<compile_context>
chip_gen: v7x
topology: tpu7x:2x2x1
jax: 0.10.0
libtpu: 0.0.40
codegen_flags: <defaults>
</compile_context>

<pallas_src>
import jax
import jax.numpy as jnp
from jax import lax
from jax.experimental import pallas as pl
from jax.experimental.pallas import tpu as pltpu


# ----------------------------------------------------------------------------
# LSTM cell (gate order i, f, g, o — matches PyTorch).
# The i/f/o gate pre-activations arrive PRE-SCALED by 0.5 (folded into the
# packed weights/biases), so sigmoid(x) == 0.5*(1 + tanh(0.5*x)) becomes a
# single tanh per gate here (1 EUP push instead of exp + reciprocal).
# ----------------------------------------------------------------------------
def _lstm_cell(gates, c, h):
    i = 0.5 + 0.5 * jnp.tanh(gates[:, 0:h])
    f = 0.5 + 0.5 * jnp.tanh(gates[:, h:2 * h])
    g = jnp.tanh(gates[:, 2 * h:3 * h])
    o = 0.5 + 0.5 * jnp.tanh(gates[:, 3 * h:4 * h])
    c_new = f * c + i * g
    h_new = o * jnp.tanh(c_new)
    return h_new, c_new


# ----------------------------------------------------------------------------
# Fused Pallas kernel: lstm1 (bi) -> lstm2 (bi) -> fc -> sigmoid
# ----------------------------------------------------------------------------
def _quadcdd_fused_kernel(
    x_ref,                                    # (T, Bp, D)
    w_ih1f_ref, b1f_ref,                      # layer-1 fwd input proj (D, 4H1)
    w_ih1b_ref, b1b_ref,                      # layer-1 bwd input proj
    whh1bd_ref,                               # block-diag [W_hh1f | W_hh1b]  (2H1, 8H1)
    w_ih2f_ref, w_hh2f_ref, b2f_ref,          # layer-2 fwd (gate-padded to 128 lanes)
    w_ih2b_ref, b2b_ref,                      # layer-2 bwd (1 step; h0=0 => no W_hh)
    fc_w_ref, fc_b_ref,                       # final Linear (rows padded to match)
    out_ref,                                  # (Bp, O)
    h1_ref, xw2_ref,                          # VMEM scratch
):
    T, Bp, D = x_ref.shape
    H1 = whh1bd_ref.shape[0] // 2
    H2p = w_hh2f_ref.shape[0]
    f32 = jnp.float32
    unroll = True if T <= 32 else 8           # T-aware unroll factor

    # ---- Layer 1 ------------------------------------------------------------
    w_ih1f = w_ih1f_ref[...]                  # (D, 4H1) — tiny, keep in vregs
    w_ih1b = w_ih1b_ref[...]
    whh1bd = whh1bd_ref[...]
    # Hoisted bias broadcasts (outside the recurrence).
    b1f_b = jnp.broadcast_to(b1f_ref[...], (Bp, 4 * H1))
    b1b_b = jnp.broadcast_to(b1b_ref[...], (Bp, 4 * H1))
    zeros1 = jnp.zeros((Bp, H1), dtype=f32)

    def in_proj1(x_t, w, b_bcast):
        # K=D input projection on the VPU (D is tiny, typically 1): one
        # lane-broadcast multiply-add per input feature instead of a K=D MXU
        # matmul; bias folded in.
        g = x_t[:, 0:1] * w[0:1, :] + b_bcast
        for d in range(1, D):                 # static unroll (D small)
            g = g + x_t[:, d:d + 1] * w[d:d + 1, :]
        return g

    # Forward and backward recurrences share one loop; the backward direction
    # walks the sequence via reverse indexing (no flips).  Their recurrent
    # matmuls are fused into a single K=2*H1 block-diagonal MXU push.
    def layer1_step(t, carry):
        hf, cf, hb, cb = carry
        tb = T - 1 - t
        hcat = jnp.concatenate([hf, hb], axis=-1)                    # (Bp, 2H1)
        g_hh = jnp.dot(hcat, whh1bd, preferred_element_type=f32)     # (Bp, 8H1)
        gates_f = in_proj1(x_ref[t], w_ih1f, b1f_b) + g_hh[:, 0:4 * H1]
        gates_b = in_proj1(x_ref[tb], w_ih1b, b1b_b) + g_hh[:, 4 * H1:8 * H1]
        hf, cf = _lstm_cell(gates_f, cf, H1)
        hb, cb = _lstm_cell(gates_b, cb, H1)
        # Write both directions straight into their 128-lane-aligned halves of
        # the shared layer-1 output buffer (no concat copy later).
        h1_ref[t, :, 0:H1] = hf
        h1_ref[tb, :, H1:2 * H1] = hb
        return hf, cf, hb, cb

    lax.fori_loop(0, T, layer1_step, (zeros1, zeros1, zeros1, zeros1),
                  unroll=unroll)

    # ---- Layer 2 forward: hoisted input projection over the whole layer-1
    # output sequence (single lane-dense K=2*H1 matmul), read straight from
    # the shared h1 buffer.
    h1_all = h1_ref[...]                                             # (T, Bp, 2H1)
    xw2_ref[...] = (
        jnp.dot(h1_all.reshape(T * Bp, 2 * H1), w_ih2f_ref[...],
                preferred_element_type=f32) + b2f_ref[...]
    ).reshape(T, Bp, 4 * H2p)

    whh2f = w_hh2f_ref[...]
    zeros2 = jnp.zeros((Bp, H2p), dtype=f32)

    def layer2_step(t, carry):
        h, c = carry
        gates = xw2_ref[t] + jnp.dot(h, whh2f, preferred_element_type=f32)
        return _lstm_cell(gates, c, H2p)

    h2f, _ = lax.fori_loop(0, T, layer2_step, (zeros2, zeros2), unroll=unroll)

    # ---- Layer 2 backward: only the output at position T-1 is needed, which
    # for the reversed direction is its first step (h0 = c0 = 0, so the
    # recurrent term vanishes and W_hh_reverse is not needed).
    gates_b2 = (
        jnp.dot(h1_ref[T - 1], w_ih2b_ref[...], preferred_element_type=f32)
        + b2b_ref[...]
    )
    h2b, _ = _lstm_cell(gates_b2, zeros2, H2p)

    # ---- Final Linear + sigmoid.  sigmoid on all 4 outputs is identical to
    # cat([sigmoid(out[:, :3]), sigmoid(out[:, 3:4])], dim=1).
    last = jnp.concatenate([h2f, h2b], axis=-1)                      # (Bp, 2*H2p)
    y = jnp.dot(last, fc_w_ref[...], preferred_element_type=f32) + fc_b_ref[...]
    out_ref[...] = jax.nn.sigmoid(y)


# ----------------------------------------------------------------------------
# Parameter packing.
#   * i/f/o gate columns pre-scaled by 0.5 (tanh-form sigmoid in the kernel).
#   * layer-2 gate blocks padded H2 -> 128 lanes; padded columns have zero
#     weights/biases, so i=f=o=0.5, g=0 => c=h stay exactly 0 (results exact).
#   * layer-1 recurrent weights packed block-diagonally for a single merged
#     fwd/bwd MXU push per step.
# ----------------------------------------------------------------------------
def _prescale_ifo(w, h):
    """Multiply the i/f/o gate blocks (trailing axis of width 4h) by 0.5."""
    lead = w.shape[:-1]
    w4 = w.reshape(lead + (4, h))
    scale = jnp.array([0.5, 0.5, 1.0, 0.5], w.dtype).reshape(
        (1,) * len(lead) + (4, 1))
    return (w4 * scale).reshape(lead + (4 * h,))


def _pad_gate_blocks(w, h, hp):
    """Zero-pad each of the 4 gate blocks of the trailing axis from h to hp."""
    if hp == h:
        return w
    lead = w.shape[:-1]
    w4 = w.reshape(lead + (4, h))
    pad_cfg = [(0, 0)] * (len(lead) + 1) + [(0, hp - h)]
    return jnp.pad(w4, pad_cfg).reshape(lead + (4 * hp,))


def _prepare_kernel_params(params):
    # ---- layer 1
    w_ih1f, w_hh1f, b1f = params["lstm1_fwd"]
    w_ih1b, w_hh1b, b1b = params["lstm1_bwd"]
    H1 = w_hh1f.shape[0]
    w_ih1f = _prescale_ifo(w_ih1f, H1)
    w_ih1b = _prescale_ifo(w_ih1b, H1)
    b1f = _prescale_ifo(b1f, H1)
    b1b = _prescale_ifo(b1b, H1)
    w_hh1f = _prescale_ifo(w_hh1f, H1)
    w_hh1b = _prescale_ifo(w_hh1b, H1)
    # block-diagonal [W_hh1f | W_hh1b]: (2H1, 8H1)
    whh1bd = jnp.zeros((2 * H1, 8 * H1), jnp.float32)
    whh1bd = whh1bd.at[:H1, :4 * H1].set(w_hh1f)
    whh1bd = whh1bd.at[H1:, 4 * H1:].set(w_hh1b)

    # ---- layer 2 (gate-padded H2 -> H2p lanes)
    w_ih2f, w_hh2f, b2f = params["lstm2_fwd"]
    w_ih2b, _w_hh2b, b2b = params["lstm2_bwd"]   # W_hh_reverse unused (h0 = 0)
    H2 = w_hh2f.shape[0]
    H2p = max(128, ((H2 + 127) // 128) * 128)
    w_ih2f_p = _pad_gate_blocks(_prescale_ifo(w_ih2f, H2), H2, H2p)
    b2f_p = _pad_gate_blocks(_prescale_ifo(b2f, H2), H2, H2p)
    w_hh2f_p = jnp.pad(_pad_gate_blocks(_prescale_ifo(w_hh2f, H2), H2, H2p),
                       ((0, H2p - H2), (0, 0)))
    w_ih2b_p = _pad_gate_blocks(_prescale_ifo(w_ih2b, H2), H2, H2p)
    b2b_p = _pad_gate_blocks(_prescale_ifo(b2b, H2), H2, H2p)

    # FC weight rows = [fwd | bwd]; pad each half's rows H2 -> H2p.
    fc_w = params["fc_w"]
    O = fc_w.shape[1]
    fc_w_p = jnp.pad(fc_w.reshape(2, H2, O), ((0, 0), (0, H2p - H2), (0, 0)))
    fc_w_p = fc_w_p.reshape(2 * H2p, O)

    return (w_ih1f, b1f, w_ih1b, b1b, whh1bd,
            w_ih2f_p, w_hh2f_p, b2f_p, w_ih2b_p, b2b_p, fc_w_p, params["fc_b"])


# ----------------------------------------------------------------------------
# Wrapper
# ----------------------------------------------------------------------------
def _padded_tile_bytes(shape):
    """f32 bytes of a shape laid out with (8, 128) last-two-dim padding."""
    s = list(shape)
    if len(s) == 1:
        s = [1, s[0]]
    s[-1] = -(-s[-1] // 128) * 128
    s[-2] = -(-s[-2] // 8) * 8
    n = 1
    for v in s:
        n *= v
    return 4 * n


def quadcdd_forward(x, params):
    """x: (batch, seq_len, input_size) float32.  Returns (batch, 4)."""
    x = x.astype(jnp.float32)
    B, T, D = x.shape
    Bp = max(8, ((B + 7) // 8) * 8)              # pad batch to f32 sublane tile
    x_t = jnp.transpose(x, (1, 0, 2))            # time-major (T, B, D)
    x_t = jnp.pad(x_t, ((0, 0), (0, Bp - B), (0, 0)))

    kparams = _prepare_kernel_params(params)
    (w_ih1f, b1f, w_ih1b, b1b, whh1bd,
     w_ih2f, w_hh2f, b2f, w_ih2b, b2b, fc_w, fc_b) = kparams

    H1 = whh1bd.shape[0] // 2
    H2p = w_hh2f.shape[0]
    O = fc_w.shape[1]

    # Explicit VMEM budget: all operands + scratch + out, with headroom,
    # capped at the v7x 64 MiB physical ceiling.
    operand_shapes = [x_t.shape, w_ih1f.shape, b1f.shape, w_ih1b.shape,
                      b1b.shape, whh1bd.shape, w_ih2f.shape, w_hh2f.shape,
                      b2f.shape, w_ih2b.shape, b2b.shape, fc_w.shape,
                      fc_b.shape, (Bp, O),
                      (T, Bp, 2 * H1), (T, Bp, 4 * H2p)]
    est = sum(_padded_tile_bytes(s) for s in operand_shapes)
    vmem_limit = int(min(max(2 * est + (8 << 20), 32 << 20), 64 << 20))

    vmem = pl.BlockSpec(memory_space=pltpu.MemorySpace.VMEM)
    out = pl.pallas_call(
        _quadcdd_fused_kernel,
        out_shape=jax.ShapeDtypeStruct((Bp, O), jnp.float32),
        in_specs=[vmem] * 13,
        out_specs=vmem,
        scratch_shapes=[
            pltpu.VMEM((T, Bp, 2 * H1), jnp.float32),    # layer-1 output sequence
            pltpu.VMEM((T, Bp, 4 * H2p), jnp.float32),   # hoisted h1 @ W_ih (layer-2 fwd)
        ],
        compiler_params=pltpu.CompilerParams(vmem_limit_bytes=vmem_limit),
    )(x_t, w_ih1f, b1f, w_ih1b, b1b, whh1bd,
      w_ih2f, w_hh2f, b2f, w_ih2b, b2b, fc_w, fc_b)
    return out[:B]


# ----------------------------------------------------------------------------
# Deterministic parameter init (PyTorch-style uniform(-1/sqrt(H), 1/sqrt(H)));
# weights stored transposed (D, 4H) vs PyTorch's (4H, D); b = b_ih + b_hh.
# ----------------------------------------------------------------------------
def _init_lstm_dir(key, d_in, hidden):
    scale = 1.0 / jnp.sqrt(hidden)
    k1, k2, k3, k4 = jax.random.split(key, 4)
    w_ih = jax.random.uniform(k1, (d_in, 4 * hidden), jnp.float32, -scale, scale)
    w_hh = jax.random.uniform(k2, (hidden, 4 * hidden), jnp.float32, -scale, scale)
    b_ih = jax.random.uniform(k3, (4 * hidden,), jnp.float32, -scale, scale)
    b_hh = jax.random.uniform(k4, (4 * hidden,), jnp.float32, -scale, scale)
    bias = (b_ih + b_hh).reshape(1, 4 * hidden)
    return (w_ih, w_hh, bias)


def init_params(key, input_size=1, hidden_size_1=128, hidden_size_2=64, output_size=4):
    keys = jax.random.split(key, 6)
    params = {
        "lstm1_fwd": _init_lstm_dir(keys[0], input_size, hidden_size_1),
        "lstm1_bwd": _init_lstm_dir(keys[1], input_size, hidden_size_1),
        "lstm2_fwd": _init_lstm_dir(keys[2], 2 * hidden_size_1, hidden_size_2),
        "lstm2_bwd": _init_lstm_dir(keys[3], 2 * hidden_size_1, hidden_size_2),
    }
    fc_scale = 1.0 / jnp.sqrt(2 * hidden_size_2)
    params["fc_w"] = jax.random.uniform(
        keys[4], (2 * hidden_size_2, output_size), jnp.float32, -fc_scale, fc_scale
    )
    params["fc_b"] = jax.random.uniform(
        keys[5], (1, output_size), jnp.float32, -fc_scale, fc_scale
    )
    return params


# ----------------------------------------------------------------------------
# Pure-JAX reference (full bidirectional LSTMs, flip-run-flip) for validation.
# Uses the ORIGINAL (un-prescaled, un-padded) parameters.
# ----------------------------------------------------------------------------
def _lstm_dir_ref(x_tbd, w_ih, w_hh, bias, reverse=False):
    H = w_hh.shape[0]
    xs = jnp.flip(x_tbd, axis=0) if reverse else x_tbd

    def step(carry, x_t):
        h, c = carry
        gates = x_t @ w_ih + h @ w_hh + bias
        i = jax.nn.sigmoid(gates[:, :H])
        f = jax.nn.sigmoid(gates[:, H:2 * H])
        g = jnp.tanh(gates[:, 2 * H:3 * H])
        o = jax.nn.sigmoid(gates[:, 3 * H:4 * H])
        c = f * c + i * g
        h = o * jnp.tanh(c)
        return (h, c), h

    h0 = jnp.zeros((x_tbd.shape[1], H), jnp.float32)
    _, hs = lax.scan(step, (h0, h0), xs)
    return jnp.flip(hs, axis=0) if reverse else hs


def quadcdd_forward_ref(x, params):
    x_t = jnp.transpose(x.astype(jnp.float32), (1, 0, 2))
    h1 = jnp.concatenate(
        [_lstm_dir_ref(x_t, *params["lstm1_fwd"]),
         _lstm_dir_ref(x_t, *params["lstm1_bwd"], reverse=True)], axis=-1)
    h2 = jnp.concatenate(
        [_lstm_dir_ref(h1, *params["lstm2_fwd"]),
         _lstm_dir_ref(h1, *params["lstm2_bwd"], reverse=True)], axis=-1)
    y = h2[-1] @ params["fc_w"] + params["fc_b"]
    return jax.nn.sigmoid(y)


# ----------------------------------------------------------------------------
if __name__ == "__main__":
    key = jax.random.PRNGKey(0)
    k_param, k_x = jax.random.split(key)

    batch, seq_len, input_size = 2, 8, 1
    params = init_params(k_param, input_size=input_size)
    x = jax.random.normal(k_x, (batch, seq_len, input_size), dtype=jnp.float32)

    fwd = jax.jit(quadcdd_forward)
    out = jax.block_until_ready(fwd(x, params))
    assert out.shape == (batch, 4)
    assert bool(jnp.all(jnp.isfinite(out)))

    ref = jax.block_until_ready(quadcdd_forward_ref(x, params))
    assert bool(jnp.allclose(out, ref, atol=1e-3, rtol=1e-3)), (out, ref)

    print("KERNEL_OK")
</pallas_src>

<mosaic_0001>
module attributes {stable_mosaic.version = 11 : i64} {
  func.func @_quadcdd_fused_kernel(%arg0: memref<8x8x1xf32, #tpu.memory_space<vmem>>, %arg1: memref<1x512xf32, #tpu.memory_space<vmem>>, %arg2: memref<1x512xf32, #tpu.memory_space<vmem>>, %arg3: memref<1x512xf32, #tpu.memory_space<vmem>>, %arg4: memref<1x512xf32, #tpu.memory_space<vmem>>, %arg5: memref<256x1024xf32, #tpu.memory_space<vmem>>, %arg6: memref<256x512xf32, #tpu.memory_space<vmem>>, %arg7: memref<128x512xf32, #tpu.memory_space<vmem>>, %arg8: memref<1x512xf32, #tpu.memory_space<vmem>>, %arg9: memref<256x512xf32, #tpu.memory_space<vmem>>, %arg10: memref<1x512xf32, #tpu.memory_space<vmem>>, %arg11: memref<256x4xf32, #tpu.memory_space<vmem>>, %arg12: memref<1x4xf32, #tpu.memory_space<vmem>>, %arg13: memref<8x4xf32, #tpu.memory_space<vmem>>, %arg14: memref<8x8x256xf32, #tpu.memory_space<vmem>>, %arg15: memref<8x8x512xf32, #tpu.memory_space<vmem>>) attributes {dimension_semantics = [], scalar_prefetch = 0 : i64, scratch_operands = 2 : i64, tpu.core_type = #tpu.core_type<tc>} {
    %c0 = arith.constant 0 : index
    %c0_0 = arith.constant 0 : index
    %0 = vector.load %arg1[%c0, %c0_0] : memref<1x512xf32, #tpu.memory_space<vmem>>, vector<1x512xf32>
    %c0_1 = arith.constant 0 : index
    %c0_2 = arith.constant 0 : index
    %1 = vector.load %arg3[%c0_1, %c0_2] : memref<1x512xf32, #tpu.memory_space<vmem>>, vector<1x512xf32>
    %c0_3 = arith.constant 0 : index
    %c0_4 = arith.constant 0 : index
    %2 = vector.load %arg5[%c0_3, %c0_4] : memref<256x1024xf32, #tpu.memory_space<vmem>>, vector<256x1024xf32>
    %c0_5 = arith.constant 0 : index
    %c0_6 = arith.constant 0 : index
    %3 = vector.load %arg2[%c0_5, %c0_6] : memref<1x512xf32, #tpu.memory_space<vmem>>, vector<1x512xf32>
    %4 = vector.shape_cast %3 : vector<1x512xf32> to vector<1x512xf32>
    %5 = vector.broadcast %4 : vector<1x512xf32> to vector<8x512xf32>
    %c0_7 = arith.constant 0 : index
    %c0_8 = arith.constant 0 : index
    %6 = vector.load %arg4[%c0_7, %c0_8] : memref<1x512xf32, #tpu.memory_space<vmem>>, vector<1x512xf32>
    %7 = vector.shape_cast %6 : vector<1x512xf32> to vector<1x512xf32>
    %8 = vector.broadcast %7 : vector<1x512xf32> to vector<8x512xf32>
    %cst = arith.constant 0.000000e+00 : f32
    %9 = vector.broadcast %cst : f32 to vector<8x128xf32>
    %c0_i32 = arith.constant 0 : i32
    %c7_i32 = arith.constant 7 : i32
    %10 = arith.subi %c7_i32, %c0_i32 : i32
    %11 = tpu.concatenate %9, %9 in 1 : vector<8x128xf32>, vector<8x128xf32> -> vector<8x256xf32>
    %cst_9 = arith.constant dense<0.000000e+00> : vector<8x1024xf32>
    %12 = tpu.matmul %11, %2, %cst_9 {dimension_numbers = #tpu.dot_dimension_numbers<[1], [0], [0], [1], [0, 0, 1, 1], [], []>} : vector<8x256xf32>, vector<256x1024xf32>, vector<8x1024xf32> -> vector<8x1024xf32>
    %13 = arith.index_cast %c0_i32 : i32 to index
    %c0_10 = arith.constant 0 : index
    %c0_11 = arith.constant 0 : index
    %14 = vector.load %arg0[%13, %c0_10, %c0_11] : memref<8x8x1xf32, #tpu.memory_space<vmem>>, vector<1x8x1xf32>
    %15 = vector.shape_cast %14 : vector<1x8x1xf32> to vector<8x1xf32>
    %16 = vector.broadcast %15 : vector<8x1xf32> to vector<8x512xf32>
    %17 = vector.broadcast %0 : vector<1x512xf32> to vector<8x512xf32>
    %18 = arith.mulf %16, %17 : vector<8x512xf32>
    %19 = arith.addf %18, %5 : vector<8x512xf32>
    %20 = vector.extract_strided_slice %12 {offsets = [0, 0], sizes = [8, 512], strides = [1, 1]} : vector<8x1024xf32> to vector<8x512xf32>
    %21 = arith.addf %19, %20 : vector<8x512xf32>
    %22 = arith.index_cast %10 : i32 to index
    %c0_12 = arith.constant 0 : index
    %c0_13 = arith.constant 0 : index
    %23 = vector.load %arg0[%22, %c0_12, %c0_13] : memref<8x8x1xf32, #tpu.memory_space<vmem>>, vector<1x8x1xf32>
    %24 = vector.shape_cast %23 : vector<1x8x1xf32> to vector<8x1xf32>
    %25 = vector.broadcast %24 : vector<8x1xf32> to vector<8x512xf32>
    %26 = vector.broadcast %1 : vector<1x512xf32> to vector<8x512xf32>
    %27 = arith.mulf %25, %26 : vector<8x512xf32>
    %28 = arith.addf %27, %8 : vector<8x512xf32>
    %29 = vector.extract_strided_slice %12 {offsets = [0, 512], sizes = [8, 512], strides = [1, 1]} : vector<8x1024xf32> to vector<8x512xf32>
    %30 = arith.addf %28, %29 : vector<8x512xf32>
    %31 = vector.extract_strided_slice %21 {offsets = [0, 0], sizes = [8, 128], strides = [1, 1]} : vector<8x512xf32> to vector<8x128xf32>
    %32 = math.tanh %31 : vector<8x128xf32>
    %cst_14 = arith.constant 5.000000e-01 : f32
    %33 = vector.broadcast %cst_14 : f32 to vector<8x128xf32>
    %34 = arith.mulf %33, %32 : vector<8x128xf32>
    %cst_15 = arith.constant 5.000000e-01 : f32
    %35 = vector.broadcast %cst_15 : f32 to vector<8x128xf32>
    %36 = arith.addf %35, %34 : vector<8x128xf32>
    %37 = vector.extract_strided_slice %21 {offsets = [0, 128], sizes = [8, 128], strides = [1, 1]} : vector<8x512xf32> to vector<8x128xf32>
    %38 = math.tanh %37 : vector<8x128xf32>
    %cst_16 = arith.constant 5.000000e-01 : f32
    %39 = vector.broadcast %cst_16 : f32 to vector<8x128xf32>
    %40 = arith.mulf %39, %38 : vector<8x128xf32>
    %cst_17 = arith.constant 5.000000e-01 : f32
    %41 = vector.broadcast %cst_17 : f32 to vector<8x128xf32>
    %42 = arith.addf %41, %40 : vector<8x128xf32>
    %43 = vector.extract_strided_slice %21 {offsets = [0, 256], sizes = [8, 128], strides = [1, 1]} : vector<8x512xf32> to vector<8x128xf32>
    %44 = math.tanh %43 : vector<8x128xf32>
    %45 = vector.extract_strided_slice %21 {offsets = [0, 384], sizes = [8, 128], strides = [1, 1]} : vector<8x512xf32> to vector<8x128xf32>
    %46 = math.tanh %45 : vector<8x128xf32>
    %cst_18 = arith.constant 5.000000e-01 : f32
    %47 = vector.broadcast %cst_18 : f32 to vector<8x128xf32>
    %48 = arith.mulf %47, %46 : vector<8x128xf32>
    %cst_19 = arith.constant 5.000000e-01 : f32
    %49 = vector.broadcast %cst_19 : f32 to vector<8x128xf32>
    %50 = arith.addf %49, %48 : vector<8x128xf32>
    %51 = arith.mulf %42, %9 : vector<8x128xf32>
    %52 = arith.mulf %36, %44 : vector<8x128xf32>
    %53 = arith.addf %51, %52 : vector<8x128xf32>
    %54 = math.tanh %53 : vector<8x128xf32>
    %55 = arith.mulf %50, %54 : vector<8x128xf32>
    %56 = vector.extract_strided_slice %30 {offsets = [0, 0], sizes = [8, 128], strides = [1, 1]} : vector<8x512xf32> to vector<8x128xf32>
    %57 = math.tanh %56 : vector<8x128xf32>
    %cst_20 = arith.constant 5.000000e-01 : f32
    %58 = vector.broadcast %cst_20 : f32 to vector<8x128xf32>
    %59 = arith.mulf %58, %57 : vector<8x128xf32>
    %cst_21 = arith.constant 5.000000e-01 : f32
    %60 = vector.broadcast %cst_21 : f32 to vector<8x128xf32>
    %61 = arith.addf %60, %59 : vector<8x128xf32>
    %62 = vector.extract_strided_slice %30 {offsets = [0, 128], sizes = [8, 128], strides = [1, 1]} : vector<8x512xf32> to vector<8x128xf32>
    %63 = math.tanh %62 : vector<8x128xf32>
    %cst_22 = arith.constant 5.000000e-01 : f32
    %64 = vector.broadcast %cst_22 : f32 to vector<8x128xf32>
    %65 = arith.mulf %64, %63 : vector<8x128xf32>
    %cst_23 = arith.constant 5.000000e-01 : f32
    %66 = vector.broadcast %cst_23 : f32 to vector<8x128xf32>
    %67 = arith.addf %66, %65 : vector<8x128xf32>
    %68 = vector.extract_strided_slice %30 {offsets = [0, 256], sizes = [8, 128], strides = [1, 1]} : vector<8x512xf32> to vector<8x128xf32>
    %69 = math.tanh %68 : vector<8x128xf32>
    %70 = vector.extract_strided_slice %30 {offsets = [0, 384], sizes = [8, 128], strides = [1, 1]} : vector<8x512xf32> to vector<8x128xf32>
    %71 = math.tanh %70 : vector<8x128xf32>
    %cst_24 = arith.constant 5.000000e-01 : f32
    %72 = vector.broadcast %cst_24 : f32 to vector<8x128xf32>
    %73 = arith.mulf %72, %71 : vector<8x128xf32>
    %cst_25 = arith.constant 5.000000e-01 : f32
    %74 = vector.broadcast %cst_25 : f32 to vector<8x128xf32>
    %75 = arith.addf %74, %73 : vector<8x128xf32>
    %76 = arith.mulf %67, %9 : vector<8x128xf32>
    %77 = arith.mulf %61, %69 : vector<8x128xf32>
    %78 = arith.addf %76, %77 : vector<8x128xf32>
    %79 = math.tanh %78 : vector<8x128xf32>
    %80 = arith.mulf %75, %79 : vector<8x128xf32>
    %81 = arith.index_cast %c0_i32 : i32 to index
    %c0_26 = arith.constant 0 : index
    %c0_27 = arith.constant 0 : index
    %82 = vector.load %arg14[%81, %c0_26, %c0_27] : memref<8x8x256xf32, #tpu.memory_space<vmem>>, vector<1x8x128xf32>
    %83 = vector.shape_cast %82 : vector<1x8x128xf32> to vector<8x128xf32>
    %84 = vector.shape_cast %55 : vector<8x128xf32> to vector<1x8x128xf32>
    tpu.vector_store %arg14[%81, %c0_26, %c0_27], %84 {strides = array<i32>} : memref<8x8x256xf32, #tpu.memory_space<vmem>>, vector<1x8x128xf32>,
    %85 = arith.index_cast %10 : i32 to index
    %c0_28 = arith.constant 0 : index
    %c128 = arith.constant 128 : index
    %86 = vector.load %arg14[%85, %c0_28, %c128] : memref<8x8x256xf32, #tpu.memory_space<vmem>>, vector<1x8x128xf32>
    %87 = vector.shape_cast %86 : vector<1x8x128xf32> to vector<8x128xf32>
    %88 = vector.shape_cast %80 : vector<8x128xf32> to vector<1x8x128xf32>
    tpu.vector_store %arg14[%85, %c0_28, %c128], %88 {strides = array<i32>} : memref<8x8x256xf32, #tpu.memory_space<vmem>>, vector<1x8x128xf32>,
    %c1_i32 = arith.constant 1 : i32
    %c7_i32_29 = arith.constant 7 : i32
    %89 = arith.subi %c7_i32_29, %c1_i32 : i32
    %90 = tpu.concatenate %55, %80 in 1 : vector<8x128xf32>, vector<8x128xf32> -> vector<8x256xf32>
    %cst_30 = arith.constant dense<0.000000e+00> : vector<8x1024xf32>
    %91 = tpu.matmul %90, %2, %cst_30 {dimension_numbers = #tpu.dot_dimension_numbers<[1], [0], [0], [1], [0, 0, 1, 1], [], []>} : vector<8x256xf32>, vector<256x1024xf32>, vector<8x1024xf32> -> vector<8x1024xf32>
    %92 = arith.index_cast %c1_i32 : i32 to index
    %c0_31 = arith.constant 0 : index
    %c0_32 = arith.constant 0 : index
    %93 = vector.load %arg0[%92, %c0_31, %c0_32] : memref<8x8x1xf32, #tpu.memory_space<vmem>>, vector<1x8x1xf32>
    %94 = vector.shape_cast %93 : vector<1x8x1xf32> to vector<8x1xf32>
    %95 = vector.broadcast %94 : vector<8x1xf32> to vector<8x512xf32>
    %96 = vector.broadcast %0 : vector<1x512xf32> to vector<8x512xf32>
    %97 = arith.mulf %95, %96 : vector<8x512xf32>
    %98 = arith.addf %97, %5 : vector<8x512xf32>
    %99 = vector.extract_strided_slice %91 {offsets = [0, 0], sizes = [8, 512], strides = [1, 1]} : vector<8x1024xf32> to vector<8x512xf32>
    %100 = arith.addf %98, %99 : vector<8x512xf32>
    %101 = arith.index_cast %89 : i32 to index
    %c0_33 = arith.constant 0 : index
    %c0_34 = arith.constant 0 : index
    %102 = vector.load %arg0[%101, %c0_33, %c0_34] : memref<8x8x1xf32, #tpu.memory_space<vmem>>, vector<1x8x1xf32>
    %103 = vector.shape_cast %102 : vector<1x8x1xf32> to vector<8x1xf32>
    %104 = vector.broadcast %103 : vector<8x1xf32> to vector<8x512xf32>
    %105 = vector.broadcast %1 : vector<1x512xf32> to vector<8x512xf32>
    %106 = arith.mulf %104, %105 : vector<8x512xf32>
    %107 = arith.addf %106, %8 : vector<8x512xf32>
    %108 = vector.extract_strided_slice %91 {offsets = [0, 512], sizes = [8, 512], strides = [1, 1]} : vector<8x1024xf32> to vector<8x512xf32>
    %109 = arith.addf %107, %108 : vector<8x512xf32>
    %110 = vector.extract_strided_slice %100 {offsets = [0, 0], sizes = [8, 128], strides = [1, 1]} : vector<8x512xf32> to vector<8x128xf32>
    %111 = math.tanh %110 : vector<8x128xf32>
    %cst_35 = arith.constant 5.000000e-01 : f32
    %112 = vector.broadcast %cst_35 : f32 to vector<8x128xf32>
    %113 = arith.mulf %112, %111 : vector<8x128xf32>
    %cst_36 = arith.constant 5.000000e-01 : f32
    %114 = vector.broadcast %cst_36 : f32 to vector<8x128xf32>
    %115 = arith.addf %114, %113 : vector<8x128xf32>
    %116 = vector.extract_strided_slice %100 {offsets = [0, 128], sizes = [8, 128], strides = [1, 1]} : vector<8x512xf32> to vector<8x128xf32>
    %117 = math.tanh %116 : vector<8x128xf32>
    %cst_37 = arith.constant 5.000000e-01 : f32
    %118 = vector.broadcast %cst_37 : f32 to vector<8x128xf32>
    %119 = arith.mulf %118, %117 : vector<8x128xf32>
    %cst_38 = arith.constant 5.000000e-01 : f32
    %120 = vector.broadcast %cst_38 : f32 to vector<8x128xf32>
    %121 = arith.addf %120, %119 : vector<8x128xf32>
    %122 = vector.extract_strided_slice %100 {offsets = [0, 256], sizes = [8, 128], strides = [1, 1]} : vector<8x512xf32> to vector<8x128xf32>
    %123 = math.tanh %122 : vector<8x128xf32>
    %124 = vector.extract_strided_slice %100 {offsets = [0, 384], sizes = [8, 128], strides = [1, 1]} : vector<8x512xf32> to vector<8x128xf32>
    %125 = math.tanh %124 : vector<8x128xf32>
    %cst_39 = arith.constant 5.000000e-01 : f32
    %126 = vector.broadcast %cst_39 : f32 to vector<8x128xf32>
    %127 = arith.mulf %126, %125 : vector<8x128xf32>
    %cst_40 = arith.constant 5.000000e-01 : f32
    %128 = vector.broadcast %cst_40 : f32 to vector<8x128xf32>
    %129 = arith.addf %128, %127 : vector<8x128xf32>
    %130 = arith.mulf %121, %53 : vector<8x128xf32>
    %131 = arith.mulf %115, %123 : vector<8x128xf32>
    %132 = arith.addf %130, %131 : vector<8x128xf32>
    %133 = math.tanh %132 : vector<8x128xf32>
    %134 = arith.mulf %129, %133 : vector<8x128xf32>
    %135 = vector.extract_strided_slice %109 {offsets = [0, 0], sizes = [8, 128], strides = [1, 1]} : vector<8x512xf32> to vector<8x128xf32>
    %136 = math.tanh %135 : vector<8x128xf32>
    %cst_41 = arith.constant 5.000000e-01 : f32
    %137 = vector.broadcast %cst_41 : f32 to vector<8x128xf32>
    %138 = arith.mulf %137, %136 : vector<8x128xf32>
    %cst_42 = arith.constant 5.000000e-01 : f32
    %139 = vector.broadcast %cst_42 : f32 to vector<8x128xf32>
    %140 = arith.addf %139, %138 : vector<8x128xf32>
    %141 = vector.extract_strided_slice %109 {offsets = [0, 128], sizes = [8, 128], strides = [1, 1]} : vector<8x512xf32> to vector<8x128xf32>
    %142 = math.tanh %141 : vector<8x128xf32>
    %cst_43 = arith.constant 5.000000e-01 : f32
    %143 = vector.broadcast %cst_43 : f32 to vector<8x128xf32>
    %144 = arith.mulf %143, %142 : vector<8x128xf32>
    %cst_44 = arith.constant 5.000000e-01 : f32
    %145 = vector.broadcast %cst_44 : f32 to vector<8x128xf32>
    %146 = arith.addf %145, %144 : vector<8x128xf32>
    %147 = vector.extract_strided_slice %109 {offsets = [0, 256], sizes = [8, 128], strides = [1, 1]} : vector<8x512xf32> to vector<8x128xf32>
    %148 = math.tanh %147 : vector<8x128xf32>
    %149 = vector.extract_strided_slice %109 {offsets = [0, 384], sizes = [8, 128], strides = [1, 1]} : vector<8x512xf32> to vector<8x128xf32>
    %150 = math.tanh %149 : vector<8x128xf32>
    %cst_45 = arith.constant 5.000000e-01 : f32
    %151 = vector.broadcast %cst_45 : f32 to vector<8x128xf32>
    %152 = arith.mulf %151, %150 : vector<8x128xf32>
    %cst_46 = arith.constant 5.000000e-01 : f32
    %153 = vector.broadcast %cst_46 : f32 to vector<8x128xf32>
    %154 = arith.addf %153, %152 : vector<8x128xf32>
    %155 = arith.mulf %146, %78 : vector<8x128xf32>
    %156 = arith.mulf %140, %148 : vector<8x128xf32>
    %157 = arith.addf %155, %156 : vector<8x128xf32>
    %158 = math.tanh %157 : vector<8x128xf32>
    %159 = arith.mulf %154, %158 : vector<8x128xf32>
    %160 = arith.index_cast %c1_i32 : i32 to index
    %c0_47 = arith.constant 0 : index
    %c0_48 = arith.constant 0 : index
    %161 = vector.load %arg14[%160, %c0_47, %c0_48] : memref<8x8x256xf32, #tpu.memory_space<vmem>>, vector<1x8x128xf32>
    %162 = vector.shape_cast %161 : vector<1x8x128xf32> to vector<8x128xf32>
    %163 = vector.shape_cast %134 : vector<8x128xf32> to vector<1x8x128xf32>
    tpu.vector_store %arg14[%160, %c0_47, %c0_48], %163 {strides = array<i32>} : memref<8x8x256xf32, #tpu.memory_space<vmem>>, vector<1x8x128xf32>,
    %164 = arith.index_cast %89 : i32 to index
    %c0_49 = arith.constant 0 : index
    %c128_50 = arith.constant 128 : index
    %165 = vector.load %arg14[%164, %c0_49, %c128_50] : memref<8x8x256xf32, #tpu.memory_space<vmem>>, vector<1x8x128xf32>
    %166 = vector.shape_cast %165 : vector<1x8x128xf32> to vector<8x128xf32>
    %167 = vector.shape_cast %159 : vector<8x128xf32> to vector<1x8x128xf32>
    tpu.vector_store %arg14[%164, %c0_49, %c128_50], %167 {strides = array<i32>} : memref<8x8x256xf32, #tpu.memory_space<vmem>>, vector<1x8x128xf32>,
    %c2_i32 = arith.constant 2 : i32
    %c7_i32_51 = arith.constant 7 : i32
    %168 = arith.subi %c7_i32_51, %c2_i32 : i32
    %169 = tpu.concatenate %134, %159 in 1 : vector<8x128xf32>, vector<8x128xf32> -> vector<8x256xf32>
    %cst_52 = arith.constant dense<0.000000e+00> : vector<8x1024xf32>
    %170 = tpu.matmul %169, %2, %cst_52 {dimension_numbers = #tpu.dot_dimension_numbers<[1], [0], [0], [1], [0, 0, 1, 1], [], []>} : vector<8x256xf32>, vector<256x1024xf32>, vector<8x1024xf32> -> vector<8x1024xf32>
    %171 = arith.index_cast %c2_i32 : i32 to index
    %c0_53 = arith.constant 0 : index
    %c0_54 = arith.constant 0 : index
    %172 = vector.load %arg0[%171, %c0_53, %c0_54] : memref<8x8x1xf32, #tpu.memory_space<vmem>>, vector<1x8x1xf32>
    %173 = vector.shape_cast %172 : vector<1x8x1xf32> to vector<8x1xf32>
    %174 = vector.broadcast %173 : vector<8x1xf32> to vector<8x512xf32>
    %175 = vector.broadcast %0 : vector<1x512xf32> to vector<8x512xf32>
    %176 = arith.mulf %174, %175 : vector<8x512xf32>
    %177 = arith.addf %176, %5 : vector<8x512xf32>
    %178 = vector.extract_strided_slice %170 {offsets = [0, 0], sizes = [8, 512], strides = [1, 1]} : vector<8x1024xf32> to vector<8x512xf32>
    %179 = arith.addf %177, %178 : vector<8x512xf32>
    %180 = arith.index_cast %168 : i32 to index
    %c0_55 = arith.constant 0 : index
    %c0_56 = arith.constant 0 : index
    %181 = vector.load %arg0[%180, %c0_55, %c0_56] : memref<8x8x1xf32, #tpu.memory_space<vmem>>, vector<1x8x1xf32>
    %182 = vector.shape_cast %181 : vector<1x8x1xf32> to vector<8x1xf32>
    %183 = vector.broadcast %182 : vector<8x1xf32> to vector<8x512xf32>
    %184 = vector.broadcast %1 : vector<1x512xf32> to vector<8x512xf32>
    %185 = arith.mulf %183, %184 : vector<8x512xf32>
    %186 = arith.addf %185, %8 : vector<8x512xf32>
    %187 = vector.extract_strided_slice %170 {offsets = [0, 512], sizes = [8, 512], strides = [1, 1]} : vector<8x1024xf32> to vector<8x512xf32>
    %188 = arith.addf %186, %187 : vector<8x512xf32>
    %189 = vector.extract_strided_slice %179 {offsets = [0, 0], sizes = [8, 128], strides = [1, 1]} : vector<8x512xf32> to vector<8x128xf32>
    %190 = math.tanh %189 : vector<8x128xf32>
    %cst_57 = arith.constant 5.000000e-01 : f32
    %191 = vector.broadcast %cst_57 : f32 to vector<8x128xf32>
    %192 = arith.mulf %191, %190 : vector<8x128xf32>
    %cst_58 = arith.constant 5.000000e-01 : f32
    %193 = vector.broadcast %cst_58 : f32 to vector<8x128xf32>
    %194 = arith.addf %193, %192 : vector<8x128xf32>
    %195 = vector.extract_strided_slice %179 {offsets = [0, 128], sizes = [8, 128], strides = [1, 1]} : vector<8x512xf32> to vector<8x128xf32>
    %196 = math.tanh %195 : vector<8x128xf32>
    %cst_59 = arith.constant 5.000000e-01 : f32
    %197 = vector.broadcast %cst_59 : f32 to vector<8x128xf32>
    %198 = arith.mulf %197, %196 : vector<8x128xf32>
    %cst_60 = arith.constant 5.000000e-01 : f32
    %199 = vector.broadcast %cst_60 : f32 to vector<8x128xf32>
    %200 = arith.addf %199, %198 : vector<8x128xf32>
    %201 = vector.extract_strided_slice %179 {offsets = [0, 256], sizes = [8, 128], strides = [1, 1]} : vector<8x512xf32> to vector<8x128xf32>
    %202 = math.tanh %201 : vector<8x128xf32>
    %203 = vector.extract_strided_slice %179 {offsets = [0, 384], sizes = [8, 128], strides = [1, 1]} : vector<8x512xf32> to vector<8x128xf32>
    %204 = math.tanh %203 : vector<8x128xf32>
    %cst_61 = arith.constant 5.000000e-01 : f32
    %205 = vector.broadcast %cst_61 : f32 to vector<8x128xf32>
    %206 = arith.mulf %205, %204 : vector<8x128xf32>
    %cst_62 = arith.constant 5.000000e-01 : f32
    %207 = vector.broadcast %cst_62 : f32 to vector<8x128xf32>
    %208 = arith.addf %207, %206 : vector<8x128xf32>
    %209 = arith.mulf %200, %132 : vector<8x128xf32>
    %210 = arith.mulf %194, %202 : vector<8x128xf32>
    %211 = arith.addf %209, %210 : vector<8x128xf32>
    %212 = math.tanh %211 : vector<8x128xf32>
    %213 = arith.mulf %208, %212 : vector<8x128xf32>
    %214 = vector.extract_strided_slice %188 {offsets = [0, 0], sizes = [8, 128], strides = [1, 1]} : vector<8x512xf32> to vector<8x128xf32>
    %215 = math.tanh %214 : vector<8x128xf32>
    %cst_63 = arith.constant 5.000000e-01 : f32
    %216 = vector.broadcast %cst_63 : f32 to vector<8x128xf32>
    %217 = arith.mulf %216, %215 : vector<8x128xf32>
    %cst_64 = arith.constant 5.000000e-01 : f32
    %218 = vector.broadcast %cst_64 : f32 to vector<8x128xf32>
    %219 = arith.addf %218, %217 : vector<8x128xf32>
    %220 = vector.extract_strided_slice %188 {offsets = [0, 128], sizes = [8, 128], strides = [1, 1]} : vector<8x512xf32> to vector<8x128xf32>
    %221 = math.tanh %220 : vector<8x128xf32>
    %cst_65 = arith.constant 5.000000e-01 : f32
    %222 = vector.broadcast %cst_65 : f32 to vector<8x128xf32>
    %223 = arith.mulf %222, %221 : vector<8x128xf32>
    %cst_66 = arith.constant 5.000000e-01 : f32
    %224 = vector.broadcast %cst_66 : f32 to vector<8x128xf32>
    %225 = arith.addf %224, %223 : vector<8x128xf32>
    %226 = vector.extract_strided_slice %188 {offsets = [0, 256], sizes = [8, 128], strides = [1, 1]} : vector<8x512xf32> to vector<8x128xf32>
    %227 = math.tanh %226 : vector<8x128xf32>
    %228 = vector.extract_strided_slice %188 {offsets = [0, 384], sizes = [8, 128], strides = [1, 1]} : vector<8x512xf32> to vector<8x128xf32>
    %229 = math.tanh %228 : vector<8x128xf32>
    %cst_67 = arith.constant 5.000000e-01 : f32
    %230 = vector.broadcast %cst_67 : f32 to vector<8x128xf32>
    %231 = arith.mulf %230, %229 : vector<8x128xf32>
    %cst_68 = arith.constant 5.000000e-01 : f32
    %232 = vector.broadcast %cst_68 : f32 to vector<8x128xf32>
    %233 = arith.addf %232, %231 : vector<8x128xf32>
    %234 = arith.mulf %225, %157 : vector<8x128xf32>
    %235 = arith.mulf %219, %227 : vector<8x128xf32>
    %236 = arith.addf %234, %235 : vector<8x128xf32>
    %237 = math.tanh %236 : vector<8x128xf32>
    %238 = arith.mulf %233, %237 : vector<8x128xf32>
    %239 = arith.index_cast %c2_i32 : i32 to index
    %c0_69 = arith.constant 0 : index
    %c0_70 = arith.constant 0 : index
    %240 = vector.load %arg14[%239, %c0_69, %c0_70] : memref<8x8x256xf32, #tpu.memory_space<vmem>>, vector<1x8x128xf32>
    %241 = vector.shape_cast %240 : vector<1x8x128xf32> to vector<8x128xf32>
    %242 = vector.shape_cast %213 : vector<8x128xf32> to vector<1x8x128xf32>
    tpu.vector_store %arg14[%239, %c0_69, %c0_70], %242 {strides = array<i32>} : memref<8x8x256xf32, #tpu.memory_space<vmem>>, vector<1x8x128xf32>,
    %243 = arith.index_cast %168 : i32 to index
    %c0_71 = arith.constant 0 : index
    %c128_72 = arith.constant 128 : index
    %244 = vector.load %arg14[%243, %c0_71, %c128_72] : memref<8x8x256xf32, #tpu.memory_space<vmem>>, vector<1x8x128xf32>
    %245 = vector.shape_cast %244 : vector<1x8x128xf32> to vector<8x128xf32>
    %246 = vector.shape_cast %238 : vector<8x128xf32> to vector<1x8x128xf32>
    tpu.vector_store %arg14[%243, %c0_71, %c128_72], %246 {strides = array<i32>} : memref<8x8x256xf32, #tpu.memory_space<vmem>>, vector<1x8x128xf32>,
    %c3_i32 = arith.constant 3 : i32
    %c7_i32_73 = arith.constant 7 : i32
    %247 = arith.subi %c7_i32_73, %c3_i32 : i32
    %248 = tpu.concatenate %213, %238 in 1 : vector<8x128xf32>, vector<8x128xf32> -> vector<8x256xf32>
    %cst_74 = arith.constant dense<0.000000e+00> : vector<8x1024xf32>
    %249 = tpu.matmul %248, %2, %cst_74 {dimension_numbers = #tpu.dot_dimension_numbers<[1], [0], [0], [1], [0, 0, 1, 1], [], []>} : vector<8x256xf32>, vector<256x1024xf32>, vector<8x1024xf32> -> vector<8x1024xf32>
    %250 = arith.index_cast %c3_i32 : i32 to index
    %c0_75 = arith.constant 0 : index
    %c0_76 = arith.constant 0 : index
    %251 = vector.load %arg0[%250, %c0_75, %c0_76] : memref<8x8x1xf32, #tpu.memory_space<vmem>>, vector<1x8x1xf32>
    %252 = vector.shape_cast %251 : vector<1x8x1xf32> to vector<8x1xf32>
    %253 = vector.broadcast %252 : vector<8x1xf32> to vector<8x512xf32>
    %254 = vector.broadcast %0 : vector<1x512xf32> to vector<8x512xf32>
    %255 = arith.mulf %253, %254 : vector<8x512xf32>
    %256 = arith.addf %255, %5 : vector<8x512xf32>
    %257 = vector.extract_strided_slice %249 {offsets = [0, 0], sizes = [8, 512], strides = [1, 1]} : vector<8x1024xf32> to vector<8x512xf32>
    %258 = arith.addf %256, %257 : vector<8x512xf32>
    %259 = arith.index_cast %247 : i32 to index
    %c0_77 = arith.constant 0 : index
    %c0_78 = arith.constant 0 : index
    %260 = vector.load %arg0[%259, %c0_77, %c0_78] : memref<8x8x1xf32, #tpu.memory_space<vmem>>, vector<1x8x1xf32>
    %261 = vector.shape_cast %260 : vector<1x8x1xf32> to vector<8x1xf32>
    %262 = vector.broadcast %261 : vector<8x1xf32> to vector<8x512xf32>
    %263 = vector.broadcast %1 : vector<1x512xf32> to vector<8x512xf32>
    %264 = arith.mulf %262, %263 : vector<8x512xf32>
    %265 = arith.addf %264, %8 : vector<8x512xf32>
    %266 = vector.extract_strided_slice %249 {offsets = [0, 512], sizes = [8, 512], strides = [1, 1]} : vector<8x1024xf32> to vector<8x512xf32>
    %267 = arith.addf %265, %266 : vector<8x512xf32>
    %268 = vector.extract_strided_slice %258 {offsets = [0, 0], sizes = [8, 128], strides = [1, 1]} : vector<8x512xf32> to vector<8x128xf32>
    %269 = math.tanh %268 : vector<8x128xf32>
    %cst_79 = arith.constant 5.000000e-01 : f32
    %270 = vector.broadcast %cst_79 : f32 to vector<8x128xf32>
    %271 = arith.mulf %270, %269 : vector<8x128xf32>
    %cst_80 = arith.constant 5.000000e-01 : f32
    %272 = vector.broadcast %cst_80 : f32 to vector<8x128xf32>
    %273 = arith.addf %272, %271 : vector<8x128xf32>
    %274 = vector.extract_strided_slice %258 {offsets = [0, 128], sizes = [8, 128], strides = [1, 1]} : vector<8x512xf32> to vector<8x128xf32>
    %275 = math.tanh %274 : vector<8x128xf32>
    %cst_81 = arith.constant 5.000000e-01 : f32
    %276 = vector.broadcast %cst_81 : f32 to vector<8x128xf32>
    %277 = arith.mulf %276, %275 : vector<8x128xf32>
    %cst_82 = arith.constant 5.000000e-01 : f32
    %278 = vector.broadcast %cst_82 : f32 to vector<8x128xf32>
    %279 = arith.addf %278, %277 : vector<8x128xf32>
    %280 = vector.extract_strided_slice %258 {offsets = [0, 256], sizes = [8, 128], strides = [1, 1]} : vector<8x512xf32> to vector<8x128xf32>
    %281 = math.tanh %280 : vector<8x128xf32>
    %282 = vector.extract_strided_slice %258 {offsets = [0, 384], sizes = [8, 128], strides = [1, 1]} : vector<8x512xf32> to vector<8x128xf32>
    %283 = math.tanh %282 : vector<8x128xf32>
    %cst_83 = arith.constant 5.000000e-01 : f32
    %284 = vector.broadcast %cst_83 : f32 to vector<8x128xf32>
    %285 = arith.mulf %284, %283 : vector<8x128xf32>
    %cst_84 = arith.constant 5.000000e-01 : f32
    %286 = vector.broadcast %cst_84 : f32 to vector<8x128xf32>
    %287 = arith.addf %286, %285 : vector<8x128xf32>
    %288 = arith.mulf %279, %211 : vector<8x128xf32>
    %289 = arith.mulf %273, %281 : vector<8x128xf32>
    %290 = arith.addf %288, %289 : vector<8x128xf32>
    %291 = math.tanh %290 : vector<8x128xf32>
    %292 = arith.mulf %287, %291 : vector<8x128xf32>
    %293 = vector.extract_strided_slice %267 {offsets = [0, 0], sizes = [8, 128], strides = [1, 1]} : vector<8x512xf32> to vector<8x128xf32>
    %294 = math.tanh %293 : vector<8x128xf32>
    %cst_85 = arith.constant 5.000000e-01 : f32
    %295 = vector.broadcast %cst_85 : f32 to vector<8x128xf32>
    %296 = arith.mulf %295, %294 : vector<8x128xf32>
    %cst_86 = arith.constant 5.000000e-01 : f32
    %297 = vector.broadcast %cst_86 : f32 to vector<8x128xf32>
    %298 = arith.addf %297, %296 : vector<8x128xf32>
    %299 = vector.extract_strided_slice %267 {offsets = [0, 128], sizes = [8, 128], strides = [1, 1]} : vector<8x512xf32> to vector<8x128xf32>
    %300 = math.tanh %299 : vector<8x128xf32>
    %cst_87 = arith.constant 5.000000e-01 : f32
    %301 = vector.broadcast %cst_87 : f32 to vector<8x128xf32>
    %302 = arith.mulf %301, %300 : vector<8x128xf32>
    %cst_88 = arith.constant 5.000000e-01 : f32
    %303 = vector.broadcast %cst_88 : f32 to vector<8x128xf32>
    %304 = arith.addf %303, %302 : vector<8x128xf32>
    %305 = vector.extract_strided_slice %267 {offsets = [0, 256], sizes = [8, 128], strides = [1, 1]} : vector<8x512xf32> to vector<8x128xf32>
    %306 = math.tanh %305 : vector<8x128xf32>
    %307 = vector.extract_strided_slice %267 {offsets = [0, 384], sizes = [8, 128], strides = [1, 1]} : vector<8x512xf32> to vector<8x128xf32>
    %308 = math.tanh %307 : vector<8x128xf32>
    %cst_89 = arith.constant 5.000000e-01 : f32
    %309 = vector.broadcast %cst_89 : f32 to vector<8x128xf32>
    %310 = arith.mulf %309, %308 : vector<8x128xf32>
    %cst_90 = arith.constant 5.000000e-01 : f32
    %311 = vector.broadcast %cst_90 : f32 to vector<8x128xf32>
    %312 = arith.addf %311, %310 : vector<8x128xf32>
    %313 = arith.mulf %304, %236 : vector<8x128xf32>
    %314 = arith.mulf %298, %306 : vector<8x128xf32>
    %315 = arith.addf %313, %314 : vector<8x128xf32>
    %316 = math.tanh %315 : vector<8x128xf32>
    %317 = arith.mulf %312, %316 : vector<8x128xf32>
    %318 = arith.index_cast %c3_i32 : i32 to index
    %c0_91 = arith.constant 0 : index
    %c0_92 = arith.constant 0 : index
    %319 = vector.load %arg14[%318, %c0_91, %c0_92] : memref<8x8x256xf32, #tpu.memory_space<vmem>>, vector<1x8x128xf32>
    %320 = vector.shape_cast %319 : vector<1x8x128xf32> to vector<8x128xf32>
    %321 = vector.shape_cast %292 : vector<8x128xf32> to vector<1x8x128xf32>
    tpu.vector_store %arg14[%318, %c0_91, %c0_92], %321 {strides = array<i32>} : memref<8x8x256xf32, #tpu.memory_space<vmem>>, vector<1x8x128xf32>,
    %322 = arith.index_cast %247 : i32 to index
    %c0_93 = arith.constant 0 : index
    %c128_94 = arith.constant 128 : index
    %323 = vector.load %arg14[%322, %c0_93, %c128_94] : memref<8x8x256xf32, #tpu.memory_space<vmem>>, vector<1x8x128xf32>
    %324 = vector.shape_cast %323 : vector<1x8x128xf32> to vector<8x128xf32>
    %325 = vector.shape_cast %317 : vector<8x128xf32> to vector<1x8x128xf32>
    tpu.vector_store %arg14[%322, %c0_93, %c128_94], %325 {strides = array<i32>} : memref<8x8x256xf32, #tpu.memory_space<vmem>>, vector<1x8x128xf32>,
    %c4_i32 = arith.constant 4 : i32
    %c7_i32_95 = arith.constant 7 : i32
    %326 = arith.subi %c7_i32_95, %c4_i32 : i32
    %327 = tpu.concatenate %292, %317 in 1 : vector<8x128xf32>, vector<8x128xf32> -> vector<8x256xf32>
    %cst_96 = arith.constant dense<0.000000e+00> : vector<8x1024xf32>
    %328 = tpu.matmul %327, %2, %cst_96 {dimension_numbers = #tpu.dot_dimension_numbers<[1], [0], [0], [1], [0, 0, 1, 1], [], []>} : vector<8x256xf32>, vector<256x1024xf32>, vector<8x1024xf32> -> vector<8x1024xf32>
    %329 = arith.index_cast %c4_i32 : i32 to index
    %c0_97 = arith.constant 0 : index
    %c0_98 = arith.constant 0 : index
    %330 = vector.load %arg0[%329, %c0_97, %c0_98] : memref<8x8x1xf32, #tpu.memory_space<vmem>>, vector<1x8x1xf32>
    %331 = vector.shape_cast %330 : vector<1x8x1xf32> to vector<8x1xf32>
    %332 = vector.broadcast %331 : vector<8x1xf32> to vector<8x512xf32>
    %333 = vector.broadcast %0 : vector<1x512xf32> to vector<8x512xf32>
    %334 = arith.mulf %332, %333 : vector<8x512xf32>
    %335 = arith.addf %334, %5 : vector<8x512xf32>
    %336 = vector.extract_strided_slice %328 {offsets = [0, 0], sizes = [8, 512], strides = [1, 1]} : vector<8x1024xf32> to vector<8x512xf32>
    %337 = arith.addf %335, %336 : vector<8x512xf32>
    %338 = arith.index_cast %326 : i32 to index
    %c0_99 = arith.constant 0 : index
    %c0_100 = arith.constant 0 : index
    %339 = vector.load %arg0[%338, %c0_99, %c0_100] : memref<8x8x1xf32, #tpu.memory_space<vmem>>, vector<1x8x1xf32>
    %340 = vector.shape_cast %339 : vector<1x8x1xf32> to vector<8x1xf32>
    %341 = vector.broadcast %340 : vector<8x1xf32> to vector<8x512xf32>
    %342 = vector.broadcast %1 : vector<1x512xf32> to vector<8x512xf32>
    %343 = arith.mulf %341, %342 : vector<8x512xf32>
    %344 = arith.addf %343, %8 : vector<8x512xf32>
    %345 = vector.extract_strided_slice %328 {offsets = [0, 512], sizes = [8, 512], strides = [1, 1]} : vector<8x1024xf32> to vector<8x512xf32>
    %346 = arith.addf %344, %345 : vector<8x512xf32>
    %347 = vector.extract_strided_slice %337 {offsets = [0, 0], sizes = [8, 128], strides = [1, 1]} : vector<8x512xf32> to vector<8x128xf32>
    %348 = math.tanh %347 : vector<8x128xf32>
    %cst_101 = arith.constant 5.000000e-01 : f32
    %349 = vector.broadcast %cst_101 : f32 to vector<8x128xf32>
    %350 = arith.mulf %349, %348 : vector<8x128xf32>
    %cst_102 = arith.constant 5.000000e-01 : f32
    %351 = vector.broadcast %cst_102 : f32 to vector<8x128xf32>
    %352 = arith.addf %351, %350 : vector<8x128xf32>
    %353 = vector.extract_strided_slice %337 {offsets = [0, 128], sizes = [8, 128], strides = [1, 1]} : vector<8x512xf32> to vector<8x128xf32>
    %354 = math.tanh %353 : vector<8x128xf32>
    %cst_103 = arith.constant 5.000000e-01 : f32
    %355 = vector.broadcast %cst_103 : f32 to vector<8x128xf32>
    %356 = arith.mulf %355, %354 : vector<8x128xf32>
    %cst_104 = arith.constant 5.000000e-01 : f32
    %357 = vector.broadcast %cst_104 : f32 to vector<8x128xf32>
    %358 = arith.addf %357, %356 : vector<8x128xf32>
    %359 = vector.extract_strided_slice %337 {offsets = [0, 256], sizes = [8, 128], strides = [1, 1]} : vector<8x512xf32> to vector<8x128xf32>
    %360 = math.tanh %359 : vector<8x128xf32>
    %361 = vector.extract_strided_slice %337 {offsets = [0, 384], sizes = [8, 128], strides = [1, 1]} : vector<8x512xf32> to vector<8x128xf32>
    %362 = math.tanh %361 : vector<8x128xf32>
    %cst_105 = arith.constant 5.000000e-01 : f32
    %363 = vector.broadcast %cst_105 : f32 to vector<8x128xf32>
    %364 = arith.mulf %363, %362 : vector<8x128xf32>
    %cst_106 = arith.constant 5.000000e-01 : f32
    %365 = vector.broadcast %cst_106 : f32 to vector<8x128xf32>
    %366 = arith.addf %365, %364 : vector<8x128xf32>
    %367 = arith.mulf %358, %290 : vector<8x128xf32>
    %368 = arith.mulf %352, %360 : vector<8x128xf32>
    %369 = arith.addf %367, %368 : vector<8x128xf32>
    %370 = math.tanh %369 : vector<8x128xf32>
    %371 = arith.mulf %366, %370 : vector<8x128xf32>
    %372 = vector.extract_strided_slice %346 {offsets = [0, 0], sizes = [8, 128], strides = [1, 1]} : vector<8x512xf32> to vector<8x128xf32>
    %373 = math.tanh %372 : vector<8x128xf32>
    %cst_107 = arith.constant 5.000000e-01 : f32
    %374 = vector.broadcast %cst_107 : f32 to vector<8x128xf32>
    %375 = arith.mulf %374, %373 : vector<8x128xf32>
    %cst_108 = arith.constant 5.000000e-01 : f32
    %376 = vector.broadcast %cst_108 : f32 to vector<8x128xf32>
    %377 = arith.addf %376, %375 : vector<8x128xf32>
    %378 = vector.extract_strided_slice %346 {offsets = [0, 128], sizes = [8, 128], strides = [1, 1]} : vector<8x512xf32> to vector<8x128xf32>
    %379 = math.tanh %378 : vector<8x128xf32>
    %cst_109 = arith.constant 5.000000e-01 : f32
    %380 = vector.broadcast %cst_109 : f32 to vector<8x128xf32>
    %381 = arith.mulf %380, %379 : vector<8x128xf32>
    %cst_110 = arith.constant 5.000000e-01 : f32
    %382 = vector.broadcast %cst_110 : f32 to vector<8x128xf32>
    %383 = arith.addf %382, %381 : vector<8x128xf32>
    %384 = vector.extract_strided_slice %346 {offsets = [0, 256], sizes = [8, 128], strides = [1, 1]} : vector<8x512xf32> to vector<8x128xf32>
    %385 = math.tanh %384 : vector<8x128xf32>
    %386 = vector.extract_strided_slice %346 {offsets = [0, 384], sizes = [8, 128], strides = [1, 1]} : vector<8x512xf32> to vector<8x128xf32>
    %387 = math.tanh %386 : vector<8x128xf32>
    %cst_111 = arith.constant 5.000000e-01 : f32
    %388 = vector.broadcast %cst_111 : f32 to vector<8x128xf32>
    %389 = arith.mulf %388, %387 : vector<8x128xf32>
    %cst_112 = arith.constant 5.000000e-01 : f32
    %390 = vector.broadcast %cst_112 : f32 to vector<8x128xf32>
    %391 = arith.addf %390, %389 : vector<8x128xf32>
    %392 = arith.mulf %383, %315 : vector<8x128xf32>
    %393 = arith.mulf %377, %385 : vector<8x128xf32>
    %394 = arith.addf %392, %393 : vector<8x128xf32>
    %395 = math.tanh %394 : vector<8x128xf32>
    %396 = arith.mulf %391, %395 : vector<8x128xf32>
    %397 = arith.index_cast %c4_i32 : i32 to index
    %c0_113 = arith.constant 0 : index
    %c0_114 = arith.constant 0 : index
    %398 = vector.load %arg14[%397, %c0_113, %c0_114] : memref<8x8x256xf32, #tpu.memory_space<vmem>>, vector<1x8x128xf32>
    %399 = vector.shape_cast %398 : vector<1x8x128xf32> to vector<8x128xf32>
    %400 = vector.shape_cast %371 : vector<8x128xf32> to vector<1x8x128xf32>
    tpu.vector_store %arg14[%397, %c0_113, %c0_114], %400 {strides = array<i32>} : memref<8x8x256xf32, #tpu.memory_space<vmem>>, vector<1x8x128xf32>,
    %401 = arith.index_cast %326 : i32 to index
    %c0_115 = arith.constant 0 : index
    %c128_116 = arith.constant 128 : index
    %402 = vector.load %arg14[%401, %c0_115, %c128_116] : memref<8x8x256xf32, #tpu.memory_space<vmem>>, vector<1x8x128xf32>
    %403 = vector.shape_cast %402 : vector<1x8x128xf32> to vector<8x128xf32>
    %404 = vector.shape_cast %396 : vector<8x128xf32> to vector<1x8x128xf32>
    tpu.vector_store %arg14[%401, %c0_115, %c128_116], %404 {strides = array<i32>} : memref<8x8x256xf32, #tpu.memory_space<vmem>>, vector<1x8x128xf32>,
    %c5_i32 = arith.constant 5 : i32
    %c7_i32_117 = arith.constant 7 : i32
    %405 = arith.subi %c7_i32_117, %c5_i32 : i32
    %406 = tpu.concatenate %371, %396 in 1 : vector<8x128xf32>, vector<8x128xf32> -> vector<8x256xf32>
    %cst_118 = arith.constant dense<0.000000e+00> : vector<8x1024xf32>
    %407 = tpu.matmul %406, %2, %cst_118 {dimension_numbers = #tpu.dot_dimension_numbers<[1], [0], [0], [1], [0, 0, 1, 1], [], []>} : vector<8x256xf32>, vector<256x1024xf32>, vector<8x1024xf32> -> vector<8x1024xf32>
    %408 = arith.index_cast %c5_i32 : i32 to index
    %c0_119 = arith.constant 0 : index
    %c0_120 = arith.constant 0 : index
    %409 = vector.load %arg0[%408, %c0_119, %c0_120] : memref<8x8x1xf32, #tpu.memory_space<vmem>>, vector<1x8x1xf32>
    %410 = vector.shape_cast %409 : vector<1x8x1xf32> to vector<8x1xf32>
    %411 = vector.broadcast %410 : vector<8x1xf32> to vector<8x512xf32>
    %412 = vector.broadcast %0 : vector<1x512xf32> to vector<8x512xf32>
    %413 = arith.mulf %411, %412 : vector<8x512xf32>
    %414 = arith.addf %413, %5 : vector<8x512xf32>
    %415 = vector.extract_strided_slice %407 {offsets = [0, 0], sizes = [8, 512], strides = [1, 1]} : vector<8x1024xf32> to vector<8x512xf32>
    %416 = arith.addf %414, %415 : vector<8x512xf32>
    %417 = arith.index_cast %405 : i32 to index
    %c0_121 = arith.constant 0 : index
    %c0_122 = arith.constant 0 : index
    %418 = vector.load %arg0[%417, %c0_121, %c0_122] : memref<8x8x1xf32, #tpu.memory_space<vmem>>, vector<1x8x1xf32>
    %419 = vector.shape_cast %418 : vector<1x8x1xf32> to vector<8x1xf32>
    %420 = vector.broadcast %419 : vector<8x1xf32> to vector<8x512xf32>
    %421 = vector.broadcast %1 : vector<1x512xf32> to vector<8x512xf32>
    %422 = arith.mulf %420, %421 : vector<8x512xf32>
    %423 = arith.addf %422, %8 : vector<8x512xf32>
    %424 = vector.extract_strided_slice %407 {offsets = [0, 512], sizes = [8, 512], strides = [1, 1]} : vector<8x1024xf32> to vector<8x512xf32>
    %425 = arith.addf %423, %424 : vector<8x512xf32>
    %426 = vector.extract_strided_slice %416 {offsets = [0, 0], sizes = [8, 128], strides = [1, 1]} : vector<8x512xf32> to vector<8x128xf32>
    %427 = math.tanh %426 : vector<8x128xf32>
    %cst_123 = arith.constant 5.000000e-01 : f32
    %428 = vector.broadcast %cst_123 : f32 to vector<8x128xf32>
    %429 = arith.mulf %428, %427 : vector<8x128xf32>
    %cst_124 = arith.constant 5.000000e-01 : f32
    %430 = vector.broadcast %cst_124 : f32 to vector<8x128xf32>
    %431 = arith.addf %430, %429 : vector<8x128xf32>
    %432 = vector.extract_strided_slice %416 {offsets = [0, 128], sizes = [8, 128], strides = [1, 1]} : vector<8x512xf32> to vector<8x128xf32>
    %433 = math.tanh %432 : vector<8x128xf32>
    %cst_125 = arith.constant 5.000000e-01 : f32
    %434 = vector.broadcast %cst_125 : f32 to vector<8x128xf32>
    %435 = arith.mulf %434, %433 : vector<8x128xf32>
    %cst_126 = arith.constant 5.000000e-01 : f32
    %436 = vector.broadcast %cst_126 : f32 to vector<8x128xf32>
    %437 = arith.addf %436, %435 : vector<8x128xf32>
    %438 = vector.extract_strided_slice %416 {offsets = [0, 256], sizes = [8, 128], strides = [1, 1]} : vector<8x512xf32> to vector<8x128xf32>
    %439 = math.tanh %438 : vector<8x128xf32>
    %440 = vector.extract_strided_slice %416 {offsets = [0, 384], sizes = [8, 128], strides = [1, 1]} : vector<8x512xf32> to vector<8x128xf32>
    %441 = math.tanh %440 : vector<8x128xf32>
    %cst_127 = arith.constant 5.000000e-01 : f32
    %442 = vector.broadcast %cst_127 : f32 to vector<8x128xf32>
    %443 = arith.mulf %442, %441 : vector<8x128xf32>
    %cst_128 = arith.constant 5.000000e-01 : f32
    %444 = vector.broadcast %cst_128 : f32 to vector<8x128xf32>
    %445 = arith.addf %444, %443 : vector<8x128xf32>
    %446 = arith.mulf %437, %369 : vector<8x128xf32>
    %447 = arith.mulf %431, %439 : vector<8x128xf32>
    %448 = arith.addf %446, %447 : vector<8x128xf32>
    %449 = math.tanh %448 : vector<8x128xf32>
    %450 = arith.mulf %445, %449 : vector<8x128xf32>
    %451 = vector.extract_strided_slice %425 {offsets = [0, 0], sizes = [8, 128], strides = [1, 1]} : vector<8x512xf32> to vector<8x128xf32>
    %452 = math.tanh %451 : vector<8x128xf32>
    %cst_129 = arith.constant 5.000000e-01 : f32
    %453 = vector.broadcast %cst_129 : f32 to vector<8x128xf32>
    %454 = arith.mulf %453, %452 : vector<8x128xf32>
    %cst_130 = arith.constant 5.000000e-01 : f32
    %455 = vector.broadcast %cst_130 : f32 to vector<8x128xf32>
    %456 = arith.addf %455, %454 : vector<8x128xf32>
    %457 = vector.extract_strided_slice %425 {offsets = [0, 128], sizes = [8, 128], strides = [1, 1]} : vector<8x512xf32> to vector<8x128xf32>
    %458 = math.tanh %457 : vector<8x128xf32>
    %cst_131 = arith.constant 5.000000e-01 : f32
    %459 = vector.broadcast %cst_131 : f32 to vector<8x128xf32>
    %460 = arith.mulf %459, %458 : vector<8x128xf32>
    %cst_132 = arith.constant 5.000000e-01 : f32
    %461 = vector.broadcast %cst_132 : f32 to vector<8x128xf32>
    %462 = arith.addf %461, %460 : vector<8x128xf32>
    %463 = vector.extract_strided_slice %425 {offsets = [0, 256], sizes = [8, 128], strides = [1, 1]} : vector<8x512xf32> to vector<8x128xf32>
    %464 = math.tanh %463 : vector<8x128xf32>
    %465 = vector.extract_strided_slice %425 {offsets = [0, 384], sizes = [8, 128], strides = [1, 1]} : vector<8x512xf32> to vector<8x128xf32>
    %466 = math.tanh %465 : vector<8x128xf32>
    %cst_133 = arith.constant 5.000000e-01 : f32
    %467 = vector.broadcast %cst_133 : f32 to vector<8x128xf32>
    %468 = arith.mulf %467, %466 : vector<8x128xf32>
    %cst_134 = arith.constant 5.000000e-01 : f32
    %469 = vector.broadcast %cst_134 : f32 to vector<8x128xf32>
    %470 = arith.addf %469, %468 : vector<8x128xf32>
    %471 = arith.mulf %462, %394 : vector<8x128xf32>
    %472 = arith.mulf %456, %464 : vector<8x128xf32>
    %473 = arith.addf %471, %472 : vector<8x128xf32>
    %474 = math.tanh %473 : vector<8x128xf32>
    %475 = arith.mulf %470, %474 : vector<8x128xf32>
    %476 = arith.index_cast %c5_i32 : i32 to index
    %c0_135 = arith.constant 0 : index
    %c0_136 = arith.constant 0 : index
    %477 = vector.load %arg14[%476, %c0_135, %c0_136] : memref<8x8x256xf32, #tpu.memory_space<vmem>>, vector<1x8x128xf32>
    %478 = vector.shape_cast %477 : vector<1x8x128xf32> to vector<8x128xf32>
    %479 = vector.shape_cast %450 : vector<8x128xf32> to vector<1x8x128xf32>
    tpu.vector_store %arg14[%476, %c0_135, %c0_136], %479 {strides = array<i32>} : memref<8x8x256xf32, #tpu.memory_space<vmem>>, vector<1x8x128xf32>,
    %480 = arith.index_cast %405 : i32 to index
    %c0_137 = arith.constant 0 : index
    %c128_138 = arith.constant 128 : index
    %481 = vector.load %arg14[%480, %c0_137, %c128_138] : memref<8x8x256xf32, #tpu.memory_space<vmem>>, vector<1x8x128xf32>
    %482 = vector.shape_cast %481 : vector<1x8x128xf32> to vector<8x128xf32>
    %483 = vector.shape_cast %475 : vector<8x128xf32> to vector<1x8x128xf32>
    tpu.vector_store %arg14[%480, %c0_137, %c128_138], %483 {strides = array<i32>} : memref<8x8x256xf32, #tpu.memory_space<vmem>>, vector<1x8x128xf32>,
    %c6_i32 = arith.constant 6 : i32
    %c7_i32_139 = arith.constant 7 : i32
    %484 = arith.subi %c7_i32_139, %c6_i32 : i32
    %485 = tpu.concatenate %450, %475 in 1 : vector<8x128xf32>, vector<8x128xf32> -> vector<8x256xf32>
    %cst_140 = arith.constant dense<0.000000e+00> : vector<8x1024xf32>
    %486 = tpu.matmul %485, %2, %cst_140 {dimension_numbers = #tpu.dot_dimension_numbers<[1], [0], [0], [1], [0, 0, 1, 1], [], []>} : vector<8x256xf32>, vector<256x1024xf32>, vector<8x1024xf32> -> vector<8x1024xf32>
    %487 = arith.index_cast %c6_i32 : i32 to index
    %c0_141 = arith.constant 0 : index
    %c0_142 = arith.constant 0 : index
    %488 = vector.load %arg0[%487, %c0_141, %c0_142] : memref<8x8x1xf32, #tpu.memory_space<vmem>>, vector<1x8x1xf32>
    %489 = vector.shape_cast %488 : vector<1x8x1xf32> to vector<8x1xf32>
    %490 = vector.broadcast %489 : vector<8x1xf32> to vector<8x512xf32>
    %491 = vector.broadcast %0 : vector<1x512xf32> to vector<8x512xf32>
    %492 = arith.mulf %490, %491 : vector<8x512xf32>
    %493 = arith.addf %492, %5 : vector<8x512xf32>
    %494 = vector.extract_strided_slice %486 {offsets = [0, 0], sizes = [8, 512], strides = [1, 1]} : vector<8x1024xf32> to vector<8x512xf32>
    %495 = arith.addf %493, %494 : vector<8x512xf32>
    %496 = arith.index_cast %484 : i32 to index
    %c0_143 = arith.constant 0 : index
    %c0_144 = arith.constant 0 : index
    %497 = vector.load %arg0[%496, %c0_143, %c0_144] : memref<8x8x1xf32, #tpu.memory_space<vmem>>, vector<1x8x1xf32>
    %498 = vector.shape_cast %497 : vector<1x8x1xf32> to vector<8x1xf32>
    %499 = vector.broadcast %498 : vector<8x1xf32> to vector<8x512xf32>
    %500 = vector.broadcast %1 : vector<1x512xf32> to vector<8x512xf32>
    %501 = arith.mulf %499, %500 : vector<8x512xf32>
    %502 = arith.addf %501, %8 : vector<8x512xf32>
    %503 = vector.extract_strided_slice %486 {offsets = [0, 512], sizes = [8, 512], strides = [1, 1]} : vector<8x1024xf32> to vector<8x512xf32>
    %504 = arith.addf %502, %503 : vector<8x512xf32>
    %505 = vector.extract_strided_slice %495 {offsets = [0, 0], sizes = [8, 128], strides = [1, 1]} : vector<8x512xf32> to vector<8x128xf32>
    %506 = math.tanh %505 : vector<8x128xf32>
    %cst_145 = arith.constant 5.000000e-01 : f32
    %507 = vector.broadcast %cst_145 : f32 to vector<8x128xf32>
    %508 = arith.mulf %507, %506 : vector<8x128xf32>
    %cst_146 = arith.constant 5.000000e-01 : f32
    %509 = vector.broadcast %cst_146 : f32 to vector<8x128xf32>
    %510 = arith.addf %509, %508 : vector<8x128xf32>
    %511 = vector.extract_strided_slice %495 {offsets = [0, 128], sizes = [8, 128], strides = [1, 1]} : vector<8x512xf32> to vector<8x128xf32>
    %512 = math.tanh %511 : vector<8x128xf32>
    %cst_147 = arith.constant 5.000000e-01 : f32
    %513 = vector.broadcast %cst_147 : f32 to vector<8x128xf32>
    %514 = arith.mulf %513, %512 : vector<8x128xf32>
    %cst_148 = arith.constant 5.000000e-01 : f32
    %515 = vector.broadcast %cst_148 : f32 to vector<8x128xf32>
    %516 = arith.addf %515, %514 : vector<8x128xf32>
    %517 = vector.extract_strided_slice %495 {offsets = [0, 256], sizes = [8, 128], strides = [1, 1]} : vector<8x512xf32> to vector<8x128xf32>
    %518 = math.tanh %517 : vector<8x128xf32>
    %519 = vector.extract_strided_slice %495 {offsets = [0, 384], sizes = [8, 128], strides = [1, 1]} : vector<8x512xf32> to vector<8x128xf32>
    %520 = math.tanh %519 : vector<8x128xf32>
    %cst_149 = arith.constant 5.000000e-01 : f32
    %521 = vector.broadcast %cst_149 : f32 to vector<8x128xf32>
    %522 = arith.mulf %521, %520 : vector<8x128xf32>
    %cst_150 = arith.constant 5.000000e-01 : f32
    %523 = vector.broadcast %cst_150 : f32 to vector<8x128xf32>
    %524 = arith.addf %523, %522 : vector<8x128xf32>
    %525 = arith.mulf %516, %448 : vector<8x128xf32>
    %526 = arith.mulf %510, %518 : vector<8x128xf32>
    %527 = arith.addf %525, %526 : vector<8x128xf32>
    %528 = math.tanh %527 : vector<8x128xf32>
    %529 = arith.mulf %524, %528 : vector<8x128xf32>
    %530 = vector.extract_strided_slice %504 {offsets = [0, 0], sizes = [8, 128], strides = [1, 1]} : vector<8x512xf32> to vector<8x128xf32>
    %531 = math.tanh %530 : vector<8x128xf32>
    %cst_151 = arith.constant 5.000000e-01 : f32
    %532 = vector.broadcast %cst_151 : f32 to vector<8x128xf32>
    %533 = arith.mulf %532, %531 : vector<8x128xf32>
    %cst_152 = arith.constant 5.000000e-01 : f32
    %534 = vector.broadcast %cst_152 : f32 to vector<8x128xf32>
    %535 = arith.addf %534, %533 : vector<8x128xf32>
    %536 = vector.extract_strided_slice %504 {offsets = [0, 128], sizes = [8, 128], strides = [1, 1]} : vector<8x512xf32> to vector<8x128xf32>
    %537 = math.tanh %536 : vector<8x128xf32>
    %cst_153 = arith.constant 5.000000e-01 : f32
    %538 = vector.broadcast %cst_153 : f32 to vector<8x128xf32>
    %539 = arith.mulf %538, %537 : vector<8x128xf32>
    %cst_154 = arith.constant 5.000000e-01 : f32
    %540 = vector.broadcast %cst_154 : f32 to vector<8x128xf32>
    %541 = arith.addf %540, %539 : vector<8x128xf32>
    %542 = vector.extract_strided_slice %504 {offsets = [0, 256], sizes = [8, 128], strides = [1, 1]} : vector<8x512xf32> to vector<8x128xf32>
    %543 = math.tanh %542 : vector<8x128xf32>
    %544 = vector.extract_strided_slice %504 {offsets = [0, 384], sizes = [8, 128], strides = [1, 1]} : vector<8x512xf32> to vector<8x128xf32>
    %545 = math.tanh %544 : vector<8x128xf32>
    %cst_155 = arith.constant 5.000000e-01 : f32
    %546 = vector.broadcast %cst_155 : f32 to vector<8x128xf32>
    %547 = arith.mulf %546, %545 : vector<8x128xf32>
    %cst_156 = arith.constant 5.000000e-01 : f32
    %548 = vector.broadcast %cst_156 : f32 to vector<8x128xf32>
    %549 = arith.addf %548, %547 : vector<8x128xf32>
    %550 = arith.mulf %541, %473 : vector<8x128xf32>
    %551 = arith.mulf %535, %543 : vector<8x128xf32>
    %552 = arith.addf %550, %551 : vector<8x128xf32>
    %553 = math.tanh %552 : vector<8x128xf32>
    %554 = arith.mulf %549, %553 : vector<8x128xf32>
    %555 = arith.index_cast %c6_i32 : i32 to index
    %c0_157 = arith.constant 0 : index
    %c0_158 = arith.constant 0 : index
    %556 = vector.load %arg14[%555, %c0_157, %c0_158] : memref<8x8x256xf32, #tpu.memory_space<vmem>>, vector<1x8x128xf32>
    %557 = vector.shape_cast %556 : vector<1x8x128xf32> to vector<8x128xf32>
    %558 = vector.shape_cast %529 : vector<8x128xf32> to vector<1x8x128xf32>
    tpu.vector_store %arg14[%555, %c0_157, %c0_158], %558 {strides = array<i32>} : memref<8x8x256xf32, #tpu.memory_space<vmem>>, vector<1x8x128xf32>,
    %559 = arith.index_cast %484 : i32 to index
    %c0_159 = arith.constant 0 : index
    %c128_160 = arith.constant 128 : index
    %560 = vector.load %arg14[%559, %c0_159, %c128_160] : memref<8x8x256xf32, #tpu.memory_space<vmem>>, vector<1x8x128xf32>
    %561 = vector.shape_cast %560 : vector<1x8x128xf32> to vector<8x128xf32>
    %562 = vector.shape_cast %554 : vector<8x128xf32> to vector<1x8x128xf32>
    tpu.vector_store %arg14[%559, %c0_159, %c128_160], %562 {strides = array<i32>} : memref<8x8x256xf32, #tpu.memory_space<vmem>>, vector<1x8x128xf32>,
    %c7_i32_161 = arith.constant 7 : i32
    %c7_i32_162 = arith.constant 7 : i32
    %563 = arith.subi %c7_i32_162, %c7_i32_161 : i32
    %564 = tpu.concatenate %529, %554 in 1 : vector<8x128xf32>, vector<8x128xf32> -> vector<8x256xf32>
    %cst_163 = arith.constant dense<0.000000e+00> : vector<8x1024xf32>
    %565 = tpu.matmul %564, %2, %cst_163 {dimension_numbers = #tpu.dot_dimension_numbers<[1], [0], [0], [1], [0, 0, 1, 1], [], []>} : vector<8x256xf32>, vector<256x1024xf32>, vector<8x1024xf32> -> vector<8x1024xf32>
    %566 = arith.index_cast %c7_i32_161 : i32 to index
    %c0_164 = arith.constant 0 : index
    %c0_165 = arith.constant 0 : index
    %567 = vector.load %arg0[%566, %c0_164, %c0_165] : memref<8x8x1xf32, #tpu.memory_space<vmem>>, vector<1x8x1xf32>
    %568 = vector.shape_cast %567 : vector<1x8x1xf32> to vector<8x1xf32>
    %569 = vector.broadcast %568 : vector<8x1xf32> to vector<8x512xf32>
    %570 = vector.broadcast %0 : vector<1x512xf32> to vector<8x512xf32>
    %571 = arith.mulf %569, %570 : vector<8x512xf32>
    %572 = arith.addf %571, %5 : vector<8x512xf32>
    %573 = vector.extract_strided_slice %565 {offsets = [0, 0], sizes = [8, 512], strides = [1, 1]} : vector<8x1024xf32> to vector<8x512xf32>
    %574 = arith.addf %572, %573 : vector<8x512xf32>
    %575 = arith.index_cast %563 : i32 to index
    %c0_166 = arith.constant 0 : index
    %c0_167 = arith.constant 0 : index
    %576 = vector.load %arg0[%575, %c0_166, %c0_167] : memref<8x8x1xf32, #tpu.memory_space<vmem>>, vector<1x8x1xf32>
    %577 = vector.shape_cast %576 : vector<1x8x1xf32> to vector<8x1xf32>
    %578 = vector.broadcast %577 : vector<8x1xf32> to vector<8x512xf32>
    %579 = vector.broadcast %1 : vector<1x512xf32> to vector<8x512xf32>
    %580 = arith.mulf %578, %579 : vector<8x512xf32>
    %581 = arith.addf %580, %8 : vector<8x512xf32>
    %582 = vector.extract_strided_slice %565 {offsets = [0, 512], sizes = [8, 512], strides = [1, 1]} : vector<8x1024xf32> to vector<8x512xf32>
    %583 = arith.addf %581, %582 : vector<8x512xf32>
    %584 = vector.extract_strided_slice %574 {offsets = [0, 0], sizes = [8, 128], strides = [1, 1]} : vector<8x512xf32> to vector<8x128xf32>
    %585 = math.tanh %584 : vector<8x128xf32>
    %cst_168 = arith.constant 5.000000e-01 : f32
    %586 = vector.broadcast %cst_168 : f32 to vector<8x128xf32>
    %587 = arith.mulf %586, %585 : vector<8x128xf32>
    %cst_169 = arith.constant 5.000000e-01 : f32
    %588 = vector.broadcast %cst_169 : f32 to vector<8x128xf32>
    %589 = arith.addf %588, %587 : vector<8x128xf32>
    %590 = vector.extract_strided_slice %574 {offsets = [0, 128], sizes = [8, 128], strides = [1, 1]} : vector<8x512xf32> to vector<8x128xf32>
    %591 = math.tanh %590 : vector<8x128xf32>
    %cst_170 = arith.constant 5.000000e-01 : f32
    %592 = vector.broadcast %cst_170 : f32 to vector<8x128xf32>
    %593 = arith.mulf %592, %591 : vector<8x128xf32>
    %cst_171 = arith.constant 5.000000e-01 : f32
    %594 = vector.broadcast %cst_171 : f32 to vector<8x128xf32>
    %595 = arith.addf %594, %593 : vector<8x128xf32>
    %596 = vector.extract_strided_slice %574 {offsets = [0, 256], sizes = [8, 128], strides = [1, 1]} : vector<8x512xf32> to vector<8x128xf32>
    %597 = math.tanh %596 : vector<8x128xf32>
    %598 = vector.extract_strided_slice %574 {offsets = [0, 384], sizes = [8, 128], strides = [1, 1]} : vector<8x512xf32> to vector<8x128xf32>
    %599 = math.tanh %598 : vector<8x128xf32>
    %cst_172 = arith.constant 5.000000e-01 : f32
    %600 = vector.broadcast %cst_172 : f32 to vector<8x128xf32>
    %601 = arith.mulf %600, %599 : vector<8x128xf32>
    %cst_173 = arith.constant 5.000000e-01 : f32
    %602 = vector.broadcast %cst_173 : f32 to vector<8x128xf32>
    %603 = arith.addf %602, %601 : vector<8x128xf32>
    %604 = arith.mulf %595, %527 : vector<8x128xf32>
    %605 = arith.mulf %589, %597 : vector<8x128xf32>
    %606 = arith.addf %604, %605 : vector<8x128xf32>
    %607 = math.tanh %606 : vector<8x128xf32>
    %608 = arith.mulf %603, %607 : vector<8x128xf32>
    %609 = vector.extract_strided_slice %583 {offsets = [0, 0], sizes = [8, 128], strides = [1, 1]} : vector<8x512xf32> to vector<8x128xf32>
    %610 = math.tanh %609 : vector<8x128xf32>
    %cst_174 = arith.constant 5.000000e-01 : f32
    %611 = vector.broadcast %cst_174 : f32 to vector<8x128xf32>
    %612 = arith.mulf %611, %610 : vector<8x128xf32>
    %cst_175 = arith.constant 5.000000e-01 : f32
    %613 = vector.broadcast %cst_175 : f32 to vector<8x128xf32>
    %614 = arith.addf %613, %612 : vector<8x128xf32>
    %615 = vector.extract_strided_slice %583 {offsets = [0, 128], sizes = [8, 128], strides = [1, 1]} : vector<8x512xf32> to vector<8x128xf32>
    %616 = math.tanh %615 : vector<8x128xf32>
    %cst_176 = arith.constant 5.000000e-01 : f32
    %617 = vector.broadcast %cst_176 : f32 to vector<8x128xf32>
    %618 = arith.mulf %617, %616 : vector<8x128xf32>
    %cst_177 = arith.constant 5.000000e-01 : f32
    %619 = vector.broadcast %cst_177 : f32 to vector<8x128xf32>
    %620 = arith.addf %619, %618 : vector<8x128xf32>
    %621 = vector.extract_strided_slice %583 {offsets = [0, 256], sizes = [8, 128], strides = [1, 1]} : vector<8x512xf32> to vector<8x128xf32>
    %622 = math.tanh %621 : vector<8x128xf32>
    %623 = vector.extract_strided_slice %583 {offsets = [0, 384], sizes = [8, 128], strides = [1, 1]} : vector<8x512xf32> to vector<8x128xf32>
    %624 = math.tanh %623 : vector<8x128xf32>
    %cst_178 = arith.constant 5.000000e-01 : f32
    %625 = vector.broadcast %cst_178 : f32 to vector<8x128xf32>
    %626 = arith.mulf %625, %624 : vector<8x128xf32>
    %cst_179 = arith.constant 5.000000e-01 : f32
    %627 = vector.broadcast %cst_179 : f32 to vector<8x128xf32>
    %628 = arith.addf %627, %626 : vector<8x128xf32>
    %629 = arith.mulf %620, %552 : vector<8x128xf32>
    %630 = arith.mulf %614, %622 : vector<8x128xf32>
    %631 = arith.addf %629, %630 : vector<8x128xf32>
    %632 = math.tanh %631 : vector<8x128xf32>
    %633 = arith.mulf %628, %632 : vector<8x128xf32>
    %634 = arith.index_cast %c7_i32_161 : i32 to index
    %c0_180 = arith.constant 0 : index
    %c0_181 = arith.constant 0 : index
    %635 = vector.load %arg14[%634, %c0_180, %c0_181] : memref<8x8x256xf32, #tpu.memory_space<vmem>>, vector<1x8x128xf32>
    %636 = vector.shape_cast %635 : vector<1x8x128xf32> to vector<8x128xf32>
    %637 = vector.shape_cast %608 : vector<8x128xf32> to vector<1x8x128xf32>
    tpu.vector_store %arg14[%634, %c0_180, %c0_181], %637 {strides = array<i32>} : memref<8x8x256xf32, #tpu.memory_space<vmem>>, vector<1x8x128xf32>,
    %638 = arith.index_cast %563 : i32 to index
    %c0_182 = arith.constant 0 : index
    %c128_183 = arith.constant 128 : index
    %639 = vector.load %arg14[%638, %c0_182, %c128_183] : memref<8x8x256xf32, #tpu.memory_space<vmem>>, vector<1x8x128xf32>
    %640 = vector.shape_cast %639 : vector<1x8x128xf32> to vector<8x128xf32>
    %641 = vector.shape_cast %633 : vector<8x128xf32> to vector<1x8x128xf32>
    tpu.vector_store %arg14[%638, %c0_182, %c128_183], %641 {strides = array<i32>} : memref<8x8x256xf32, #tpu.memory_space<vmem>>, vector<1x8x128xf32>,
    %c8_i32 = arith.constant 8 : i32
    %c0_184 = arith.constant 0 : index
    %c0_185 = arith.constant 0 : index
    %c0_186 = arith.constant 0 : index
    %642 = vector.load %arg14[%c0_184, %c0_185, %c0_186] : memref<8x8x256xf32, #tpu.memory_space<vmem>>, vector<8x8x256xf32>
    %643 = vector.shape_cast %642 : vector<8x8x256xf32> to vector<64x256xf32>
    %c0_187 = arith.constant 0 : index
    %c0_188 = arith.constant 0 : index
    %644 = vector.load %arg6[%c0_187, %c0_188] : memref<256x512xf32, #tpu.memory_space<vmem>>, vector<256x512xf32>
    %cst_189 = arith.constant dense<0.000000e+00> : vector<64x512xf32>
    %645 = tpu.matmul %643, %644, %cst_189 {dimension_numbers = #tpu.dot_dimension_numbers<[1], [0], [0], [1], [0, 0, 1, 1], [], []>} : vector<64x256xf32>, vector<256x512xf32>, vector<64x512xf32> -> vector<64x512xf32>
    %c0_190 = arith.constant 0 : index
    %c0_191 = arith.constant 0 : index
    %646 = vector.load %arg8[%c0_190, %c0_191] : memref<1x512xf32, #tpu.memory_space<vmem>>, vector<1x512xf32>
    %647 = vector.broadcast %646 : vector<1x512xf32> to vector<64x512xf32>
    %648 = arith.addf %645, %647 : vector<64x512xf32>
    %649 = vector.shape_cast %648 : vector<64x512xf32> to vector<8x8x512xf32>
    %c0_192 = arith.constant 0 : index
    %c0_193 = arith.constant 0 : index
    %c0_194 = arith.constant 0 : index
    %650 = vector.load %arg15[%c0_192, %c0_193, %c0_194] : memref<8x8x512xf32, #tpu.memory_space<vmem>>, vector<8x8x512xf32>
    tpu.vector_store %arg15[%c0_192, %c0_193, %c0_194], %649 {strides = array<i32>} : memref<8x8x512xf32, #tpu.memory_space<vmem>>, vector<8x8x512xf32>,
    %c0_195 = arith.constant 0 : index
    %c0_196 = arith.constant 0 : index
    %651 = vector.load %arg7[%c0_195, %c0_196] : memref<128x512xf32, #tpu.memory_space<vmem>>, vector<128x512xf32>
    %cst_197 = arith.constant 0.000000e+00 : f32
    %652 = vector.broadcast %cst_197 : f32 to vector<8x128xf32>
    %c0_i32_198 = arith.constant 0 : i32
    %653 = arith.index_cast %c0_i32_198 : i32 to index
    %c0_199 = arith.constant 0 : index
    %c0_200 = arith.constant 0 : index
    %654 = vector.load %arg15[%653, %c0_199, %c0_200] : memref<8x8x512xf32, #tpu.memory_space<vmem>>, vector<1x8x512xf32>
    %655 = vector.shape_cast %654 : vector<1x8x512xf32> to vector<8x512xf32>
    %cst_201 = arith.constant dense<0.000000e+00> : vector<8x512xf32>
    %656 = tpu.matmul %652, %651, %cst_201 {dimension_numbers = #tpu.dot_dimension_numbers<[1], [0], [0], [1], [0, 0, 1, 1], [], []>} : vector<8x128xf32>, vector<128x512xf32>, vector<8x512xf32> -> vector<8x512xf32>
    %657 = arith.addf %655, %656 : vector<8x512xf32>
    %658 = vector.extract_strided_slice %657 {offsets = [0, 0], sizes = [8, 128], strides = [1, 1]} : vector<8x512xf32> to vector<8x128xf32>
    %659 = math.tanh %658 : vector<8x128xf32>
    %cst_202 = arith.constant 5.000000e-01 : f32
    %660 = vector.broadcast %cst_202 : f32 to vector<8x128xf32>
    %661 = arith.mulf %660, %659 : vector<8x128xf32>
    %cst_203 = arith.constant 5.000000e-01 : f32
    %662 = vector.broadcast %cst_203 : f32 to vector<8x128xf32>
    %663 = arith.addf %662, %661 : vector<8x128xf32>
    %664 = vector.extract_strided_slice %657 {offsets = [0, 128], sizes = [8, 128], strides = [1, 1]} : vector<8x512xf32> to vector<8x128xf32>
    %665 = math.tanh %664 : vector<8x128xf32>
    %cst_204 = arith.constant 5.000000e-01 : f32
    %666 = vector.broadcast %cst_204 : f32 to vector<8x128xf32>
    %667 = arith.mulf %666, %665 : vector<8x128xf32>
    %cst_205 = arith.constant 5.000000e-01 : f32
    %668 = vector.broadcast %cst_205 : f32 to vector<8x128xf32>
    %669 = arith.addf %668, %667 : vector<8x128xf32>
    %670 = vector.extract_strided_slice %657 {offsets = [0, 256], sizes = [8, 128], strides = [1, 1]} : vector<8x512xf32> to vector<8x128xf32>
    %671 = math.tanh %670 : vector<8x128xf32>
    %672 = vector.extract_strided_slice %657 {offsets = [0, 384], sizes = [8, 128], strides = [1, 1]} : vector<8x512xf32> to vector<8x128xf32>
    %673 = math.tanh %672 : vector<8x128xf32>
    %cst_206 = arith.constant 5.000000e-01 : f32
    %674 = vector.broadcast %cst_206 : f32 to vector<8x128xf32>
    %675 = arith.mulf %674, %673 : vector<8x128xf32>
    %cst_207 = arith.constant 5.000000e-01 : f32
    %676 = vector.broadcast %cst_207 : f32 to vector<8x128xf32>
    %677 = arith.addf %676, %675 : vector<8x128xf32>
    %678 = arith.mulf %669, %652 : vector<8x128xf32>
    %679 = arith.mulf %663, %671 : vector<8x128xf32>
    %680 = arith.addf %678, %679 : vector<8x128xf32>
    %681 = math.tanh %680 : vector<8x128xf32>
    %682 = arith.mulf %677, %681 : vector<8x128xf32>
    %c1_i32_208 = arith.constant 1 : i32
    %683 = arith.index_cast %c1_i32_208 : i32 to index
    %c0_209 = arith.constant 0 : index
    %c0_210 = arith.constant 0 : index
    %684 = vector.load %arg15[%683, %c0_209, %c0_210] : memref<8x8x512xf32, #tpu.memory_space<vmem>>, vector<1x8x512xf32>
    %685 = vector.shape_cast %684 : vector<1x8x512xf32> to vector<8x512xf32>
    %cst_211 = arith.constant dense<0.000000e+00> : vector<8x512xf32>
    %686 = tpu.matmul %682, %651, %cst_211 {dimension_numbers = #tpu.dot_dimension_numbers<[1], [0], [0], [1], [0, 0, 1, 1], [], []>} : vector<8x128xf32>, vector<128x512xf32>, vector<8x512xf32> -> vector<8x512xf32>
    %687 = arith.addf %685, %686 : vector<8x512xf32>
    %688 = vector.extract_strided_slice %687 {offsets = [0, 0], sizes = [8, 128], strides = [1, 1]} : vector<8x512xf32> to vector<8x128xf32>
    %689 = math.tanh %688 : vector<8x128xf32>
    %cst_212 = arith.constant 5.000000e-01 : f32
    %690 = vector.broadcast %cst_212 : f32 to vector<8x128xf32>
    %691 = arith.mulf %690, %689 : vector<8x128xf32>
    %cst_213 = arith.constant 5.000000e-01 : f32
    %692 = vector.broadcast %cst_213 : f32 to vector<8x128xf32>
    %693 = arith.addf %692, %691 : vector<8x128xf32>
    %694 = vector.extract_strided_slice %687 {offsets = [0, 128], sizes = [8, 128], strides = [1, 1]} : vector<8x512xf32> to vector<8x128xf32>
    %695 = math.tanh %694 : vector<8x128xf32>
    %cst_214 = arith.constant 5.000000e-01 : f32
    %696 = vector.broadcast %cst_214 : f32 to vector<8x128xf32>
    %697 = arith.mulf %696, %695 : vector<8x128xf32>
    %cst_215 = arith.constant 5.000000e-01 : f32
    %698 = vector.broadcast %cst_215 : f32 to vector<8x128xf32>
    %699 = arith.addf %698, %697 : vector<8x128xf32>
    %700 = vector.extract_strided_slice %687 {offsets = [0, 256], sizes = [8, 128], strides = [1, 1]} : vector<8x512xf32> to vector<8x128xf32>
    %701 = math.tanh %700 : vector<8x128xf32>
    %702 = vector.extract_strided_slice %687 {offsets = [0, 384], sizes = [8, 128], strides = [1, 1]} : vector<8x512xf32> to vector<8x128xf32>
    %703 = math.tanh %702 : vector<8x128xf32>
    %cst_216 = arith.constant 5.000000e-01 : f32
    %704 = vector.broadcast %cst_216 : f32 to vector<8x128xf32>
    %705 = arith.mulf %704, %703 : vector<8x128xf32>
    %cst_217 = arith.constant 5.000000e-01 : f32
    %706 = vector.broadcast %cst_217 : f32 to vector<8x128xf32>
    %707 = arith.addf %706, %705 : vector<8x128xf32>
    %708 = arith.mulf %699, %680 : vector<8x128xf32>
    %709 = arith.mulf %693, %701 : vector<8x128xf32>
    %710 = arith.addf %708, %709 : vector<8x128xf32>
    %711 = math.tanh %710 : vector<8x128xf32>
    %712 = arith.mulf %707, %711 : vector<8x128xf32>
    %c2_i32_218 = arith.constant 2 : i32
    %713 = arith.index_cast %c2_i32_218 : i32 to index
    %c0_219 = arith.constant 0 : index
    %c0_220 = arith.constant 0 : index
    %714 = vector.load %arg15[%713, %c0_219, %c0_220] : memref<8x8x512xf32, #tpu.memory_space<vmem>>, vector<1x8x512xf32>
    %715 = vector.shape_cast %714 : vector<1x8x512xf32> to vector<8x512xf32>
    %cst_221 = arith.constant dense<0.000000e+00> : vector<8x512xf32>
    %716 = tpu.matmul %712, %651, %cst_221 {dimension_numbers = #tpu.dot_dimension_numbers<[1], [0], [0], [1], [0, 0, 1, 1], [], []>} : vector<8x128xf32>, vector<128x512xf32>, vector<8x512xf32> -> vector<8x512xf32>
    %717 = arith.addf %715, %716 : vector<8x512xf32>
    %718 = vector.extract_strided_slice %717 {offsets = [0, 0], sizes = [8, 128], strides = [1, 1]} : vector<8x512xf32> to vector<8x128xf32>
    %719 = math.tanh %718 : vector<8x128xf32>
    %cst_222 = arith.constant 5.000000e-01 : f32
    %720 = vector.broadcast %cst_222 : f32 to vector<8x128xf32>
    %721 = arith.mulf %720, %719 : vector<8x128xf32>
    %cst_223 = arith.constant 5.000000e-01 : f32
    %722 = vector.broadcast %cst_223 : f32 to vector<8x128xf32>
    %723 = arith.addf %722, %721 : vector<8x128xf32>
    %724 = vector.extract_strided_slice %717 {offsets = [0, 128], sizes = [8, 128], strides = [1, 1]} : vector<8x512xf32> to vector<8x128xf32>
    %725 = math.tanh %724 : vector<8x128xf32>
    %cst_224 = arith.constant 5.000000e-01 : f32
    %726 = vector.broadcast %cst_224 : f32 to vector<8x128xf32>
    %727 = arith.mulf %726, %725 : vector<8x128xf32>
    %cst_225 = arith.constant 5.000000e-01 : f32
    %728 = vector.broadcast %cst_225 : f32 to vector<8x128xf32>
    %729 = arith.addf %728, %727 : vector<8x128xf32>
    %730 = vector.extract_strided_slice %717 {offsets = [0, 256], sizes = [8, 128], strides = [1, 1]} : vector<8x512xf32> to vector<8x128xf32>
    %731 = math.tanh %730 : vector<8x128xf32>
    %732 = vector.extract_strided_slice %717 {offsets = [0, 384], sizes = [8, 128], strides = [1, 1]} : vector<8x512xf32> to vector<8x128xf32>
    %733 = math.tanh %732 : vector<8x128xf32>
    %cst_226 = arith.constant 5.000000e-01 : f32
    %734 = vector.broadcast %cst_226 : f32 to vector<8x128xf32>
    %735 = arith.mulf %734, %733 : vector<8x128xf32>
    %cst_227 = arith.constant 5.000000e-01 : f32
    %736 = vector.broadcast %cst_227 : f32 to vector<8x128xf32>
    %737 = arith.addf %736, %735 : vector<8x128xf32>
    %738 = arith.mulf %729, %710 : vector<8x128xf32>
    %739 = arith.mulf %723, %731 : vector<8x128xf32>
    %740 = arith.addf %738, %739 : vector<8x128xf32>
    %741 = math.tanh %740 : vector<8x128xf32>
    %742 = arith.mulf %737, %741 : vector<8x128xf32>
    %c3_i32_228 = arith.constant 3 : i32
    %743 = arith.index_cast %c3_i32_228 : i32 to index
    %c0_229 = arith.constant 0 : index
    %c0_230 = arith.constant 0 : index
    %744 = vector.load %arg15[%743, %c0_229, %c0_230] : memref<8x8x512xf32, #tpu.memory_space<vmem>>, vector<1x8x512xf32>
    %745 = vector.shape_cast %744 : vector<1x8x512xf32> to vector<8x512xf32>
    %cst_231 = arith.constant dense<0.000000e+00> : vector<8x512xf32>
    %746 = tpu.matmul %742, %651, %cst_231 {dimension_numbers = #tpu.dot_dimension_numbers<[1], [0], [0], [1], [0, 0, 1, 1], [], []>} : vector<8x128xf32>, vector<128x512xf32>, vector<8x512xf32> -> vector<8x512xf32>
    %747 = arith.addf %745, %746 : vector<8x512xf32>
    %748 = vector.extract_strided_slice %747 {offsets = [0, 0], sizes = [8, 128], strides = [1, 1]} : vector<8x512xf32> to vector<8x128xf32>
    %749 = math.tanh %748 : vector<8x128xf32>
    %cst_232 = arith.constant 5.000000e-01 : f32
    %750 = vector.broadcast %cst_232 : f32 to vector<8x128xf32>
    %751 = arith.mulf %750, %749 : vector<8x128xf32>
    %cst_233 = arith.constant 5.000000e-01 : f32
    %752 = vector.broadcast %cst_233 : f32 to vector<8x128xf32>
    %753 = arith.addf %752, %751 : vector<8x128xf32>
    %754 = vector.extract_strided_slice %747 {offsets = [0, 128], sizes = [8, 128], strides = [1, 1]} : vector<8x512xf32> to vector<8x128xf32>
    %755 = math.tanh %754 : vector<8x128xf32>
    %cst_234 = arith.constant 5.000000e-01 : f32
    %756 = vector.broadcast %cst_234 : f32 to vector<8x128xf32>
    %757 = arith.mulf %756, %755 : vector<8x128xf32>
    %cst_235 = arith.constant 5.000000e-01 : f32
    %758 = vector.broadcast %cst_235 : f32 to vector<8x128xf32>
    %759 = arith.addf %758, %757 : vector<8x128xf32>
    %760 = vector.extract_strided_slice %747 {offsets = [0, 256], sizes = [8, 128], strides = [1, 1]} : vector<8x512xf32> to vector<8x128xf32>
    %761 = math.tanh %760 : vector<8x128xf32>
    %762 = vector.extract_strided_slice %747 {offsets = [0, 384], sizes = [8, 128], strides = [1, 1]} : vector<8x512xf32> to vector<8x128xf32>
    %763 = math.tanh %762 : vector<8x128xf32>
    %cst_236 = arith.constant 5.000000e-01 : f32
    %764 = vector.broadcast %cst_236 : f32 to vector<8x128xf32>
    %765 = arith.mulf %764, %763 : vector<8x128xf32>
    %cst_237 = arith.constant 5.000000e-01 : f32
    %766 = vector.broadcast %cst_237 : f32 to vector<8x128xf32>
    %767 = arith.addf %766, %765 : vector<8x128xf32>
    %768 = arith.mulf %759, %740 : vector<8x128xf32>
    %769 = arith.mulf %753, %761 : vector<8x128xf32>
    %770 = arith.addf %768, %769 : vector<8x128xf32>
    %771 = math.tanh %770 : vector<8x128xf32>
    %772 = arith.mulf %767, %771 : vector<8x128xf32>
    %c4_i32_238 = arith.constant 4 : i32
    %773 = arith.index_cast %c4_i32_238 : i32 to index
    %c0_239 = arith.constant 0 : index
    %c0_240 = arith.constant 0 : index
    %774 = vector.load %arg15[%773, %c0_239, %c0_240] : memref<8x8x512xf32, #tpu.memory_space<vmem>>, vector<1x8x512xf32>
    %775 = vector.shape_cast %774 : vector<1x8x512xf32> to vector<8x512xf32>
    %cst_241 = arith.constant dense<0.000000e+00> : vector<8x512xf32>
    %776 = tpu.matmul %772, %651, %cst_241 {dimension_numbers = #tpu.dot_dimension_numbers<[1], [0], [0], [1], [0, 0, 1, 1], [], []>} : vector<8x128xf32>, vector<128x512xf32>, vector<8x512xf32> -> vector<8x512xf32>
    %777 = arith.addf %775, %776 : vector<8x512xf32>
    %778 = vector.extract_strided_slice %777 {offsets = [0, 0], sizes = [8, 128], strides = [1, 1]} : vector<8x512xf32> to vector<8x128xf32>
    %779 = math.tanh %778 : vector<8x128xf32>
    %cst_242 = arith.constant 5.000000e-01 : f32
    %780 = vector.broadcast %cst_242 : f32 to vector<8x128xf32>
    %781 = arith.mulf %780, %779 : vector<8x128xf32>
    %cst_243 = arith.constant 5.000000e-01 : f32
    %782 = vector.broadcast %cst_243 : f32 to vector<8x128xf32>
    %783 = arith.addf %782, %781 : vector<8x128xf32>
    %784 = vector.extract_strided_slice %777 {offsets = [0, 128], sizes = [8, 128], strides = [1, 1]} : vector<8x512xf32> to vector<8x128xf32>
    %785 = math.tanh %784 : vector<8x128xf32>
    %cst_244 = arith.constant 5.000000e-01 : f32
    %786 = vector.broadcast %cst_244 : f32 to vector<8x128xf32>
    %787 = arith.mulf %786, %785 : vector<8x128xf32>
    %cst_245 = arith.constant 5.000000e-01 : f32
    %788 = vector.broadcast %cst_245 : f32 to vector<8x128xf32>
    %789 = arith.addf %788, %787 : vector<8x128xf32>
    %790 = vector.extract_strided_slice %777 {offsets = [0, 256], sizes = [8, 128], strides = [1, 1]} : vector<8x512xf32> to vector<8x128xf32>
    %791 = math.tanh %790 : vector<8x128xf32>
    %792 = vector.extract_strided_slice %777 {offsets = [0, 384], sizes = [8, 128], strides = [1, 1]} : vector<8x512xf32> to vector<8x128xf32>
    %793 = math.tanh %792 : vector<8x128xf32>
    %cst_246 = arith.constant 5.000000e-01 : f32
    %794 = vector.broadcast %cst_246 : f32 to vector<8x128xf32>
    %795 = arith.mulf %794, %793 : vector<8x128xf32>
    %cst_247 = arith.constant 5.000000e-01 : f32
    %796 = vector.broadcast %cst_247 : f32 to vector<8x128xf32>
    %797 = arith.addf %796, %795 : vector<8x128xf32>
    %798 = arith.mulf %789, %770 : vector<8x128xf32>
    %799 = arith.mulf %783, %791 : vector<8x128xf32>
    %800 = arith.addf %798, %799 : vector<8x128xf32>
    %801 = math.tanh %800 : vector<8x128xf32>
    %802 = arith.mulf %797, %801 : vector<8x128xf32>
    %c5_i32_248 = arith.constant 5 : i32
    %803 = arith.index_cast %c5_i32_248 : i32 to index
    %c0_249 = arith.constant 0 : index
    %c0_250 = arith.constant 0 : index
    %804 = vector.load %arg15[%803, %c0_249, %c0_250] : memref<8x8x512xf32, #tpu.memory_space<vmem>>, vector<1x8x512xf32>
    %805 = vector.shape_cast %804 : vector<1x8x512xf32> to vector<8x512xf32>
    %cst_251 = arith.constant dense<0.000000e+00> : vector<8x512xf32>
    %806 = tpu.matmul %802, %651, %cst_251 {dimension_numbers = #tpu.dot_dimension_numbers<[1], [0], [0], [1], [0, 0, 1, 1], [], []>} : vector<8x128xf32>, vector<128x512xf32>, vector<8x512xf32> -> vector<8x512xf32>
    %807 = arith.addf %805, %806 : vector<8x512xf32>
    %808 = vector.extract_strided_slice %807 {offsets = [0, 0], sizes = [8, 128], strides = [1, 1]} : vector<8x512xf32> to vector<8x128xf32>
    %809 = math.tanh %808 : vector<8x128xf32>
    %cst_252 = arith.constant 5.000000e-01 : f32
    %810 = vector.broadcast %cst_252 : f32 to vector<8x128xf32>
    %811 = arith.mulf %810, %809 : vector<8x128xf32>
    %cst_253 = arith.constant 5.000000e-01 : f32
    %812 = vector.broadcast %cst_253 : f32 to vector<8x128xf32>
    %813 = arith.addf %812, %811 : vector<8x128xf32>
    %814 = vector.extract_strided_slice %807 {offsets = [0, 128], sizes = [8, 128], strides = [1, 1]} : vector<8x512xf32> to vector<8x128xf32>
    %815 = math.tanh %814 : vector<8x128xf32>
    %cst_254 = arith.constant 5.000000e-01 : f32
    %816 = vector.broadcast %cst_254 : f32 to vector<8x128xf32>
    %817 = arith.mulf %816, %815 : vector<8x128xf32>
    %cst_255 = arith.constant 5.000000e-01 : f32
    %818 = vector.broadcast %cst_255 : f32 to vector<8x128xf32>
    %819 = arith.addf %818, %817 : vector<8x128xf32>
    %820 = vector.extract_strided_slice %807 {offsets = [0, 256], sizes = [8, 128], strides = [1, 1]} : vector<8x512xf32> to vector<8x128xf32>
    %821 = math.tanh %820 : vector<8x128xf32>
    %822 = vector.extract_strided_slice %807 {offsets = [0, 384], sizes = [8, 128], strides = [1, 1]} : vector<8x512xf32> to vector<8x128xf32>
    %823 = math.tanh %822 : vector<8x128xf32>
    %cst_256 = arith.constant 5.000000e-01 : f32
    %824 = vector.broadcast %cst_256 : f32 to vector<8x128xf32>
    %825 = arith.mulf %824, %823 : vector<8x128xf32>
    %cst_257 = arith.constant 5.000000e-01 : f32
    %826 = vector.broadcast %cst_257 : f32 to vector<8x128xf32>
    %827 = arith.addf %826, %825 : vector<8x128xf32>
    %828 = arith.mulf %819, %800 : vector<8x128xf32>
    %829 = arith.mulf %813, %821 : vector<8x128xf32>
    %830 = arith.addf %828, %829 : vector<8x128xf32>
    %831 = math.tanh %830 : vector<8x128xf32>
    %832 = arith.mulf %827, %831 : vector<8x128xf32>
    %c6_i32_258 = arith.constant 6 : i32
    %833 = arith.index_cast %c6_i32_258 : i32 to index
    %c0_259 = arith.constant 0 : index
    %c0_260 = arith.constant 0 : index
    %834 = vector.load %arg15[%833, %c0_259, %c0_260] : memref<8x8x512xf32, #tpu.memory_space<vmem>>, vector<1x8x512xf32>
    %835 = vector.shape_cast %834 : vector<1x8x512xf32> to vector<8x512xf32>
    %cst_261 = arith.constant dense<0.000000e+00> : vector<8x512xf32>
    %836 = tpu.matmul %832, %651, %cst_261 {dimension_numbers = #tpu.dot_dimension_numbers<[1], [0], [0], [1], [0, 0, 1, 1], [], []>} : vector<8x128xf32>, vector<128x512xf32>, vector<8x512xf32> -> vector<8x512xf32>
    %837 = arith.addf %835, %836 : vector<8x512xf32>
    %838 = vector.extract_strided_slice %837 {offsets = [0, 0], sizes = [8, 128], strides = [1, 1]} : vector<8x512xf32> to vector<8x128xf32>
    %839 = math.tanh %838 : vector<8x128xf32>
    %cst_262 = arith.constant 5.000000e-01 : f32
    %840 = vector.broadcast %cst_262 : f32 to vector<8x128xf32>
    %841 = arith.mulf %840, %839 : vector<8x128xf32>
    %cst_263 = arith.constant 5.000000e-01 : f32
    %842 = vector.broadcast %cst_263 : f32 to vector<8x128xf32>
    %843 = arith.addf %842, %841 : vector<8x128xf32>
    %844 = vector.extract_strided_slice %837 {offsets = [0, 128], sizes = [8, 128], strides = [1, 1]} : vector<8x512xf32> to vector<8x128xf32>
    %845 = math.tanh %844 : vector<8x128xf32>
    %cst_264 = arith.constant 5.000000e-01 : f32
    %846 = vector.broadcast %cst_264 : f32 to vector<8x128xf32>
    %847 = arith.mulf %846, %845 : vector<8x128xf32>
    %cst_265 = arith.constant 5.000000e-01 : f32
    %848 = vector.broadcast %cst_265 : f32 to vector<8x128xf32>
    %849 = arith.addf %848, %847 : vector<8x128xf32>
    %850 = vector.extract_strided_slice %837 {offsets = [0, 256], sizes = [8, 128], strides = [1, 1]} : vector<8x512xf32> to vector<8x128xf32>
    %851 = math.tanh %850 : vector<8x128xf32>
    %852 = vector.extract_strided_slice %837 {offsets = [0, 384], sizes = [8, 128], strides = [1, 1]} : vector<8x512xf32> to vector<8x128xf32>
    %853 = math.tanh %852 : vector<8x128xf32>
    %cst_266 = arith.constant 5.000000e-01 : f32
    %854 = vector.broadcast %cst_266 : f32 to vector<8x128xf32>
    %855 = arith.mulf %854, %853 : vector<8x128xf32>
    %cst_267 = arith.constant 5.000000e-01 : f32
    %856 = vector.broadcast %cst_267 : f32 to vector<8x128xf32>
    %857 = arith.addf %856, %855 : vector<8x128xf32>
    %858 = arith.mulf %849, %830 : vector<8x128xf32>
    %859 = arith.mulf %843, %851 : vector<8x128xf32>
    %860 = arith.addf %858, %859 : vector<8x128xf32>
    %861 = math.tanh %860 : vector<8x128xf32>
    %862 = arith.mulf %857, %861 : vector<8x128xf32>
    %c7_i32_268 = arith.constant 7 : i32
    %863 = arith.index_cast %c7_i32_268 : i32 to index
    %c0_269 = arith.constant 0 : index
    %c0_270 = arith.constant 0 : index
    %864 = vector.load %arg15[%863, %c0_269, %c0_270] : memref<8x8x512xf32, #tpu.memory_space<vmem>>, vector<1x8x512xf32>
    %865 = vector.shape_cast %864 : vector<1x8x512xf32> to vector<8x512xf32>
    %cst_271 = arith.constant dense<0.000000e+00> : vector<8x512xf32>
    %866 = tpu.matmul %862, %651, %cst_271 {dimension_numbers = #tpu.dot_dimension_numbers<[1], [0], [0], [1], [0, 0, 1, 1], [], []>} : vector<8x128xf32>, vector<128x512xf32>, vector<8x512xf32> -> vector<8x512xf32>
    %867 = arith.addf %865, %866 : vector<8x512xf32>
    %868 = vector.extract_strided_slice %867 {offsets = [0, 0], sizes = [8, 128], strides = [1, 1]} : vector<8x512xf32> to vector<8x128xf32>
    %869 = math.tanh %868 : vector<8x128xf32>
    %cst_272 = arith.constant 5.000000e-01 : f32
    %870 = vector.broadcast %cst_272 : f32 to vector<8x128xf32>
    %871 = arith.mulf %870, %869 : vector<8x128xf32>
    %cst_273 = arith.constant 5.000000e-01 : f32
    %872 = vector.broadcast %cst_273 : f32 to vector<8x128xf32>
    %873 = arith.addf %872, %871 : vector<8x128xf32>
    %874 = vector.extract_strided_slice %867 {offsets = [0, 128], sizes = [8, 128], strides = [1, 1]} : vector<8x512xf32> to vector<8x128xf32>
    %875 = math.tanh %874 : vector<8x128xf32>
    %cst_274 = arith.constant 5.000000e-01 : f32
    %876 = vector.broadcast %cst_274 : f32 to vector<8x128xf32>
    %877 = arith.mulf %876, %875 : vector<8x128xf32>
    %cst_275 = arith.constant 5.000000e-01 : f32
    %878 = vector.broadcast %cst_275 : f32 to vector<8x128xf32>
    %879 = arith.addf %878, %877 : vector<8x128xf32>
    %880 = vector.extract_strided_slice %867 {offsets = [0, 256], sizes = [8, 128], strides = [1, 1]} : vector<8x512xf32> to vector<8x128xf32>
    %881 = math.tanh %880 : vector<8x128xf32>
    %882 = vector.extract_strided_slice %867 {offsets = [0, 384], sizes = [8, 128], strides = [1, 1]} : vector<8x512xf32> to vector<8x128xf32>
    %883 = math.tanh %882 : vector<8x128xf32>
    %cst_276 = arith.constant 5.000000e-01 : f32
    %884 = vector.broadcast %cst_276 : f32 to vector<8x128xf32>
    %885 = arith.mulf %884, %883 : vector<8x128xf32>
    %cst_277 = arith.constant 5.000000e-01 : f32
    %886 = vector.broadcast %cst_277 : f32 to vector<8x128xf32>
    %887 = arith.addf %886, %885 : vector<8x128xf32>
    %888 = arith.mulf %879, %860 : vector<8x128xf32>
    %889 = arith.mulf %873, %881 : vector<8x128xf32>
    %890 = arith.addf %888, %889 : vector<8x128xf32>
    %891 = math.tanh %890 : vector<8x128xf32>
    %892 = arith.mulf %887, %891 : vector<8x128xf32>
    %c8_i32_278 = arith.constant 8 : i32
    %c7 = arith.constant 7 : index
    %c0_279 = arith.constant 0 : index
    %c0_280 = arith.constant 0 : index
    %893 = vector.load %arg14[%c7, %c0_279, %c0_280] : memref<8x8x256xf32, #tpu.memory_space<vmem>>, vector<1x8x256xf32>
    %894 = vector.shape_cast %893 : vector<1x8x256xf32> to vector<8x256xf32>
    %c0_281 = arith.constant 0 : index
    %c0_282 = arith.constant 0 : index
    %895 = vector.load %arg9[%c0_281, %c0_282] : memref<256x512xf32, #tpu.memory_space<vmem>>, vector<256x512xf32>
    %cst_283 = arith.constant dense<0.000000e+00> : vector<8x512xf32>
    %896 = tpu.matmul %894, %895, %cst_283 {dimension_numbers = #tpu.dot_dimension_numbers<[1], [0], [0], [1], [0, 0, 1, 1], [], []>} : vector<8x256xf32>, vector<256x512xf32>, vector<8x512xf32> -> vector<8x512xf32>
    %c0_284 = arith.constant 0 : index
    %c0_285 = arith.constant 0 : index
    %897 = vector.load %arg10[%c0_284, %c0_285] : memref<1x512xf32, #tpu.memory_space<vmem>>, vector<1x512xf32>
    %898 = vector.broadcast %897 : vector<1x512xf32> to vector<8x512xf32>
    %899 = arith.addf %896, %898 : vector<8x512xf32>
    %900 = vector.extract_strided_slice %899 {offsets = [0, 0], sizes = [8, 128], strides = [1, 1]} : vector<8x512xf32> to vector<8x128xf32>
    %901 = math.tanh %900 : vector<8x128xf32>
    %cst_286 = arith.constant 5.000000e-01 : f32
    %902 = vector.broadcast %cst_286 : f32 to vector<8x128xf32>
    %903 = arith.mulf %902, %901 : vector<8x128xf32>
    %cst_287 = arith.constant 5.000000e-01 : f32
    %904 = vector.broadcast %cst_287 : f32 to vector<8x128xf32>
    %905 = arith.addf %904, %903 : vector<8x128xf32>
    %906 = vector.extract_strided_slice %899 {offsets = [0, 128], sizes = [8, 128], strides = [1, 1]} : vector<8x512xf32> to vector<8x128xf32>
    %907 = math.tanh %906 : vector<8x128xf32>
    %cst_288 = arith.constant 5.000000e-01 : f32
    %908 = vector.broadcast %cst_288 : f32 to vector<8x128xf32>
    %909 = arith.mulf %908, %907 : vector<8x128xf32>
    %cst_289 = arith.constant 5.000000e-01 : f32
    %910 = vector.broadcast %cst_289 : f32 to vector<8x128xf32>
    %911 = arith.addf %910, %909 : vector<8x128xf32>
    %912 = vector.extract_strided_slice %899 {offsets = [0, 256], sizes = [8, 128], strides = [1, 1]} : vector<8x512xf32> to vector<8x128xf32>
    %913 = math.tanh %912 : vector<8x128xf32>
    %914 = vector.extract_strided_slice %899 {offsets = [0, 384], sizes = [8, 128], strides = [1, 1]} : vector<8x512xf32> to vector<8x128xf32>
    %915 = math.tanh %914 : vector<8x128xf32>
    %cst_290 = arith.constant 5.000000e-01 : f32
    %916 = vector.broadcast %cst_290 : f32 to vector<8x128xf32>
    %917 = arith.mulf %916, %915 : vector<8x128xf32>
    %cst_291 = arith.constant 5.000000e-01 : f32
    %918 = vector.broadcast %cst_291 : f32 to vector<8x128xf32>
    %919 = arith.addf %918, %917 : vector<8x128xf32>
    %920 = arith.mulf %911, %652 : vector<8x128xf32>
    %921 = arith.mulf %905, %913 : vector<8x128xf32>
    %922 = arith.addf %920, %921 : vector<8x128xf32>
    %923 = math.tanh %922 : vector<8x128xf32>
    %924 = arith.mulf %919, %923 : vector<8x128xf32>
    %925 = tpu.concatenate %892, %924 in 1 : vector<8x128xf32>, vector<8x128xf32> -> vector<8x256xf32>
    %c0_292 = arith.constant 0 : index
    %c0_293 = arith.constant 0 : index
    %926 = vector.load %arg11[%c0_292, %c0_293] : memref<256x4xf32, #tpu.memory_space<vmem>>, vector<256x4xf32>
    %cst_294 = arith.constant dense<0.000000e+00> : vector<8x4xf32>
    %927 = tpu.matmul %925, %926, %cst_294 {dimension_numbers = #tpu.dot_dimension_numbers<[1], [0], [0], [1], [0, 0, 1, 1], [], []>} : vector<8x256xf32>, vector<256x4xf32>, vector<8x4xf32> -> vector<8x4xf32>
    %c0_295 = arith.constant 0 : index
    %c0_296 = arith.constant 0 : index
    %928 = vector.load %arg12[%c0_295, %c0_296] : memref<1x4xf32, #tpu.memory_space<vmem>>, vector<1x4xf32>
    %929 = vector.broadcast %928 : vector<1x4xf32> to vector<8x4xf32>
    %930 = arith.addf %927, %929 : vector<8x4xf32>
    %931 = arith.negf %930 : vector<8x4xf32>
    %932 = math.exp %931 : vector<8x4xf32>
    %cst_297 = arith.constant 1.000000e+00 : f32
    %933 = vector.broadcast %cst_297 : f32 to vector<8x4xf32>
    %934 = arith.addf %933, %932 : vector<8x4xf32>
    %935 = arith.divf %933, %934 : vector<8x4xf32>
    %c0_298 = arith.constant 0 : index
    %c0_299 = arith.constant 0 : index
    %936 = vector.load %arg13[%c0_298, %c0_299] : memref<8x4xf32, #tpu.memory_space<vmem>>, vector<8x4xf32>
    tpu.vector_store %arg13[%c0_298, %c0_299], %935 {strides = array<i32>} : memref<8x4xf32, #tpu.memory_space<vmem>>, vector<8x4xf32>,
    return
  }
}

</mosaic_0001>

<llo_original>
// kernel: quadcdd_forward.1
$region0: #{quadcdd_forward.1}
  #allocation0 [shape = 'u32[]', space=smem, size = 0x4, offset = 0x4, fixed_abs, tag = 'smem constant byte address 0x4 - core index']
  #allocation1 [shape = 'u32[144,128]{1,0:T(1,128)}', space=vmem, size = 0x12000, scoped, tag = 'internal scratch']
  #allocation2 [shape = 'f32[8,8,256]{2,1,0:T(8,128)}', space=vmem, size = 0x10000, scoped, tag = 'scratch operand']
  #allocation3 [shape = 'f32[8,8,512]{2,1,0:T(8,128)}', space=vmem, size = 0x20000, scoped, tag = 'scratch operand']
  %s0 = inlined_call_operand.vmem [shape: f32[8,8,1], index: 0, kind: input, shape index: {}]
  %s1 = inlined_call_operand.vmem [shape: f32[1,512], index: 1, kind: input, shape index: {}]
  %s2 = inlined_call_operand.vmem [shape: f32[1,512], index: 2, kind: input, shape index: {}]
  %s3 = inlined_call_operand.vmem [shape: f32[1,512], index: 3, kind: input, shape index: {}]
  %s4 = inlined_call_operand.vmem [shape: f32[1,512], index: 4, kind: input, shape index: {}]
  %s5 = inlined_call_operand.vmem [shape: f32[256,1024], index: 5, kind: input, shape index: {}]
  %s6 = inlined_call_operand.vmem [shape: f32[256,512], index: 6, kind: input, shape index: {}]
  %s7 = inlined_call_operand.vmem [shape: f32[128,512], index: 7, kind: input, shape index: {}]
  %s8 = inlined_call_operand.vmem [shape: f32[1,512], index: 8, kind: input, shape index: {}]
  %s9 = inlined_call_operand.vmem [shape: f32[256,512], index: 9, kind: input, shape index: {}]
  %s10 = inlined_call_operand.vmem [shape: f32[1,512], index: 10, kind: input, shape index: {}]
  %s11 = inlined_call_operand.vmem [shape: f32[256,4], index: 11, kind: input, shape index: {}]
  %s12 = inlined_call_operand.vmem [shape: f32[1,4], index: 12, kind: input, shape index: {}]
  %s13 = inlined_call_operand.vmem [shape: f32[8,4], index: 13, kind: output, shape index: {}]
  %s14 = sld [smem:[#allocation0]]
  $region62: #{quadcdd_forward.1} parent=0
    _
  %s16 = ssub.s32 1, %s14
  %s17 = scalar_select 0, %s16, %s14
  // Predicated region
  $region2: #{quadcdd_forward.1} parent=0 // pred_check
    _
  $region3: #{quadcdd_forward.1} parent=0 // pred_check_branch
    %19 = sbr.rel (0) target = $region5
  $region4: #{quadcdd_forward.1} parent=0 // pred_region
    _
  $region5: #{quadcdd_forward.1} parent=0 // pred_fallthru
    _
  // Predicated region
  $region6: #{quadcdd_forward.1} parent=0 // pred_check
    _
  $region7: #{quadcdd_forward.1} parent=0 // pred_check_branch
    %21 = sbr.rel (0) target = $region9
  $region8: #{quadcdd_forward.1} parent=0 // pred_region
    _
  $region9: #{quadcdd_forward.1} parent=0 // pred_fallthru
    _
  // Predicated region
  $region10: #{quadcdd_forward.1} parent=0 // pred_check
    _
  $region11: #{quadcdd_forward.1} parent=0 // pred_check_branch
    %23 = sbr.rel (0) target = $region13
  $region12: #{quadcdd_forward.1} parent=0 // pred_region
    _
  $region13: #{quadcdd_forward.1} parent=0 // pred_fallthru
    _
  // Predicated region
  $region14: #{quadcdd_forward.1} parent=0 // pred_check
    _
  $region15: #{quadcdd_forward.1} parent=0 // pred_check_branch
    %25 = sbr.rel (0) target = $region17
  $region16: #{quadcdd_forward.1} parent=0 // pred_region
    _
  $region17: #{quadcdd_forward.1} parent=0 // pred_fallthru
    _
  // Predicated region
  $region18: #{quadcdd_forward.1} parent=0 // pred_check
    _
  $region19: #{quadcdd_forward.1} parent=0 // pred_check_branch
    %27 = sbr.rel (0) target = $region21
  $region20: #{quadcdd_forward.1} parent=0 // pred_region
    _
  $region21: #{quadcdd_forward.1} parent=0 // pred_fallthru
    _
  // Predicated region
  $region22: #{quadcdd_forward.1} parent=0 // pred_check
    _
  $region23: #{quadcdd_forward.1} parent=0 // pred_check_branch
    %29 = sbr.rel (0) target = $region25
  $region24: #{quadcdd_forward.1} parent=0 // pred_region
    _
  $region25: #{quadcdd_forward.1} parent=0 // pred_fallthru
    _
  // Predicated region
  $region26: #{quadcdd_forward.1} parent=0 // pred_check
    _
  $region27: #{quadcdd_forward.1} parent=0 // pred_check_branch
    %31 = sbr.rel (0) target = $region29
  $region28: #{quadcdd_forward.1} parent=0 // pred_region
    _
  $region29: #{quadcdd_forward.1} parent=0 // pred_fallthru
    _
  // Predicated region
  $region30: #{quadcdd_forward.1} parent=0 // pred_check
    _
  $region31: #{quadcdd_forward.1} parent=0 // pred_check_branch
    %33 = sbr.rel (0) target = $region33
  $region32: #{quadcdd_forward.1} parent=0 // pred_region
    _
  $region33: #{quadcdd_forward.1} parent=0 // pred_fallthru
    _
  // Predicated region
  $region34: #{quadcdd_forward.1} parent=0 // pred_check
    _
  $region35: #{quadcdd_forward.1} parent=0 // pred_check_branch
    %35 = sbr.rel (0) target = $region37
  $region36: #{quadcdd_forward.1} parent=0 // pred_region
    _
  $region37: #{quadcdd_forward.1} parent=0 // pred_fallthru
    _
  // Predicated region
  $region38: #{quadcdd_forward.1} parent=0 // pred_check
    _
  $region39: #{quadcdd_forward.1} parent=0 // pred_check_branch
    %37 = sbr.rel (0) target = $region41
  $region40: #{quadcdd_forward.1} parent=0 // pred_region
    _
  $region41: #{quadcdd_forward.1} parent=0 // pred_fallthru
    _
  // Predicated region
  $region42: #{quadcdd_forward.1} parent=0 // pred_check
    _
  $region43: #{quadcdd_forward.1} parent=0 // pred_check_branch
    %39 = sbr.rel (0) target = $region45
  $region44: #{quadcdd_forward.1} parent=0 // pred_region
    _
  $region45: #{quadcdd_forward.1} parent=0 // pred_fallthru
    _
  // Predicated region
  $region46: #{quadcdd_forward.1} parent=0 // pred_check
    _
  $region47: #{quadcdd_forward.1} parent=0 // pred_check_branch
    %41 = sbr.rel (0) target = $region49
  $region48: #{quadcdd_forward.1} parent=0 // pred_region
    _
  $region49: #{quadcdd_forward.1} parent=0 // pred_fallthru
    _
  // Predicated region
  $region50: #{quadcdd_forward.1} parent=0 // pred_check
    _
  $region51: #{quadcdd_forward.1} parent=0 // pred_check_branch
    %43 = sbr.rel (0) target = $region53
  $region52: #{quadcdd_forward.1} parent=0 // pred_region
    _
  $region53: #{quadcdd_forward.1} parent=0 // pred_fallthru
    _
  %v44 = vld [vmem:[%s1] sm:$0xf]
  %v45 = vld [vmem:[%s3] sm:$0xf]
  %v46 = vld [vmem:[%s5] sm:$0xff]
  %v47 = vld [vmem:[%s5 + $0x8] sm:$0xff]
  %v48 = vld [vmem:[%s5 + $0x10] sm:$0xff]
  %v49 = vld [vmem:[%s5 + $0x18] sm:$0xff]
  %v50 = vld [vmem:[%s5 + $0x20] sm:$0xff]
  %v51 = vld [vmem:[%s5 + $0x28] sm:$0xff]
  %v52 = vld [vmem:[%s5 + $0x30] sm:$0xff]
  %v53 = vld [vmem:[%s5 + $0x38] sm:$0xff]
  %v54 = vld [vmem:[%s5 + $0x40] sm:$0xff]
  %v55 = vld [vmem:[%s5 + $0x48] sm:$0xff]
  %v56 = vld [vmem:[%s5 + $0x50] sm:$0xff]
  %v57 = vld [vmem:[%s5 + $0x58] sm:$0xff]
  %v58 = vld [vmem:[%s5 + $0x60] sm:$0xff]
  %v59 = vld [vmem:[%s5 + $0x68] sm:$0xff]
  %v60 = vld [vmem:[%s5 + $0x70] sm:$0xff]
  %v61 = vld [vmem:[%s5 + $0x78] sm:$0xff]
  %v62 = vld [vmem:[%s5 + $0x80] sm:$0xff]
  %v63 = vld [vmem:[%s5 + $0x88] sm:$0xff]
  %v64 = vld [vmem:[%s5 + $0x90] sm:$0xff]
  %v65 = vld [vmem:[%s5 + $0x98] sm:$0xff]
  %v66 = vld [vmem:[%s5 + $0xa0] sm:$0xff]
  %v67 = vld [vmem:[%s5 + $0xa8] sm:$0xff]
  %v68 = vld [vmem:[%s5 + $0xb0] sm:$0xff]
  %v69 = vld [vmem:[%s5 + $0xb8] sm:$0xff]
  %v70 = vld [vmem:[%s5 + $0xc0] sm:$0xff]
  %v71 = vld [vmem:[%s5 + $0xc8] sm:$0xff]
  %v72 = vld [vmem:[%s5 + $0xd0] sm:$0xff]
  %v73 = vld [vmem:[%s5 + $0xd8] sm:$0xff]
  %v74 = vld [vmem:[%s5 + $0xe0] sm:$0xff]
  %v75 = vld [vmem:[%s5 + $0xe8] sm:$0xff]
  %v76 = vld [vmem:[%s5 + $0xf0] sm:$0xff]
  %v77 = vld [vmem:[%s5 + $0xf8] sm:$0xff]
  %v78 = vld [vmem:[%s5 + $0x100] sm:$0xff]
  %v79 = vld [vmem:[%s5 + $0x108] sm:$0xff]
  %v80 = vld [vmem:[%s5 + $0x110] sm:$0xff]
  %v81 = vld [vmem:[%s5 + $0x118] sm:$0xff]
  %v82 = vld [vmem:[%s5 + $0x120] sm:$0xff]
  %v83 = vld [vmem:[%s5 + $0x128] sm:$0xff]
  %v84 = vld [vmem:[%s5 + $0x130] sm:$0xff]
  %v85 = vld [vmem:[%s5 + $0x138] sm:$0xff]
  %v86 = vld [vmem:[%s5 + $0x140] sm:$0xff]
  %v87 = vld [vmem:[%s5 + $0x148] sm:$0xff]
  %v88 = vld [vmem:[%s5 + $0x150] sm:$0xff]
  %v89 = vld [vmem:[%s5 + $0x158] sm:$0xff]
  %v90 = vld [vmem:[%s5 + $0x160] sm:$0xff]
  %v91 = vld [vmem:[%s5 + $0x168] sm:$0xff]
  %v92 = vld [vmem:[%s5 + $0x170] sm:$0xff]
  %v93 = vld [vmem:[%s5 + $0x178] sm:$0xff]
  %v94 = vld [vmem:[%s5 + $0x180] sm:$0xff]
  %v95 = vld [vmem:[%s5 + $0x188] sm:$0xff]
  %v96 = vld [vmem:[%s5 + $0x190] sm:$0xff]
  %v97 = vld [vmem:[%s5 + $0x198] sm:$0xff]
  %v98 = vld [vmem:[%s5 + $0x1a0] sm:$0xff]
  %v99 = vld [vmem:[%s5 + $0x1a8] sm:$0xff]
  %v100 = vld [vmem:[%s5 + $0x1b0] sm:$0xff]
  %v101 = vld [vmem:[%s5 + $0x1b8] sm:$0xff]
  %v102 = vld [vmem:[%s5 + $0x1c0] sm:$0xff]
  %v103 = vld [vmem:[%s5 + $0x1c8] sm:$0xff]
  %v104 = vld [vmem:[%s5 + $0x1d0] sm:$0xff]
  %v105 = vld [vmem:[%s5 + $0x1d8] sm:$0xff]
  %v106 = vld [vmem:[%s5 + $0x1e0] sm:$0xff]
  %v107 = vld [vmem:[%s5 + $0x1e8] sm:$0xff]
  %v108 = vld [vmem:[%s5 + $0x1f0] sm:$0xff]
  %v109 = vld [vmem:[%s5 + $0x1f8] sm:$0xff]
  %v110 = vld [vmem:[%s5 + $0x200] sm:$0xff]
  %v111 = vld [vmem:[%s5 + $0x208] sm:$0xff]
  %v112 = vld [vmem:[%s5 + $0x210] sm:$0xff]
  %v113 = vld [vmem:[%s5 + $0x218] sm:$0xff]
  %v114 = vld [vmem:[%s5 + $0x220] sm:$0xff]
  %v115 = vld [vmem:[%s5 + $0x228] sm:$0xff]
  %v116 = vld [vmem:[%s5 + $0x230] sm:$0xff]
  %v117 = vld [vmem:[%s5 + $0x238] sm:$0xff]
  %v118 = vld [vmem:[%s5 + $0x240] sm:$0xff]
  %v119 = vld [vmem:[%s5 + $0x248] sm:$0xff]
  %v120 = vld [vmem:[%s5 + $0x250] sm:$0xff]
  %v121 = vld [vmem:[%s5 + $0x258] sm:$0xff]
  %v122 = vld [vmem:[%s5 + $0x260] sm:$0xff]
  %v123 = vld [vmem:[%s5 + $0x268] sm:$0xff]
  %v124 = vld [vmem:[%s5 + $0x270] sm:$0xff]
  %v125 = vld [vmem:[%s5 + $0x278] sm:$0xff]
  %v126 = vld [vmem:[%s5 + $0x280] sm:$0xff]
  %v127 = vld [vmem:[%s5 + $0x288] sm:$0xff]
  %v128 = vld [vmem:[%s5 + $0x290] sm:$0xff]
  %v129 = vld [vmem:[%s5 + $0x298] sm:$0xff]
  %v130 = vld [vmem:[%s5 + $0x2a0] sm:$0xff]
  %v131 = vld [vmem:[%s5 + $0x2a8] sm:$0xff]
  %v132 = vld [vmem:[%s5 + $0x2b0] sm:$0xff]
  %v133 = vld [vmem:[%s5 + $0x2b8] sm:$0xff]
  %v134 = vld [vmem:[%s5 + $0x2c0] sm:$0xff]
  %v135 = vld [vmem:[%s5 + $0x2c8] sm:$0xff]
  %v136 = vld [vmem:[%s5 + $0x2d0] sm:$0xff]
  %v137 = vld [vmem:[%s5 + $0x2d8] sm:$0xff]
  %v138 = vld [vmem:[%s5 + $0x2e0] sm:$0xff]
  %v139 = vld [vmem:[%s5 + $0x2e8] sm:$0xff]
  %v140 = vld [vmem:[%s5 + $0x2f0] sm:$0xff]
  %v141 = vld [vmem:[%s5 + $0x2f8] sm:$0xff]
  %v142 = vld [vmem:[%s5 + $0x300] sm:$0xff]
  %v143 = vld [vmem:[%s5 + $0x308] sm:$0xff]
  %v144 = vld [vmem:[%s5 + $0x310] sm:$0xff]
  %v145 = vld [vmem:[%s5 + $0x318] sm:$0xff]
  %v146 = vld [vmem:[%s5 + $0x320] sm:$0xff]
  %v147 = vld [vmem:[%s5 + $0x328] sm:$0xff]
  %v148 = vld [vmem:[%s5 + $0x330] sm:$0xff]
  %v149 = vld [vmem:[%s5 + $0x338] sm:$0xff]
  %v150 = vld [vmem:[%s5 + $0x340] sm:$0xff]
  %v151 = vld [vmem:[%s5 + $0x348] sm:$0xff]
  %v152 = vld [vmem:[%s5 + $0x350] sm:$0xff]
  %v153 = vld [vmem:[%s5 + $0x358] sm:$0xff]
  %v154 = vld [vmem:[%s5 + $0x360] sm:$0xff]
  %v155 = vld [vmem:[%s5 + $0x368] sm:$0xff]
  %v156 = vld [vmem:[%s5 + $0x370] sm:$0xff]
  %v157 = vld [vmem:[%s5 + $0x378] sm:$0xff]
  %v158 = vld [vmem:[%s5 + $0x380] sm:$0xff]
  %v159 = vld [vmem:[%s5 + $0x388] sm:$0xff]
  %v160 = vld [vmem:[%s5 + $0x390] sm:$0xff]
  %v161 = vld [vmem:[%s5 + $0x398] sm:$0xff]
  %v162 = vld [vmem:[%s5 + $0x3a0] sm:$0xff]
  %v163 = vld [vmem:[%s5 + $0x3a8] sm:$0xff]
  %v164 = vld [vmem:[%s5 + $0x3b0] sm:$0xff]
  %v165 = vld [vmem:[%s5 + $0x3b8] sm:$0xff]
  %v166 = vld [vmem:[%s5 + $0x3c0] sm:$0xff]
  %v167 = vld [vmem:[%s5 + $0x3c8] sm:$0xff]
  %v168 = vld [vmem:[%s5 + $0x3d0] sm:$0xff]
  %v169 = vld [vmem:[%s5 + $0x3d8] sm:$0xff]
  %v170 = vld [vmem:[%s5 + $0x3e0] sm:$0xff]
  %v171 = vld [vmem:[%s5 + $0x3e8] sm:$0xff]
  %v172 = vld [vmem:[%s5 + $0x3f0] sm:$0xff]
  %v173 = vld [vmem:[%s5 + $0x3f8] sm:$0xff]
  %v174 = vld [vmem:[%s5 + $0x400] sm:$0xff]
  %v175 = vld [vmem:[%s5 + $0x408] sm:$0xff]
  %v176 = vld [vmem:[%s5 + $0x410] sm:$0xff]
  %v177 = vld [vmem:[%s5 + $0x418] sm:$0xff]
  %v178 = vld [vmem:[%s5 + $0x420] sm:$0xff]
  %v179 = vld [vmem:[%s5 + $0x428] sm:$0xff]
  %v180 = vld [vmem:[%s5 + $0x430] sm:$0xff]
  %v181 = vld [vmem:[%s5 + $0x438] sm:$0xff]
  %v182 = vld [vmem:[%s5 + $0x440] sm:$0xff]
  %v183 = vld [vmem:[%s5 + $0x448] sm:$0xff]
  %v184 = vld [vmem:[%s5 + $0x450] sm:$0xff]
  %v185 = vld [vmem:[%s5 + $0x458] sm:$0xff]
  %v186 = vld [vmem:[%s5 + $0x460] sm:$0xff]
  %v187 = vld [vmem:[%s5 + $0x468] sm:$0xff]
  %v188 = vld [vmem:[%s5 + $0x470] sm:$0xff]
  %v189 = vld [vmem:[%s5 + $0x478] sm:$0xff]
  %v190 = vld [vmem:[%s5 + $0x480] sm:$0xff]
  %v191 = vld [vmem:[%s5 + $0x488] sm:$0xff]
  %v192 = vld [vmem:[%s5 + $0x490] sm:$0xff]
  %v193 = vld [vmem:[%s5 + $0x498] sm:$0xff]
  %v194 = vld [vmem:[%s5 + $0x4a0] sm:$0xff]
  %v195 = vld [vmem:[%s5 + $0x4a8] sm:$0xff]
  %v196 = vld [vmem:[%s5 + $0x4b0] sm:$0xff]
  %v197 = vld [vmem:[%s5 + $0x4b8] sm:$0xff]
  %v198 = vld [vmem:[%s5 + $0x4c0] sm:$0xff]
  %v199 = vld [vmem:[%s5 + $0x4c8] sm:$0xff]
  %v200 = vld [vmem:[%s5 + $0x4d0] sm:$0xff]
  %v201 = vld [vmem:[%s5 + $0x4d8] sm:$0xff]
  %v202 = vld [vmem:[%s5 + $0x4e0] sm:$0xff]
  %v203 = vld [vmem:[%s5 + $0x4e8] sm:$0xff]
  %v204 = vld [vmem:[%s5 + $0x4f0] sm:$0xff]
  %v205 = vld [vmem:[%s5 + $0x4f8] sm:$0xff]
  %v206 = vld [vmem:[%s5 + $0x500] sm:$0xff]
  %v207 = vld [vmem:[%s5 + $0x508] sm:$0xff]
  %v208 = vld [vmem:[%s5 + $0x510] sm:$0xff]
  %v209 = vld [vmem:[%s5 + $0x518] sm:$0xff]
  %v210 = vld [vmem:[%s5 + $0x520] sm:$0xff]
  %v211 = vld [vmem:[%s5 + $0x528] sm:$0xff]
  %v212 = vld [vmem:[%s5 + $0x530] sm:$0xff]
  %v213 = vld [vmem:[%s5 + $0x538] sm:$0xff]
  %v214 = vld [vmem:[%s5 + $0x540] sm:$0xff]
  %v215 = vld [vmem:[%s5 + $0x548] sm:$0xff]
  %v216 = vld [vmem:[%s5 + $0x550] sm:$0xff]
  %v217 = vld [vmem:[%s5 + $0x558] sm:$0xff]
  %v218 = vld [vmem:[%s5 + $0x560] sm:$0xff]
  %v219 = vld [vmem:[%s5 + $0x568] sm:$0xff]
  %v220 = vld [vmem:[%s5 + $0x570] sm:$0xff]
  %v221 = vld [vmem:[%s5 + $0x578] sm:$0xff]
  %v222 = vld [vmem:[%s5 + $0x580] sm:$0xff]
  %v223 = vld [vmem:[%s5 + $0x588] sm:$0xff]
  %v224 = vld [vmem:[%s5 + $0x590] sm:$0xff]
  %v225 = vld [vmem:[%s5 + $0x598] sm:$0xff]
  %v226 = vld [vmem:[%s5 + $0x5a0] sm:$0xff]
  %v227 = vld [vmem:[%s5 + $0x5a8] sm:$0xff]
  %v228 = vld [vmem:[%s5 + $0x5b0] sm:$0xff]
  %v229 = vld [vmem:[%s5 + $0x5b8] sm:$0xff]
  %v230 = vld [vmem:[%s5 + $0x5c0] sm:$0xff]
  %v231 = vld [vmem:[%s5 + $0x5c8] sm:$0xff]
  %v232 = vld [vmem:[%s5 + $0x5d0] sm:$0xff]
  %v233 = vld [vmem:[%s5 + $0x5d8] sm:$0xff]
  %v234 = vld [vmem:[%s5 + $0x5e0] sm:$0xff]
  %v235 = vld [vmem:[%s5 + $0x5e8] sm:$0xff]
  %v236 = vld [vmem:[%s5 + $0x5f0] sm:$0xff]
  %v237 = vld [vmem:[%s5 + $0x5f8] sm:$0xff]
  %v238 = vld [vmem:[%s5 + $0x600] sm:$0xff]
  %v239 = vld [vmem:[%s5 + $0x608] sm:$0xff]
  %v240 = vld [vmem:[%s5 + $0x610] sm:$0xff]
  %v241 = vld [vmem:[%s5 + $0x618] sm:$0xff]
  %v242 = vld [vmem:[%s5 + $0x620] sm:$0xff]
  %v243 = vld [vmem:[%s5 + $0x628] sm:$0xff]
  %v244 = vld [vmem:[%s5 + $0x630] sm:$0xff]
  %v245 = vld [vmem:[%s5 + $0x638] sm:$0xff]
  %v246 = vld [vmem:[%s5 + $0x640] sm:$0xff]
  %v247 = vld [vmem:[%s5 + $0x648] sm:$0xff]
  %v248 = vld [vmem:[%s5 + $0x650] sm:$0xff]
  %v249 = vld [vmem:[%s5 + $0x658] sm:$0xff]
  %v250 = vld [vmem:[%s5 + $0x660] sm:$0xff]
  %v251 = vld [vmem:[%s5 + $0x668] sm:$0xff]
  %v252 = vld [vmem:[%s5 + $0x670] sm:$0xff]
  %v253 = vld [vmem:[%s5 + $0x678] sm:$0xff]
  %v254 = vld [vmem:[%s5 + $0x680] sm:$0xff]
  %v255 = vld [vmem:[%s5 + $0x688] sm:$0xff]
  %v256 = vld [vmem:[%s5 + $0x690] sm:$0xff]
  %v257 = vld [vmem:[%s5 + $0x698] sm:$0xff]
  %v258 = vld [vmem:[%s5 + $0x6a0] sm:$0xff]
  %v259 = vld [vmem:[%s5 + $0x6a8] sm:$0xff]
  %v260 = vld [vmem:[%s5 + $0x6b0] sm:$0xff]
  %v261 = vld [vmem:[%s5 + $0x6b8] sm:$0xff]
  %v262 = vld [vmem:[%s5 + $0x6c0] sm:$0xff]
  %v263 = vld [vmem:[%s5 + $0x6c8] sm:$0xff]
  %v264 = vld [vmem:[%s5 + $0x6d0] sm:$0xff]
  %v265 = vld [vmem:[%s5 + $0x6d8] sm:$0xff]
  %v266 = vld [vmem:[%s5 + $0x6e0] sm:$0xff]
  %v267 = vld [vmem:[%s5 + $0x6e8] sm:$0xff]
  %v268 = vld [vmem:[%s5 + $0x6f0] sm:$0xff]
  %v269 = vld [vmem:[%s5 + $0x6f8] sm:$0xff]
  %v270 = vld [vmem:[%s5 + $0x700] sm:$0xff]
  %v271 = vld [vmem:[%s5 + $0x708] sm:$0xff]
  %v272 = vld [vmem:[%s5 + $0x710] sm:$0xff]
  %v273 = vld [vmem:[%s5 + $0x718] sm:$0xff]
  %v274 = vld [vmem:[%s5 + $0x720] sm:$0xff]
  %v275 = vld [vmem:[%s5 + $0x728] sm:$0xff]
  %v276 = vld [vmem:[%s5 + $0x730] sm:$0xff]
  %v277 = vld [vmem:[%s5 + $0x738] sm:$0xff]
  %v278 = vld [vmem:[%s5 + $0x740] sm:$0xff]
  %v279 = vld [vmem:[%s5 + $0x748] sm:$0xff]
  %v280 = vld [vmem:[%s5 + $0x750] sm:$0xff]
  %v281 = vld [vmem:[%s5 + $0x758] sm:$0xff]
  %v282 = vld [vmem:[%s5 + $0x760] sm:$0xff]
  %v283 = vld [vmem:[%s5 + $0x768] sm:$0xff]
  %v284 = vld [vmem:[%s5 + $0x770] sm:$0xff]
  %v285 = vld [vmem:[%s5 + $0x778] sm:$0xff]
  %v286 = vld [vmem:[%s5 + $0x780] sm:$0xff]
  %v287 = vld [vmem:[%s5 + $0x788] sm:$0xff]
  %v288 = vld [vmem:[%s5 + $0x790] sm:$0xff]
  %v289 = vld [vmem:[%s5 + $0x798] sm:$0xff]
  %v290 = vld [vmem:[%s5 + $0x7a0] sm:$0xff]
  %v291 = vld [vmem:[%s5 + $0x7a8] sm:$0xff]
  %v292 = vld [vmem:[%s5 + $0x7b0] sm:$0xff]
  %v293 = vld [vmem:[%s5 + $0x7b8] sm:$0xff]
  %v294 = vld [vmem:[%s5 + $0x7c0] sm:$0xff]
  %v295 = vld [vmem:[%s5 + $0x7c8] sm:$0xff]
  %v296 = vld [vmem:[%s5 + $0x7d0] sm:$0xff]
  %v297 = vld [vmem:[%s5 + $0x7d8] sm:$0xff]
  %v298 = vld [vmem:[%s5 + $0x7e0] sm:$0xff]
  %v299 = vld [vmem:[%s5 + $0x7e8] sm:$0xff]
  %v300 = vld [vmem:[%s5 + $0x7f0] sm:$0xff]
  %v301 = vld [vmem:[%s5 + $0x7f8] sm:$0xff]
  %v302 = vld [vmem:[%s2] sm:$0xf]
  %v304 = vlaneseq
  %v305 = vshrl.u32 %v304, 7
  %v306 = vsub.s32 0, %v305
  %v307 = vrot.slane %v302, %v306
  %v308 = vlaneseq
  %v309 = vshrl.u32 %v308, 7
  %v310 = vsub.s32 1, %v309
  %v311 = vrot.slane %v302, %v310
  %v312 = vlaneseq
  %v313 = vshrl.u32 %v312, 7
  %v314 = vsub.s32 2, %v313
  %v315 = vrot.slane %v302, %v314
  %v316 = vlaneseq
  %v317 = vshrl.u32 %v316, 7
  %v318 = vsub.s32 3, %v317
  %v319 = vrot.slane %v302, %v318
  %v324 = vld [vmem:[%s4] sm:$0xf]
  %v326 = vlaneseq
  %v327 = vshrl.u32 %v326, 7
  %v328 = vsub.s32 0, %v327
  %v329 = vrot.slane %v324, %v328
  %v330 = vlaneseq
  %v331 = vshrl.u32 %v330, 7
  %v332 = vsub.s32 1, %v331
  %v333 = vrot.slane %v324, %v332
  %v334 = vlaneseq
  %v335 = vshrl.u32 %v334, 7
  %v336 = vsub.s32 2, %v335
  %v337 = vrot.slane %v324, %v336
  %v338 = vlaneseq
  %v339 = vshrl.u32 %v338, 7
  %v340 = vsub.s32 3, %v339
  %v341 = vrot.slane %v324, %v340
  %346 = vmatprep.subr.mxu0 %v47
  %347 = vmatpush1.msra.mxu0 %v46
  %348 = vmatprep.subr.mxu0 %v55
  %349 = vmatpush1.msra.mxu0 %v54
  %350 = vmatprep.subr.mxu0 %v63
  %351 = vmatpush1.msra.mxu0 %v62
  %352 = vmatprep.subr.mxu0 %v71
  %353 = vmatpush1.msra.mxu0 %v70
  %354 = vmatprep.subr.mxu0 %v79
  %355 = vmatpush1.msra.mxu0 %v78
  %356 = vmatprep.subr.mxu0 %v87
  %357 = vmatpush1.msra.mxu0 %v86
  %358 = vmatprep.subr.mxu0 %v95
  %359 = vmatpush1.msra.mxu0 %v94
  %360 = vmatprep.subr.mxu0 %v103
  %361 = vmatpush1.msra.mxu0 %v102
  %362 = vmatprep.subr.mxu0 %v111
  %363 = vmatpush1.msra.mxu0 %v110
  %364 = vmatprep.subr.mxu0 %v119
  %365 = vmatpush1.msra.mxu0 %v118
  %366 = vmatprep.subr.mxu0 %v127
  %367 = vmatpush1.msra.mxu0 %v126
  %368 = vmatprep.subr.mxu0 %v135
  %369 = vmatpush1.msra.mxu0 %v134
  %370 = vmatprep.subr.mxu0 %v143
  %371 = vmatpush1.msra.mxu0 %v142
  %372 = vmatprep.subr.mxu0 %v151
  %373 = vmatpush1.msra.mxu0 %v150
  %374 = vmatprep.subr.mxu0 %v159
  %375 = vmatpush1.msra.mxu0 %v158
  %376 = vmatprep.subr.mxu0 %v167
  %377 = vmatpush1.msra.mxu0 %v166
  %378 = vmatprep.subr.mxu0 %v175
  %379 = vmatpush1.msra.mxu0 %v174
  %380 = vmatprep.subr.mxu0 %v183
  %381 = vmatpush1.msra.mxu0 %v182
  %382 = vmatprep.subr.mxu0 %v191
  %383 = vmatpush1.msra.mxu0 %v190
  %384 = vmatprep.subr.mxu0 %v199
  %385 = vmatpush1.msra.mxu0 %v198
  %386 = vmatprep.subr.mxu0 %v207
  %387 = vmatpush1.msra.mxu0 %v206
  %388 = vmatprep.subr.mxu0 %v215
  %389 = vmatpush1.msra.mxu0 %v214
  %390 = vmatprep.subr.mxu0 %v223
  %391 = vmatpush1.msra.mxu0 %v222
  %392 = vmatprep.subr.mxu0 %v231
  %393 = vmatpush1.msra.mxu0 %v230
  %394 = vmatprep.subr.mxu0 %v239
  %395 = vmatpush1.msra.mxu0 %v238
  %396 = vmatprep.subr.mxu0 %v247
  %397 = vmatpush1.msra.mxu0 %v246
  %398 = vmatprep.subr.mxu0 %v255
  %399 = vmatpush1.msra.mxu0 %v254
  %400 = vmatprep.subr.mxu0 %v263
  %401 = vmatpush1.msra.mxu0 %v262
  %402 = vmatprep.subr.mxu0 %v271
  %403 = vmatpush1.msra.mxu0 %v270
  %404 = vmatprep.subr.mxu0 %v279
  %405 = vmatpush1.msra.mxu0 %v278
  %406 = vmatprep.subr.mxu0 %v287
  %407 = vmatpush1.msra.mxu0 %v286
  %408 = vmatprep.subr.mxu0 %v295
  %409 = vmatpush1.msra.mxu0 %v294
  %410 = vmatprep.mubr.f32.mxu0 0.0
  %411 = vmatmul.mubr.f32.gmra.mrb[0].mxu0 0.0
  %v412 = vpop.f32.mrb[0].mxu0
  %v413 = vadd.f32 0.0, %v412
  %v414 = vpop.f32.mrb[0].mxu0
  %v415 = vadd.f32 0.0, %v414
  %416 = vdwg.mxu0
  %417 = vmatprep.subr.mxu0 %v49
  %418 = vmatpush1.msra.mxu0 %v48
  %419 = vmatprep.subr.mxu0 %v57
  %420 = vmatpush1.msra.mxu0 %v56
  %421 = vmatprep.subr.mxu0 %v65
  %422 = vmatpush1.msra.mxu0 %v64
  %423 = vmatprep.subr.mxu0 %v73
  %424 = vmatpush1.msra.mxu0 %v72
  %425 = vmatprep.subr.mxu0 %v81
  %426 = vmatpush1.msra.mxu0 %v80
  %427 = vmatprep.subr.mxu0 %v89
  %428 = vmatpush1.msra.mxu0 %v88
  %429 = vmatprep.subr.mxu0 %v97
  %430 = vmatpush1.msra.mxu0 %v96
  %431 = vmatprep.subr.mxu0 %v105
  %432 = vmatpush1.msra.mxu0 %v104
  %433 = vmatprep.subr.mxu0 %v113
  %434 = vmatpush1.msra.mxu0 %v112
  %435 = vmatprep.subr.mxu0 %v121
  %436 = vmatpush1.msra.mxu0 %v120
  %437 = vmatprep.subr.mxu0 %v129
  %438 = vmatpush1.msra.mxu0 %v128
  %439 = vmatprep.subr.mxu0 %v137
  %440 = vmatpush1.msra.mxu0 %v136
  %441 = vmatprep.subr.mxu0 %v145
  %442 = vmatpush1.msra.mxu0 %v144
  %443 = vmatprep.subr.mxu0 %v153
  %444 = vmatpush1.msra.mxu0 %v152
  %445 = vmatprep.subr.mxu0 %v161
  %446 = vmatpush1.msra.mxu0 %v160
  %447 = vmatprep.subr.mxu0 %v169
  %448 = vmatpush1.msra.mxu0 %v168
  %449 = vmatprep.subr.mxu0 %v177
  %450 = vmatpush1.msra.mxu0 %v176
  %451 = vmatprep.subr.mxu0 %v185
  %452 = vmatpush1.msra.mxu0 %v184
  %453 = vmatprep.subr.mxu0 %v193
  %454 = vmatpush1.msra.mxu0 %v192
  %455 = vmatprep.subr.mxu0 %v201
  %456 = vmatpush1.msra.mxu0 %v200
  %457 = vmatprep.subr.mxu0 %v209
  %458 = vmatpush1.msra.mxu0 %v208
  %459 = vmatprep.subr.mxu0 %v217
  %460 = vmatpush1.msra.mxu0 %v216
  %461 = vmatprep.subr.mxu0 %v225
  %462 = vmatpush1.msra.mxu0 %v224
  %463 = vmatprep.subr.mxu0 %v233
  %464 = vmatpush1.msra.mxu0 %v232
  %465 = vmatprep.subr.mxu0 %v241
  %466 = vmatpush1.msra.mxu0 %v240
  %467 = vmatprep.subr.mxu0 %v249
  %468 = vmatpush1.msra.mxu0 %v248
  %469 = vmatprep.subr.mxu0 %v257
  %470 = vmatpush1.msra.mxu0 %v256
  %471 = vmatprep.subr.mxu0 %v265
  %472 = vmatpush1.msra.mxu0 %v264
  %473 = vmatprep.subr.mxu0 %v273
  %474 = vmatpush1.msra.mxu0 %v272
  %475 = vmatprep.subr.mxu0 %v281
  %476 = vmatpush1.msra.mxu0 %v280
  %477 = vmatprep.subr.mxu0 %v289
  %478 = vmatpush1.msra.mxu0 %v288
  %479 = vmatprep.subr.mxu0 %v297
  %480 = vmatpush1.msra.mxu0 %v296
  %481 = vmatprep.mubr.f32.mxu0 0.0
  %482 = vmatmul.mubr.f32.gmra.mrb[0].mxu0 0.0
  %v483 = vpop.f32.mrb[0].mxu0
  %v484 = vadd.f32 0.0, %v483
  %v485 = vpop.f32.mrb[0].mxu0
  %v486 = vadd.f32 0.0, %v485
  %487 = vdwg.mxu0
  %488 = vmatprep.subr.mxu0 %v51
  %489 = vmatpush1.msra.mxu0 %v50
  %490 = vmatprep.subr.mxu0 %v59
  %491 = vmatpush1.msra.mxu0 %v58
  %492 = vmatprep.subr.mxu0 %v67
  %493 = vmatpush1.msra.mxu0 %v66
  %494 = vmatprep.subr.mxu0 %v75
  %495 = vmatpush1.msra.mxu0 %v74
  %496 = vmatprep.subr.mxu0 %v83
  %497 = vmatpush1.msra.mxu0 %v82
  %498 = vmatprep.subr.mxu0 %v91
  %499 = vmatpush1.msra.mxu0 %v90
  %500 = vmatprep.subr.mxu0 %v99
  %501 = vmatpush1.msra.mxu0 %v98
  %502 = vmatprep.subr.mxu0 %v107
  %503 = vmatpush1.msra.mxu0 %v106
  %504 = vmatprep.subr.mxu0 %v115
  %505 = vmatpush1.msra.mxu0 %v114
  %506 = vmatprep.subr.mxu0 %v123
  %507 = vmatpush1.msra.mxu0 %v122
  %508 = vmatprep.subr.mxu0 %v131
  %509 = vmatpush1.msra.mxu0 %v130
  %510 = vmatprep.subr.mxu0 %v139
  %511 = vmatpush1.msra.mxu0 %v138
  %512 = vmatprep.subr.mxu0 %v147
  %513 = vmatpush1.msra.mxu0 %v146
  %514 = vmatprep.subr.mxu0 %v155
  %515 = vmatpush1.msra.mxu0 %v154
  %516 = vmatprep.subr.mxu0 %v163
  %517 = vmatpush1.msra.mxu0 %v162
  %518 = vmatprep.subr.mxu0 %v171
  %519 = vmatpush1.msra.mxu0 %v170
  %520 = vmatprep.subr.mxu0 %v179
  %521 = vmatpush1.msra.mxu0 %v178
  %522 = vmatprep.subr.mxu0 %v187
  %523 = vmatpush1.msra.mxu0 %v186
  %524 = vmatprep.subr.mxu0 %v195
  %525 = vmatpush1.msra.mxu0 %v194
  %526 = vmatprep.subr.mxu0 %v203
  %527 = vmatpush1.msra.mxu0 %v202
  %528 = vmatprep.subr.mxu0 %v211
  %529 = vmatpush1.msra.mxu0 %v210
  %530 = vmatprep.subr.mxu0 %v219
  %531 = vmatpush1.msra.mxu0 %v218
  %532 = vmatprep.subr.mxu0 %v227
  %533 = vmatpush1.msra.mxu0 %v226
  %534 = vmatprep.subr.mxu0 %v235
  %535 = vmatpush1.msra.mxu0 %v234
  %536 = vmatprep.subr.mxu0 %v243
  %537 = vmatpush1.msra.mxu0 %v242
  %538 = vmatprep.subr.mxu0 %v251
  %539 = vmatpush1.msra.mxu0 %v250
  %540 = vmatprep.subr.mxu0 %v259
  %541 = vmatpush1.msra.mxu0 %v258
  %542 = vmatprep.subr.mxu0 %v267
  %543 = vmatpush1.msra.mxu0 %v266
  %544 = vmatprep.subr.mxu0 %v275
  %545 = vmatpush1.msra.mxu0 %v274
  %546 = vmatprep.subr.mxu0 %v283
  %547 = vmatpush1.msra.mxu0 %v282
  %548 = vmatprep.subr.mxu0 %v291
  %549 = vmatpush1.msra.mxu0 %v290
  %550 = vmatprep.subr.mxu0 %v299
  %551 = vmatpush1.msra.mxu0 %v298
  %552 = vmatprep.mubr.f32.mxu0 0.0
  %553 = vmatmul.mubr.f32.gmra.mrb[0].mxu0 0.0
  %v554 = vpop.f32.mrb[0].mxu0
  %v555 = vadd.f32 0.0, %v554
  %v556 = vpop.f32.mrb[0].mxu0
  %v557 = vadd.f32 0.0, %v556
  %558 = vdwg.mxu0
  %559 = vmatprep.subr.mxu0 %v53
  %560 = vmatpush1.msra.mxu0 %v52
  %561 = vmatprep.subr.mxu0 %v61
  %562 = vmatpush1.msra.mxu0 %v60
  %563 = vmatprep.subr.mxu0 %v69
  %564 = vmatpush1.msra.mxu0 %v68
  %565 = vmatprep.subr.mxu0 %v77
  %566 = vmatpush1.msra.mxu0 %v76
  %567 = vmatprep.subr.mxu0 %v85
  %568 = vmatpush1.msra.mxu0 %v84
  %569 = vmatprep.subr.mxu0 %v93
  %570 = vmatpush1.msra.mxu0 %v92
  %571 = vmatprep.subr.mxu0 %v101
  %572 = vmatpush1.msra.mxu0 %v100
  %573 = vmatprep.subr.mxu0 %v109
  %574 = vmatpush1.msra.mxu0 %v108
  %575 = vmatprep.subr.mxu0 %v117
  %576 = vmatpush1.msra.mxu0 %v116
  %577 = vmatprep.subr.mxu0 %v125
  %578 = vmatpush1.msra.mxu0 %v124
  %579 = vmatprep.subr.mxu0 %v133
  %580 = vmatpush1.msra.mxu0 %v132
  %581 = vmatprep.subr.mxu0 %v141
  %582 = vmatpush1.msra.mxu0 %v140
  %583 = vmatprep.subr.mxu0 %v149
  %584 = vmatpush1.msra.mxu0 %v148
  %585 = vmatprep.subr.mxu0 %v157
  %586 = vmatpush1.msra.mxu0 %v156
  %587 = vmatprep.subr.mxu0 %v165
  %588 = vmatpush1.msra.mxu0 %v164
  %589 = vmatprep.subr.mxu0 %v173
  %590 = vmatpush1.msra.mxu0 %v172
  %591 = vmatprep.subr.mxu0 %v181
  %592 = vmatpush1.msra.mxu0 %v180
  %593 = vmatprep.subr.mxu0 %v189
  %594 = vmatpush1.msra.mxu0 %v188
  %595 = vmatprep.subr.mxu0 %v197
  %596 = vmatpush1.msra.mxu0 %v196
  %597 = vmatprep.subr.mxu0 %v205
  %598 = vmatpush1.msra.mxu0 %v204
  %599 = vmatprep.subr.mxu0 %v213
  %600 = vmatpush1.msra.mxu0 %v212
  %601 = vmatprep.subr.mxu0 %v221
  %602 = vmatpush1.msra.mxu0 %v220
  %603 = vmatprep.subr.mxu0 %v229
  %604 = vmatpush1.msra.mxu0 %v228
  %605 = vmatprep.subr.mxu0 %v237
  %606 = vmatpush1.msra.mxu0 %v236
  %607 = vmatprep.subr.mxu0 %v245
  %608 = vmatpush1.msra.mxu0 %v244
  %609 = vmatprep.subr.mxu0 %v253
  %610 = vmatpush1.msra.mxu0 %v252
  %611 = vmatprep.subr.mxu0 %v261
  %612 = vmatpush1.msra.mxu0 %v260
  %613 = vmatprep.subr.mxu0 %v269
  %614 = vmatpush1.msra.mxu0 %v268
  %615 = vmatprep.subr.mxu0 %v277
  %616 = vmatpush1.msra.mxu0 %v276
  %617 = vmatprep.subr.mxu0 %v285
  %618 = vmatpush1.msra.mxu0 %v284
  %619 = vmatprep.subr.mxu0 %v293
  %620 = vmatpush1.msra.mxu0 %v292
  %621 = vmatprep.subr.mxu0 %v301
  %622 = vmatpush1.msra.mxu0 %v300
  %623 = vmatprep.mubr.f32.mxu0 0.0
  %624 = vmatmul.mubr.f32.gmra.mrb[0].mxu0 0.0
  %v625 = vpop.f32.mrb[0].mxu0
  %v626 = vadd.f32 0.0, %v625
  %v627 = vpop.f32.mrb[0].mxu0
  %v628 = vadd.f32 0.0, %v627
  %629 = vdwg.mxu0
  %v630 = vld [vmem:[%s0] sm:$0xff]
  %632 = vset.pattern.permute.xlu0 0
  %633 = vperm.xlu0 %632, %v630
  %v634 = vpop.permute.xlu0 %633
  %v637 = vlaneseq
  %v638 = vshrl.u32 %v637, 7
  %v639 = vsub.s32 0, %v638
  %v640 = vrot.slane %v44, %v639
  %v641 = vlaneseq
  %v642 = vshrl.u32 %v641, 7
  %v643 = vsub.s32 1, %v642
  %v644 = vrot.slane %v44, %v643
  %v645 = vlaneseq
  %v646 = vshrl.u32 %v645, 7
  %v647 = vsub.s32 2, %v646
  %v648 = vrot.slane %v44, %v647
  %v649 = vlaneseq
  %v650 = vshrl.u32 %v649, 7
  %v651 = vsub.s32 3, %v650
  %v652 = vrot.slane %v44, %v651
  %v657 = vmul.f32 %v634, %v640
  %v658 = vmul.f32 %v634, %v644
  %v659 = vmul.f32 %v634, %v648
  %v660 = vmul.f32 %v634, %v652
  %v661 = vadd.f32 %v657, %v307
  %v662 = vadd.f32 %v658, %v311
  %v663 = vadd.f32 %v659, %v315
  %v664 = vadd.f32 %v660, %v319
  %v665 = vadd.f32 %v661, %v413
  %v666 = vadd.f32 %v662, %v415
  %v667 = vadd.f32 %v663, %v484
  %v668 = vadd.f32 %v664, %v486
  %s669 = scalar_lea.vmem %s0, 56
  %v670 = vld [vmem:[%s669] sm:$0xff]
  %672 = vset.pattern.permute.xlu0 0
  %673 = vperm.xlu0 %672, %v670
  %v674 = vpop.permute.xlu0 %673
  %v677 = vlaneseq
  %v678 = vshrl.u32 %v677, 7
  %v679 = vsub.s32 0, %v678
  %v680 = vrot.slane %v45, %v679
  %v681 = vlaneseq
  %v682 = vshrl.u32 %v681, 7
  %v683 = vsub.s32 1, %v682
  %v684 = vrot.slane %v45, %v683
  %v685 = vlaneseq
  %v686 = vshrl.u32 %v685, 7
  %v687 = vsub.s32 2, %v686
  %v688 = vrot.slane %v45, %v687
  %v689 = vlaneseq
  %v690 = vshrl.u32 %v689, 7
  %v691 = vsub.s32 3, %v690
  %v692 = vrot.slane %v45, %v691
  %v697 = vmul.f32 %v674, %v680
  %v698 = vmul.f32 %v674, %v684
  %v699 = vmul.f32 %v674, %v688
  %v700 = vmul.f32 %v674, %v692
  %v701 = vadd.f32 %v697, %v329
  %v702 = vadd.f32 %v698, %v333
  %v703 = vadd.f32 %v699, %v337
  %v704 = vadd.f32 %v700, %v341
  %v705 = vadd.f32 %v701, %v555
  %v706 = vadd.f32 %v702, %v557
  %v707 = vadd.f32 %v703, %v626
  %v708 = vadd.f32 %v704, %v628
  %v709 = vtanh.pop %v665
  %v710 = vmul.f32 %v709, 0.5
  %v711 = vadd.f32 %v710, 0.5
  %v712 = vtanh.pop %v666
  %v713 = vmul.f32 %v712, 0.5
  %v714 = vadd.f32 %v713, 0.5
  %v715 = vtanh.pop %v667
  %v716 = vtanh.pop %v668
  %v717 = vmul.f32 %v716, 0.5
  %v718 = vadd.f32 %v717, 0.5
  %v719 = vmul.f32 %v714, 0.0
  %v720 = vmul.f32 %v711, %v715
  %v721 = vadd.f32 %v719, %v720
  %v722 = vtanh.pop %v721
  %v723 = vmul.f32 %v718, %v722
  %v724 = vtanh.pop %v705
  %v725 = vmul.f32 %v724, 0.5
  %v726 = vadd.f32 %v725, 0.5
  %v727 = vtanh.pop %v706
  %v728 = vmul.f32 %v727, 0.5
  %v729 = vadd.f32 %v728, 0.5
  %v730 = vtanh.pop %v707
  %v731 = vtanh.pop %v708
  %v732 = vmul.f32 %v731, 0.5
  %v733 = vadd.f32 %v732, 0.5
  %v734 = vmul.f32 %v729, 0.0
  %v735 = vmul.f32 %v726, %v730
  %v736 = vadd.f32 %v734, %v735
  %v737 = vtanh.pop %v736
  %v738 = vmul.f32 %v733, %v737
  %739 = vst [vmem:[#allocation2] sm:$0xff] %v723
  %s740 = scalar_lea.vmem [#allocation2], 112
  %741 = vst [vmem:[%s740 + $0x8] sm:$0xff] %v738
  %742 = vmatprep.subr.mxu0 %v47
  %743 = vmatpush1.msra.mxu0 %v46
  %744 = vmatprep.subr.mxu0 %v55
  %745 = vmatpush1.msra.mxu0 %v54
  %746 = vmatprep.subr.mxu0 %v63
  %747 = vmatpush1.msra.mxu0 %v62
  %748 = vmatprep.subr.mxu0 %v71
  %749 = vmatpush1.msra.mxu0 %v70
  %750 = vmatprep.subr.mxu0 %v79
  %751 = vmatpush1.msra.mxu0 %v78
  %752 = vmatprep.subr.mxu0 %v87
  %753 = vmatpush1.msra.mxu0 %v86
  %754 = vmatprep.subr.mxu0 %v95
  %755 = vmatpush1.msra.mxu0 %v94
  %756 = vmatprep.subr.mxu0 %v103
  %757 = vmatpush1.msra.mxu0 %v102
  %758 = vmatprep.subr.mxu0 %v111
  %759 = vmatpush1.msra.mxu0 %v110
  %760 = vmatprep.subr.mxu0 %v119
  %761 = vmatpush1.msra.mxu0 %v118
  %762 = vmatprep.subr.mxu0 %v127
  %763 = vmatpush1.msra.mxu0 %v126
  %764 = vmatprep.subr.mxu0 %v135
  %765 = vmatpush1.msra.mxu0 %v134
  %766 = vmatprep.subr.mxu0 %v143
  %767 = vmatpush1.msra.mxu0 %v142
  %768 = vmatprep.subr.mxu0 %v151
  %769 = vmatpush1.msra.mxu0 %v150
  %770 = vmatprep.subr.mxu0 %v159
  %771 = vmatpush1.msra.mxu0 %v158
  %772 = vmatprep.subr.mxu0 %v167
  %773 = vmatpush1.msra.mxu0 %v166
  %774 = vmatprep.subr.mxu0 %v175
  %775 = vmatpush1.msra.mxu0 %v174
  %776 = vmatprep.subr.mxu0 %v183
  %777 = vmatpush1.msra.mxu0 %v182
  %778 = vmatprep.subr.mxu0 %v191
  %779 = vmatpush1.msra.mxu0 %v190
  %780 = vmatprep.subr.mxu0 %v199
  %781 = vmatpush1.msra.mxu0 %v198
  %782 = vmatprep.subr.mxu0 %v207
  %783 = vmatpush1.msra.mxu0 %v206
  %784 = vmatprep.subr.mxu0 %v215
  %785 = vmatpush1.msra.mxu0 %v214
  %786 = vmatprep.subr.mxu0 %v223
  %787 = vmatpush1.msra.mxu0 %v222
  %788 = vmatprep.subr.mxu0 %v231
  %789 = vmatpush1.msra.mxu0 %v230
  %790 = vmatprep.subr.mxu0 %v239
  %791 = vmatpush1.msra.mxu0 %v238
  %792 = vmatprep.subr.mxu0 %v247
  %793 = vmatpush1.msra.mxu0 %v246
  %794 = vmatprep.subr.mxu0 %v255
  %795 = vmatpush1.msra.mxu0 %v254
  %796 = vmatprep.subr.mxu0 %v263
  %797 = vmatpush1.msra.mxu0 %v262
  %798 = vmatprep.subr.mxu0 %v271
  %799 = vmatpush1.msra.mxu0 %v270
  %800 = vmatprep.subr.mxu0 %v279
  %801 = vmatpush1.msra.mxu0 %v278
  %802 = vmatprep.subr.mxu0 %v287
  %803 = vmatpush1.msra.mxu0 %v286
  %804 = vmatprep.subr.mxu0 %v295
  %805 = vmatpush1.msra.mxu0 %v294
  %806 = vmatprep.mubr.f32.mxu0 %v738
  %807 = vmatmul.mubr.f32.gmra.mrb[0].mxu0 %v723
  %v808 = vpop.f32.mrb[0].mxu0
  %v809 = vadd.f32 0.0, %v808
  %v810 = vpop.f32.mrb[0].mxu0
  %v811 = vadd.f32 0.0, %v810
  %812 = vdwg.mxu0
  %813 = vmatprep.subr.mxu0 %v49
  %814 = vmatpush1.msra.mxu0 %v48
  %815 = vmatprep.subr.mxu0 %v57
  %816 = vmatpush1.msra.mxu0 %v56
  %817 = vmatprep.subr.mxu0 %v65
  %818 = vmatpush1.msra.mxu0 %v64
  %819 = vmatprep.subr.mxu0 %v73
  %820 = vmatpush1.msra.mxu0 %v72
  %821 = vmatprep.subr.mxu0 %v81
  %822 = vmatpush1.msra.mxu0 %v80
  %823 = vmatprep.subr.mxu0 %v89
  %824 = vmatpush1.msra.mxu0 %v88
  %825 = vmatprep.subr.mxu0 %v97
  %826 = vmatpush1.msra.mxu0 %v96
  %827 = vmatprep.subr.mxu0 %v105
  %828 = vmatpush1.msra.mxu0 %v104
  %829 = vmatprep.subr.mxu0 %v113
  %830 = vmatpush1.msra.mxu0 %v112
  %831 = vmatprep.subr.mxu0 %v121
  %832 = vmatpush1.msra.mxu0 %v120
  %833 = vmatprep.subr.mxu0 %v129
  %834 = vmatpush1.msra.mxu0 %v128
  %835 = vmatprep.subr.mxu0 %v137
  %836 = vmatpush1.msra.mxu0 %v136
  %837 = vmatprep.subr.mxu0 %v145
  %838 = vmatpush1.msra.mxu0 %v144
  %839 = vmatprep.subr.mxu0 %v153
  %840 = vmatpush1.msra.mxu0 %v152
  %841 = vmatprep.subr.mxu0 %v161
  %842 = vmatpush1.msra.mxu0 %v160
  %843 = vmatprep.subr.mxu0 %v169
  %844 = vmatpush1.msra.mxu0 %v168
  %845 = vmatprep.subr.mxu0 %v177
  %846 = vmatpush1.msra.mxu0 %v176
  %847 = vmatprep.subr.mxu0 %v185
  %848 = vmatpush1.msra.mxu0 %v184
  %849 = vmatprep.subr.mxu0 %v193
  %850 = vmatpush1.msra.mxu0 %v192
  %851 = vmatprep.subr.mxu0 %v201
  %852 = vmatpush1.msra.mxu0 %v200
  %853 = vmatprep.subr.mxu0 %v209
  %854 = vmatpush1.msra.mxu0 %v208
  %855 = vmatprep.subr.mxu0 %v217
  %856 = vmatpush1.msra.mxu0 %v216
  %857 = vmatprep.subr.mxu0 %v225
  %858 = vmatpush1.msra.mxu0 %v224
  %859 = vmatprep.subr.mxu0 %v233
  %860 = vmatpush1.msra.mxu0 %v232
  %861 = vmatprep.subr.mxu0 %v241
  %862 = vmatpush1.msra.mxu0 %v240
  %863 = vmatprep.subr.mxu0 %v249
  %864 = vmatpush1.msra.mxu0 %v248
  %865 = vmatprep.subr.mxu0 %v257
  %866 = vmatpush1.msra.mxu0 %v256
  %867 = vmatprep.subr.mxu0 %v265
  %868 = vmatpush1.msra.mxu0 %v264
  %869 = vmatprep.subr.mxu0 %v273
  %870 = vmatpush1.msra.mxu0 %v272
  %871 = vmatprep.subr.mxu0 %v281
  %872 = vmatpush1.msra.mxu0 %v280
  %873 = vmatprep.subr.mxu0 %v289
  %874 = vmatpush1.msra.mxu0 %v288
  %875 = vmatprep.subr.mxu0 %v297
  %876 = vmatpush1.msra.mxu0 %v296
  %877 = vmatprep.mubr.f32.mxu0 %v738
  %878 = vmatmul.mubr.f32.gmra.mrb[0].mxu0 %v723
  %v879 = vpop.f32.mrb[0].mxu0
  %v880 = vadd.f32 0.0, %v879
  %v881 = vpop.f32.mrb[0].mxu0
  %v882 = vadd.f32 0.0, %v881
  %883 = vdwg.mxu0
  %884 = vmatprep.subr.mxu0 %v51
  %885 = vmatpush1.msra.mxu0 %v50
  %886 = vmatprep.subr.mxu0 %v59
  %887 = vmatpush1.msra.mxu0 %v58
  %888 = vmatprep.subr.mxu0 %v67
  %889 = vmatpush1.msra.mxu0 %v66
  %890 = vmatprep.subr.mxu0 %v75
  %891 = vmatpush1.msra.mxu0 %v74
  %892 = vmatprep.subr.mxu0 %v83
  %893 = vmatpush1.msra.mxu0 %v82
  %894 = vmatprep.subr.mxu0 %v91
  %895 = vmatpush1.msra.mxu0 %v90
  %896 = vmatprep.subr.mxu0 %v99
  %897 = vmatpush1.msra.mxu0 %v98
  %898 = vmatprep.subr.mxu0 %v107
  %899 = vmatpush1.msra.mxu0 %v106
  %900 = vmatprep.subr.mxu0 %v115
  %901 = vmatpush1.msra.mxu0 %v114
  %902 = vmatprep.subr.mxu0 %v123
  %903 = vmatpush1.msra.mxu0 %v122
  %904 = vmatprep.subr.mxu0 %v131
  %905 = vmatpush1.msra.mxu0 %v130
  %906 = vmatprep.subr.mxu0 %v139
  %907 = vmatpush1.msra.mxu0 %v138
  %908 = vmatprep.subr.mxu0 %v147
  %909 = vmatpush1.msra.mxu0 %v146
  %910 = vmatprep.subr.mxu0 %v155
  %911 = vmatpush1.msra.mxu0 %v154
  %912 = vmatprep.subr.mxu0 %v163
  %913 = vmatpush1.msra.mxu0 %v162
  %914 = vmatprep.subr.mxu0 %v171
  %915 = vmatpush1.msra.mxu0 %v170
  %916 = vmatprep.subr.mxu0 %v179
  %917 = vmatpush1.msra.mxu0 %v178
  %918 = vmatprep.subr.mxu0 %v187
  %919 = vmatpush1.msra.mxu0 %v186
  %920 = vmatprep.subr.mxu0 %v195
  %921 = vmatpush1.msra.mxu0 %v194
  %922 = vmatprep.subr.mxu0 %v203
  %923 = vmatpush1.msra.mxu0 %v202
  %924 = vmatprep.subr.mxu0 %v211
  %925 = vmatpush1.msra.mxu0 %v210
  %926 = vmatprep.subr.mxu0 %v219
  %927 = vmatpush1.msra.mxu0 %v218
  %928 = vmatprep.subr.mxu0 %v227
  %929 = vmatpush1.msra.mxu0 %v226
  %930 = vmatprep.subr.mxu0 %v235
  %931 = vmatpush1.msra.mxu0 %v234
  %932 = vmatprep.subr.mxu0 %v243
  %933 = vmatpush1.msra.mxu0 %v242
  %934 = vmatprep.subr.mxu0 %v251
  %935 = vmatpush1.msra.mxu0 %v250
  %936 = vmatprep.subr.mxu0 %v259
  %937 = vmatpush1.msra.mxu0 %v258
  %938 = vmatprep.subr.mxu0 %v267
  %939 = vmatpush1.msra.mxu0 %v266
  %940 = vmatprep.subr.mxu0 %v275
  %941 = vmatpush1.msra.mxu0 %v274
  %942 = vmatprep.subr.mxu0 %v283
  %943 = vmatpush1.msra.mxu0 %v282
  %944 = vmatprep.subr.mxu0 %v291
  %945 = vmatpush1.msra.mxu0 %v290
  %946 = vmatprep.subr.mxu0 %v299
  %947 = vmatpush1.msra.mxu0 %v298
  %948 = vmatprep.mubr.f32.mxu0 %v738
  %949 = vmatmul.mubr.f32.gmra.mrb[0].mxu0 %v723
  %v950 = vpop.f32.mrb[0].mxu0
  %v951 = vadd.f32 0.0, %v950
  %v952 = vpop.f32.mrb[0].mxu0
  %v953 = vadd.f32 0.0, %v952
  %954 = vdwg.mxu0
  %955 = vmatprep.subr.mxu0 %v53
  %956 = vmatpush1.msra.mxu0 %v52
  %957 = vmatprep.subr.mxu0 %v61
  %958 = vmatpush1.msra.mxu0 %v60
  %959 = vmatprep.subr.mxu0 %v69
  %960 = vmatpush1.msra.mxu0 %v68
  %961 = vmatprep.subr.mxu0 %v77
  %962 = vmatpush1.msra.mxu0 %v76
  %963 = vmatprep.subr.mxu0 %v85
  %964 = vmatpush1.msra.mxu0 %v84
  %965 = vmatprep.subr.mxu0 %v93
  %966 = vmatpush1.msra.mxu0 %v92
  %967 = vmatprep.subr.mxu0 %v101
  %968 = vmatpush1.msra.mxu0 %v100
  %969 = vmatprep.subr.mxu0 %v109
  %970 = vmatpush1.msra.mxu0 %v108
  %971 = vmatprep.subr.mxu0 %v117
  %972 = vmatpush1.msra.mxu0 %v116
  %973 = vmatprep.subr.mxu0 %v125
  %974 = vmatpush1.msra.mxu0 %v124
  %975 = vmatprep.subr.mxu0 %v133
  %976 = vmatpush1.msra.mxu0 %v132
  %977 = vmatprep.subr.mxu0 %v141
  %978 = vmatpush1.msra.mxu0 %v140
  %979 = vmatprep.subr.mxu0 %v149
  %980 = vmatpush1.msra.mxu0 %v148
  %981 = vmatprep.subr.mxu0 %v157
  %982 = vmatpush1.msra.mxu0 %v156
  %983 = vmatprep.subr.mxu0 %v165
  %984 = vmatpush1.msra.mxu0 %v164
  %985 = vmatprep.subr.mxu0 %v173
  %986 = vmatpush1.msra.mxu0 %v172
  %987 = vmatprep.subr.mxu0 %v181
  %988 = vmatpush1.msra.mxu0 %v180
  %989 = vmatprep.subr.mxu0 %v189
  %990 = vmatpush1.msra.mxu0 %v188
  %991 = vmatprep.subr.mxu0 %v197
  %992 = vmatpush1.msra.mxu0 %v196
  %993 = vmatprep.subr.mxu0 %v205
  %994 = vmatpush1.msra.mxu0 %v204
  %995 = vmatprep.subr.mxu0 %v213
  %996 = vmatpush1.msra.mxu0 %v212
  %997 = vmatprep.subr.mxu0 %v221
  %998 = vmatpush1.msra.mxu0 %v220
  %999 = vmatprep.subr.mxu0 %v229
  %1000 = vmatpush1.msra.mxu0 %v228
  %1001 = vmatprep.subr.mxu0 %v237
  %1002 = vmatpush1.msra.mxu0 %v236
  %1003 = vmatprep.subr.mxu0 %v245
  %1004 = vmatpush1.msra.mxu0 %v244
  %1005 = vmatprep.subr.mxu0 %v253
  %1006 = vmatpush1.msra.mxu0 %v252
  %1007 = vmatprep.subr.mxu0 %v261
  %1008 = vmatpush1.msra.mxu0 %v260
  %1009 = vmatprep.subr.mxu0 %v269
  %1010 = vmatpush1.msra.mxu0 %v268
  %1011 = vmatprep.subr.mxu0 %v277
  %1012 = vmatpush1.msra.mxu0 %v276
  %1013 = vmatprep.subr.mxu0 %v285
  %1014 = vmatpush1.msra.mxu0 %v284
  %1015 = vmatprep.subr.mxu0 %v293
  %1016 = vmatpush1.msra.mxu0 %v292
  %1017 = vmatprep.subr.mxu0 %v301
  %1018 = vmatpush1.msra.mxu0 %v300
  %1019 = vmatprep.mubr.f32.mxu0 %v738
  %1020 = vmatmul.mubr.f32.gmra.mrb[0].mxu0 %v723
  %v1021 = vpop.f32.mrb[0].mxu0
  %v1022 = vadd.f32 0.0, %v1021
  %v1023 = vpop.f32.mrb[0].mxu0
  %v1024 = vadd.f32 0.0, %v1023
  %1025 = vdwg.mxu0
  %s1026 = scalar_lea.vmem %s0, 8
  %v1027 = vld [vmem:[%s1026] sm:$0xff]
  %1029 = vset.pattern.permute.xlu0 0
  %1030 = vperm.xlu0 %1029, %v1027
  %v1031 = vpop.permute.xlu0 %1030
  %v1033 = vmul.f32 %v1031, %v640
  %v1034 = vmul.f32 %v1031, %v644
  %v1035 = vmul.f32 %v1031, %v648
  %v1036 = vmul.f32 %v1031, %v652
  %v1037 = vadd.f32 %v1033, %v307
  %v1038 = vadd.f32 %v1034, %v311
  %v1039 = vadd.f32 %v1035, %v315
  %v1040 = vadd.f32 %v1036, %v319
  %v1041 = vadd.f32 %v1037, %v809
  %v1042 = vadd.f32 %v1038, %v811
  %v1043 = vadd.f32 %v1039, %v880
  %v1044 = vadd.f32 %v1040, %v882
  %s1045 = scalar_lea.vmem %s0, 48
  %v1046 = vld [vmem:[%s1045] sm:$0xff]
  %1048 = vset.pattern.permute.xlu0 0
  %1049 = vperm.xlu0 %1048, %v1046
  %v1050 = vpop.permute.xlu0 %1049
  %v1052 = vmul.f32 %v1050, %v680
  %v1053 = vmul.f32 %v1050, %v684
  %v1054 = vmul.f32 %v1050, %v688
  %v1055 = vmul.f32 %v1050, %v692
  %v1056 = vadd.f32 %v1052, %v329
  %v1057 = vadd.f32 %v1053, %v333
  %v1058 = vadd.f32 %v1054, %v337
  %v1059 = vadd.f32 %v1055, %v341
  %v1060 = vadd.f32 %v1056, %v951
  %v1061 = vadd.f32 %v1057, %v953
  %v1062 = vadd.f32 %v1058, %v1022
  %v1063 = vadd.f32 %v1059, %v1024
  %v1064 = vtanh.pop %v1041
  %v1065 = vmul.f32 %v1064, 0.5
  %v1066 = vadd.f32 %v1065, 0.5
  %v1067 = vtanh.pop %v1042
  %v1068 = vmul.f32 %v1067, 0.5
  %v1069 = vadd.f32 %v1068, 0.5
  %v1070 = vtanh.pop %v1043
  %v1071 = vtanh.pop %v1044
  %v1072 = vmul.f32 %v1071, 0.5
  %v1073 = vadd.f32 %v1072, 0.5
  %v1074 = vmul.f32 %v1069, %v721
  %v1075 = vmul.f32 %v1066, %v1070
  %v1076 = vadd.f32 %v1074, %v1075
  %v1077 = vtanh.pop %v1076
  %v1078 = vmul.f32 %v1073, %v1077
  %v1079 = vtanh.pop %v1060
  %v1080 = vmul.f32 %v1079, 0.5
  %v1081 = vadd.f32 %v1080, 0.5
  %v1082 = vtanh.pop %v1061
  %v1083 = vmul.f32 %v1082, 0.5
  %v1084 = vadd.f32 %v1083, 0.5
  %v1085 = vtanh.pop %v1062
  %v1086 = vtanh.pop %v1063
  %v1087 = vmul.f32 %v1086, 0.5
  %v1088 = vadd.f32 %v1087, 0.5
  %v1089 = vmul.f32 %v1084, %v736
  %v1090 = vmul.f32 %v1081, %v1085
  %v1091 = vadd.f32 %v1089, %v1090
  %v1092 = vtanh.pop %v1091
  %v1093 = vmul.f32 %v1088, %v1092
  %s1094 = scalar_lea.vmem [#allocation2], 16
  %1095 = vst [vmem:[%s1094] sm:$0xff] %v1078
  %s1096 = scalar_lea.vmem [#allocation2], 96
  %1097 = vst [vmem:[%s1096 + $0x8] sm:$0xff] %v1093
  %1098 = vmatprep.subr.mxu0 %v47
  %1099 = vmatpush1.msra.mxu0 %v46
  %1100 = vmatprep.subr.mxu0 %v55
  %1101 = vmatpush1.msra.mxu0 %v54
  %1102 = vmatprep.subr.mxu0 %v63
  %1103 = vmatpush1.msra.mxu0 %v62
  %1104 = vmatprep.subr.mxu0 %v71
  %1105 = vmatpush1.msra.mxu0 %v70
  %1106 = vmatprep.subr.mxu0 %v79
  %1107 = vmatpush1.msra.mxu0 %v78
  %1108 = vmatprep.subr.mxu0 %v87
  %1109 = vmatpush1.msra.mxu0 %v86
  %1110 = vmatprep.subr.mxu0 %v95
  %1111 = vmatpush1.msra.mxu0 %v94
  %1112 = vmatprep.subr.mxu0 %v103
  %1113 = vmatpush1.msra.mxu0 %v102
  %1114 = vmatprep.subr.mxu0 %v111
  %1115 = vmatpush1.msra.mxu0 %v110
  %1116 = vmatprep.subr.mxu0 %v119
  %1117 = vmatpush1.msra.mxu0 %v118
  %1118 = vmatprep.subr.mxu0 %v127
  %1119 = vmatpush1.msra.mxu0 %v126
  %1120 = vmatprep.subr.mxu0 %v135
  %1121 = vmatpush1.msra.mxu0 %v134
  %1122 = vmatprep.subr.mxu0 %v143
  %1123 = vmatpush1.msra.mxu0 %v142
  %1124 = vmatprep.subr.mxu0 %v151
  %1125 = vmatpush1.msra.mxu0 %v150
  %1126 = vmatprep.subr.mxu0 %v159
  %1127 = vmatpush1.msra.mxu0 %v158
  %1128 = vmatprep.subr.mxu0 %v167
  %1129 = vmatpush1.msra.mxu0 %v166
  %1130 = vmatprep.subr.mxu0 %v175
  %1131 = vmatpush1.msra.mxu0 %v174
  %1132 = vmatprep.subr.mxu0 %v183
  %1133 = vmatpush1.msra.mxu0 %v182
  %1134 = vmatprep.subr.mxu0 %v191
  %1135 = vmatpush1.msra.mxu0 %v190
  %1136 = vmatprep.subr.mxu0 %v199
  %1137 = vmatpush1.msra.mxu0 %v198
  %1138 = vmatprep.subr.mxu0 %v207
  %1139 = vmatpush1.msra.mxu0 %v206
  %1140 = vmatprep.subr.mxu0 %v215
  %1141 = vmatpush1.msra.mxu0 %v214
  %1142 = vmatprep.subr.mxu0 %v223
  %1143 = vmatpush1.msra.mxu0 %v222
  %1144 = vmatprep.subr.mxu0 %v231
  %1145 = vmatpush1.msra.mxu0 %v230
  %1146 = vmatprep.subr.mxu0 %v239
  %1147 = vmatpush1.msra.mxu0 %v238
  %1148 = vmatprep.subr.mxu0 %v247
  %1149 = vmatpush1.msra.mxu0 %v246
  %1150 = vmatprep.subr.mxu0 %v255
  %1151 = vmatpush1.msra.mxu0 %v254
  %1152 = vmatprep.subr.mxu0 %v263
  %1153 = vmatpush1.msra.mxu0 %v262
  %1154 = vmatprep.subr.mxu0 %v271
  %1155 = vmatpush1.msra.mxu0 %v270
  %1156 = vmatprep.subr.mxu0 %v279
  %1157 = vmatpush1.msra.mxu0 %v278
  %1158 = vmatprep.subr.mxu0 %v287
  %1159 = vmatpush1.msra.mxu0 %v286
  %1160 = vmatprep.subr.mxu0 %v295
  %1161 = vmatpush1.msra.mxu0 %v294
  %1162 = vmatprep.mubr.f32.mxu0 %v1093
  %1163 = vmatmul.mubr.f32.gmra.mrb[0].mxu0 %v1078
  %v1164 = vpop.f32.mrb[0].mxu0
  %v1165 = vadd.f32 0.0, %v1164
  %v1166 = vpop.f32.mrb[0].mxu0
  %v1167 = vadd.f32 0.0, %v1166
  %1168 = vdwg.mxu0
  %1169 = vmatprep.subr.mxu0 %v49
  %1170 = vmatpush1.msra.mxu0 %v48
  %1171 = vmatprep.subr.mxu0 %v57
  %1172 = vmatpush1.msra.mxu0 %v56
  %1173 = vmatprep.subr.mxu0 %v65
  %1174 = vmatpush1.msra.mxu0 %v64
  %1175 = vmatprep.subr.mxu0 %v73
  %1176 = vmatpush1.msra.mxu0 %v72
  %1177 = vmatprep.subr.mxu0 %v81
  %1178 = vmatpush1.msra.mxu0 %v80
  %1179 = vmatprep.subr.mxu0 %v89
  %1180 = vmatpush1.msra.mxu0 %v88
  %1181 = vmatprep.subr.mxu0 %v97
  %1182 = vmatpush1.msra.mxu0 %v96
  %1183 = vmatprep.subr.mxu0 %v105
  %1184 = vmatpush1.msra.mxu0 %v104
  %1185 = vmatprep.subr.mxu0 %v113
  %1186 = vmatpush1.msra.mxu0 %v112
  %1187 = vmatprep.subr.mxu0 %v121
  %1188 = vmatpush1.msra.mxu0 %v120
  %1189 = vmatprep.subr.mxu0 %v129
  %1190 = vmatpush1.msra.mxu0 %v128
  %1191 = vmatprep.subr.mxu0 %v137
  %1192 = vmatpush1.msra.mxu0 %v136
  %1193 = vmatprep.subr.mxu0 %v145
  %1194 = vmatpush1.msra.mxu0 %v144
  %1195 = vmatprep.subr.mxu0 %v153
  %1196 = vmatpush1.msra.mxu0 %v152
  %1197 = vmatprep.subr.mxu0 %v161
  %1198 = vmatpush1.msra.mxu0 %v160
  %1199 = vmatprep.subr.mxu0 %v169
  %1200 = vmatpush1.msra.mxu0 %v168
  %1201 = vmatprep.subr.mxu0 %v177
  %1202 = vmatpush1.msra.mxu0 %v176
  %1203 = vmatprep.subr.mxu0 %v185
  %1204 = vmatpush1.msra.mxu0 %v184
  %1205 = vmatprep.subr.mxu0 %v193
  %1206 = vmatpush1.msra.mxu0 %v192
  %1207 = vmatprep.subr.mxu0 %v201
  %1208 = vmatpush1.msra.mxu0 %v200
  %1209 = vmatprep.subr.mxu0 %v209
  %1210 = vmatpush1.msra.mxu0 %v208
  %1211 = vmatprep.subr.mxu0 %v217
  %1212 = vmatpush1.msra.mxu0 %v216
  %1213 = vmatprep.subr.mxu0 %v225
  %1214 = vmatpush1.msra.mxu0 %v224
  %1215 = vmatprep.subr.mxu0 %v233
  %1216 = vmatpush1.msra.mxu0 %v232
  %1217 = vmatprep.subr.mxu0 %v241
  %1218 = vmatpush1.msra.mxu0 %v240
  %1219 = vmatprep.subr.mxu0 %v249
  %1220 = vmatpush1.msra.mxu0 %v248
  %1221 = vmatprep.subr.mxu0 %v257
  %1222 = vmatpush1.msra.mxu0 %v256
  %1223 = vmatprep.subr.mxu0 %v265
  %1224 = vmatpush1.msra.mxu0 %v264
  %1225 = vmatprep.subr.mxu0 %v273
  %1226 = vmatpush1.msra.mxu0 %v272
  %1227 = vmatprep.subr.mxu0 %v281
  %1228 = vmatpush1.msra.mxu0 %v280
  %1229 = vmatprep.subr.mxu0 %v289
  %1230 = vmatpush1.msra.mxu0 %v288
  %1231 = vmatprep.subr.mxu0 %v297
  %1232 = vmatpush1.msra.mxu0 %v296
  %1233 = vmatprep.mubr.f32.mxu0 %v1093
  %1234 = vmatmul.mubr.f32.gmra.mrb[0].mxu0 %v1078
  %v1235 = vpop.f32.mrb[0].mxu0
  %v1236 = vadd.f32 0.0, %v1235
  %v1237 = vpop.f32.mrb[0].mxu0
  %v1238 = vadd.f32 0.0, %v1237
  %1239 = vdwg.mxu0
  %1240 = vmatprep.subr.mxu0 %v51
  %1241 = vmatpush1.msra.mxu0 %v50
  %1242 = vmatprep.subr.mxu0 %v59
  %1243 = vmatpush1.msra.mxu0 %v58
  %1244 = vmatprep.subr.mxu0 %v67
  %1245 = vmatpush1.msra.mxu0 %v66
  %1246 = vmatprep.subr.mxu0 %v75
  %1247 = vmatpush1.msra.mxu0 %v74
  %1248 = vmatprep.subr.mxu0 %v83
  %1249 = vmatpush1.msra.mxu0 %v82
  %1250 = vmatprep.subr.mxu0 %v91
  %1251 = vmatpush1.msra.mxu0 %v90
  %1252 = vmatprep.subr.mxu0 %v99
  %1253 = vmatpush1.msra.mxu0 %v98
  %1254 = vmatprep.subr.mxu0 %v107
  %1255 = vmatpush1.msra.mxu0 %v106
  %1256 = vmatprep.subr.mxu0 %v115
  %1257 = vmatpush1.msra.mxu0 %v114
  %1258 = vmatprep.subr.mxu0 %v123
  %1259 = vmatpush1.msra.mxu0 %v122
  %1260 = vmatprep.subr.mxu0 %v131
  %1261 = vmatpush1.msra.mxu0 %v130
  %1262 = vmatprep.subr.mxu0 %v139
  %1263 = vmatpush1.msra.mxu0 %v138
  %1264 = vmatprep.subr.mxu0 %v147
  %1265 = vmatpush1.msra.mxu0 %v146
  %1266 = vmatprep.subr.mxu0 %v155
  %1267 = vmatpush1.msra.mxu0 %v154
  %1268 = vmatprep.subr.mxu0 %v163
  %1269 = vmatpush1.msra.mxu0 %v162
  %1270 = vmatprep.subr.mxu0 %v171
  %1271 = vmatpush1.msra.mxu0 %v170
  %1272 = vmatprep.subr.mxu0 %v179
  %1273 = vmatpush1.msra.mxu0 %v178
  %1274 = vmatprep.subr.mxu0 %v187
  %1275 = vmatpush1.msra.mxu0 %v186
  %1276 = vmatprep.subr.mxu0 %v195
  %1277 = vmatpush1.msra.mxu0 %v194
  %1278 = vmatprep.subr.mxu0 %v203
  %1279 = vmatpush1.msra.mxu0 %v202
  %1280 = vmatprep.subr.mxu0 %v211
  %1281 = vmatpush1.msra.mxu0 %v210
  %1282 = vmatprep.subr.mxu0 %v219
  %1283 = vmatpush1.msra.mxu0 %v218
  %1284 = vmatprep.subr.mxu0 %v227
  %1285 = vmatpush1.msra.mxu0 %v226
  %1286 = vmatprep.subr.mxu0 %v235
  %1287 = vmatpush1.msra.mxu0 %v234
  %1288 = vmatprep.subr.mxu0 %v243
  %1289 = vmatpush1.msra.mxu0 %v242
  %1290 = vmatprep.subr.mxu0 %v251
  %1291 = vmatpush1.msra.mxu0 %v250
  %1292 = vmatprep.subr.mxu0 %v259
  %1293 = vmatpush1.msra.mxu0 %v258
  %1294 = vmatprep.subr.mxu0 %v267
  %1295 = vmatpush1.msra.mxu0 %v266
  %1296 = vmatprep.subr.mxu0 %v275
  %1297 = vmatpush1.msra.mxu0 %v274
  %1298 = vmatprep.subr.mxu0 %v283
  %1299 = vmatpush1.msra.mxu0 %v282
  %1300 = vmatprep.subr.mxu0 %v291
  %1301 = vmatpush1.msra.mxu0 %v290
  %1302 = vmatprep.subr.mxu0 %v299
  %1303 = vmatpush1.msra.mxu0 %v298
  %1304 = vmatprep.mubr.f32.mxu0 %v1093
  %1305 = vmatmul.mubr.f32.gmra.mrb[0].mxu0 %v1078
  %v1306 = vpop.f32.mrb[0].mxu0
  %v1307 = vadd.f32 0.0, %v1306
  %v1308 = vpop.f32.mrb[0].mxu0
  %v1309 = vadd.f32 0.0, %v1308
  %1310 = vdwg.mxu0
  %1311 = vmatprep.subr.mxu0 %v53
  %1312 = vmatpush1.msra.mxu0 %v52
  %1313 = vmatprep.subr.mxu0 %v61
  %1314 = vmatpush1.msra.mxu0 %v60
  %1315 = vmatprep.subr.mxu0 %v69
  %1316 = vmatpush1.msra.mxu0 %v68
  %1317 = vmatprep.subr.mxu0 %v77
  %1318 = vmatpush1.msra.mxu0 %v76
  %1319 = vmatprep.subr.mxu0 %v85
  %1320 = vmatpush1.msra.mxu0 %v84
  %1321 = vmatprep.subr.mxu0 %v93
  %1322 = vmatpush1.msra.mxu0 %v92
  %1323 = vmatprep.subr.mxu0 %v101
  %1324 = vmatpush1.msra.mxu0 %v100
  %1325 = vmatprep.subr.mxu0 %v109
  %1326 = vmatpush1.msra.mxu0 %v108
  %1327 = vmatprep.subr.mxu0 %v117
  %1328 = vmatpush1.msra.mxu0 %v116
  %1329 = vmatprep.subr.mxu0 %v125
  %1330 = vmatpush1.msra.mxu0 %v124
  %1331 = vmatprep.subr.mxu0 %v133
  %1332 = vmatpush1.msra.mxu0 %v132
  %1333 = vmatprep.subr.mxu0 %v141
  %1334 = vmatpush1.msra.mxu0 %v140
  %1335 = vmatprep.subr.mxu0 %v149
  %1336 = vmatpush1.msra.mxu0 %v148
  %1337 = vmatprep.subr.mxu0 %v157
  %1338 = vmatpush1.msra.mxu0 %v156
  %1339 = vmatprep.subr.mxu0 %v165
  %1340 = vmatpush1.msra.mxu0 %v164
  %1341 = vmatprep.subr.mxu0 %v173
  %1342 = vmatpush1.msra.mxu0 %v172
  %1343 = vmatprep.subr.mxu0 %v181
  %1344 = vmatpush1.msra.mxu0 %v180
  %1345 = vmatprep.subr.mxu0 %v189
  %1346 = vmatpush1.msra.mxu0 %v188
  %1347 = vmatprep.subr.mxu0 %v197
  %1348 = vmatpush1.msra.mxu0 %v196
  %1349 = vmatprep.subr.mxu0 %v205
  %1350 = vmatpush1.msra.mxu0 %v204
  %1351 = vmatprep.subr.mxu0 %v213
  %1352 = vmatpush1.msra.mxu0 %v212
  %1353 = vmatprep.subr.mxu0 %v221
  %1354 = vmatpush1.msra.mxu0 %v220
  %1355 = vmatprep.subr.mxu0 %v229
  %1356 = vmatpush1.msra.mxu0 %v228
  %1357 = vmatprep.subr.mxu0 %v237
  %1358 = vmatpush1.msra.mxu0 %v236
  %1359 = vmatprep.subr.mxu0 %v245
  %1360 = vmatpush1.msra.mxu0 %v244
  %1361 = vmatprep.subr.mxu0 %v253
  %1362 = vmatpush1.msra.mxu0 %v252
  %1363 = vmatprep.subr.mxu0 %v261
  %1364 = vmatpush1.msra.mxu0 %v260
  %1365 = vmatprep.subr.mxu0 %v269
  %1366 = vmatpush1.msra.mxu0 %v268
  %1367 = vmatprep.subr.mxu0 %v277
  %1368 = vmatpush1.msra.mxu0 %v276
  %1369 = vmatprep.subr.mxu0 %v285
  %1370 = vmatpush1.msra.mxu0 %v284
  %1371 = vmatprep.subr.mxu0 %v293
  %1372 = vmatpush1.msra.mxu0 %v292
  %1373 = vmatprep.subr.mxu0 %v301
  %1374 = vmatpush1.msra.mxu0 %v300
  %1375 = vmatprep.mubr.f32.mxu0 %v1093
  %1376 = vmatmul.mubr.f32.gmra.mrb[0].mxu0 %v1078
  %v1377 = vpop.f32.mrb[0].mxu0
  %v1378 = vadd.f32 0.0, %v1377
  %v1379 = vpop.f32.mrb[0].mxu0
  %v1380 = vadd.f32 0.0, %v1379
  %1381 = vdwg.mxu0
  %s1382 = scalar_lea.vmem %s0, 16
  %v1383 = vld [vmem:[%s1382] sm:$0xff]
  %1385 = vset.pattern.permute.xlu0 0
  %1386 = vperm.xlu0 %1385, %v1383
  %v1387 = vpop.permute.xlu0 %1386
  %v1389 = vmul.f32 %v1387, %v640
  %v1390 = vmul.f32 %v1387, %v644
  %v1391 = vmul.f32 %v1387, %v648
  %v1392 = vmul.f32 %v1387, %v652
  %v1393 = vadd.f32 %v1389, %v307
  %v1394 = vadd.f32 %v1390, %v311
  %v1395 = vadd.f32 %v1391, %v315
  %v1396 = vadd.f32 %v1392, %v319
  %v1397 = vadd.f32 %v1393, %v1165
  %v1398 = vadd.f32 %v1394, %v1167
  %v1399 = vadd.f32 %v1395, %v1236
  %v1400 = vadd.f32 %v1396, %v1238
  %s1401 = scalar_lea.vmem %s0, 40
  %v1402 = vld [vmem:[%s1401] sm:$0xff]
  %1404 = vset.pattern.permute.xlu0 0
  %1405 = vperm.xlu0 %1404, %v1402
  %v1406 = vpop.permute.xlu0 %1405
  %v1408 = vmul.f32 %v1406, %v680
  %v1409 = vmul.f32 %v1406, %v684
  %v1410 = vmul.f32 %v1406, %v688
  %v1411 = vmul.f32 %v1406, %v692
  %v1412 = vadd.f32 %v1408, %v329
  %v1413 = vadd.f32 %v1409, %v333
  %v1414 = vadd.f32 %v1410, %v337
  %v1415 = vadd.f32 %v1411, %v341
  %v1416 = vadd.f32 %v1412, %v1307
  %v1417 = vadd.f32 %v1413, %v1309
  %v1418 = vadd.f32 %v1414, %v1378
  %v1419 = vadd.f32 %v1415, %v1380
  %v1420 = vtanh.pop %v1397
  %v1421 = vmul.f32 %v1420, 0.5
  %v1422 = vadd.f32 %v1421, 0.5
  %v1423 = vtanh.pop %v1398
  %v1424 = vmul.f32 %v1423, 0.5
  %v1425 = vadd.f32 %v1424, 0.5
  %v1426 = vtanh.pop %v1399
  %v1427 = vtanh.pop %v1400
  %v1428 = vmul.f32 %v1427, 0.5
  %v1429 = vadd.f32 %v1428, 0.5
  %v1430 = vmul.f32 %v1425, %v1076
  %v1431 = vmul.f32 %v1422, %v1426
  %v1432 = vadd.f32 %v1430, %v1431
  %v1433 = vtanh.pop %v1432
  %v1434 = vmul.f32 %v1429, %v1433
  %v1435 = vtanh.pop %v1416
  %v1436 = vmul.f32 %v1435, 0.5
  %v1437 = vadd.f32 %v1436, 0.5
  %v1438 = vtanh.pop %v1417
  %v1439 = vmul.f32 %v1438, 0.5
  %v1440 = vadd.f32 %v1439, 0.5
  %v1441 = vtanh.pop %v1418
  %v1442 = vtanh.pop %v1419
  %v1443 = vmul.f32 %v1442, 0.5
  %v1444 = vadd.f32 %v1443, 0.5
  %v1445 = vmul.f32 %v1440, %v1091
  %v1446 = vmul.f32 %v1437, %v1441
  %v1447 = vadd.f32 %v1445, %v1446
  %v1448 = vtanh.pop %v1447
  %v1449 = vmul.f32 %v1444, %v1448
  %s1450 = scalar_lea.vmem [#allocation2], 32
  %1451 = vst [vmem:[%s1450] sm:$0xff] %v1434
  %s1452 = scalar_lea.vmem [#allocation2], 80
  %1453 = vst [vmem:[%s1452 + $0x8] sm:$0xff] %v1449
  %1454 = vmatprep.subr.mxu0 %v47
  %1455 = vmatpush1.msra.mxu0 %v46
  %1456 = vmatprep.subr.mxu0 %v55
  %1457 = vmatpush1.msra.mxu0 %v54
  %1458 = vmatprep.subr.mxu0 %v63
  %1459 = vmatpush1.msra.mxu0 %v62
  %1460 = vmatprep.subr.mxu0 %v71
  %1461 = vmatpush1.msra.mxu0 %v70
  %1462 = vmatprep.subr.mxu0 %v79
  %1463 = vmatpush1.msra.mxu0 %v78
  %1464 = vmatprep.subr.mxu0 %v87
  %1465 = vmatpush1.msra.mxu0 %v86
  %1466 = vmatprep.subr.mxu0 %v95
  %1467 = vmatpush1.msra.mxu0 %v94
  %1468 = vmatprep.subr.mxu0 %v103
  %1469 = vmatpush1.msra.mxu0 %v102
  %1470 = vmatprep.subr.mxu0 %v111
  %1471 = vmatpush1.msra.mxu0 %v110
  %1472 = vmatprep.subr.mxu0 %v119
  %1473 = vmatpush1.msra.mxu0 %v118
  %1474 = vmatprep.subr.mxu0 %v127
  %1475 = vmatpush1.msra.mxu0 %v126
  %1476 = vmatprep.subr.mxu0 %v135
  %1477 = vmatpush1.msra.mxu0 %v134
  %1478 = vmatprep.subr.mxu0 %v143
  %1479 = vmatpush1.msra.mxu0 %v142
  %1480 = vmatprep.subr.mxu0 %v151
  %1481 = vmatpush1.msra.mxu0 %v150
  %1482 = vmatprep.subr.mxu0 %v159
  %1483 = vmatpush1.msra.mxu0 %v158
  %1484 = vmatprep.subr.mxu0 %v167
  %1485 = vmatpush1.msra.mxu0 %v166
  %1486 = vmatprep.subr.mxu0 %v175
  %1487 = vmatpush1.msra.mxu0 %v174
  %1488 = vmatprep.subr.mxu0 %v183
  %1489 = vmatpush1.msra.mxu0 %v182
  %1490 = vmatprep.subr.mxu0 %v191
  %1491 = vmatpush1.msra.mxu0 %v190
  %1492 = vmatprep.subr.mxu0 %v199
  %1493 = vmatpush1.msra.mxu0 %v198
  %1494 = vmatprep.subr.mxu0 %v207
  %1495 = vmatpush1.msra.mxu0 %v206
  %1496 = vmatprep.subr.mxu0 %v215
  %1497 = vmatpush1.msra.mxu0 %v214
  %1498 = vmatprep.subr.mxu0 %v223
  %1499 = vmatpush1.msra.mxu0 %v222
  %1500 = vmatprep.subr.mxu0 %v231
  %1501 = vmatpush1.msra.mxu0 %v230
  %1502 = vmatprep.subr.mxu0 %v239
  %1503 = vmatpush1.msra.mxu0 %v238
  %1504 = vmatprep.subr.mxu0 %v247
  %1505 = vmatpush1.msra.mxu0 %v246
  %1506 = vmatprep.subr.mxu0 %v255
  %1507 = vmatpush1.msra.mxu0 %v254
  %1508 = vmatprep.subr.mxu0 %v263
  %1509 = vmatpush1.msra.mxu0 %v262
  %1510 = vmatprep.subr.mxu0 %v271
  %1511 = vmatpush1.msra.mxu0 %v270
  %1512 = vmatprep.subr.mxu0 %v279
  %1513 = vmatpush1.msra.mxu0 %v278
  %1514 = vmatprep.subr.mxu0 %v287
  %1515 = vmatpush1.msra.mxu0 %v286
  %1516 = vmatprep.subr.mxu0 %v295
  %1517 = vmatpush1.msra.mxu0 %v294
  %1518 = vmatprep.mubr.f32.mxu0 %v1449
  %1519 = vmatmul.mubr.f32.gmra.mrb[0].mxu0 %v1434
  %v1520 = vpop.f32.mrb[0].mxu0
  %v1521 = vadd.f32 0.0, %v1520
  %v1522 = vpop.f32.mrb[0].mxu0
  %v1523 = vadd.f32 0.0, %v1522
  %1524 = vdwg.mxu0
  %1525 = vmatprep.subr.mxu0 %v49
  %1526 = vmatpush1.msra.mxu0 %v48
  %1527 = vmatprep.subr.mxu0 %v57
  %1528 = vmatpush1.msra.mxu0 %v56
  %1529 = vmatprep.subr.mxu0 %v65
  %1530 = vmatpush1.msra.mxu0 %v64
  %1531 = vmatprep.subr.mxu0 %v73
  %1532 = vmatpush1.msra.mxu0 %v72
  %1533 = vmatprep.subr.mxu0 %v81
  %1534 = vmatpush1.msra.mxu0 %v80
  %1535 = vmatprep.subr.mxu0 %v89
  %1536 = vmatpush1.msra.mxu0 %v88
  %1537 = vmatprep.subr.mxu0 %v97
  %1538 = vmatpush1.msra.mxu0 %v96
  %1539 = vmatprep.subr.mxu0 %v105
  %1540 = vmatpush1.msra.mxu0 %v104
  %1541 = vmatprep.subr.mxu0 %v113
  %1542 = vmatpush1.msra.mxu0 %v112
  %1543 = vmatprep.subr.mxu0 %v121
  %1544 = vmatpush1.msra.mxu0 %v120
  %1545 = vmatprep.subr.mxu0 %v129
  %1546 = vmatpush1.msra.mxu0 %v128
  %1547 = vmatprep.subr.mxu0 %v137
  %1548 = vmatpush1.msra.mxu0 %v136
  %1549 = vmatprep.subr.mxu0 %v145
  %1550 = vmatpush1.msra.mxu0 %v144
  %1551 = vmatprep.subr.mxu0 %v153
  %1552 = vmatpush1.msra.mxu0 %v152
  %1553 = vmatprep.subr.mxu0 %v161
  %1554 = vmatpush1.msra.mxu0 %v160
  %1555 = vmatprep.subr.mxu0 %v169
  %1556 = vmatpush1.msra.mxu0 %v168
  %1557 = vmatprep.subr.mxu0 %v177
  %1558 = vmatpush1.msra.mxu0 %v176
  %1559 = vmatprep.subr.mxu0 %v185
  %1560 = vmatpush1.msra.mxu0 %v184
  %1561 = vmatprep.subr.mxu0 %v193
  %1562 = vmatpush1.msra.mxu0 %v192
  %1563 = vmatprep.subr.mxu0 %v201
  %1564 = vmatpush1.msra.mxu0 %v200
  %1565 = vmatprep.subr.mxu0 %v209
  %1566 = vmatpush1.msra.mxu0 %v208
  %1567 = vmatprep.subr.mxu0 %v217
  %1568 = vmatpush1.msra.mxu0 %v216
  %1569 = vmatprep.subr.mxu0 %v225
  %1570 = vmatpush1.msra.mxu0 %v224
  %1571 = vmatprep.subr.mxu0 %v233
  %1572 = vmatpush1.msra.mxu0 %v232
  %1573 = vmatprep.subr.mxu0 %v241
  %1574 = vmatpush1.msra.mxu0 %v240
  %1575 = vmatprep.subr.mxu0 %v249
  %1576 = vmatpush1.msra.mxu0 %v248
  %1577 = vmatprep.subr.mxu0 %v257
  %1578 = vmatpush1.msra.mxu0 %v256
  %1579 = vmatprep.subr.mxu0 %v265
  %1580 = vmatpush1.msra.mxu0 %v264
  %1581 = vmatprep.subr.mxu0 %v273
  %1582 = vmatpush1.msra.mxu0 %v272
  %1583 = vmatprep.subr.mxu0 %v281
  %1584 = vmatpush1.msra.mxu0 %v280
  %1585 = vmatprep.subr.mxu0 %v289
  %1586 = vmatpush1.msra.mxu0 %v288
  %1587 = vmatprep.subr.mxu0 %v297
  %1588 = vmatpush1.msra.mxu0 %v296
  %1589 = vmatprep.mubr.f32.mxu0 %v1449
  %1590 = vmatmul.mubr.f32.gmra.mrb[0].mxu0 %v1434
  %v1591 = vpop.f32.mrb[0].mxu0
  %v1592 = vadd.f32 0.0, %v1591
  %v1593 = vpop.f32.mrb[0].mxu0
  %v1594 = vadd.f32 0.0, %v1593
  %1595 = vdwg.mxu0
  %1596 = vmatprep.subr.mxu0 %v51
  %1597 = vmatpush1.msra.mxu0 %v50
  %1598 = vmatprep.subr.mxu0 %v59
  %1599 = vmatpush1.msra.mxu0 %v58
  %1600 = vmatprep.subr.mxu0 %v67
  %1601 = vmatpush1.msra.mxu0 %v66
  %1602 = vmatprep.subr.mxu0 %v75
  %1603 = vmatpush1.msra.mxu0 %v74
  %1604 = vmatprep.subr.mxu0 %v83
  %1605 = vmatpush1.msra.mxu0 %v82
  %1606 = vmatprep.subr.mxu0 %v91
  %1607 = vmatpush1.msra.mxu0 %v90
  %1608 = vmatprep.subr.mxu0 %v99
  %1609 = vmatpush1.msra.mxu0 %v98
  %1610 = vmatprep.subr.mxu0 %v107
  %1611 = vmatpush1.msra.mxu0 %v106
  %1612 = vmatprep.subr.mxu0 %v115
  %1613 = vmatpush1.msra.mxu0 %v114
  %1614 = vmatprep.subr.mxu0 %v123
  %1615 = vmatpush1.msra.mxu0 %v122
  %1616 = vmatprep.subr.mxu0 %v131
  %1617 = vmatpush1.msra.mxu0 %v130
  %1618 = vmatprep.subr.mxu0 %v139
  %1619 = vmatpush1.msra.mxu0 %v138
  %1620 = vmatprep.subr.mxu0 %v147
  %1621 = vmatpush1.msra.mxu0 %v146
  %1622 = vmatprep.subr.mxu0 %v155
  %1623 = vmatpush1.msra.mxu0 %v154
  %1624 = vmatprep.subr.mxu0 %v163
  %1625 = vmatpush1.msra.mxu0 %v162
  %1626 = vmatprep.subr.mxu0 %v171
  %1627 = vmatpush1.msra.mxu0 %v170
  %1628 = vmatprep.subr.mxu0 %v179
  %1629 = vmatpush1.msra.mxu0 %v178
  %1630 = vmatprep.subr.mxu0 %v187
  %1631 = vmatpush1.msra.mxu0 %v186
  %1632 = vmatprep.subr.mxu0 %v195
  %1633 = vmatpush1.msra.mxu0 %v194
  %1634 = vmatprep.subr.mxu0 %v203
  %1635 = vmatpush1.msra.mxu0 %v202
  %1636 = vmatprep.subr.mxu0 %v211
  %1637 = vmatpush1.msra.mxu0 %v210
  %1638 = vmatprep.subr.mxu0 %v219
  %1639 = vmatpush1.msra.mxu0 %v218
  %1640 = vmatprep.subr.mxu0 %v227
  %1641 = vmatpush1.msra.mxu0 %v226
  %1642 = vmatprep.subr.mxu0 %v235
  %1643 = vmatpush1.msra.mxu0 %v234
  %1644 = vmatprep.subr.mxu0 %v243
  %1645 = vmatpush1.msra.mxu0 %v242
  %1646 = vmatprep.subr.mxu0 %v251
  %1647 = vmatpush1.msra.mxu0 %v250
  %1648 = vmatprep.subr.mxu0 %v259
  %1649 = vmatpush1.msra.mxu0 %v258
  %1650 = vmatprep.subr.mxu0 %v267
  %1651 = vmatpush1.msra.mxu0 %v266
  %1652 = vmatprep.subr.mxu0 %v275
  %1653 = vmatpush1.msra.mxu0 %v274
  %1654 = vmatprep.subr.mxu0 %v283
  %1655 = vmatpush1.msra.mxu0 %v282
  %1656 = vmatprep.subr.mxu0 %v291
  %1657 = vmatpush1.msra.mxu0 %v290
  %1658 = vmatprep.subr.mxu0 %v299
  %1659 = vmatpush1.msra.mxu0 %v298
  %1660 = vmatprep.mubr.f32.mxu0 %v1449
  %1661 = vmatmul.mubr.f32.gmra.mrb[0].mxu0 %v1434
  %v1662 = vpop.f32.mrb[0].mxu0
  %v1663 = vadd.f32 0.0, %v1662
  %v1664 = vpop.f32.mrb[0].mxu0
  %v1665 = vadd.f32 0.0, %v1664
  %1666 = vdwg.mxu0
  %1667 = vmatprep.subr.mxu0 %v53
  %1668 = vmatpush1.msra.mxu0 %v52
  %1669 = vmatprep.subr.mxu0 %v61
  %1670 = vmatpush1.msra.mxu0 %v60
  %1671 = vmatprep.subr.mxu0 %v69
  %1672 = vmatpush1.msra.mxu0 %v68
  %1673 = vmatprep.subr.mxu0 %v77
  %1674 = vmatpush1.msra.mxu0 %v76
  %1675 = vmatprep.subr.mxu0 %v85
  %1676 = vmatpush1.msra.mxu0 %v84
  %1677 = vmatprep.subr.mxu0 %v93
  %1678 = vmatpush1.msra.mxu0 %v92
  %1679 = vmatprep.subr.mxu0 %v101
  %1680 = vmatpush1.msra.mxu0 %v100
  %1681 = vmatprep.subr.mxu0 %v109
  %1682 = vmatpush1.msra.mxu0 %v108
  %1683 = vmatprep.subr.mxu0 %v117
  %1684 = vmatpush1.msra.mxu0 %v116
  %1685 = vmatprep.subr.mxu0 %v125
  %1686 = vmatpush1.msra.mxu0 %v124
  %1687 = vmatprep.subr.mxu0 %v133
  %1688 = vmatpush1.msra.mxu0 %v132
  %1689 = vmatprep.subr.mxu0 %v141
  %1690 = vmatpush1.msra.mxu0 %v140
  %1691 = vmatprep.subr.mxu0 %v149
  %1692 = vmatpush1.msra.mxu0 %v148
  %1693 = vmatprep.subr.mxu0 %v157
  %1694 = vmatpush1.msra.mxu0 %v156
  %1695 = vmatprep.subr.mxu0 %v165
  %1696 = vmatpush1.msra.mxu0 %v164
  %1697 = vmatprep.subr.mxu0 %v173
  %1698 = vmatpush1.msra.mxu0 %v172
  %1699 = vmatprep.subr.mxu0 %v181
  %1700 = vmatpush1.msra.mxu0 %v180
  %1701 = vmatprep.subr.mxu0 %v189
  %1702 = vmatpush1.msra.mxu0 %v188
  %1703 = vmatprep.subr.mxu0 %v197
  %1704 = vmatpush1.msra.mxu0 %v196
  %1705 = vmatprep.subr.mxu0 %v205
  %1706 = vmatpush1.msra.mxu0 %v204
  %1707 = vmatprep.subr.mxu0 %v213
  %1708 = vmatpush1.msra.mxu0 %v212
  %1709 = vmatprep.subr.mxu0 %v221
  %1710 = vmatpush1.msra.mxu0 %v220
  %1711 = vmatprep.subr.mxu0 %v229
  %1712 = vmatpush1.msra.mxu0 %v228
  %1713 = vmatprep.subr.mxu0 %v237
  %1714 = vmatpush1.msra.mxu0 %v236
  %1715 = vmatprep.subr.mxu0 %v245
  %1716 = vmatpush1.msra.mxu0 %v244
  %1717 = vmatprep.subr.mxu0 %v253
  %1718 = vmatpush1.msra.mxu0 %v252
  %1719 = vmatprep.subr.mxu0 %v261
  %1720 = vmatpush1.msra.mxu0 %v260
  %1721 = vmatprep.subr.mxu0 %v269
  %1722 = vmatpush1.msra.mxu0 %v268
  %1723 = vmatprep.subr.mxu0 %v277
  %1724 = vmatpush1.msra.mxu0 %v276
  %1725 = vmatprep.subr.mxu0 %v285
  %1726 = vmatpush1.msra.mxu0 %v284
  %1727 = vmatprep.subr.mxu0 %v293
  %1728 = vmatpush1.msra.mxu0 %v292
  %1729 = vmatprep.subr.mxu0 %v301
  %1730 = vmatpush1.msra.mxu0 %v300
  %1731 = vmatprep.mubr.f32.mxu0 %v1449
  %1732 = vmatmul.mubr.f32.gmra.mrb[0].mxu0 %v1434
  %v1733 = vpop.f32.mrb[0].mxu0
  %v1734 = vadd.f32 0.0, %v1733
  %v1735 = vpop.f32.mrb[0].mxu0
  %v1736 = vadd.f32 0.0, %v1735
  %1737 = vdwg.mxu0
  %s1738 = scalar_lea.vmem %s0, 24
  %v1739 = vld [vmem:[%s1738] sm:$0xff]
  %1741 = vset.pattern.permute.xlu0 0
  %1742 = vperm.xlu0 %1741, %v1739
  %v1743 = vpop.permute.xlu0 %1742
  %v1745 = vmul.f32 %v1743, %v640
  %v1746 = vmul.f32 %v1743, %v644
  %v1747 = vmul.f32 %v1743, %v648
  %v1748 = vmul.f32 %v1743, %v652
  %v1749 = vadd.f32 %v1745, %v307
  %v1750 = vadd.f32 %v1746, %v311
  %v1751 = vadd.f32 %v1747, %v315
  %v1752 = vadd.f32 %v1748, %v319
  %v1753 = vadd.f32 %v1749, %v1521
  %v1754 = vadd.f32 %v1750, %v1523
  %v1755 = vadd.f32 %v1751, %v1592
  %v1756 = vadd.f32 %v1752, %v1594
  %s1757 = scalar_lea.vmem %s0, 32
  %v1758 = vld [vmem:[%s1757] sm:$0xff]
  %1760 = vset.pattern.permute.xlu0 0
  %1761 = vperm.xlu0 %1760, %v1758
  %v1762 = vpop.permute.xlu0 %1761
  %v1764 = vmul.f32 %v1762, %v680
  %v1765 = vmul.f32 %v1762, %v684
  %v1766 = vmul.f32 %v1762, %v688
  %v1767 = vmul.f32 %v1762, %v692
  %v1768 = vadd.f32 %v1764, %v329
  %v1769 = vadd.f32 %v1765, %v333
  %v1770 = vadd.f32 %v1766, %v337
  %v1771 = vadd.f32 %v1767, %v341
  %v1772 = vadd.f32 %v1768, %v1663
  %v1773 = vadd.f32 %v1769, %v1665
  %v1774 = vadd.f32 %v1770, %v1734
  %v1775 = vadd.f32 %v1771, %v1736
  %v1776 = vtanh.pop %v1753
  %v1777 = vmul.f32 %v1776, 0.5
  %v1778 = vadd.f32 %v1777, 0.5
  %v1779 = vtanh.pop %v1754
  %v1780 = vmul.f32 %v1779, 0.5
  %v1781 = vadd.f32 %v1780, 0.5
  %v1782 = vtanh.pop %v1755
  %v1783 = vtanh.pop %v1756
  %v1784 = vmul.f32 %v1783, 0.5
  %v1785 = vadd.f32 %v1784, 0.5
  %v1786 = vmul.f32 %v1781, %v1432
  %v1787 = vmul.f32 %v1778, %v1782
  %v1788 = vadd.f32 %v1786, %v1787
  %v1789 = vtanh.pop %v1788
  %v1790 = vmul.f32 %v1785, %v1789
  %v1791 = vtanh.pop %v1772
  %v1792 = vmul.f32 %v1791, 0.5
  %v1793 = vadd.f32 %v1792, 0.5
  %v1794 = vtanh.pop %v1773
  %v1795 = vmul.f32 %v1794, 0.5
  %v1796 = vadd.f32 %v1795, 0.5
  %v1797 = vtanh.pop %v1774
  %v1798 = vtanh.pop %v1775
  %v1799 = vmul.f32 %v1798, 0.5
  %v1800 = vadd.f32 %v1799, 0.5
  %v1801 = vmul.f32 %v1796, %v1447
  %v1802 = vmul.f32 %v1793, %v1797
  %v1803 = vadd.f32 %v1801, %v1802
  %v1804 = vtanh.pop %v1803
  %v1805 = vmul.f32 %v1800, %v1804
  %s1806 = scalar_lea.vmem [#allocation2], 48
  %1807 = vst [vmem:[%s1806] sm:$0xff] %v1790
  %s1808 = scalar_lea.vmem [#allocation2], 64
  %1809 = vst [vmem:[%s1808 + $0x8] sm:$0xff] %v1805
  %1810 = vmatprep.subr.mxu0 %v47
  %1811 = vmatpush1.msra.mxu0 %v46
  %1812 = vmatprep.subr.mxu0 %v55
  %1813 = vmatpush1.msra.mxu0 %v54
  %1814 = vmatprep.subr.mxu0 %v63
  %1815 = vmatpush1.msra.mxu0 %v62
  %1816 = vmatprep.subr.mxu0 %v71
  %1817 = vmatpush1.msra.mxu0 %v70
  %1818 = vmatprep.subr.mxu0 %v79
  %1819 = vmatpush1.msra.mxu0 %v78
  %1820 = vmatprep.subr.mxu0 %v87
  %1821 = vmatpush1.msra.mxu0 %v86
  %1822 = vmatprep.subr.mxu0 %v95
  %1823 = vmatpush1.msra.mxu0 %v94
  %1824 = vmatprep.subr.mxu0 %v103
  %1825 = vmatpush1.msra.mxu0 %v102
  %1826 = vmatprep.subr.mxu0 %v111
  %1827 = vmatpush1.msra.mxu0 %v110
  %1828 = vmatprep.subr.mxu0 %v119
  %1829 = vmatpush1.msra.mxu0 %v118
  %1830 = vmatprep.subr.mxu0 %v127
  %1831 = vmatpush1.msra.mxu0 %v126
  %1832 = vmatprep.subr.mxu0 %v135
  %1833 = vmatpush1.msra.mxu0 %v134
  %1834 = vmatprep.subr.mxu0 %v143
  %1835 = vmatpush1.msra.mxu0 %v142
  %1836 = vmatprep.subr.mxu0 %v151
  %1837 = vmatpush1.msra.mxu0 %v150
  %1838 = vmatprep.subr.mxu0 %v159
  %1839 = vmatpush1.msra.mxu0 %v158
  %1840 = vmatprep.subr.mxu0 %v167
  %1841 = vmatpush1.msra.mxu0 %v166
  %1842 = vmatprep.subr.mxu0 %v175
  %1843 = vmatpush1.msra.mxu0 %v174
  %1844 = vmatprep.subr.mxu0 %v183
  %1845 = vmatpush1.msra.mxu0 %v182
  %1846 = vmatprep.subr.mxu0 %v191
  %1847 = vmatpush1.msra.mxu0 %v190
  %1848 = vmatprep.subr.mxu0 %v199
  %1849 = vmatpush1.msra.mxu0 %v198
  %1850 = vmatprep.subr.mxu0 %v207
  %1851 = vmatpush1.msra.mxu0 %v206
  %1852 = vmatprep.subr.mxu0 %v215
  %1853 = vmatpush1.msra.mxu0 %v214
  %1854 = vmatprep.subr.mxu0 %v223
  %1855 = vmatpush1.msra.mxu0 %v222
  %1856 = vmatprep.subr.mxu0 %v231
  %1857 = vmatpush1.msra.mxu0 %v230
  %1858 = vmatprep.subr.mxu0 %v239
  %1859 = vmatpush1.msra.mxu0 %v238
  %1860 = vmatprep.subr.mxu0 %v247
  %1861 = vmatpush1.msra.mxu0 %v246
  %1862 = vmatprep.subr.mxu0 %v255
  %1863 = vmatpush1.msra.mxu0 %v254
  %1864 = vmatprep.subr.mxu0 %v263
  %1865 = vmatpush1.msra.mxu0 %v262
  %1866 = vmatprep.subr.mxu0 %v271
  %1867 = vmatpush1.msra.mxu0 %v270
  %1868 = vmatprep.subr.mxu0 %v279
  %1869 = vmatpush1.msra.mxu0 %v278
  %1870 = vmatprep.subr.mxu0 %v287
  %1871 = vmatpush1.msra.mxu0 %v286
  %1872 = vmatprep.subr.mxu0 %v295
  %1873 = vmatpush1.msra.mxu0 %v294
  %1874 = vmatprep.mubr.f32.mxu0 %v1805
  %1875 = vmatmul.mubr.f32.gmra.mrb[0].mxu0 %v1790
  %v1876 = vpop.f32.mrb[0].mxu0
  %v1877 = vadd.f32 0.0, %v1876
  %v1878 = vpop.f32.mrb[0].mxu0
  %v1879 = vadd.f32 0.0, %v1878
  %1880 = vdwg.mxu0
  %1881 = vmatprep.subr.mxu0 %v49
  %1882 = vmatpush1.msra.mxu0 %v48
  %1883 = vmatprep.subr.mxu0 %v57
  %1884 = vmatpush1.msra.mxu0 %v56
  %1885 = vmatprep.subr.mxu0 %v65
  %1886 = vmatpush1.msra.mxu0 %v64
  %1887 = vmatprep.subr.mxu0 %v73
  %1888 = vmatpush1.msra.mxu0 %v72
  %1889 = vmatprep.subr.mxu0 %v81
  %1890 = vmatpush1.msra.mxu0 %v80
  %1891 = vmatprep.subr.mxu0 %v89
  %1892 = vmatpush1.msra.mxu0 %v88
  %1893 = vmatprep.subr.mxu0 %v97
  %1894 = vmatpush1.msra.mxu0 %v96
  %1895 = vmatprep.subr.mxu0 %v105
  %1896 = vmatpush1.msra.mxu0 %v104
  %1897 = vmatprep.subr.mxu0 %v113
  %1898 = vmatpush1.msra.mxu0 %v112
  %1899 = vmatprep.subr.mxu0 %v121
  %1900 = vmatpush1.msra.mxu0 %v120
  %1901 = vmatprep.subr.mxu0 %v129
  %1902 = vmatpush1.msra.mxu0 %v128
  %1903 = vmatprep.subr.mxu0 %v137
  %1904 = vmatpush1.msra.mxu0 %v136
  %1905 = vmatprep.subr.mxu0 %v145
  %1906 = vmatpush1.msra.mxu0 %v144
  %1907 = vmatprep.subr.mxu0 %v153
  %1908 = vmatpush1.msra.mxu0 %v152
  %1909 = vmatprep.subr.mxu0 %v161
  %1910 = vmatpush1.msra.mxu0 %v160
  %1911 = vmatprep.subr.mxu0 %v169
  %1912 = vmatpush1.msra.mxu0 %v168
  %1913 = vmatprep.subr.mxu0 %v177
  %1914 = vmatpush1.msra.mxu0 %v176
  %1915 = vmatprep.subr.mxu0 %v185
  %1916 = vmatpush1.msra.mxu0 %v184
  %1917 = vmatprep.subr.mxu0 %v193
  %1918 = vmatpush1.msra.mxu0 %v192
  %1919 = vmatprep.subr.mxu0 %v201
  %1920 = vmatpush1.msra.mxu0 %v200
  %1921 = vmatprep.subr.mxu0 %v209
  %1922 = vmatpush1.msra.mxu0 %v208
  %1923 = vmatprep.subr.mxu0 %v217
  %1924 = vmatpush1.msra.mxu0 %v216
  %1925 = vmatprep.subr.mxu0 %v225
  %1926 = vmatpush1.msra.mxu0 %v224
  %1927 = vmatprep.subr.mxu0 %v233
  %1928 = vmatpush1.msra.mxu0 %v232
  %1929 = vmatprep.subr.mxu0 %v241
  %1930 = vmatpush1.msra.mxu0 %v240
  %1931 = vmatprep.subr.mxu0 %v249
  %1932 = vmatpush1.msra.mxu0 %v248
  %1933 = vmatprep.subr.mxu0 %v257
  %1934 = vmatpush1.msra.mxu0 %v256
  %1935 = vmatprep.subr.mxu0 %v265
  %1936 = vmatpush1.msra.mxu0 %v264
  %1937 = vmatprep.subr.mxu0 %v273
  %1938 = vmatpush1.msra.mxu0 %v272
  %1939 = vmatprep.subr.mxu0 %v281
  %1940 = vmatpush1.msra.mxu0 %v280
  %1941 = vmatprep.subr.mxu0 %v289
  %1942 = vmatpush1.msra.mxu0 %v288
  %1943 = vmatprep.subr.mxu0 %v297
  %1944 = vmatpush1.msra.mxu0 %v296
  %1945 = vmatprep.mubr.f32.mxu0 %v1805
  %1946 = vmatmul.mubr.f32.gmra.mrb[0].mxu0 %v1790
  %v1947 = vpop.f32.mrb[0].mxu0
  %v1948 = vadd.f32 0.0, %v1947
  %v1949 = vpop.f32.mrb[0].mxu0
  %v1950 = vadd.f32 0.0, %v1949
  %1951 = vdwg.mxu0
  %1952 = vmatprep.subr.mxu0 %v51
  %1953 = vmatpush1.msra.mxu0 %v50
  %1954 = vmatprep.subr.mxu0 %v59
  %1955 = vmatpush1.msra.mxu0 %v58
  %1956 = vmatprep.subr.mxu0 %v67
  %1957 = vmatpush1.msra.mxu0 %v66
  %1958 = vmatprep.subr.mxu0 %v75
  %1959 = vmatpush1.msra.mxu0 %v74
  %1960 = vmatprep.subr.mxu0 %v83
  %1961 = vmatpush1.msra.mxu0 %v82
  %1962 = vmatprep.subr.mxu0 %v91
  %1963 = vmatpush1.msra.mxu0 %v90
  %1964 = vmatprep.subr.mxu0 %v99
  %1965 = vmatpush1.msra.mxu0 %v98
  %1966 = vmatprep.subr.mxu0 %v107
  %1967 = vmatpush1.msra.mxu0 %v106
  %1968 = vmatprep.subr.mxu0 %v115
  %1969 = vmatpush1.msra.mxu0 %v114
  %1970 = vmatprep.subr.mxu0 %v123
  %1971 = vmatpush1.msra.mxu0 %v122
  %1972 = vmatprep.subr.mxu0 %v131
  %1973 = vmatpush1.msra.mxu0 %v130
  %1974 = vmatprep.subr.mxu0 %v139
  %1975 = vmatpush1.msra.mxu0 %v138
  %1976 = vmatprep.subr.mxu0 %v147
  %1977 = vmatpush1.msra.mxu0 %v146
  %1978 = vmatprep.subr.mxu0 %v155
  %1979 = vmatpush1.msra.mxu0 %v154
  %1980 = vmatprep.subr.mxu0 %v163
  %1981 = vmatpush1.msra.mxu0 %v162
  %1982 = vmatprep.subr.mxu0 %v171
  %1983 = vmatpush1.msra.mxu0 %v170
  %1984 = vmatprep.subr.mxu0 %v179
  %1985 = vmatpush1.msra.mxu0 %v178
  %1986 = vmatprep.subr.mxu0 %v187
  %1987 = vmatpush1.msra.mxu0 %v186
  %1988 = vmatprep.subr.mxu0 %v195
  %1989 = vmatpush1.msra.mxu0 %v194
  %1990 = vmatprep.subr.mxu0 %v203
  %1991 = vmatpush1.msra.mxu0 %v202
  %1992 = vmatprep.subr.mxu0 %v211
  %1993 = vmatpush1.msra.mxu0 %v210
  %1994 = vmatprep.subr.mxu0 %v219
  %1995 = vmatpush1.msra.mxu0 %v218
  %1996 = vmatprep.subr.mxu0 %v227
  %1997 = vmatpush1.msra.mxu0 %v226
  %1998 = vmatprep.subr.mxu0 %v235
  %1999 = vmatpush1.msra.mxu0 %v234
  %2000 = vmatprep.subr.mxu0 %v243
  %2001 = vmatpush1.msra.mxu0 %v242
  %2002 = vmatprep.subr.mxu0 %v251
  %2003 = vmatpush1.msra.mxu0 %v250
  %2004 = vmatprep.subr.mxu0 %v259
  %2005 = vmatpush1.msra.mxu0 %v258
  %2006 = vmatprep.subr.mxu0 %v267
  %2007 = vmatpush1.msra.mxu0 %v266
  %2008 = vmatprep.subr.mxu0 %v275
  %2009 = vmatpush1.msra.mxu0 %v274
  %2010 = vmatprep.subr.mxu0 %v283
  %2011 = vmatpush1.msra.mxu0 %v282
  %2012 = vmatprep.subr.mxu0 %v291
  %2013 = vmatpush1.msra.mxu0 %v290
  %2014 = vmatprep.subr.mxu0 %v299
  %2015 = vmatpush1.msra.mxu0 %v298
  %2016 = vmatprep.mubr.f32.mxu0 %v1805
  %2017 = vmatmul.mubr.f32.gmra.mrb[0].mxu0 %v1790
  %v2018 = vpop.f32.mrb[0].mxu0
  %v2019 = vadd.f32 0.0, %v2018
  %v2020 = vpop.f32.mrb[0].mxu0
  %v2021 = vadd.f32 0.0, %v2020
  %2022 = vdwg.mxu0
  %2023 = vmatprep.subr.mxu0 %v53
  %2024 = vmatpush1.msra.mxu0 %v52
  %2025 = vmatprep.subr.mxu0 %v61
  %2026 = vmatpush1.msra.mxu0 %v60
  %2027 = vmatprep.subr.mxu0 %v69
  %2028 = vmatpush1.msra.mxu0 %v68
  %2029 = vmatprep.subr.mxu0 %v77
  %2030 = vmatpush1.msra.mxu0 %v76
  %2031 = vmatprep.subr.mxu0 %v85
  %2032 = vmatpush1.msra.mxu0 %v84
  %2033 = vmatprep.subr.mxu0 %v93
  %2034 = vmatpush1.msra.mxu0 %v92
  %2035 = vmatprep.subr.mxu0 %v101
  %2036 = vmatpush1.msra.mxu0 %v100
  %2037 = vmatprep.subr.mxu0 %v109
  %2038 = vmatpush1.msra.mxu0 %v108
  %2039 = vmatprep.subr.mxu0 %v117
  %2040 = vmatpush1.msra.mxu0 %v116
  %2041 = vmatprep.subr.mxu0 %v125
  %2042 = vmatpush1.msra.mxu0 %v124
  %2043 = vmatprep.subr.mxu0 %v133
  %2044 = vmatpush1.msra.mxu0 %v132
  %2045 = vmatprep.subr.mxu0 %v141
  %2046 = vmatpush1.msra.mxu0 %v140
  %2047 = vmatprep.subr.mxu0 %v149
  %2048 = vmatpush1.msra.mxu0 %v148
  %2049 = vmatprep.subr.mxu0 %v157
  %2050 = vmatpush1.msra.mxu0 %v156
  %2051 = vmatprep.subr.mxu0 %v165
  %2052 = vmatpush1.msra.mxu0 %v164
  %2053 = vmatprep.subr.mxu0 %v173
  %2054 = vmatpush1.msra.mxu0 %v172
  %2055 = vmatprep.subr.mxu0 %v181
  %2056 = vmatpush1.msra.mxu0 %v180
  %2057 = vmatprep.subr.mxu0 %v189
  %2058 = vmatpush1.msra.mxu0 %v188
  %2059 = vmatprep.subr.mxu0 %v197
  %2060 = vmatpush1.msra.mxu0 %v196
  %2061 = vmatprep.subr.mxu0 %v205
  %2062 = vmatpush1.msra.mxu0 %v204
  %2063 = vmatprep.subr.mxu0 %v213
  %2064 = vmatpush1.msra.mxu0 %v212
  %2065 = vmatprep.subr.mxu0 %v221
  %2066 = vmatpush1.msra.mxu0 %v220
  %2067 = vmatprep.subr.mxu0 %v229
  %2068 = vmatpush1.msra.mxu0 %v228
  %2069 = vmatprep.subr.mxu0 %v237
  %2070 = vmatpush1.msra.mxu0 %v236
  %2071 = vmatprep.subr.mxu0 %v245
  %2072 = vmatpush1.msra.mxu0 %v244
  %2073 = vmatprep.subr.mxu0 %v253
  %2074 = vmatpush1.msra.mxu0 %v252
  %2075 = vmatprep.subr.mxu0 %v261
  %2076 = vmatpush1.msra.mxu0 %v260
  %2077 = vmatprep.subr.mxu0 %v269
  %2078 = vmatpush1.msra.mxu0 %v268
  %2079 = vmatprep.subr.mxu0 %v277
  %2080 = vmatpush1.msra.mxu0 %v276
  %2081 = vmatprep.subr.mxu0 %v285
  %2082 = vmatpush1.msra.mxu0 %v284
  %2083 = vmatprep.subr.mxu0 %v293
  %2084 = vmatpush1.msra.mxu0 %v292
  %2085 = vmatprep.subr.mxu0 %v301
  %2086 = vmatpush1.msra.mxu0 %v300
  %2087 = vmatprep.mubr.f32.mxu0 %v1805
  %2088 = vmatmul.mubr.f32.gmra.mrb[0].mxu0 %v1790
  %v2089 = vpop.f32.mrb[0].mxu0
  %v2090 = vadd.f32 0.0, %v2089
  %v2091 = vpop.f32.mrb[0].mxu0
  %v2092 = vadd.f32 0.0, %v2091
  %2093 = vdwg.mxu0
  %v2094 = vld [vmem:[%s1757] sm:$0xff]
  %2096 = vset.pattern.permute.xlu0 0
  %2097 = vperm.xlu0 %2096, %v2094
  %v2098 = vpop.permute.xlu0 %2097
  %v2100 = vmul.f32 %v2098, %v640
  %v2101 = vmul.f32 %v2098, %v644
  %v2102 = vmul.f32 %v2098, %v648
  %v2103 = vmul.f32 %v2098, %v652
  %v2104 = vadd.f32 %v2100, %v307
  %v2105 = vadd.f32 %v2101, %v311
  %v2106 = vadd.f32 %v2102, %v315
  %v2107 = vadd.f32 %v2103, %v319
  %v2108 = vadd.f32 %v2104, %v1877
  %v2109 = vadd.f32 %v2105, %v1879
  %v2110 = vadd.f32 %v2106, %v1948
  %v2111 = vadd.f32 %v2107, %v1950
  %v2112 = vld [vmem:[%s1738] sm:$0xff]
  %2114 = vset.pattern.permute.xlu0 0
  %2115 = vperm.xlu0 %2114, %v2112
  %v2116 = vpop.permute.xlu0 %2115
  %v2118 = vmul.f32 %v2116, %v680
  %v2119 = vmul.f32 %v2116, %v684
  %v2120 = vmul.f32 %v2116, %v688
  %v2121 = vmul.f32 %v2116, %v692
  %v2122 = vadd.f32 %v2118, %v329
  %v2123 = vadd.f32 %v2119, %v333
  %v2124 = vadd.f32 %v2120, %v337
  %v2125 = vadd.f32 %v2121, %v341
  %v2126 = vadd.f32 %v2122, %v2019
  %v2127 = vadd.f32 %v2123, %v2021
  %v2128 = vadd.f32 %v2124, %v2090
  %v2129 = vadd.f32 %v2125, %v2092
  %v2130 = vtanh.pop %v2108
  %v2131 = vmul.f32 %v2130, 0.5
  %v2132 = vadd.f32 %v2131, 0.5
  %v2133 = vtanh.pop %v2109
  %v2134 = vmul.f32 %v2133, 0.5
  %v2135 = vadd.f32 %v2134, 0.5
  %v2136 = vtanh.pop %v2110
  %v2137 = vtanh.pop %v2111
  %v2138 = vmul.f32 %v2137, 0.5
  %v2139 = vadd.f32 %v2138, 0.5
  %v2140 = vmul.f32 %v2135, %v1788
  %v2141 = vmul.f32 %v2132, %v2136
  %v2142 = vadd.f32 %v2140, %v2141
  %v2143 = vtanh.pop %v2142
  %v2144 = vmul.f32 %v2139, %v2143
  %v2145 = vtanh.pop %v2126
  %v2146 = vmul.f32 %v2145, 0.5
  %v2147 = vadd.f32 %v2146, 0.5
  %v2148 = vtanh.pop %v2127
  %v2149 = vmul.f32 %v2148, 0.5
  %v2150 = vadd.f32 %v2149, 0.5
  %v2151 = vtanh.pop %v2128
  %v2152 = vtanh.pop %v2129
  %v2153 = vmul.f32 %v2152, 0.5
  %v2154 = vadd.f32 %v2153, 0.5
  %v2155 = vmul.f32 %v2150, %v1803
  %v2156 = vmul.f32 %v2147, %v2151
  %v2157 = vadd.f32 %v2155, %v2156
  %v2158 = vtanh.pop %v2157
  %v2159 = vmul.f32 %v2154, %v2158
  %2160 = vst [vmem:[%s1808] sm:$0xff] %v2144
  %2161 = vst [vmem:[%s1806 + $0x8] sm:$0xff] %v2159
  %2162 = vmatprep.subr.mxu0 %v47
  %2163 = vmatpush1.msra.mxu0 %v46
  %2164 = vmatprep.subr.mxu0 %v55
  %2165 = vmatpush1.msra.mxu0 %v54
  %2166 = vmatprep.subr.mxu0 %v63
  %2167 = vmatpush1.msra.mxu0 %v62
  %2168 = vmatprep.subr.mxu0 %v71
  %2169 = vmatpush1.msra.mxu0 %v70
  %2170 = vmatprep.subr.mxu0 %v79
  %2171 = vmatpush1.msra.mxu0 %v78
  %2172 = vmatprep.subr.mxu0 %v87
  %2173 = vmatpush1.msra.mxu0 %v86
  %2174 = vmatprep.subr.mxu0 %v95
  %2175 = vmatpush1.msra.mxu0 %v94
  %2176 = vmatprep.subr.mxu0 %v103
  %2177 = vmatpush1.msra.mxu0 %v102
  %2178 = vmatprep.subr.mxu0 %v111
  %2179 = vmatpush1.msra.mxu0 %v110
  %2180 = vmatprep.subr.mxu0 %v119
  %2181 = vmatpush1.msra.mxu0 %v118
  %2182 = vmatprep.subr.mxu0 %v127
  %2183 = vmatpush1.msra.mxu0 %v126
  %2184 = vmatprep.subr.mxu0 %v135
  %2185 = vmatpush1.msra.mxu0 %v134
  %2186 = vmatprep.subr.mxu0 %v143
  %2187 = vmatpush1.msra.mxu0 %v142
  %2188 = vmatprep.subr.mxu0 %v151
  %2189 = vmatpush1.msra.mxu0 %v150
  %2190 = vmatprep.subr.mxu0 %v159
  %2191 = vmatpush1.msra.mxu0 %v158
  %2192 = vmatprep.subr.mxu0 %v167
  %2193 = vmatpush1.msra.mxu0 %v166
  %2194 = vmatprep.subr.mxu0 %v175
  %2195 = vmatpush1.msra.mxu0 %v174
  %2196 = vmatprep.subr.mxu0 %v183
  %2197 = vmatpush1.msra.mxu0 %v182
  %2198 = vmatprep.subr.mxu0 %v191
  %2199 = vmatpush1.msra.mxu0 %v190
  %2200 = vmatprep.subr.mxu0 %v199
  %2201 = vmatpush1.msra.mxu0 %v198
  %2202 = vmatprep.subr.mxu0 %v207
  %2203 = vmatpush1.msra.mxu0 %v206
  %2204 = vmatprep.subr.mxu0 %v215
  %2205 = vmatpush1.msra.mxu0 %v214
  %2206 = vmatprep.subr.mxu0 %v223
  %2207 = vmatpush1.msra.mxu0 %v222
  %2208 = vmatprep.subr.mxu0 %v231
  %2209 = vmatpush1.msra.mxu0 %v230
  %2210 = vmatprep.subr.mxu0 %v239
  %2211 = vmatpush1.msra.mxu0 %v238
  %2212 = vmatprep.subr.mxu0 %v247
  %2213 = vmatpush1.msra.mxu0 %v246
  %2214 = vmatprep.subr.mxu0 %v255
  %2215 = vmatpush1.msra.mxu0 %v254
  %2216 = vmatprep.subr.mxu0 %v263
  %2217 = vmatpush1.msra.mxu0 %v262
  %2218 = vmatprep.subr.mxu0 %v271
  %2219 = vmatpush1.msra.mxu0 %v270
  %2220 = vmatprep.subr.mxu0 %v279
  %2221 = vmatpush1.msra.mxu0 %v278
  %2222 = vmatprep.subr.mxu0 %v287
  %2223 = vmatpush1.msra.mxu0 %v286
  %2224 = vmatprep.subr.mxu0 %v295
  %2225 = vmatpush1.msra.mxu0 %v294
  %2226 = vmatprep.mubr.f32.mxu0 %v2159
  %2227 = vmatmul.mubr.f32.gmra.mrb[0].mxu0 %v2144
  %v2228 = vpop.f32.mrb[0].mxu0
  %v2229 = vadd.f32 0.0, %v2228
  %v2230 = vpop.f32.mrb[0].mxu0
  %v2231 = vadd.f32 0.0, %v2230
  %2232 = vdwg.mxu0
  %2233 = vmatprep.subr.mxu0 %v49
  %2234 = vmatpush1.msra.mxu0 %v48
  %2235 = vmatprep.subr.mxu0 %v57
  %2236 = vmatpush1.msra.mxu0 %v56
  %2237 = vmatprep.subr.mxu0 %v65
  %2238 = vmatpush1.msra.mxu0 %v64
  %2239 = vmatprep.subr.mxu0 %v73
  %2240 = vmatpush1.msra.mxu0 %v72
  %2241 = vmatprep.subr.mxu0 %v81
  %2242 = vmatpush1.msra.mxu0 %v80
  %2243 = vmatprep.subr.mxu0 %v89
  %2244 = vmatpush1.msra.mxu0 %v88
  %2245 = vmatprep.subr.mxu0 %v97
  %2246 = vmatpush1.msra.mxu0 %v96
  %2247 = vmatprep.subr.mxu0 %v105
  %2248 = vmatpush1.msra.mxu0 %v104
  %2249 = vmatprep.subr.mxu0 %v113
  %2250 = vmatpush1.msra.mxu0 %v112
  %2251 = vmatprep.subr.mxu0 %v121
  %2252 = vmatpush1.msra.mxu0 %v120
  %2253 = vmatprep.subr.mxu0 %v129
  %2254 = vmatpush1.msra.mxu0 %v128
  %2255 = vmatprep.subr.mxu0 %v137
  %2256 = vmatpush1.msra.mxu0 %v136
  %2257 = vmatprep.subr.mxu0 %v145
  %2258 = vmatpush1.msra.mxu0 %v144
  %2259 = vmatprep.subr.mxu0 %v153
  %2260 = vmatpush1.msra.mxu0 %v152
  %2261 = vmatprep.subr.mxu0 %v161
  %2262 = vmatpush1.msra.mxu0 %v160
  %2263 = vmatprep.subr.mxu0 %v169
  %2264 = vmatpush1.msra.mxu0 %v168
  %2265 = vmatprep.subr.mxu0 %v177
  %2266 = vmatpush1.msra.mxu0 %v176
  %2267 = vmatprep.subr.mxu0 %v185
  %2268 = vmatpush1.msra.mxu0 %v184
  %2269 = vmatprep.subr.mxu0 %v193
  %2270 = vmatpush1.msra.mxu0 %v192
  %2271 = vmatprep.subr.mxu0 %v201
  %2272 = vmatpush1.msra.mxu0 %v200
  %2273 = vmatprep.subr.mxu0 %v209
  %2274 = vmatpush1.msra.mxu0 %v208
  %2275 = vmatprep.subr.mxu0 %v217
  %2276 = vmatpush1.msra.mxu0 %v216
  %2277 = vmatprep.subr.mxu0 %v225
  %2278 = vmatpush1.msra.mxu0 %v224
  %2279 = vmatprep.subr.mxu0 %v233
  %2280 = vmatpush1.msra.mxu0 %v232
  %2281 = vmatprep.subr.mxu0 %v241
  %2282 = vmatpush1.msra.mxu0 %v240
  %2283 = vmatprep.subr.mxu0 %v249
  %2284 = vmatpush1.msra.mxu0 %v248
  %2285 = vmatprep.subr.mxu0 %v257
  %2286 = vmatpush1.msra.mxu0 %v256
  %2287 = vmatprep.subr.mxu0 %v265
  %2288 = vmatpush1.msra.mxu0 %v264
  %2289 = vmatprep.subr.mxu0 %v273
  %2290 = vmatpush1.msra.mxu0 %v272
  %2291 = vmatprep.subr.mxu0 %v281
  %2292 = vmatpush1.msra.mxu0 %v280
  %2293 = vmatprep.subr.mxu0 %v289
  %2294 = vmatpush1.msra.mxu0 %v288
  %2295 = vmatprep.subr.mxu0 %v297
  %2296 = vmatpush1.msra.mxu0 %v296
  %2297 = vmatprep.mubr.f32.mxu0 %v2159
  %2298 = vmatmul.mubr.f32.gmra.mrb[0].mxu0 %v2144
  %v2299 = vpop.f32.mrb[0].mxu0
  %v2300 = vadd.f32 0.0, %v2299
  %v2301 = vpop.f32.mrb[0].mxu0
  %v2302 = vadd.f32 0.0, %v2301
  %2303 = vdwg.mxu0
  %2304 = vmatprep.subr.mxu0 %v51
  %2305 = vmatpush1.msra.mxu0 %v50
  %2306 = vmatprep.subr.mxu0 %v59
  %2307 = vmatpush1.msra.mxu0 %v58
  %2308 = vmatprep.subr.mxu0 %v67
  %2309 = vmatpush1.msra.mxu0 %v66
  %2310 = vmatprep.subr.mxu0 %v75
  %2311 = vmatpush1.msra.mxu0 %v74
  %2312 = vmatprep.subr.mxu0 %v83
  %2313 = vmatpush1.msra.mxu0 %v82
  %2314 = vmatprep.subr.mxu0 %v91
  %2315 = vmatpush1.msra.mxu0 %v90
  %2316 = vmatprep.subr.mxu0 %v99
  %2317 = vmatpush1.msra.mxu0 %v98
  %2318 = vmatprep.subr.mxu0 %v107
  %2319 = vmatpush1.msra.mxu0 %v106
  %2320 = vmatprep.subr.mxu0 %v115
  %2321 = vmatpush1.msra.mxu0 %v114
  %2322 = vmatprep.subr.mxu0 %v123
  %2323 = vmatpush1.msra.mxu0 %v122
  %2324 = vmatprep.subr.mxu0 %v131
  %2325 = vmatpush1.msra.mxu0 %v130
  %2326 = vmatprep.subr.mxu0 %v139
  %2327 = vmatpush1.msra.mxu0 %v138
  %2328 = vmatprep.subr.mxu0 %v147
  %2329 = vmatpush1.msra.mxu0 %v146
  %2330 = vmatprep.subr.mxu0 %v155
  %2331 = vmatpush1.msra.mxu0 %v154
  %2332 = vmatprep.subr.mxu0 %v163
  %2333 = vmatpush1.msra.mxu0 %v162
  %2334 = vmatprep.subr.mxu0 %v171
  %2335 = vmatpush1.msra.mxu0 %v170
  %2336 = vmatprep.subr.mxu0 %v179
  %2337 = vmatpush1.msra.mxu0 %v178
  %2338 = vmatprep.subr.mxu0 %v187
  %2339 = vmatpush1.msra.mxu0 %v186
  %2340 = vmatprep.subr.mxu0 %v195
  %2341 = vmatpush1.msra.mxu0 %v194
  %2342 = vmatprep.subr.mxu0 %v203
  %2343 = vmatpush1.msra.mxu0 %v202
  %2344 = vmatprep.subr.mxu0 %v211
  %2345 = vmatpush1.msra.mxu0 %v210
  %2346 = vmatprep.subr.mxu0 %v219
  %2347 = vmatpush1.msra.mxu0 %v218
  %2348 = vmatprep.subr.mxu0 %v227
  %2349 = vmatpush1.msra.mxu0 %v226
  %2350 = vmatprep.subr.mxu0 %v235
  %2351 = vmatpush1.msra.mxu0 %v234
  %2352 = vmatprep.subr.mxu0 %v243
  %2353 = vmatpush1.msra.mxu0 %v242
  %2354 = vmatprep.subr.mxu0 %v251
  %2355 = vmatpush1.msra.mxu0 %v250
  %2356 = vmatprep.subr.mxu0 %v259
  %2357 = vmatpush1.msra.mxu0 %v258
  %2358 = vmatprep.subr.mxu0 %v267
  %2359 = vmatpush1.msra.mxu0 %v266
  %2360 = vmatprep.subr.mxu0 %v275
  %2361 = vmatpush1.msra.mxu0 %v274
  %2362 = vmatprep.subr.mxu0 %v283
  %2363 = vmatpush1.msra.mxu0 %v282
  %2364 = vmatprep.subr.mxu0 %v291
  %2365 = vmatpush1.msra.mxu0 %v290
  %2366 = vmatprep.subr.mxu0 %v299
  %2367 = vmatpush1.msra.mxu0 %v298
  %2368 = vmatprep.mubr.f32.mxu0 %v2159
  %2369 = vmatmul.mubr.f32.gmra.mrb[0].mxu0 %v2144
  %v2370 = vpop.f32.mrb[0].mxu0
  %v2371 = vadd.f32 0.0, %v2370
  %v2372 = vpop.f32.mrb[0].mxu0
  %v2373 = vadd.f32 0.0, %v2372
  %2374 = vdwg.mxu0
  %2375 = vmatprep.subr.mxu0 %v53
  %2376 = vmatpush1.msra.mxu0 %v52
  %2377 = vmatprep.subr.mxu0 %v61
  %2378 = vmatpush1.msra.mxu0 %v60
  %2379 = vmatprep.subr.mxu0 %v69
  %2380 = vmatpush1.msra.mxu0 %v68
  %2381 = vmatprep.subr.mxu0 %v77
  %2382 = vmatpush1.msra.mxu0 %v76
  %2383 = vmatprep.subr.mxu0 %v85
  %2384 = vmatpush1.msra.mxu0 %v84
  %2385 = vmatprep.subr.mxu0 %v93
  %2386 = vmatpush1.msra.mxu0 %v92
  %2387 = vmatprep.subr.mxu0 %v101
  %2388 = vmatpush1.msra.mxu0 %v100
  %2389 = vmatprep.subr.mxu0 %v109
  %2390 = vmatpush1.msra.mxu0 %v108
  %2391 = vmatprep.subr.mxu0 %v117
  %2392 = vmatpush1.msra.mxu0 %v116
  %2393 = vmatprep.subr.mxu0 %v125
  %2394 = vmatpush1.msra.mxu0 %v124
  %2395 = vmatprep.subr.mxu0 %v133
  %2396 = vmatpush1.msra.mxu0 %v132
  %2397 = vmatprep.subr.mxu0 %v141
  %2398 = vmatpush1.msra.mxu0 %v140
  %2399 = vmatprep.subr.mxu0 %v149
  %2400 = vmatpush1.msra.mxu0 %v148
  %2401 = vmatprep.subr.mxu0 %v157
  %2402 = vmatpush1.msra.mxu0 %v156
  %2403 = vmatprep.subr.mxu0 %v165
  %2404 = vmatpush1.msra.mxu0 %v164
  %2405 = vmatprep.subr.mxu0 %v173
  %2406 = vmatpush1.msra.mxu0 %v172
  %2407 = vmatprep.subr.mxu0 %v181
  %2408 = vmatpush1.msra.mxu0 %v180
  %2409 = vmatprep.subr.mxu0 %v189
  %2410 = vmatpush1.msra.mxu0 %v188
  %2411 = vmatprep.subr.mxu0 %v197
  %2412 = vmatpush1.msra.mxu0 %v196
  %2413 = vmatprep.subr.mxu0 %v205
  %2414 = vmatpush1.msra.mxu0 %v204
  %2415 = vmatprep.subr.mxu0 %v213
  %2416 = vmatpush1.msra.mxu0 %v212
  %2417 = vmatprep.subr.mxu0 %v221
  %2418 = vmatpush1.msra.mxu0 %v220
  %2419 = vmatprep.subr.mxu0 %v229
  %2420 = vmatpush1.msra.mxu0 %v228
  %2421 = vmatprep.subr.mxu0 %v237
  %2422 = vmatpush1.msra.mxu0 %v236
  %2423 = vmatprep.subr.mxu0 %v245
  %2424 = vmatpush1.msra.mxu0 %v244
  %2425 = vmatprep.subr.mxu0 %v253
  %2426 = vmatpush1.msra.mxu0 %v252
  %2427 = vmatprep.subr.mxu0 %v261
  %2428 = vmatpush1.msra.mxu0 %v260
  %2429 = vmatprep.subr.mxu0 %v269
  %2430 = vmatpush1.msra.mxu0 %v268
  %2431 = vmatprep.subr.mxu0 %v277
  %2432 = vmatpush1.msra.mxu0 %v276
  %2433 = vmatprep.subr.mxu0 %v285
  %2434 = vmatpush1.msra.mxu0 %v284
  %2435 = vmatprep.subr.mxu0 %v293
  %2436 = vmatpush1.msra.mxu0 %v292
  %2437 = vmatprep.subr.mxu0 %v301
  %2438 = vmatpush1.msra.mxu0 %v300
  %2439 = vmatprep.mubr.f32.mxu0 %v2159
  %2440 = vmatmul.mubr.f32.gmra.mrb[0].mxu0 %v2144
  %v2441 = vpop.f32.mrb[0].mxu0
  %v2442 = vadd.f32 0.0, %v2441
  %v2443 = vpop.f32.mrb[0].mxu0
  %v2444 = vadd.f32 0.0, %v2443
  %2445 = vdwg.mxu0
  %v2446 = vld [vmem:[%s1401] sm:$0xff]
  %2448 = vset.pattern.permute.xlu0 0
  %2449 = vperm.xlu0 %2448, %v2446
  %v2450 = vpop.permute.xlu0 %2449
  %v2452 = vmul.f32 %v2450, %v640
  %v2453 = vmul.f32 %v2450, %v644
  %v2454 = vmul.f32 %v2450, %v648
  %v2455 = vmul.f32 %v2450, %v652
  %v2456 = vadd.f32 %v2452, %v307
  %v2457 = vadd.f32 %v2453, %v311
  %v2458 = vadd.f32 %v2454, %v315
  %v2459 = vadd.f32 %v2455, %v319
  %v2460 = vadd.f32 %v2456, %v2229
  %v2461 = vadd.f32 %v2457, %v2231
  %v2462 = vadd.f32 %v2458, %v2300
  %v2463 = vadd.f32 %v2459, %v2302
  %v2464 = vld [vmem:[%s1382] sm:$0xff]
  %2466 = vset.pattern.permute.xlu0 0
  %2467 = vperm.xlu0 %2466, %v2464
  %v2468 = vpop.permute.xlu0 %2467
  %v2470 = vmul.f32 %v2468, %v680
  %v2471 = vmul.f32 %v2468, %v684
  %v2472 = vmul.f32 %v2468, %v688
  %v2473 = vmul.f32 %v2468, %v692
  %v2474 = vadd.f32 %v2470, %v329
  %v2475 = vadd.f32 %v2471, %v333
  %v2476 = vadd.f32 %v2472, %v337
  %v2477 = vadd.f32 %v2473, %v341
  %v2478 = vadd.f32 %v2474, %v2371
  %v2479 = vadd.f32 %v2475, %v2373
  %v2480 = vadd.f32 %v2476, %v2442
  %v2481 = vadd.f32 %v2477, %v2444
  %v2482 = vtanh.pop %v2460
  %v2483 = vmul.f32 %v2482, 0.5
  %v2484 = vadd.f32 %v2483, 0.5
  %v2485 = vtanh.pop %v2461
  %v2486 = vmul.f32 %v2485, 0.5
  %v2487 = vadd.f32 %v2486, 0.5
  %v2488 = vtanh.pop %v2462
  %v2489 = vtanh.pop %v2463
  %v2490 = vmul.f32 %v2489, 0.5
  %v2491 = vadd.f32 %v2490, 0.5
  %v2492 = vmul.f32 %v2487, %v2142
  %v2493 = vmul.f32 %v2484, %v2488
  %v2494 = vadd.f32 %v2492, %v2493
  %v2495 = vtanh.pop %v2494
  %v2496 = vmul.f32 %v2491, %v2495
  %v2497 = vtanh.pop %v2478
  %v2498 = vmul.f32 %v2497, 0.5
  %v2499 = vadd.f32 %v2498, 0.5
  %v2500 = vtanh.pop %v2479
  %v2501 = vmul.f32 %v2500, 0.5
  %v2502 = vadd.f32 %v2501, 0.5
  %v2503 = vtanh.pop %v2480
  %v2504 = vtanh.pop %v2481
  %v2505 = vmul.f32 %v2504, 0.5
  %v2506 = vadd.f32 %v2505, 0.5
  %v2507 = vmul.f32 %v2502, %v2157
  %v2508 = vmul.f32 %v2499, %v2503
  %v2509 = vadd.f32 %v2507, %v2508
  %v2510 = vtanh.pop %v2509
  %v2511 = vmul.f32 %v2506, %v2510
  %2512 = vst [vmem:[%s1452] sm:$0xff] %v2496
  %2513 = vst [vmem:[%s1450 + $0x8] sm:$0xff] %v2511
  %2514 = vmatprep.subr.mxu0 %v47
  %2515 = vmatpush1.msra.mxu0 %v46
  %2516 = vmatprep.subr.mxu0 %v55
  %2517 = vmatpush1.msra.mxu0 %v54
  %2518 = vmatprep.subr.mxu0 %v63
  %2519 = vmatpush1.msra.mxu0 %v62
  %2520 = vmatprep.subr.mxu0 %v71
  %2521 = vmatpush1.msra.mxu0 %v70
  %2522 = vmatprep.subr.mxu0 %v79
  %2523 = vmatpush1.msra.mxu0 %v78
  %2524 = vmatprep.subr.mxu0 %v87
  %2525 = vmatpush1.msra.mxu0 %v86
  %2526 = vmatprep.subr.mxu0 %v95
  %2527 = vmatpush1.msra.mxu0 %v94
  %2528 = vmatprep.subr.mxu0 %v103
  %2529 = vmatpush1.msra.mxu0 %v102
  %2530 = vmatprep.subr.mxu0 %v111
  %2531 = vmatpush1.msra.mxu0 %v110
  %2532 = vmatprep.subr.mxu0 %v119
  %2533 = vmatpush1.msra.mxu0 %v118
  %2534 = vmatprep.subr.mxu0 %v127
  %2535 = vmatpush1.msra.mxu0 %v126
  %2536 = vmatprep.subr.mxu0 %v135
  %2537 = vmatpush1.msra.mxu0 %v134
  %2538 = vmatprep.subr.mxu0 %v143
  %2539 = vmatpush1.msra.mxu0 %v142
  %2540 = vmatprep.subr.mxu0 %v151
  %2541 = vmatpush1.msra.mxu0 %v150
  %2542 = vmatprep.subr.mxu0 %v159
  %2543 = vmatpush1.msra.mxu0 %v158
  %2544 = vmatprep.subr.mxu0 %v167
  %2545 = vmatpush1.msra.mxu0 %v166
  %2546 = vmatprep.subr.mxu0 %v175
  %2547 = vmatpush1.msra.mxu0 %v174
  %2548 = vmatprep.subr.mxu0 %v183
  %2549 = vmatpush1.msra.mxu0 %v182
  %2550 = vmatprep.subr.mxu0 %v191
  %2551 = vmatpush1.msra.mxu0 %v190
  %2552 = vmatprep.subr.mxu0 %v199
  %2553 = vmatpush1.msra.mxu0 %v198
  %2554 = vmatprep.subr.mxu0 %v207
  %2555 = vmatpush1.msra.mxu0 %v206
  %2556 = vmatprep.subr.mxu0 %v215
  %2557 = vmatpush1.msra.mxu0 %v214
  %2558 = vmatprep.subr.mxu0 %v223
  %2559 = vmatpush1.msra.mxu0 %v222
  %2560 = vmatprep.subr.mxu0 %v231
  %2561 = vmatpush1.msra.mxu0 %v230
  %2562 = vmatprep.subr.mxu0 %v239
  %2563 = vmatpush1.msra.mxu0 %v238
  %2564 = vmatprep.subr.mxu0 %v247
  %2565 = vmatpush1.msra.mxu0 %v246
  %2566 = vmatprep.subr.mxu0 %v255
  %2567 = vmatpush1.msra.mxu0 %v254
  %2568 = vmatprep.subr.mxu0 %v263
  %2569 = vmatpush1.msra.mxu0 %v262
  %2570 = vmatprep.subr.mxu0 %v271
  %2571 = vmatpush1.msra.mxu0 %v270
  %2572 = vmatprep.subr.mxu0 %v279
  %2573 = vmatpush1.msra.mxu0 %v278
  %2574 = vmatprep.subr.mxu0 %v287
  %2575 = vmatpush1.msra.mxu0 %v286
  %2576 = vmatprep.subr.mxu0 %v295
  %2577 = vmatpush1.msra.mxu0 %v294
  %2578 = vmatprep.mubr.f32.mxu0 %v2511
  %2579 = vmatmul.mubr.f32.gmra.mrb[0].mxu0 %v2496
  %v2580 = vpop.f32.mrb[0].mxu0
  %v2581 = vadd.f32 0.0, %v2580
  %v2582 = vpop.f32.mrb[0].mxu0
  %v2583 = vadd.f32 0.0, %v2582
  %2584 = vdwg.mxu0
  %2585 = vmatprep.subr.mxu0 %v49
  %2586 = vmatpush1.msra.mxu0 %v48
  %2587 = vmatprep.subr.mxu0 %v57
  %2588 = vmatpush1.msra.mxu0 %v56
  %2589 = vmatprep.subr.mxu0 %v65
  %2590 = vmatpush1.msra.mxu0 %v64
  %2591 = vmatprep.subr.mxu0 %v73
  %2592 = vmatpush1.msra.mxu0 %v72
  %2593 = vmatprep.subr.mxu0 %v81
  %2594 = vmatpush1.msra.mxu0 %v80
  %2595 = vmatprep.subr.mxu0 %v89
  %2596 = vmatpush1.msra.mxu0 %v88
  %2597 = vmatprep.subr.mxu0 %v97
  %2598 = vmatpush1.msra.mxu0 %v96
  %2599 = vmatprep.subr.mxu0 %v105
  %2600 = vmatpush1.msra.mxu0 %v104
  %2601 = vmatprep.subr.mxu0 %v113
  %2602 = vmatpush1.msra.mxu0 %v112
  %2603 = vmatprep.subr.mxu0 %v121
  %2604 = vmatpush1.msra.mxu0 %v120
  %2605 = vmatprep.subr.mxu0 %v129
  %2606 = vmatpush1.msra.mxu0 %v128
  %2607 = vmatprep.subr.mxu0 %v137
  %2608 = vmatpush1.msra.mxu0 %v136
  %2609 = vmatprep.subr.mxu0 %v145
  %2610 = vmatpush1.msra.mxu0 %v144
  %2611 = vmatprep.subr.mxu0 %v153
  %2612 = vmatpush1.msra.mxu0 %v152
  %2613 = vmatprep.subr.mxu0 %v161
  %2614 = vmatpush1.msra.mxu0 %v160
  %2615 = vmatprep.subr.mxu0 %v169
  %2616 = vmatpush1.msra.mxu0 %v168
  %2617 = vmatprep.subr.mxu0 %v177
  %2618 = vmatpush1.msra.mxu0 %v176
  %2619 = vmatprep.subr.mxu0 %v185
  %2620 = vmatpush1.msra.mxu0 %v184
  %2621 = vmatprep.subr.mxu0 %v193
  %2622 = vmatpush1.msra.mxu0 %v192
  %2623 = vmatprep.subr.mxu0 %v201
  %2624 = vmatpush1.msra.mxu0 %v200
  %2625 = vmatprep.subr.mxu0 %v209
  %2626 = vmatpush1.msra.mxu0 %v208
  %2627 = vmatprep.subr.mxu0 %v217
  %2628 = vmatpush1.msra.mxu0 %v216
  %2629 = vmatprep.subr.mxu0 %v225
  %2630 = vmatpush1.msra.mxu0 %v224
  %2631 = vmatprep.subr.mxu0 %v233
  %2632 = vmatpush1.msra.mxu0 %v232
  %2633 = vmatprep.subr.mxu0 %v241
  %2634 = vmatpush1.msra.mxu0 %v240
  %2635 = vmatprep.subr.mxu0 %v249
  %2636 = vmatpush1.msra.mxu0 %v248
  %2637 = vmatprep.subr.mxu0 %v257
  %2638 = vmatpush1.msra.mxu0 %v256
  %2639 = vmatprep.subr.mxu0 %v265
  %2640 = vmatpush1.msra.mxu0 %v264
  %2641 = vmatprep.subr.mxu0 %v273
  %2642 = vmatpush1.msra.mxu0 %v272
  %2643 = vmatprep.subr.mxu0 %v281
  %2644 = vmatpush1.msra.mxu0 %v280
  %2645 = vmatprep.subr.mxu0 %v289
  %2646 = vmatpush1.msra.mxu0 %v288
  %2647 = vmatprep.subr.mxu0 %v297
  %2648 = vmatpush1.msra.mxu0 %v296
  %2649 = vmatprep.mubr.f32.mxu0 %v2511
  %2650 = vmatmul.mubr.f32.gmra.mrb[0].mxu0 %v2496
  %v2651 = vpop.f32.mrb[0].mxu0
  %v2652 = vadd.f32 0.0, %v2651
  %v2653 = vpop.f32.mrb[0].mxu0
  %v2654 = vadd.f32 0.0, %v2653
  %2655 = vdwg.mxu0
  %2656 = vmatprep.subr.mxu0 %v51
  %2657 = vmatpush1.msra.mxu0 %v50
  %2658 = vmatprep.subr.mxu0 %v59
  %2659 = vmatpush1.msra.mxu0 %v58
  %2660 = vmatprep.subr.mxu0 %v67
  %2661 = vmatpush1.msra.mxu0 %v66
  %2662 = vmatprep.subr.mxu0 %v75
  %2663 = vmatpush1.msra.mxu0 %v74
  %2664 = vmatprep.subr.mxu0 %v83
  %2665 = vmatpush1.msra.mxu0 %v82
  %2666 = vmatprep.subr.mxu0 %v91
  %2667 = vmatpush1.msra.mxu0 %v90
  %2668 = vmatprep.subr.mxu0 %v99
  %2669 = vmatpush1.msra.mxu0 %v98
  %2670 = vmatprep.subr.mxu0 %v107
  %2671 = vmatpush1.msra.mxu0 %v106
  %2672 = vmatprep.subr.mxu0 %v115
  %2673 = vmatpush1.msra.mxu0 %v114
  %2674 = vmatprep.subr.mxu0 %v123
  %2675 = vmatpush1.msra.mxu0 %v122
  %2676 = vmatprep.subr.mxu0 %v131
  %2677 = vmatpush1.msra.mxu0 %v130
  %2678 = vmatprep.subr.mxu0 %v139
  %2679 = vmatpush1.msra.mxu0 %v138
  %2680 = vmatprep.subr.mxu0 %v147
  %2681 = vmatpush1.msra.mxu0 %v146
  %2682 = vmatprep.subr.mxu0 %v155
  %2683 = vmatpush1.msra.mxu0 %v154
  %2684 = vmatprep.subr.mxu0 %v163
  %2685 = vmatpush1.msra.mxu0 %v162
  %2686 = vmatprep.subr.mxu0 %v171
  %2687 = vmatpush1.msra.mxu0 %v170
  %2688 = vmatprep.subr.mxu0 %v179
  %2689 = vmatpush1.msra.mxu0 %v178
  %2690 = vmatprep.subr.mxu0 %v187
  %2691 = vmatpush1.msra.mxu0 %v186
  %2692 = vmatprep.subr.mxu0 %v195
  %2693 = vmatpush1.msra.mxu0 %v194
  %2694 = vmatprep.subr.mxu0 %v203
  %2695 = vmatpush1.msra.mxu0 %v202
  %2696 = vmatprep.subr.mxu0 %v211
  %2697 = vmatpush1.msra.mxu0 %v210
  %2698 = vmatprep.subr.mxu0 %v219
  %2699 = vmatpush1.msra.mxu0 %v218
  %2700 = vmatprep.subr.mxu0 %v227
  %2701 = vmatpush1.msra.mxu0 %v226
  %2702 = vmatprep.subr.mxu0 %v235
  %2703 = vmatpush1.msra.mxu0 %v234
  %2704 = vmatprep.subr.mxu0 %v243
  %2705 = vmatpush1.msra.mxu0 %v242
  %2706 = vmatprep.subr.mxu0 %v251
  %2707 = vmatpush1.msra.mxu0 %v250
  %2708 = vmatprep.subr.mxu0 %v259
  %2709 = vmatpush1.msra.mxu0 %v258
  %2710 = vmatprep.subr.mxu0 %v267
  %2711 = vmatpush1.msra.mxu0 %v266
  %2712 = vmatprep.subr.mxu0 %v275
  %2713 = vmatpush1.msra.mxu0 %v274
  %2714 = vmatprep.subr.mxu0 %v283
  %2715 = vmatpush1.msra.mxu0 %v282
  %2716 = vmatprep.subr.mxu0 %v291
  %2717 = vmatpush1.msra.mxu0 %v290
  %2718 = vmatprep.subr.mxu0 %v299
  %2719 = vmatpush1.msra.mxu0 %v298
  %2720 = vmatprep.mubr.f32.mxu0 %v2511
  %2721 = vmatmul.mubr.f32.gmra.mrb[0].mxu0 %v2496
  %v2722 = vpop.f32.mrb[0].mxu0
  %v2723 = vadd.f32 0.0, %v2722
  %v2724 = vpop.f32.mrb[0].mxu0
  %v2725 = vadd.f32 0.0, %v2724
  %2726 = vdwg.mxu0
  %2727 = vmatprep.subr.mxu0 %v53
  %2728 = vmatpush1.msra.mxu0 %v52
  %2729 = vmatprep.subr.mxu0 %v61
  %2730 = vmatpush1.msra.mxu0 %v60
  %2731 = vmatprep.subr.mxu0 %v69
  %2732 = vmatpush1.msra.mxu0 %v68
  %2733 = vmatprep.subr.mxu0 %v77
  %2734 = vmatpush1.msra.mxu0 %v76
  %2735 = vmatprep.subr.mxu0 %v85
  %2736 = vmatpush1.msra.mxu0 %v84
  %2737 = vmatprep.subr.mxu0 %v93
  %2738 = vmatpush1.msra.mxu0 %v92
  %2739 = vmatprep.subr.mxu0 %v101
  %2740 = vmatpush1.msra.mxu0 %v100
  %2741 = vmatprep.subr.mxu0 %v109
  %2742 = vmatpush1.msra.mxu0 %v108
  %2743 = vmatprep.subr.mxu0 %v117
  %2744 = vmatpush1.msra.mxu0 %v116
  %2745 = vmatprep.subr.mxu0 %v125
  %2746 = vmatpush1.msra.mxu0 %v124
  %2747 = vmatprep.subr.mxu0 %v133
  %2748 = vmatpush1.msra.mxu0 %v132
  %2749 = vmatprep.subr.mxu0 %v141
  %2750 = vmatpush1.msra.mxu0 %v140
  %2751 = vmatprep.subr.mxu0 %v149
  %2752 = vmatpush1.msra.mxu0 %v148
  %2753 = vmatprep.subr.mxu0 %v157
  %2754 = vmatpush1.msra.mxu0 %v156
  %2755 = vmatprep.subr.mxu0 %v165
  %2756 = vmatpush1.msra.mxu0 %v164
  %2757 = vmatprep.subr.mxu0 %v173
  %2758 = vmatpush1.msra.mxu0 %v172
  %2759 = vmatprep.subr.mxu0 %v181
  %2760 = vmatpush1.msra.mxu0 %v180
  %2761 = vmatprep.subr.mxu0 %v189
  %2762 = vmatpush1.msra.mxu0 %v188
  %2763 = vmatprep.subr.mxu0 %v197
  %2764 = vmatpush1.msra.mxu0 %v196
  %2765 = vmatprep.subr.mxu0 %v205
  %2766 = vmatpush1.msra.mxu0 %v204
  %2767 = vmatprep.subr.mxu0 %v213
  %2768 = vmatpush1.msra.mxu0 %v212
  %2769 = vmatprep.subr.mxu0 %v221
  %2770 = vmatpush1.msra.mxu0 %v220
  %2771 = vmatprep.subr.mxu0 %v229
  %2772 = vmatpush1.msra.mxu0 %v228
  %2773 = vmatprep.subr.mxu0 %v237
  %2774 = vmatpush1.msra.mxu0 %v236
  %2775 = vmatprep.subr.mxu0 %v245
  %2776 = vmatpush1.msra.mxu0 %v244
  %2777 = vmatprep.subr.mxu0 %v253
  %2778 = vmatpush1.msra.mxu0 %v252
  %2779 = vmatprep.subr.mxu0 %v261
  %2780 = vmatpush1.msra.mxu0 %v260
  %2781 = vmatprep.subr.mxu0 %v269
  %2782 = vmatpush1.msra.mxu0 %v268
  %2783 = vmatprep.subr.mxu0 %v277
  %2784 = vmatpush1.msra.mxu0 %v276
  %2785 = vmatprep.subr.mxu0 %v285
  %2786 = vmatpush1.msra.mxu0 %v284
  %2787 = vmatprep.subr.mxu0 %v293
  %2788 = vmatpush1.msra.mxu0 %v292
  %2789 = vmatprep.subr.mxu0 %v301
  %2790 = vmatpush1.msra.mxu0 %v300
  %2791 = vmatprep.mubr.f32.mxu0 %v2511
  %2792 = vmatmul.mubr.f32.gmra.mrb[0].mxu0 %v2496
  %v2793 = vpop.f32.mrb[0].mxu0
  %v2794 = vadd.f32 0.0, %v2793
  %v2795 = vpop.f32.mrb[0].mxu0
  %v2796 = vadd.f32 0.0, %v2795
  %2797 = vdwg.mxu0
  %v2798 = vld [vmem:[%s1045] sm:$0xff]
  %2800 = vset.pattern.permute.xlu0 0
  %2801 = vperm.xlu0 %2800, %v2798
  %v2802 = vpop.permute.xlu0 %2801
  %v2804 = vmul.f32 %v2802, %v640
  %v2805 = vmul.f32 %v2802, %v644
  %v2806 = vmul.f32 %v2802, %v648
  %v2807 = vmul.f32 %v2802, %v652
  %v2808 = vadd.f32 %v2804, %v307
  %v2809 = vadd.f32 %v2805, %v311
  %v2810 = vadd.f32 %v2806, %v315
  %v2811 = vadd.f32 %v2807, %v319
  %v2812 = vadd.f32 %v2808, %v2581
  %v2813 = vadd.f32 %v2809, %v2583
  %v2814 = vadd.f32 %v2810, %v2652
  %v2815 = vadd.f32 %v2811, %v2654
  %v2816 = vld [vmem:[%s1026] sm:$0xff]
  %2818 = vset.pattern.permute.xlu0 0
  %2819 = vperm.xlu0 %2818, %v2816
  %v2820 = vpop.permute.xlu0 %2819
  %v2822 = vmul.f32 %v2820, %v680
  %v2823 = vmul.f32 %v2820, %v684
  %v2824 = vmul.f32 %v2820, %v688
  %v2825 = vmul.f32 %v2820, %v692
  %v2826 = vadd.f32 %v2822, %v329
  %v2827 = vadd.f32 %v2823, %v333
  %v2828 = vadd.f32 %v2824, %v337
  %v2829 = vadd.f32 %v2825, %v341
  %v2830 = vadd.f32 %v2826, %v2723
  %v2831 = vadd.f32 %v2827, %v2725
  %v2832 = vadd.f32 %v2828, %v2794
  %v2833 = vadd.f32 %v2829, %v2796
  %v2834 = vtanh.pop %v2812
  %v2835 = vmul.f32 %v2834, 0.5
  %v2836 = vadd.f32 %v2835, 0.5
  %v2837 = vtanh.pop %v2813
  %v2838 = vmul.f32 %v2837, 0.5
  %v2839 = vadd.f32 %v2838, 0.5
  %v2840 = vtanh.pop %v2814
  %v2841 = vtanh.pop %v2815
  %v2842 = vmul.f32 %v2841, 0.5
  %v2843 = vadd.f32 %v2842, 0.5
  %v2844 = vmul.f32 %v2839, %v2494
  %v2845 = vmul.f32 %v2836, %v2840
  %v2846 = vadd.f32 %v2844, %v2845
  %v2847 = vtanh.pop %v2846
  %v2848 = vmul.f32 %v2843, %v2847
  %v2849 = vtanh.pop %v2830
  %v2850 = vmul.f32 %v2849, 0.5
  %v2851 = vadd.f32 %v2850, 0.5
  %v2852 = vtanh.pop %v2831
  %v2853 = vmul.f32 %v2852, 0.5
  %v2854 = vadd.f32 %v2853, 0.5
  %v2855 = vtanh.pop %v2832
  %v2856 = vtanh.pop %v2833
  %v2857 = vmul.f32 %v2856, 0.5
  %v2858 = vadd.f32 %v2857, 0.5
  %v2859 = vmul.f32 %v2854, %v2509
  %v2860 = vmul.f32 %v2851, %v2855
  %v2861 = vadd.f32 %v2859, %v2860
  %v2862 = vtanh.pop %v2861
  %v2863 = vmul.f32 %v2858, %v2862
  %2864 = vst [vmem:[%s1096] sm:$0xff] %v2848
  %2865 = vst [vmem:[%s1094 + $0x8] sm:$0xff] %v2863
  %2866 = vmatprep.subr.mxu0 %v47
  %2867 = vmatpush1.msra.mxu0 %v46
  %2868 = vmatprep.subr.mxu0 %v55
  %2869 = vmatpush1.msra.mxu0 %v54
  %2870 = vmatprep.subr.mxu0 %v63
  %2871 = vmatpush1.msra.mxu0 %v62
  %2872 = vmatprep.subr.mxu0 %v71
  %2873 = vmatpush1.msra.mxu0 %v70
  %2874 = vmatprep.subr.mxu0 %v79
  %2875 = vmatpush1.msra.mxu0 %v78
  %2876 = vmatprep.subr.mxu0 %v87
  %2877 = vmatpush1.msra.mxu0 %v86
  %2878 = vmatprep.subr.mxu0 %v95
  %2879 = vmatpush1.msra.mxu0 %v94
  %2880 = vmatprep.subr.mxu0 %v103
  %2881 = vmatpush1.msra.mxu0 %v102
  %2882 = vmatprep.subr.mxu0 %v111
  %2883 = vmatpush1.msra.mxu0 %v110
  %2884 = vmatprep.subr.mxu0 %v119
  %2885 = vmatpush1.msra.mxu0 %v118
  %2886 = vmatprep.subr.mxu0 %v127
  %2887 = vmatpush1.msra.mxu0 %v126
  %2888 = vmatprep.subr.mxu0 %v135
  %2889 = vmatpush1.msra.mxu0 %v134
  %2890 = vmatprep.subr.mxu0 %v143
  %2891 = vmatpush1.msra.mxu0 %v142
  %2892 = vmatprep.subr.mxu0 %v151
  %2893 = vmatpush1.msra.mxu0 %v150
  %2894 = vmatprep.subr.mxu0 %v159
  %2895 = vmatpush1.msra.mxu0 %v158
  %2896 = vmatprep.subr.mxu0 %v167
  %2897 = vmatpush1.msra.mxu0 %v166
  %2898 = vmatprep.subr.mxu0 %v175
  %2899 = vmatpush1.msra.mxu0 %v174
  %2900 = vmatprep.subr.mxu0 %v183
  %2901 = vmatpush1.msra.mxu0 %v182
  %2902 = vmatprep.subr.mxu0 %v191
  %2903 = vmatpush1.msra.mxu0 %v190
  %2904 = vmatprep.subr.mxu0 %v199
  %2905 = vmatpush1.msra.mxu0 %v198
  %2906 = vmatprep.subr.mxu0 %v207
  %2907 = vmatpush1.msra.mxu0 %v206
  %2908 = vmatprep.subr.mxu0 %v215
  %2909 = vmatpush1.msra.mxu0 %v214
  %2910 = vmatprep.subr.mxu0 %v223
  %2911 = vmatpush1.msra.mxu0 %v222
  %2912 = vmatprep.subr.mxu0 %v231
  %2913 = vmatpush1.msra.mxu0 %v230
  %2914 = vmatprep.subr.mxu0 %v239
  %2915 = vmatpush1.msra.mxu0 %v238
  %2916 = vmatprep.subr.mxu0 %v247
  %2917 = vmatpush1.msra.mxu0 %v246
  %2918 = vmatprep.subr.mxu0 %v255
  %2919 = vmatpush1.msra.mxu0 %v254
  %2920 = vmatprep.subr.mxu0 %v263
  %2921 = vmatpush1.msra.mxu0 %v262
  %2922 = vmatprep.subr.mxu0 %v271
  %2923 = vmatpush1.msra.mxu0 %v270
  %2924 = vmatprep.subr.mxu0 %v279
  %2925 = vmatpush1.msra.mxu0 %v278
  %2926 = vmatprep.subr.mxu0 %v287
  %2927 = vmatpush1.msra.mxu0 %v286
  %2928 = vmatprep.subr.mxu0 %v295
  %2929 = vmatpush1.msra.mxu0 %v294
  %2930 = vmatprep.mubr.f32.mxu0 %v2863
  %2931 = vmatmul.mubr.f32.gmra.mrb[0].mxu0 %v2848
  %v2932 = vpop.f32.mrb[0].mxu0
  %v2933 = vadd.f32 0.0, %v2932
  %v2934 = vpop.f32.mrb[0].mxu0
  %v2935 = vadd.f32 0.0, %v2934
  %2936 = vdwg.mxu0
  %2937 = vmatprep.subr.mxu0 %v49
  %2938 = vmatpush1.msra.mxu0 %v48
  %2939 = vmatprep.subr.mxu0 %v57
  %2940 = vmatpush1.msra.mxu0 %v56
  %2941 = vmatprep.subr.mxu0 %v65
  %2942 = vmatpush1.msra.mxu0 %v64
  %2943 = vmatprep.subr.mxu0 %v73
  %2944 = vmatpush1.msra.mxu0 %v72
  %2945 = vmatprep.subr.mxu0 %v81
  %2946 = vmatpush1.msra.mxu0 %v80
  %2947 = vmatprep.subr.mxu0 %v89
  %2948 = vmatpush1.msra.mxu0 %v88
  %2949 = vmatprep.subr.mxu0 %v97
  %2950 = vmatpush1.msra.mxu0 %v96
  %2951 = vmatprep.subr.mxu0 %v105
  %2952 = vmatpush1.msra.mxu0 %v104
  %2953 = vmatprep.subr.mxu0 %v113
  %2954 = vmatpush1.msra.mxu0 %v112
  %2955 = vmatprep.subr.mxu0 %v121
  %2956 = vmatpush1.msra.mxu0 %v120
  %2957 = vmatprep.subr.mxu0 %v129
  %2958 = vmatpush1.msra.mxu0 %v128
  %2959 = vmatprep.subr.mxu0 %v137
  %2960 = vmatpush1.msra.mxu0 %v136
  %2961 = vmatprep.subr.mxu0 %v145
  %2962 = vmatpush1.msra.mxu0 %v144
  %2963 = vmatprep.subr.mxu0 %v153
  %2964 = vmatpush1.msra.mxu0 %v152
  %2965 = vmatprep.subr.mxu0 %v161
  %2966 = vmatpush1.msra.mxu0 %v160
  %2967 = vmatprep.subr.mxu0 %v169
  %2968 = vmatpush1.msra.mxu0 %v168
  %2969 = vmatprep.subr.mxu0 %v177
  %2970 = vmatpush1.msra.mxu0 %v176
  %2971 = vmatprep.subr.mxu0 %v185
  %2972 = vmatpush1.msra.mxu0 %v184
  %2973 = vmatprep.subr.mxu0 %v193
  %2974 = vmatpush1.msra.mxu0 %v192
  %2975 = vmatprep.subr.mxu0 %v201
  %2976 = vmatpush1.msra.mxu0 %v200
  %2977 = vmatprep.subr.mxu0 %v209
  %2978 = vmatpush1.msra.mxu0 %v208
  %2979 = vmatprep.subr.mxu0 %v217
  %2980 = vmatpush1.msra.mxu0 %v216
  %2981 = vmatprep.subr.mxu0 %v225
  %2982 = vmatpush1.msra.mxu0 %v224
  %2983 = vmatprep.subr.mxu0 %v233
  %2984 = vmatpush1.msra.mxu0 %v232
  %2985 = vmatprep.subr.mxu0 %v241
  %2986 = vmatpush1.msra.mxu0 %v240
  %2987 = vmatprep.subr.mxu0 %v249
  %2988 = vmatpush1.msra.mxu0 %v248
  %2989 = vmatprep.subr.mxu0 %v257
  %2990 = vmatpush1.msra.mxu0 %v256
  %2991 = vmatprep.subr.mxu0 %v265
  %2992 = vmatpush1.msra.mxu0 %v264
  %2993 = vmatprep.subr.mxu0 %v273
  %2994 = vmatpush1.msra.mxu0 %v272
  %2995 = vmatprep.subr.mxu0 %v281
  %2996 = vmatpush1.msra.mxu0 %v280
  %2997 = vmatprep.subr.mxu0 %v289
  %2998 = vmatpush1.msra.mxu0 %v288
  %2999 = vmatprep.subr.mxu0 %v297
  %3000 = vmatpush1.msra.mxu0 %v296
  %3001 = vmatprep.mubr.f32.mxu0 %v2863
  %3002 = vmatmul.mubr.f32.gmra.mrb[0].mxu0 %v2848
  %v3003 = vpop.f32.mrb[0].mxu0
  %v3004 = vadd.f32 0.0, %v3003
  %v3005 = vpop.f32.mrb[0].mxu0
  %v3006 = vadd.f32 0.0, %v3005
  %3007 = vdwg.mxu0
  %3008 = vmatprep.subr.mxu0 %v51
  %3009 = vmatpush1.msra.mxu0 %v50
  %3010 = vmatprep.subr.mxu0 %v59
  %3011 = vmatpush1.msra.mxu0 %v58
  %3012 = vmatprep.subr.mxu0 %v67
  %3013 = vmatpush1.msra.mxu0 %v66
  %3014 = vmatprep.subr.mxu0 %v75
  %3015 = vmatpush1.msra.mxu0 %v74
  %3016 = vmatprep.subr.mxu0 %v83
  %3017 = vmatpush1.msra.mxu0 %v82
  %3018 = vmatprep.subr.mxu0 %v91
  %3019 = vmatpush1.msra.mxu0 %v90
  %3020 = vmatprep.subr.mxu0 %v99
  %3021 = vmatpush1.msra.mxu0 %v98
  %3022 = vmatprep.subr.mxu0 %v107
  %3023 = vmatpush1.msra.mxu0 %v106
  %3024 = vmatprep.subr.mxu0 %v115
  %3025 = vmatpush1.msra.mxu0 %v114
  %3026 = vmatprep.subr.mxu0 %v123
  %3027 = vmatpush1.msra.mxu0 %v122
  %3028 = vmatprep.subr.mxu0 %v131
  %3029 = vmatpush1.msra.mxu0 %v130
  %3030 = vmatprep.subr.mxu0 %v139
  %3031 = vmatpush1.msra.mxu0 %v138
  %3032 = vmatprep.subr.mxu0 %v147
  %3033 = vmatpush1.msra.mxu0 %v146
  %3034 = vmatprep.subr.mxu0 %v155
  %3035 = vmatpush1.msra.mxu0 %v154
  %3036 = vmatprep.subr.mxu0 %v163
  %3037 = vmatpush1.msra.mxu0 %v162
  %3038 = vmatprep.subr.mxu0 %v171
  %3039 = vmatpush1.msra.mxu0 %v170
  %3040 = vmatprep.subr.mxu0 %v179
  %3041 = vmatpush1.msra.mxu0 %v178
  %3042 = vmatprep.subr.mxu0 %v187
  %3043 = vmatpush1.msra.mxu0 %v186
  %3044 = vmatprep.subr.mxu0 %v195
  %3045 = vmatpush1.msra.mxu0 %v194
  %3046 = vmatprep.subr.mxu0 %v203
  %3047 = vmatpush1.msra.mxu0 %v202
  %3048 = vmatprep.subr.mxu0 %v211
  %3049 = vmatpush1.msra.mxu0 %v210
  %3050 = vmatprep.subr.mxu0 %v219
  %3051 = vmatpush1.msra.mxu0 %v218
  %3052 = vmatprep.subr.mxu0 %v227
  %3053 = vmatpush1.msra.mxu0 %v226
  %3054 = vmatprep.subr.mxu0 %v235
  %3055 = vmatpush1.msra.mxu0 %v234
  %3056 = vmatprep.subr.mxu0 %v243
  %3057 = vmatpush1.msra.mxu0 %v242
  %3058 = vmatprep.subr.mxu0 %v251
  %3059 = vmatpush1.msra.mxu0 %v250
  %3060 = vmatprep.subr.mxu0 %v259
  %3061 = vmatpush1.msra.mxu0 %v258
  %3062 = vmatprep.subr.mxu0 %v267
  %3063 = vmatpush1.msra.mxu0 %v266
  %3064 = vmatprep.subr.mxu0 %v275
  %3065 = vmatpush1.msra.mxu0 %v274
  %3066 = vmatprep.subr.mxu0 %v283
  %3067 = vmatpush1.msra.mxu0 %v282
  %3068 = vmatprep.subr.mxu0 %v291
  %3069 = vmatpush1.msra.mxu0 %v290
  %3070 = vmatprep.subr.mxu0 %v299
  %3071 = vmatpush1.msra.mxu0 %v298
  %3072 = vmatprep.mubr.f32.mxu0 %v2863
  %3073 = vmatmul.mubr.f32.gmra.mrb[0].mxu0 %v2848
  %v3074 = vpop.f32.mrb[0].mxu0
  %v3075 = vadd.f32 0.0, %v3074
  %v3076 = vpop.f32.mrb[0].mxu0
  %v3077 = vadd.f32 0.0, %v3076
  %3078 = vdwg.mxu0
  %3079 = vmatprep.subr.mxu0 %v53
  %3080 = vmatpush1.msra.mxu0 %v52
  %3081 = vmatprep.subr.mxu0 %v61
  %3082 = vmatpush1.msra.mxu0 %v60
  %3083 = vmatprep.subr.mxu0 %v69
  %3084 = vmatpush1.msra.mxu0 %v68
  %3085 = vmatprep.subr.mxu0 %v77
  %3086 = vmatpush1.msra.mxu0 %v76
  %3087 = vmatprep.subr.mxu0 %v85
  %3088 = vmatpush1.msra.mxu0 %v84
  %3089 = vmatprep.subr.mxu0 %v93
  %3090 = vmatpush1.msra.mxu0 %v92
  %3091 = vmatprep.subr.mxu0 %v101
  %3092 = vmatpush1.msra.mxu0 %v100
  %3093 = vmatprep.subr.mxu0 %v109
  %3094 = vmatpush1.msra.mxu0 %v108
  %3095 = vmatprep.subr.mxu0 %v117
  %3096 = vmatpush1.msra.mxu0 %v116
  %3097 = vmatprep.subr.mxu0 %v125
  %3098 = vmatpush1.msra.mxu0 %v124
  %3099 = vmatprep.subr.mxu0 %v133
  %3100 = vmatpush1.msra.mxu0 %v132
  %3101 = vmatprep.subr.mxu0 %v141
  %3102 = vmatpush1.msra.mxu0 %v140
  %3103 = vmatprep.subr.mxu0 %v149
  %3104 = vmatpush1.msra.mxu0 %v148
  %3105 = vmatprep.subr.mxu0 %v157
  %3106 = vmatpush1.msra.mxu0 %v156
  %3107 = vmatprep.subr.mxu0 %v165
  %3108 = vmatpush1.msra.mxu0 %v164
  %3109 = vmatprep.subr.mxu0 %v173
  %3110 = vmatpush1.msra.mxu0 %v172
  %3111 = vmatprep.subr.mxu0 %v181
  %3112 = vmatpush1.msra.mxu0 %v180
  %3113 = vmatprep.subr.mxu0 %v189
  %3114 = vmatpush1.msra.mxu0 %v188
  %3115 = vmatprep.subr.mxu0 %v197
  %3116 = vmatpush1.msra.mxu0 %v196
  %3117 = vmatprep.subr.mxu0 %v205
  %3118 = vmatpush1.msra.mxu0 %v204
  %3119 = vmatprep.subr.mxu0 %v213
  %3120 = vmatpush1.msra.mxu0 %v212
  %3121 = vmatprep.subr.mxu0 %v221
  %3122 = vmatpush1.msra.mxu0 %v220
  %3123 = vmatprep.subr.mxu0 %v229
  %3124 = vmatpush1.msra.mxu0 %v228
  %3125 = vmatprep.subr.mxu0 %v237
  %3126 = vmatpush1.msra.mxu0 %v236
  %3127 = vmatprep.subr.mxu0 %v245
  %3128 = vmatpush1.msra.mxu0 %v244
  %3129 = vmatprep.subr.mxu0 %v253
  %3130 = vmatpush1.msra.mxu0 %v252
  %3131 = vmatprep.subr.mxu0 %v261
  %3132 = vmatpush1.msra.mxu0 %v260
  %3133 = vmatprep.subr.mxu0 %v269
  %3134 = vmatpush1.msra.mxu0 %v268
  %3135 = vmatprep.subr.mxu0 %v277
  %3136 = vmatpush1.msra.mxu0 %v276
  %3137 = vmatprep.subr.mxu0 %v285
  %3138 = vmatpush1.msra.mxu0 %v284
  %3139 = vmatprep.subr.mxu0 %v293
  %3140 = vmatpush1.msra.mxu0 %v292
  %3141 = vmatprep.subr.mxu0 %v301
  %3142 = vmatpush1.msra.mxu0 %v300
  %3143 = vmatprep.mubr.f32.mxu0 %v2863
  %3144 = vmatmul.mubr.f32.gmra.mrb[0].mxu0 %v2848
  %v3145 = vpop.f32.mrb[0].mxu0
  %v3146 = vadd.f32 0.0, %v3145
  %v3147 = vpop.f32.mrb[0].mxu0
  %v3148 = vadd.f32 0.0, %v3147
  %3149 = vdwg.mxu0
  %v3150 = vld [vmem:[%s669] sm:$0xff]
  %3152 = vset.pattern.permute.xlu0 0
  %3153 = vperm.xlu0 %3152, %v3150
  %v3154 = vpop.permute.xlu0 %3153
  %v3156 = vmul.f32 %v3154, %v640
  %v3157 = vmul.f32 %v3154, %v644
  %v3158 = vmul.f32 %v3154, %v648
  %v3159 = vmul.f32 %v3154, %v652
  %v3160 = vadd.f32 %v3156, %v307
  %v3161 = vadd.f32 %v3157, %v311
  %v3162 = vadd.f32 %v3158, %v315
  %v3163 = vadd.f32 %v3159, %v319
  %v3164 = vadd.f32 %v3160, %v2933
  %v3165 = vadd.f32 %v3161, %v2935
  %v3166 = vadd.f32 %v3162, %v3004
  %v3167 = vadd.f32 %v3163, %v3006
  %v3168 = vld [vmem:[%s0] sm:$0xff]
  %3170 = vset.pattern.permute.xlu0 0
  %3171 = vperm.xlu0 %3170, %v3168
  %v3172 = vpop.permute.xlu0 %3171
  %v3174 = vmul.f32 %v3172, %v680
  %v3175 = vmul.f32 %v3172, %v684
  %v3176 = vmul.f32 %v3172, %v688
  %v3177 = vmul.f32 %v3172, %v692
  %v3178 = vadd.f32 %v3174, %v329
  %v3179 = vadd.f32 %v3175, %v333
  %v3180 = vadd.f32 %v3176, %v337
  %v3181 = vadd.f32 %v3177, %v341
  %v3182 = vadd.f32 %v3178, %v3075
  %v3183 = vadd.f32 %v3179, %v3077
  %v3184 = vadd.f32 %v3180, %v3146
  %v3185 = vadd.f32 %v3181, %v3148
  %v3186 = vtanh.pop %v3164
  %v3187 = vmul.f32 %v3186, 0.5
  %v3188 = vadd.f32 %v3187, 0.5
  %v3189 = vtanh.pop %v3165
  %v3190 = vmul.f32 %v3189, 0.5
  %v3191 = vadd.f32 %v3190, 0.5
  %v3192 = vtanh.pop %v3166
  %v3193 = vtanh.pop %v3167
  %v3194 = vmul.f32 %v3193, 0.5
  %v3195 = vadd.f32 %v3194, 0.5
  %v3196 = vmul.f32 %v3191, %v2846
  %v3197 = vmul.f32 %v3188, %v3192
  %v3198 = vadd.f32 %v3196, %v3197
  %v3199 = vtanh.pop %v3198
  %v3200 = vmul.f32 %v3195, %v3199
  %v3201 = vtanh.pop %v3182
  %v3202 = vmul.f32 %v3201, 0.5
  %v3203 = vadd.f32 %v3202, 0.5
  %v3204 = vtanh.pop %v3183
  %v3205 = vmul.f32 %v3204, 0.5
  %v3206 = vadd.f32 %v3205, 0.5
  %v3207 = vtanh.pop %v3184
  %v3208 = vtanh.pop %v3185
  %v3209 = vmul.f32 %v3208, 0.5
  %v3210 = vadd.f32 %v3209, 0.5
  %v3211 = vmul.f32 %v3206, %v2861
  %v3212 = vmul.f32 %v3203, %v3207
  %v3213 = vadd.f32 %v3211, %v3212
  %v3214 = vtanh.pop %v3213
  %v3215 = vmul.f32 %v3210, %v3214
  %3216 = vst [vmem:[%s740] sm:$0xff] %v3200
  %3217 = vst [vmem:[#allocation2 + $0x8] sm:$0xff] %v3215
  %v3218 = vld [vmem:[#allocation2] sm:$0xff]
  %v3219 = vld [vmem:[#allocation2 + $0x8] sm:$0xff]
  %v3220 = vld [vmem:[#allocation2 + $0x10] sm:$0xff]
  %v3221 = vld [vmem:[#allocation2 + $0x18] sm:$0xff]
  %v3222 = vld [vmem:[#allocation2 + $0x20] sm:$0xff]
  %v3223 = vld [vmem:[#allocation2 + $0x28] sm:$0xff]
  %v3224 = vld [vmem:[#allocation2 + $0x30] sm:$0xff]
  %v3225 = vld [vmem:[#allocation2 + $0x38] sm:$0xff]
  %v3226 = vld [vmem:[#allocation2 + $0x40] sm:$0xff]
  %v3227 = vld [vmem:[#allocation2 + $0x48] sm:$0xff]
  %v3228 = vld [vmem:[#allocation2 + $0x50] sm:$0xff]
  %v3229 = vld [vmem:[#allocation2 + $0x58] sm:$0xff]
  %v3230 = vld [vmem:[#allocation2 + $0x60] sm:$0xff]
  %v3231 = vld [vmem:[#allocation2 + $0x68] sm:$0xff]
  %v3232 = vld [vmem:[#allocation2 + $0x70] sm:$0xff]
  %v3233 = vld [vmem:[#allocation2 + $0x78] sm:$0xff]
  %v3234 = vld [vmem:[%s6] sm:$0xff]
  %v3235 = vld [vmem:[%s6 + $0x8] sm:$0xff]
  %v3236 = vld [vmem:[%s6 + $0x10] sm:$0xff]
  %v3237 = vld [vmem:[%s6 + $0x18] sm:$0xff]
  %v3238 = vld [vmem:[%s6 + $0x20] sm:$0xff]
  %v3239 = vld [vmem:[%s6 + $0x28] sm:$0xff]
  %v3240 = vld [vmem:[%s6 + $0x30] sm:$0xff]
  %v3241 = vld [vmem:[%s6 + $0x38] sm:$0xff]
  %v3242 = vld [vmem:[%s6 + $0x40] sm:$0xff]
  %v3243 = vld [vmem:[%s6 + $0x48] sm:$0xff]
  %v3244 = vld [vmem:[%s6 + $0x50] sm:$0xff]
  %v3245 = vld [vmem:[%s6 + $0x58] sm:$0xff]
  %v3246 = vld [vmem:[%s6 + $0x60] sm:$0xff]
  %v3247 = vld [vmem:[%s6 + $0x68] sm:$0xff]
  %v3248 = vld [vmem:[%s6 + $0x70] sm:$0xff]
  %v3249 = vld [vmem:[%s6 + $0x78] sm:$0xff]
  %v3250 = vld [vmem:[%s6 + $0x80] sm:$0xff]
  %v3251 = vld [vmem:[%s6 + $0x88] sm:$0xff]
  %v3252 = vld [vmem:[%s6 + $0x90] sm:$0xff]
  %v3253 = vld [vmem:[%s6 + $0x98] sm:$0xff]
  %v3254 = vld [vmem:[%s6 + $0xa0] sm:$0xff]
  %v3255 = vld [vmem:[%s6 + $0xa8] sm:$0xff]
  %v3256 = vld [vmem:[%s6 + $0xb0] sm:$0xff]
  %v3257 = vld [vmem:[%s6 + $0xb8] sm:$0xff]
  %v3258 = vld [vmem:[%s6 + $0xc0] sm:$0xff]
  %v3259 = vld [vmem:[%s6 + $0xc8] sm:$0xff]
  %v3260 = vld [vmem:[%s6 + $0xd0] sm:$0xff]
  %v3261 = vld [vmem:[%s6 + $0xd8] sm:$0xff]
  %v3262 = vld [vmem:[%s6 + $0xe0] sm:$0xff]
  %v3263 = vld [vmem:[%s6 + $0xe8] sm:$0xff]
  %v3264 = vld [vmem:[%s6 + $0xf0] sm:$0xff]
  %v3265 = vld [vmem:[%s6 + $0xf8] sm:$0xff]
  %v3266 = vld [vmem:[%s6 + $0x100] sm:$0xff]
  %v3267 = vld [vmem:[%s6 + $0x108] sm:$0xff]
  %v3268 = vld [vmem:[%s6 + $0x110] sm:$0xff]
  %v3269 = vld [vmem:[%s6 + $0x118] sm:$0xff]
  %v3270 = vld [vmem:[%s6 + $0x120] sm:$0xff]
  %v3271 = vld [vmem:[%s6 + $0x128] sm:$0xff]
  %v3272 = vld [vmem:[%s6 + $0x130] sm:$0xff]
  %v3273 = vld [vmem:[%s6 + $0x138] sm:$0xff]
  %v3274 = vld [vmem:[%s6 + $0x140] sm:$0xff]
  %v3275 = vld [vmem:[%s6 + $0x148] sm:$0xff]
  %v3276 = vld [vmem:[%s6 + $0x150] sm:$0xff]
  %v3277 = vld [vmem:[%s6 + $0x158] sm:$0xff]
  %v3278 = vld [vmem:[%s6 + $0x160] sm:$0xff]
  %v3279 = vld [vmem:[%s6 + $0x168] sm:$0xff]
  %v3280 = vld [vmem:[%s6 + $0x170] sm:$0xff]
  %v3281 = vld [vmem:[%s6 + $0x178] sm:$0xff]
  %v3282 = vld [vmem:[%s6 + $0x180] sm:$0xff]
  %v3283 = vld [vmem:[%s6 + $0x188] sm:$0xff]
  %v3284 = vld [vmem:[%s6 + $0x190] sm:$0xff]
  %v3285 = vld [vmem:[%s6 + $0x198] sm:$0xff]
  %v3286 = vld [vmem:[%s6 + $0x1a0] sm:$0xff]
  %v3287 = vld [vmem:[%s6 + $0x1a8] sm:$0xff]
  %v3288 = vld [vmem:[%s6 + $0x1b0] sm:$0xff]
  %v3289 = vld [vmem:[%s6 + $0x1b8] sm:$0xff]
  %v3290 = vld [vmem:[%s6 + $0x1c0] sm:$0xff]
  %v3291 = vld [vmem:[%s6 + $0x1c8] sm:$0xff]
  %v3292 = vld [vmem:[%s6 + $0x1d0] sm:$0xff]
  %v3293 = vld [vmem:[%s6 + $0x1d8] sm:$0xff]
  %v3294 = vld [vmem:[%s6 + $0x1e0] sm:$0xff]
  %v3295 = vld [vmem:[%s6 + $0x1e8] sm:$0xff]
  %v3296 = vld [vmem:[%s6 + $0x1f0] sm:$0xff]
  %v3297 = vld [vmem:[%s6 + $0x1f8] sm:$0xff]
  %v3298 = vld [vmem:[%s6 + $0x200] sm:$0xff]
  %v3299 = vld [vmem:[%s6 + $0x208] sm:$0xff]
  %v3300 = vld [vmem:[%s6 + $0x210] sm:$0xff]
  %v3301 = vld [vmem:[%s6 + $0x218] sm:$0xff]
  %v3302 = vld [vmem:[%s6 + $0x220] sm:$0xff]
  %v3303 = vld [vmem:[%s6 + $0x228] sm:$0xff]
  %v3304 = vld [vmem:[%s6 + $0x230] sm:$0xff]
  %v3305 = vld [vmem:[%s6 + $0x238] sm:$0xff]
  %v3306 = vld [vmem:[%s6 + $0x240] sm:$0xff]
  %v3307 = vld [vmem:[%s6 + $0x248] sm:$0xff]
  %v3308 = vld [vmem:[%s6 + $0x250] sm:$0xff]
  %v3309 = vld [vmem:[%s6 + $0x258] sm:$0xff]
  %v3310 = vld [vmem:[%s6 + $0x260] sm:$0xff]
  %v3311 = vld [vmem:[%s6 + $0x268] sm:$0xff]
  %v3312 = vld [vmem:[%s6 + $0x270] sm:$0xff]
  %v3313 = vld [vmem:[%s6 + $0x278] sm:$0xff]
  %v3314 = vld [vmem:[%s6 + $0x280] sm:$0xff]
  %v3315 = vld [vmem:[%s6 + $0x288] sm:$0xff]
  %v3316 = vld [vmem:[%s6 + $0x290] sm:$0xff]
  %v3317 = vld [vmem:[%s6 + $0x298] sm:$0xff]
  %v3318 = vld [vmem:[%s6 + $0x2a0] sm:$0xff]
  %v3319 = vld [vmem:[%s6 + $0x2a8] sm:$0xff]
  %v3320 = vld [vmem:[%s6 + $0x2b0] sm:$0xff]
  %v3321 = vld [vmem:[%s6 + $0x2b8] sm:$0xff]
  %v3322 = vld [vmem:[%s6 + $0x2c0] sm:$0xff]
  %v3323 = vld [vmem:[%s6 + $0x2c8] sm:$0xff]
  %v3324 = vld [vmem:[%s6 + $0x2d0] sm:$0xff]
  %v3325 = vld [vmem:[%s6 + $0x2d8] sm:$0xff]
  %v3326 = vld [vmem:[%s6 + $0x2e0] sm:$0xff]
  %v3327 = vld [vmem:[%s6 + $0x2e8] sm:$0xff]
  %v3328 = vld [vmem:[%s6 + $0x2f0] sm:$0xff]
  %v3329 = vld [vmem:[%s6 + $0x2f8] sm:$0xff]
  %v3330 = vld [vmem:[%s6 + $0x300] sm:$0xff]
  %v3331 = vld [vmem:[%s6 + $0x308] sm:$0xff]
  %v3332 = vld [vmem:[%s6 + $0x310] sm:$0xff]
  %v3333 = vld [vmem:[%s6 + $0x318] sm:$0xff]
  %v3334 = vld [vmem:[%s6 + $0x320] sm:$0xff]
  %v3335 = vld [vmem:[%s6 + $0x328] sm:$0xff]
  %v3336 = vld [vmem:[%s6 + $0x330] sm:$0xff]
  %v3337 = vld [vmem:[%s6 + $0x338] sm:$0xff]
  %v3338 = vld [vmem:[%s6 + $0x340] sm:$0xff]
  %v3339 = vld [vmem:[%s6 + $0x348] sm:$0xff]
  %v3340 = vld [vmem:[%s6 + $0x350] sm:$0xff]
  %v3341 = vld [vmem:[%s6 + $0x358] sm:$0xff]
  %v3342 = vld [vmem:[%s6 + $0x360] sm:$0xff]
  %v3343 = vld [vmem:[%s6 + $0x368] sm:$0xff]
  %v3344 = vld [vmem:[%s6 + $0x370] sm:$0xff]
  %v3345 = vld [vmem:[%s6 + $0x378] sm:$0xff]
  %v3346 = vld [vmem:[%s6 + $0x380] sm:$0xff]
  %v3347 = vld [vmem:[%s6 + $0x388] sm:$0xff]
  %v3348 = vld [vmem:[%s6 + $0x390] sm:$0xff]
  %v3349 = vld [vmem:[%s6 + $0x398] sm:$0xff]
  %v3350 = vld [vmem:[%s6 + $0x3a0] sm:$0xff]
  %v3351 = vld [vmem:[%s6 + $0x3a8] sm:$0xff]
  %v3352 = vld [vmem:[%s6 + $0x3b0] sm:$0xff]
  %v3353 = vld [vmem:[%s6 + $0x3b8] sm:$0xff]
  %v3354 = vld [vmem:[%s6 + $0x3c0] sm:$0xff]
  %v3355 = vld [vmem:[%s6 + $0x3c8] sm:$0xff]
  %v3356 = vld [vmem:[%s6 + $0x3d0] sm:$0xff]
  %v3357 = vld [vmem:[%s6 + $0x3d8] sm:$0xff]
  %v3358 = vld [vmem:[%s6 + $0x3e0] sm:$0xff]
  %v3359 = vld [vmem:[%s6 + $0x3e8] sm:$0xff]
  %v3360 = vld [vmem:[%s6 + $0x3f0] sm:$0xff]
  %v3361 = vld [vmem:[%s6 + $0x3f8] sm:$0xff]
  %v3362 = vld [vmem:[%s8] sm:$0xf]
  %v3364 = vlaneseq
  %v3365 = vshrl.u32 %v3364, 7
  %v3366 = vsub.s32 0, %v3365
  %v3367 = vrot.slane %v3362, %v3366
  %v3368 = vlaneseq
  %v3369 = vshrl.u32 %v3368, 7
  %v3370 = vsub.s32 1, %v3369
  %v3371 = vrot.slane %v3362, %v3370
  %v3372 = vlaneseq
  %v3373 = vshrl.u32 %v3372, 7
  %v3374 = vsub.s32 2, %v3373
  %v3375 = vrot.slane %v3362, %v3374
  %v3376 = vlaneseq
  %v3377 = vshrl.u32 %v3376, 7
  %v3378 = vsub.s32 3, %v3377
  %v3379 = vrot.slane %v3362, %v3378
  %3384 = vmatprep.subr.mxu0 %v3235
  %3385 = vmatpush1.msra.mxu0 %v3234
  %3386 = vmatprep.subr.mxu0 %v3239
  %3387 = vmatpush1.msra.mxu0 %v3238
  %3388 = vmatprep.subr.mxu0 %v3243
  %3389 = vmatpush1.msra.mxu0 %v3242
  %3390 = vmatprep.subr.mxu0 %v3247
  %3391 = vmatpush1.msra.mxu0 %v3246
  %3392 = vmatprep.subr.mxu0 %v3251
  %3393 = vmatpush1.msra.mxu0 %v3250
  %3394 = vmatprep.subr.mxu0 %v3255
  %3395 = vmatpush1.msra.mxu0 %v3254
  %3396 = vmatprep.subr.mxu0 %v3259
  %3397 = vmatpush1.msra.mxu0 %v3258
  %3398 = vmatprep.subr.mxu0 %v3263
  %3399 = vmatpush1.msra.mxu0 %v3262
  %3400 = vmatprep.subr.mxu0 %v3267
  %3401 = vmatpush1.msra.mxu0 %v3266
  %3402 = vmatprep.subr.mxu0 %v3271
  %3403 = vmatpush1.msra.mxu0 %v3270
  %3404 = vmatprep.subr.mxu0 %v3275
  %3405 = vmatpush1.msra.mxu0 %v3274
  %3406 = vmatprep.subr.mxu0 %v3279
  %3407 = vmatpush1.msra.mxu0 %v3278
  %3408 = vmatprep.subr.mxu0 %v3283
  %3409 = vmatpush1.msra.mxu0 %v3282
  %3410 = vmatprep.subr.mxu0 %v3287
  %3411 = vmatpush1.msra.mxu0 %v3286
  %3412 = vmatprep.subr.mxu0 %v3291
  %3413 = vmatpush1.msra.mxu0 %v3290
  %3414 = vmatprep.subr.mxu0 %v3295
  %3415 = vmatpush1.msra.mxu0 %v3294
  %3416 = vmatprep.subr.mxu0 %v3299
  %3417 = vmatpush1.msra.mxu0 %v3298
  %3418 = vmatprep.subr.mxu0 %v3303
  %3419 = vmatpush1.msra.mxu0 %v3302
  %3420 = vmatprep.subr.mxu0 %v3307
  %3421 = vmatpush1.msra.mxu0 %v3306
  %3422 = vmatprep.subr.mxu0 %v3311
  %3423 = vmatpush1.msra.mxu0 %v3310
  %3424 = vmatprep.subr.mxu0 %v3315
  %3425 = vmatpush1.msra.mxu0 %v3314
  %3426 = vmatprep.subr.mxu0 %v3319
  %3427 = vmatpush1.msra.mxu0 %v3318
  %3428 = vmatprep.subr.mxu0 %v3323
  %3429 = vmatpush1.msra.mxu0 %v3322
  %3430 = vmatprep.subr.mxu0 %v3327
  %3431 = vmatpush1.msra.mxu0 %v3326
  %3432 = vmatprep.subr.mxu0 %v3331
  %3433 = vmatpush1.msra.mxu0 %v3330
  %3434 = vmatprep.subr.mxu0 %v3335
  %3435 = vmatpush1.msra.mxu0 %v3334
  %3436 = vmatprep.subr.mxu0 %v3339
  %3437 = vmatpush1.msra.mxu0 %v3338
  %3438 = vmatprep.subr.mxu0 %v3343
  %3439 = vmatpush1.msra.mxu0 %v3342
  %3440 = vmatprep.subr.mxu0 %v3347
  %3441 = vmatpush1.msra.mxu0 %v3346
  %3442 = vmatprep.subr.mxu0 %v3351
  %3443 = vmatpush1.msra.mxu0 %v3350
  %3444 = vmatprep.subr.mxu0 %v3355
  %3445 = vmatpush1.msra.mxu0 %v3354
  %3446 = vmatprep.subr.mxu0 %v3359
  %3447 = vmatpush1.msra.mxu0 %v3358
  %3448 = vmatprep.mubr.f32.mxu0 %v3219
  %3449 = vmatmul.mubr.f32.gmra.mrb[0].mxu0 %v3218
  %v3450 = vpop.f32.mrb[0].mxu0
  %v3451 = vadd.f32 %v3367, %v3450
  %v3452 = vpop.f32.mrb[0].mxu0
  %v3453 = vadd.f32 %v3371, %v3452
  %3454 = vmatprep.mubr.f32.mxu0 %v3221
  %3455 = vmatmul.mubr.f32.gmra.mrb[0].mxu0 %v3220
  %v3456 = vpop.f32.mrb[0].mxu0
  %v3457 = vadd.f32 %v3367, %v3456
  %v3458 = vpop.f32.mrb[0].mxu0
  %v3459 = vadd.f32 %v3371, %v3458
  %3460 = vmatprep.mubr.f32.mxu0 %v3223
  %3461 = vmatmul.mubr.f32.gmra.mrb[0].mxu0 %v3222
  %v3462 = vpop.f32.mrb[0].mxu0
  %v3463 = vadd.f32 %v3367, %v3462
  %v3464 = vpop.f32.mrb[0].mxu0
  %v3465 = vadd.f32 %v3371, %v3464
  %3466 = vmatprep.mubr.f32.mxu0 %v3225
  %3467 = vmatmul.mubr.f32.gmra.mrb[0].mxu0 %v3224
  %v3468 = vpop.f32.mrb[0].mxu0
  %v3469 = vadd.f32 %v3367, %v3468
  %v3470 = vpop.f32.mrb[0].mxu0
  %v3471 = vadd.f32 %v3371, %v3470
  %3472 = vmatprep.mubr.f32.mxu0 %v3227
  %3473 = vmatmul.mubr.f32.gmra.mrb[0].mxu0 %v3226
  %v3474 = vpop.f32.mrb[0].mxu0
  %v3475 = vadd.f32 %v3367, %v3474
  %v3476 = vpop.f32.mrb[0].mxu0
  %v3477 = vadd.f32 %v3371, %v3476
  %3478 = vmatprep.mubr.f32.mxu0 %v3229
  %3479 = vmatmul.mubr.f32.gmra.mrb[0].mxu0 %v3228
  %v3480 = vpop.f32.mrb[0].mxu0
  %v3481 = vadd.f32 %v3367, %v3480
  %v3482 = vpop.f32.mrb[0].mxu0
  %v3483 = vadd.f32 %v3371, %v3482
  %3484 = vmatprep.mubr.f32.mxu0 %v3231
  %3485 = vmatmul.mubr.f32.gmra.mrb[0].mxu0 %v3230
  %v3486 = vpop.f32.mrb[0].mxu0
  %v3487 = vadd.f32 %v3367, %v3486
  %v3488 = vpop.f32.mrb[0].mxu0
  %v3489 = vadd.f32 %v3371, %v3488
  %3490 = vmatprep.mubr.f32.mxu0 %v3233
  %3491 = vmatmul.mubr.f32.gmra.mrb[0].mxu0 %v3232
  %v3492 = vpop.f32.mrb[0].mxu0
  %v3493 = vadd.f32 %v3367, %v3492
  %v3494 = vpop.f32.mrb[0].mxu0
  %v3495 = vadd.f32 %v3371, %v3494
  %3496 = vdwg.mxu0
  %3497 = vmatprep.subr.mxu0 %v3237
  %3498 = vmatpush1.msra.mxu0 %v3236
  %3499 = vmatprep.subr.mxu0 %v3241
  %3500 = vmatpush1.msra.mxu0 %v3240
  %3501 = vmatprep.subr.mxu0 %v3245
  %3502 = vmatpush1.msra.mxu0 %v3244
  %3503 = vmatprep.subr.mxu0 %v3249
  %3504 = vmatpush1.msra.mxu0 %v3248
  %3505 = vmatprep.subr.mxu0 %v3253
  %3506 = vmatpush1.msra.mxu0 %v3252
  %3507 = vmatprep.subr.mxu0 %v3257
  %3508 = vmatpush1.msra.mxu0 %v3256
  %3509 = vmatprep.subr.mxu0 %v3261
  %3510 = vmatpush1.msra.mxu0 %v3260
  %3511 = vmatprep.subr.mxu0 %v3265
  %3512 = vmatpush1.msra.mxu0 %v3264
  %3513 = vmatprep.subr.mxu0 %v3269
  %3514 = vmatpush1.msra.mxu0 %v3268
  %3515 = vmatprep.subr.mxu0 %v3273
  %3516 = vmatpush1.msra.mxu0 %v3272
  %3517 = vmatprep.subr.mxu0 %v3277
  %3518 = vmatpush1.msra.mxu0 %v3276
  %3519 = vmatprep.subr.mxu0 %v3281
  %3520 = vmatpush1.msra.mxu0 %v3280
  %3521 = vmatprep.subr.mxu0 %v3285
  %3522 = vmatpush1.msra.mxu0 %v3284
  %3523 = vmatprep.subr.mxu0 %v3289
  %3524 = vmatpush1.msra.mxu0 %v3288
  %3525 = vmatprep.subr.mxu0 %v3293
  %3526 = vmatpush1.msra.mxu0 %v3292
  %3527 = vmatprep.subr.mxu0 %v3297
  %3528 = vmatpush1.msra.mxu0 %v3296
  %3529 = vmatprep.subr.mxu0 %v3301
  %3530 = vmatpush1.msra.mxu0 %v3300
  %3531 = vmatprep.subr.mxu0 %v3305
  %3532 = vmatpush1.msra.mxu0 %v3304
  %3533 = vmatprep.subr.mxu0 %v3309
  %3534 = vmatpush1.msra.mxu0 %v3308
  %3535 = vmatprep.subr.mxu0 %v3313
  %3536 = vmatpush1.msra.mxu0 %v3312
  %3537 = vmatprep.subr.mxu0 %v3317
  %3538 = vmatpush1.msra.mxu0 %v3316
  %3539 = vmatprep.subr.mxu0 %v3321
  %3540 = vmatpush1.msra.mxu0 %v3320
  %3541 = vmatprep.subr.mxu0 %v3325
  %3542 = vmatpush1.msra.mxu0 %v3324
  %3543 = vmatprep.subr.mxu0 %v3329
  %3544 = vmatpush1.msra.mxu0 %v3328
  %3545 = vmatprep.subr.mxu0 %v3333
  %3546 = vmatpush1.msra.mxu0 %v3332
  %3547 = vmatprep.subr.mxu0 %v3337
  %3548 = vmatpush1.msra.mxu0 %v3336
  %3549 = vmatprep.subr.mxu0 %v3341
  %3550 = vmatpush1.msra.mxu0 %v3340
  %3551 = vmatprep.subr.mxu0 %v3345
  %3552 = vmatpush1.msra.mxu0 %v3344
  %3553 = vmatprep.subr.mxu0 %v3349
  %3554 = vmatpush1.msra.mxu0 %v3348
  %3555 = vmatprep.subr.mxu0 %v3353
  %3556 = vmatpush1.msra.mxu0 %v3352
  %3557 = vmatprep.subr.mxu0 %v3357
  %3558 = vmatpush1.msra.mxu0 %v3356
  %3559 = vmatprep.subr.mxu0 %v3361
  %3560 = vmatpush1.msra.mxu0 %v3360
  %3561 = vmatprep.mubr.f32.mxu0 %v3219
  %3562 = vmatmul.mubr.f32.gmra.mrb[0].mxu0 %v3218
  %v3563 = vpop.f32.mrb[0].mxu0
  %v3564 = vadd.f32 %v3375, %v3563
  %v3565 = vpop.f32.mrb[0].mxu0
  %v3566 = vadd.f32 %v3379, %v3565
  %3567 = vmatprep.mubr.f32.mxu0 %v3221
  %3568 = vmatmul.mubr.f32.gmra.mrb[0].mxu0 %v3220
  %v3569 = vpop.f32.mrb[0].mxu0
  %v3570 = vadd.f32 %v3375, %v3569
  %v3571 = vpop.f32.mrb[0].mxu0
  %v3572 = vadd.f32 %v3379, %v3571
  %3573 = vmatprep.mubr.f32.mxu0 %v3223
  %3574 = vmatmul.mubr.f32.gmra.mrb[0].mxu0 %v3222
  %v3575 = vpop.f32.mrb[0].mxu0
  %v3576 = vadd.f32 %v3375, %v3575
  %v3577 = vpop.f32.mrb[0].mxu0
  %v3578 = vadd.f32 %v3379, %v3577
  %3579 = vmatprep.mubr.f32.mxu0 %v3225
  %3580 = vmatmul.mubr.f32.gmra.mrb[0].mxu0 %v3224
  %v3581 = vpop.f32.mrb[0].mxu0
  %v3582 = vadd.f32 %v3375, %v3581
  %v3583 = vpop.f32.mrb[0].mxu0
  %v3584 = vadd.f32 %v3379, %v3583
  %3585 = vmatprep.mubr.f32.mxu0 %v3227
  %3586 = vmatmul.mubr.f32.gmra.mrb[0].mxu0 %v3226
  %v3587 = vpop.f32.mrb[0].mxu0
  %v3588 = vadd.f32 %v3375, %v3587
  %v3589 = vpop.f32.mrb[0].mxu0
  %v3590 = vadd.f32 %v3379, %v3589
  %3591 = vmatprep.mubr.f32.mxu0 %v3229
  %3592 = vmatmul.mubr.f32.gmra.mrb[0].mxu0 %v3228
  %v3593 = vpop.f32.mrb[0].mxu0
  %v3594 = vadd.f32 %v3375, %v3593
  %v3595 = vpop.f32.mrb[0].mxu0
  %v3596 = vadd.f32 %v3379, %v3595
  %3597 = vmatprep.mubr.f32.mxu0 %v3231
  %3598 = vmatmul.mubr.f32.gmra.mrb[0].mxu0 %v3230
  %v3599 = vpop.f32.mrb[0].mxu0
  %v3600 = vadd.f32 %v3375, %v3599
  %v3601 = vpop.f32.mrb[0].mxu0
  %v3602 = vadd.f32 %v3379, %v3601
  %3603 = vmatprep.mubr.f32.mxu0 %v3233
  %3604 = vmatmul.mubr.f32.gmra.mrb[0].mxu0 %v3232
  %v3605 = vpop.f32.mrb[0].mxu0
  %v3606 = vadd.f32 %v3375, %v3605
  %v3607 = vpop.f32.mrb[0].mxu0
  %v3608 = vadd.f32 %v3379, %v3607
  %3609 = vdwg.mxu0
  %3610 = vst [vmem:[#allocation3] sm:$0xff] %v3451
  %3611 = vst [vmem:[#allocation3 + $0x8] sm:$0xff] %v3453
  %3612 = vst [vmem:[#allocation3 + $0x10] sm:$0xff] %v3564
  %3613 = vst [vmem:[#allocation3 + $0x18] sm:$0xff] %v3566
  %3614 = vst [vmem:[#allocation3 + $0x20] sm:$0xff] %v3457
  %3615 = vst [vmem:[#allocation3 + $0x28] sm:$0xff] %v3459
  %3616 = vst [vmem:[#allocation3 + $0x30] sm:$0xff] %v3570
  %3617 = vst [vmem:[#allocation3 + $0x38] sm:$0xff] %v3572
  %3618 = vst [vmem:[#allocation3 + $0x40] sm:$0xff] %v3463
  %3619 = vst [vmem:[#allocation3 + $0x48] sm:$0xff] %v3465
  %3620 = vst [vmem:[#allocation3 + $0x50] sm:$0xff] %v3576
  %3621 = vst [vmem:[#allocation3 + $0x58] sm:$0xff] %v3578
  %3622 = vst [vmem:[#allocation3 + $0x60] sm:$0xff] %v3469
  %3623 = vst [vmem:[#allocation3 + $0x68] sm:$0xff] %v3471
  %3624 = vst [vmem:[#allocation3 + $0x70] sm:$0xff] %v3582
  %3625 = vst [vmem:[#allocation3 + $0x78] sm:$0xff] %v3584
  %3626 = vst [vmem:[#allocation3 + $0x80] sm:$0xff] %v3475
  %3627 = vst [vmem:[#allocation3 + $0x88] sm:$0xff] %v3477
  %3628 = vst [vmem:[#allocation3 + $0x90] sm:$0xff] %v3588
  %3629 = vst [vmem:[#allocation3 + $0x98] sm:$0xff] %v3590
  %3630 = vst [vmem:[#allocation3 + $0xa0] sm:$0xff] %v3481
  %3631 = vst [vmem:[#allocation3 + $0xa8] sm:$0xff] %v3483
  %3632 = vst [vmem:[#allocation3 + $0xb0] sm:$0xff] %v3594
  %3633 = vst [vmem:[#allocation3 + $0xb8] sm:$0xff] %v3596
  %3634 = vst [vmem:[#allocation3 + $0xc0] sm:$0xff] %v3487
  %3635 = vst [vmem:[#allocation3 + $0xc8] sm:$0xff] %v3489
  %3636 = vst [vmem:[#allocation3 + $0xd0] sm:$0xff] %v3600
  %3637 = vst [vmem:[#allocation3 + $0xd8] sm:$0xff] %v3602
  %3638 = vst [vmem:[#allocation3 + $0xe0] sm:$0xff] %v3493
  %3639 = vst [vmem:[#allocation3 + $0xe8] sm:$0xff] %v3495
  %3640 = vst [vmem:[#allocation3 + $0xf0] sm:$0xff] %v3606
  %3641 = vst [vmem:[#allocation3 + $0xf8] sm:$0xff] %v3608
  %v3642 = vld [vmem:[%s7] sm:$0xff]
  %v3643 = vld [vmem:[%s7 + $0x8] sm:$0xff]
  %v3644 = vld [vmem:[%s7 + $0x10] sm:$0xff]
  %v3645 = vld [vmem:[%s7 + $0x18] sm:$0xff]
  %v3646 = vld [vmem:[%s7 + $0x20] sm:$0xff]
  %v3647 = vld [vmem:[%s7 + $0x28] sm:$0xff]
  %v3648 = vld [vmem:[%s7 + $0x30] sm:$0xff]
  %v3649 = vld [vmem:[%s7 + $0x38] sm:$0xff]
  %v3650 = vld [vmem:[%s7 + $0x40] sm:$0xff]
  %v3651 = vld [vmem:[%s7 + $0x48] sm:$0xff]
  %v3652 = vld [vmem:[%s7 + $0x50] sm:$0xff]
  %v3653 = vld [vmem:[%s7 + $0x58] sm:$0xff]
  %v3654 = vld [vmem:[%s7 + $0x60] sm:$0xff]
  %v3655 = vld [vmem:[%s7 + $0x68] sm:$0xff]
  %v3656 = vld [vmem:[%s7 + $0x70] sm:$0xff]
  %v3657 = vld [vmem:[%s7 + $0x78] sm:$0xff]
  %v3658 = vld [vmem:[%s7 + $0x80] sm:$0xff]
  %v3659 = vld [vmem:[%s7 + $0x88] sm:$0xff]
  %v3660 = vld [vmem:[%s7 + $0x90] sm:$0xff]
  %v3661 = vld [vmem:[%s7 + $0x98] sm:$0xff]
  %v3662 = vld [vmem:[%s7 + $0xa0] sm:$0xff]
  %v3663 = vld [vmem:[%s7 + $0xa8] sm:$0xff]
  %v3664 = vld [vmem:[%s7 + $0xb0] sm:$0xff]
  %v3665 = vld [vmem:[%s7 + $0xb8] sm:$0xff]
  %v3666 = vld [vmem:[%s7 + $0xc0] sm:$0xff]
  %v3667 = vld [vmem:[%s7 + $0xc8] sm:$0xff]
  %v3668 = vld [vmem:[%s7 + $0xd0] sm:$0xff]
  %v3669 = vld [vmem:[%s7 + $0xd8] sm:$0xff]
  %v3670 = vld [vmem:[%s7 + $0xe0] sm:$0xff]
  %v3671 = vld [vmem:[%s7 + $0xe8] sm:$0xff]
  %v3672 = vld [vmem:[%s7 + $0xf0] sm:$0xff]
  %v3673 = vld [vmem:[%s7 + $0xf8] sm:$0xff]
  %v3674 = vld [vmem:[%s7 + $0x100] sm:$0xff]
  %v3675 = vld [vmem:[%s7 + $0x108] sm:$0xff]
  %v3676 = vld [vmem:[%s7 + $0x110] sm:$0xff]
  %v3677 = vld [vmem:[%s7 + $0x118] sm:$0xff]
  %v3678 = vld [vmem:[%s7 + $0x120] sm:$0xff]
  %v3679 = vld [vmem:[%s7 + $0x128] sm:$0xff]
  %v3680 = vld [vmem:[%s7 + $0x130] sm:$0xff]
  %v3681 = vld [vmem:[%s7 + $0x138] sm:$0xff]
  %v3682 = vld [vmem:[%s7 + $0x140] sm:$0xff]
  %v3683 = vld [vmem:[%s7 + $0x148] sm:$0xff]
  %v3684 = vld [vmem:[%s7 + $0x150] sm:$0xff]
  %v3685 = vld [vmem:[%s7 + $0x158] sm:$0xff]
  %v3686 = vld [vmem:[%s7 + $0x160] sm:$0xff]
  %v3687 = vld [vmem:[%s7 + $0x168] sm:$0xff]
  %v3688 = vld [vmem:[%s7 + $0x170] sm:$0xff]
  %v3689 = vld [vmem:[%s7 + $0x178] sm:$0xff]
  %v3690 = vld [vmem:[%s7 + $0x180] sm:$0xff]
  %v3691 = vld [vmem:[%s7 + $0x188] sm:$0xff]
  %v3692 = vld [vmem:[%s7 + $0x190] sm:$0xff]
  %v3693 = vld [vmem:[%s7 + $0x198] sm:$0xff]
  %v3694 = vld [vmem:[%s7 + $0x1a0] sm:$0xff]
  %v3695 = vld [vmem:[%s7 + $0x1a8] sm:$0xff]
  %v3696 = vld [vmem:[%s7 + $0x1b0] sm:$0xff]
  %v3697 = vld [vmem:[%s7 + $0x1b8] sm:$0xff]
  %v3698 = vld [vmem:[%s7 + $0x1c0] sm:$0xff]
  %v3699 = vld [vmem:[%s7 + $0x1c8] sm:$0xff]
  %v3700 = vld [vmem:[%s7 + $0x1d0] sm:$0xff]
  %v3701 = vld [vmem:[%s7 + $0x1d8] sm:$0xff]
  %v3702 = vld [vmem:[%s7 + $0x1e0] sm:$0xff]
  %v3703 = vld [vmem:[%s7 + $0x1e8] sm:$0xff]
  %v3704 = vld [vmem:[%s7 + $0x1f0] sm:$0xff]
  %v3705 = vld [vmem:[%s7 + $0x1f8] sm:$0xff]
  %v3706 = vld [vmem:[#allocation3] sm:$0xff]
  %v3707 = vld [vmem:[#allocation3 + $0x8] sm:$0xff]
  %v3708 = vld [vmem:[#allocation3 + $0x10] sm:$0xff]
  %v3709 = vld [vmem:[#allocation3 + $0x18] sm:$0xff]
  %3710 = vmatprep.subr.mxu0 %v3643
  %3711 = vmatpush1.msra.mxu0 %v3642
  %3712 = vmatprep.subr.mxu0 %v3647
  %3713 = vmatpush1.msra.mxu0 %v3646
  %3714 = vmatprep.subr.mxu0 %v3651
  %3715 = vmatpush1.msra.mxu0 %v3650
  %3716 = vmatprep.subr.mxu0 %v3655
  %3717 = vmatpush1.msra.mxu0 %v3654
  %3718 = vmatprep.subr.mxu0 %v3659
  %3719 = vmatpush1.msra.mxu0 %v3658
  %3720 = vmatprep.subr.mxu0 %v3663
  %3721 = vmatpush1.msra.mxu0 %v3662
  %3722 = vmatprep.subr.mxu0 %v3667
  %3723 = vmatpush1.msra.mxu0 %v3666
  %3724 = vmatprep.subr.mxu0 %v3671
  %3725 = vmatpush1.msra.mxu0 %v3670
  %3726 = vmatprep.subr.mxu0 %v3675
  %3727 = vmatpush1.msra.mxu0 %v3674
  %3728 = vmatprep.subr.mxu0 %v3679
  %3729 = vmatpush1.msra.mxu0 %v3678
  %3730 = vmatprep.subr.mxu0 %v3683
  %3731 = vmatpush1.msra.mxu0 %v3682
  %3732 = vmatprep.subr.mxu0 %v3687
  %3733 = vmatpush1.msra.mxu0 %v3686
  %3734 = vmatprep.subr.mxu0 %v3691
  %3735 = vmatpush1.msra.mxu0 %v3690
  %3736 = vmatprep.subr.mxu0 %v3695
  %3737 = vmatpush1.msra.mxu0 %v3694
  %3738 = vmatprep.subr.mxu0 %v3699
  %3739 = vmatpush1.msra.mxu0 %v3698
  %3740 = vmatprep.subr.mxu0 %v3703
  %3741 = vmatpush1.msra.mxu0 %v3702
  %3742 = vmatprep.subr.mxu0 0.0
  %3743 = vmatpush1.msra.mxu0 0.0
  %3744 = vmatprep.subr.mxu0 0.0
  %3745 = vmatpush1.msra.mxu0 0.0
  %3746 = vmatprep.subr.mxu0 0.0
  %3747 = vmatpush1.msra.mxu0 0.0
  %3748 = vmatprep.subr.mxu0 0.0
  %3749 = vmatpush1.msra.mxu0 0.0
  %3750 = vmatprep.subr.mxu0 0.0
  %3751 = vmatpush1.msra.mxu0 0.0
  %3752 = vmatprep.subr.mxu0 0.0
  %3753 = vmatpush1.msra.mxu0 0.0
  %3754 = vmatprep.subr.mxu0 0.0
  %3755 = vmatpush1.msra.mxu0 0.0
  %3756 = vmatprep.subr.mxu0 0.0
  %3757 = vmatpush1.msra.mxu0 0.0
  %3758 = vmatprep.subr.mxu0 0.0
  %3759 = vmatpush1.msra.mxu0 0.0
  %3760 = vmatprep.subr.mxu0 0.0
  %3761 = vmatpush1.msra.mxu0 0.0
  %3762 = vmatprep.subr.mxu0 0.0
  %3763 = vmatpush1.msra.mxu0 0.0
  %3764 = vmatprep.subr.mxu0 0.0
  %3765 = vmatpush1.msra.mxu0 0.0
  %3766 = vmatprep.subr.mxu0 0.0
  %3767 = vmatpush1.msra.mxu0 0.0
  %3768 = vmatprep.subr.mxu0 0.0
  %3769 = vmatpush1.msra.mxu0 0.0
  %3770 = vmatprep.subr.mxu0 0.0
  %3771 = vmatpush1.msra.mxu0 0.0
  %3772 = vmatprep.subr.mxu0 0.0
  %3773 = vmatpush1.msra.mxu0 0.0
  %3774 = vmatprep.mubr.f32.mxu0 0.0
  %3775 = vmatmul.mubr.f32.gmra.mrb[0].mxu0 0.0
  %v3776 = vpop.f32.mrb[0].mxu0
  %v3777 = vadd.f32 0.0, %v3776
  %v3778 = vpop.f32.mrb[0].mxu0
  %v3779 = vadd.f32 0.0, %v3778
  %3780 = vdwg.mxu0
  %3781 = vmatprep.subr.mxu0 %v3645
  %3782 = vmatpush1.msra.mxu0 %v3644
  %3783 = vmatprep.subr.mxu0 %v3649
  %3784 = vmatpush1.msra.mxu0 %v3648
  %3785 = vmatprep.subr.mxu0 %v3653
  %3786 = vmatpush1.msra.mxu0 %v3652
  %3787 = vmatprep.subr.mxu0 %v3657
  %3788 = vmatpush1.msra.mxu0 %v3656
  %3789 = vmatprep.subr.mxu0 %v3661
  %3790 = vmatpush1.msra.mxu0 %v3660
  %3791 = vmatprep.subr.mxu0 %v3665
  %3792 = vmatpush1.msra.mxu0 %v3664
  %3793 = vmatprep.subr.mxu0 %v3669
  %3794 = vmatpush1.msra.mxu0 %v3668
  %3795 = vmatprep.subr.mxu0 %v3673
  %3796 = vmatpush1.msra.mxu0 %v3672
  %3797 = vmatprep.subr.mxu0 %v3677
  %3798 = vmatpush1.msra.mxu0 %v3676
  %3799 = vmatprep.subr.mxu0 %v3681
  %3800 = vmatpush1.msra.mxu0 %v3680
  %3801 = vmatprep.subr.mxu0 %v3685
  %3802 = vmatpush1.msra.mxu0 %v3684
  %3803 = vmatprep.subr.mxu0 %v3689
  %3804 = vmatpush1.msra.mxu0 %v3688
  %3805 = vmatprep.subr.mxu0 %v3693
  %3806 = vmatpush1.msra.mxu0 %v3692
  %3807 = vmatprep.subr.mxu0 %v3697
  %3808 = vmatpush1.msra.mxu0 %v3696
  %3809 = vmatprep.subr.mxu0 %v3701
  %3810 = vmatpush1.msra.mxu0 %v3700
  %3811 = vmatprep.subr.mxu0 %v3705
  %3812 = vmatpush1.msra.mxu0 %v3704
  %3813 = vmatprep.subr.mxu0 0.0
  %3814 = vmatpush1.msra.mxu0 0.0
  %3815 = vmatprep.subr.mxu0 0.0
  %3816 = vmatpush1.msra.mxu0 0.0
  %3817 = vmatprep.subr.mxu0 0.0
  %3818 = vmatpush1.msra.mxu0 0.0
  %3819 = vmatprep.subr.mxu0 0.0
  %3820 = vmatpush1.msra.mxu0 0.0
  %3821 = vmatprep.subr.mxu0 0.0
  %3822 = vmatpush1.msra.mxu0 0.0
  %3823 = vmatprep.subr.mxu0 0.0
  %3824 = vmatpush1.msra.mxu0 0.0
  %3825 = vmatprep.subr.mxu0 0.0
  %3826 = vmatpush1.msra.mxu0 0.0
  %3827 = vmatprep.subr.mxu0 0.0
  %3828 = vmatpush1.msra.mxu0 0.0
  %3829 = vmatprep.subr.mxu0 0.0
  %3830 = vmatpush1.msra.mxu0 0.0
  %3831 = vmatprep.subr.mxu0 0.0
  %3832 = vmatpush1.msra.mxu0 0.0
  %3833 = vmatprep.subr.mxu0 0.0
  %3834 = vmatpush1.msra.mxu0 0.0
  %3835 = vmatprep.subr.mxu0 0.0
  %3836 = vmatpush1.msra.mxu0 0.0
  %3837 = vmatprep.subr.mxu0 0.0
  %3838 = vmatpush1.msra.mxu0 0.0
  %3839 = vmatprep.subr.mxu0 0.0
  %3840 = vmatpush1.msra.mxu0 0.0
  %3841 = vmatprep.subr.mxu0 0.0
  %3842 = vmatpush1.msra.mxu0 0.0
  %3843 = vmatprep.subr.mxu0 0.0
  %3844 = vmatpush1.msra.mxu0 0.0
  %3845 = vmatprep.mubr.f32.mxu0 0.0
  %3846 = vmatmul.mubr.f32.gmra.mrb[0].mxu0 0.0
  %v3847 = vpop.f32.mrb[0].mxu0
  %v3848 = vadd.f32 0.0, %v3847
  %v3849 = vpop.f32.mrb[0].mxu0
  %v3850 = vadd.f32 0.0, %v3849
  %3851 = vdwg.mxu0
  %v3852 = vadd.f32 %v3706, %v3777
  %v3853 = vadd.f32 %v3707, %v3779
  %v3854 = vadd.f32 %v3708, %v3848
  %v3855 = vadd.f32 %v3709, %v3850
  %v3856 = vtanh.pop %v3852
  %v3857 = vmul.f32 %v3856, 0.5
  %v3858 = vadd.f32 %v3857, 0.5
  %v3859 = vtanh.pop %v3853
  %v3860 = vmul.f32 %v3859, 0.5
  %v3861 = vadd.f32 %v3860, 0.5
  %v3862 = vtanh.pop %v3854
  %v3863 = vtanh.pop %v3855
  %v3864 = vmul.f32 %v3863, 0.5
  %v3865 = vadd.f32 %v3864, 0.5
  %v3866 = vmul.f32 %v3861, 0.0
  %v3867 = vmul.f32 %v3858, %v3862
  %v3868 = vadd.f32 %v3866, %v3867
  %v3869 = vtanh.pop %v3868
  %v3870 = vmul.f32 %v3865, %v3869
  %s3871 = scalar_lea.vmem [#allocation3], 32
  %v3872 = vld [vmem:[%s3871] sm:$0xff]
  %v3873 = vld [vmem:[%s3871 + $0x8] sm:$0xff]
  %v3874 = vld [vmem:[%s3871 + $0x10] sm:$0xff]
  %v3875 = vld [vmem:[%s3871 + $0x18] sm:$0xff]
  %3876 = vmatprep.subr.mxu0 %v3643
  %3877 = vmatpush1.msra.mxu0 %v3642
  %3878 = vmatprep.subr.mxu0 %v3647
  %3879 = vmatpush1.msra.mxu0 %v3646
  %3880 = vmatprep.subr.mxu0 %v3651
  %3881 = vmatpush1.msra.mxu0 %v3650
  %3882 = vmatprep.subr.mxu0 %v3655
  %3883 = vmatpush1.msra.mxu0 %v3654
  %3884 = vmatprep.subr.mxu0 %v3659
  %3885 = vmatpush1.msra.mxu0 %v3658
  %3886 = vmatprep.subr.mxu0 %v3663
  %3887 = vmatpush1.msra.mxu0 %v3662
  %3888 = vmatprep.subr.mxu0 %v3667
  %3889 = vmatpush1.msra.mxu0 %v3666
  %3890 = vmatprep.subr.mxu0 %v3671
  %3891 = vmatpush1.msra.mxu0 %v3670
  %3892 = vmatprep.subr.mxu0 %v3675
  %3893 = vmatpush1.msra.mxu0 %v3674
  %3894 = vmatprep.subr.mxu0 %v3679
  %3895 = vmatpush1.msra.mxu0 %v3678
  %3896 = vmatprep.subr.mxu0 %v3683
  %3897 = vmatpush1.msra.mxu0 %v3682
  %3898 = vmatprep.subr.mxu0 %v3687
  %3899 = vmatpush1.msra.mxu0 %v3686
  %3900 = vmatprep.subr.mxu0 %v3691
  %3901 = vmatpush1.msra.mxu0 %v3690
  %3902 = vmatprep.subr.mxu0 %v3695
  %3903 = vmatpush1.msra.mxu0 %v3694
  %3904 = vmatprep.subr.mxu0 %v3699
  %3905 = vmatpush1.msra.mxu0 %v3698
  %3906 = vmatprep.subr.mxu0 %v3703
  %3907 = vmatpush1.msra.mxu0 %v3702
  %3908 = vmatprep.subr.mxu0 0.0
  %3909 = vmatpush1.msra.mxu0 0.0
  %3910 = vmatprep.subr.mxu0 0.0
  %3911 = vmatpush1.msra.mxu0 0.0
  %3912 = vmatprep.subr.mxu0 0.0
  %3913 = vmatpush1.msra.mxu0 0.0
  %3914 = vmatprep.subr.mxu0 0.0
  %3915 = vmatpush1.msra.mxu0 0.0
  %3916 = vmatprep.subr.mxu0 0.0
  %3917 = vmatpush1.msra.mxu0 0.0
  %3918 = vmatprep.subr.mxu0 0.0
  %3919 = vmatpush1.msra.mxu0 0.0
  %3920 = vmatprep.subr.mxu0 0.0
  %3921 = vmatpush1.msra.mxu0 0.0
  %3922 = vmatprep.subr.mxu0 0.0
  %3923 = vmatpush1.msra.mxu0 0.0
  %3924 = vmatprep.subr.mxu0 0.0
  %3925 = vmatpush1.msra.mxu0 0.0
  %3926 = vmatprep.subr.mxu0 0.0
  %3927 = vmatpush1.msra.mxu0 0.0
  %3928 = vmatprep.subr.mxu0 0.0
  %3929 = vmatpush1.msra.mxu0 0.0
  %3930 = vmatprep.subr.mxu0 0.0
  %3931 = vmatpush1.msra.mxu0 0.0
  %3932 = vmatprep.subr.mxu0 0.0
  %3933 = vmatpush1.msra.mxu0 0.0
  %3934 = vmatprep.subr.mxu0 0.0
  %3935 = vmatpush1.msra.mxu0 0.0
  %3936 = vmatprep.subr.mxu0 0.0
  %3937 = vmatpush1.msra.mxu0 0.0
  %3938 = vmatprep.subr.mxu0 0.0
  %3939 = vmatpush1.msra.mxu0 0.0
  %3940 = vmatprep.mubr.f32.mxu0 0.0
  %3941 = vmatmul.mubr.f32.gmra.mrb[0].mxu0 %v3870
  %v3942 = vpop.f32.mrb[0].mxu0
  %v3943 = vadd.f32 0.0, %v3942
  %v3944 = vpop.f32.mrb[0].mxu0
  %v3945 = vadd.f32 0.0, %v3944
  %3946 = vdwg.mxu0
  %3947 = vmatprep.subr.mxu0 %v3645
  %3948 = vmatpush1.msra.mxu0 %v3644
  %3949 = vmatprep.subr.mxu0 %v3649
  %3950 = vmatpush1.msra.mxu0 %v3648
  %3951 = vmatprep.subr.mxu0 %v3653
  %3952 = vmatpush1.msra.mxu0 %v3652
  %3953 = vmatprep.subr.mxu0 %v3657
  %3954 = vmatpush1.msra.mxu0 %v3656
  %3955 = vmatprep.subr.mxu0 %v3661
  %3956 = vmatpush1.msra.mxu0 %v3660
  %3957 = vmatprep.subr.mxu0 %v3665
  %3958 = vmatpush1.msra.mxu0 %v3664
  %3959 = vmatprep.subr.mxu0 %v3669
  %3960 = vmatpush1.msra.mxu0 %v3668
  %3961 = vmatprep.subr.mxu0 %v3673
  %3962 = vmatpush1.msra.mxu0 %v3672
  %3963 = vmatprep.subr.mxu0 %v3677
  %3964 = vmatpush1.msra.mxu0 %v3676
  %3965 = vmatprep.subr.mxu0 %v3681
  %3966 = vmatpush1.msra.mxu0 %v3680
  %3967 = vmatprep.subr.mxu0 %v3685
  %3968 = vmatpush1.msra.mxu0 %v3684
  %3969 = vmatprep.subr.mxu0 %v3689
  %3970 = vmatpush1.msra.mxu0 %v3688
  %3971 = vmatprep.subr.mxu0 %v3693
  %3972 = vmatpush1.msra.mxu0 %v3692
  %3973 = vmatprep.subr.mxu0 %v3697
  %3974 = vmatpush1.msra.mxu0 %v3696
  %3975 = vmatprep.subr.mxu0 %v3701
  %3976 = vmatpush1.msra.mxu0 %v3700
  %3977 = vmatprep.subr.mxu0 %v3705
  %3978 = vmatpush1.msra.mxu0 %v3704
  %3979 = vmatprep.subr.mxu0 0.0
  %3980 = vmatpush1.msra.mxu0 0.0
  %3981 = vmatprep.subr.mxu0 0.0
  %3982 = vmatpush1.msra.mxu0 0.0
  %3983 = vmatprep.subr.mxu0 0.0
  %3984 = vmatpush1.msra.mxu0 0.0
  %3985 = vmatprep.subr.mxu0 0.0
  %3986 = vmatpush1.msra.mxu0 0.0
  %3987 = vmatprep.subr.mxu0 0.0
  %3988 = vmatpush1.msra.mxu0 0.0
  %3989 = vmatprep.subr.mxu0 0.0
  %3990 = vmatpush1.msra.mxu0 0.0
  %3991 = vmatprep.subr.mxu0 0.0
  %3992 = vmatpush1.msra.mxu0 0.0
  %3993 = vmatprep.subr.mxu0 0.0
  %3994 = vmatpush1.msra.mxu0 0.0
  %3995 = vmatprep.subr.mxu0 0.0
  %3996 = vmatpush1.msra.mxu0 0.0
  %3997 = vmatprep.subr.mxu0 0.0
  %3998 = vmatpush1.msra.mxu0 0.0
  %3999 = vmatprep.subr.mxu0 0.0
  %4000 = vmatpush1.msra.mxu0 0.0
  %4001 = vmatprep.subr.mxu0 0.0
  %4002 = vmatpush1.msra.mxu0 0.0
  %4003 = vmatprep.subr.mxu0 0.0
  %4004 = vmatpush1.msra.mxu0 0.0
  %4005 = vmatprep.subr.mxu0 0.0
  %4006 = vmatpush1.msra.mxu0 0.0
  %4007 = vmatprep.subr.mxu0 0.0
  %4008 = vmatpush1.msra.mxu0 0.0
  %4009 = vmatprep.subr.mxu0 0.0
  %4010 = vmatpush1.msra.mxu0 0.0
  %4011 = vmatprep.mubr.f32.mxu0 0.0
  %4012 = vmatmul.mubr.f32.gmra.mrb[0].mxu0 %v3870
  %v4013 = vpop.f32.mrb[0].mxu0
  %v4014 = vadd.f32 0.0, %v4013
  %v4015 = vpop.f32.mrb[0].mxu0
  %v4016 = vadd.f32 0.0, %v4015
  %4017 = vdwg.mxu0
  %v4018 = vadd.f32 %v3872, %v3943
  %v4019 = vadd.f32 %v3873, %v3945
  %v4020 = vadd.f32 %v3874, %v4014
  %v4021 = vadd.f32 %v3875, %v4016
  %v4022 = vtanh.pop %v4018
  %v4023 = vmul.f32 %v4022, 0.5
  %v4024 = vadd.f32 %v4023, 0.5
  %v4025 = vtanh.pop %v4019
  %v4026 = vmul.f32 %v4025, 0.5
  %v4027 = vadd.f32 %v4026, 0.5
  %v4028 = vtanh.pop %v4020
  %v4029 = vtanh.pop %v4021
  %v4030 = vmul.f32 %v4029, 0.5
  %v4031 = vadd.f32 %v4030, 0.5
  %v4032 = vmul.f32 %v4027, %v3868
  %v4033 = vmul.f32 %v4024, %v4028
  %v4034 = vadd.f32 %v4032, %v4033
  %v4035 = vtanh.pop %v4034
  %v4036 = vmul.f32 %v4031, %v4035
  %s4037 = scalar_lea.vmem [#allocation3], 64
  %v4038 = vld [vmem:[%s4037] sm:$0xff]
  %v4039 = vld [vmem:[%s4037 + $0x8] sm:$0xff]
  %v4040 = vld [vmem:[%s4037 + $0x10] sm:$0xff]
  %v4041 = vld [vmem:[%s4037 + $0x18] sm:$0xff]
  %4042 = vmatprep.subr.mxu0 %v3643
  %4043 = vmatpush1.msra.mxu0 %v3642
  %4044 = vmatprep.subr.mxu0 %v3647
  %4045 = vmatpush1.msra.mxu0 %v3646
  %4046 = vmatprep.subr.mxu0 %v3651
  %4047 = vmatpush1.msra.mxu0 %v3650
  %4048 = vmatprep.subr.mxu0 %v3655
  %4049 = vmatpush1.msra.mxu0 %v3654
  %4050 = vmatprep.subr.mxu0 %v3659
  %4051 = vmatpush1.msra.mxu0 %v3658
  %4052 = vmatprep.subr.mxu0 %v3663
  %4053 = vmatpush1.msra.mxu0 %v3662
  %4054 = vmatprep.subr.mxu0 %v3667
  %4055 = vmatpush1.msra.mxu0 %v3666
  %4056 = vmatprep.subr.mxu0 %v3671
  %4057 = vmatpush1.msra.mxu0 %v3670
  %4058 = vmatprep.subr.mxu0 %v3675
  %4059 = vmatpush1.msra.mxu0 %v3674
  %4060 = vmatprep.subr.mxu0 %v3679
  %4061 = vmatpush1.msra.mxu0 %v3678
  %4062 = vmatprep.subr.mxu0 %v3683
  %4063 = vmatpush1.msra.mxu0 %v3682
  %4064 = vmatprep.subr.mxu0 %v3687
  %4065 = vmatpush1.msra.mxu0 %v3686
  %4066 = vmatprep.subr.mxu0 %v3691
  %4067 = vmatpush1.msra.mxu0 %v3690
  %4068 = vmatprep.subr.mxu0 %v3695
  %4069 = vmatpush1.msra.mxu0 %v3694
  %4070 = vmatprep.subr.mxu0 %v3699
  %4071 = vmatpush1.msra.mxu0 %v3698
  %4072 = vmatprep.subr.mxu0 %v3703
  %4073 = vmatpush1.msra.mxu0 %v3702
  %4074 = vmatprep.subr.mxu0 0.0
  %4075 = vmatpush1.msra.mxu0 0.0
  %4076 = vmatprep.subr.mxu0 0.0
  %4077 = vmatpush1.msra.mxu0 0.0
  %4078 = vmatprep.subr.mxu0 0.0
  %4079 = vmatpush1.msra.mxu0 0.0
  %4080 = vmatprep.subr.mxu0 0.0
  %4081 = vmatpush1.msra.mxu0 0.0
  %4082 = vmatprep.subr.mxu0 0.0
  %4083 = vmatpush1.msra.mxu0 0.0
  %4084 = vmatprep.subr.mxu0 0.0
  %4085 = vmatpush1.msra.mxu0 0.0
  %4086 = vmatprep.subr.mxu0 0.0
  %4087 = vmatpush1.msra.mxu0 0.0
  %4088 = vmatprep.subr.mxu0 0.0
  %4089 = vmatpush1.msra.mxu0 0.0
  %4090 = vmatprep.subr.mxu0 0.0
  %4091 = vmatpush1.msra.mxu0 0.0
  %4092 = vmatprep.subr.mxu0 0.0
  %4093 = vmatpush1.msra.mxu0 0.0
  %4094 = vmatprep.subr.mxu0 0.0
  %4095 = vmatpush1.msra.mxu0 0.0
  %4096 = vmatprep.subr.mxu0 0.0
  %4097 = vmatpush1.msra.mxu0 0.0
  %4098 = vmatprep.subr.mxu0 0.0
  %4099 = vmatpush1.msra.mxu0 0.0
  %4100 = vmatprep.subr.mxu0 0.0
  %4101 = vmatpush1.msra.mxu0 0.0
  %4102 = vmatprep.subr.mxu0 0.0
  %4103 = vmatpush1.msra.mxu0 0.0
  %4104 = vmatprep.subr.mxu0 0.0
  %4105 = vmatpush1.msra.mxu0 0.0
  %4106 = vmatprep.mubr.f32.mxu0 0.0
  %4107 = vmatmul.mubr.f32.gmra.mrb[0].mxu0 %v4036
  %v4108 = vpop.f32.mrb[0].mxu0
  %v4109 = vadd.f32 0.0, %v4108
  %v4110 = vpop.f32.mrb[0].mxu0
  %v4111 = vadd.f32 0.0, %v4110
  %4112 = vdwg.mxu0
  %4113 = vmatprep.subr.mxu0 %v3645
  %4114 = vmatpush1.msra.mxu0 %v3644
  %4115 = vmatprep.subr.mxu0 %v3649
  %4116 = vmatpush1.msra.mxu0 %v3648
  %4117 = vmatprep.subr.mxu0 %v3653
  %4118 = vmatpush1.msra.mxu0 %v3652
  %4119 = vmatprep.subr.mxu0 %v3657
  %4120 = vmatpush1.msra.mxu0 %v3656
  %4121 = vmatprep.subr.mxu0 %v3661
  %4122 = vmatpush1.msra.mxu0 %v3660
  %4123 = vmatprep.subr.mxu0 %v3665
  %4124 = vmatpush1.msra.mxu0 %v3664
  %4125 = vmatprep.subr.mxu0 %v3669
  %4126 = vmatpush1.msra.mxu0 %v3668
  %4127 = vmatprep.subr.mxu0 %v3673
  %4128 = vmatpush1.msra.mxu0 %v3672
  %4129 = vmatprep.subr.mxu0 %v3677
  %4130 = vmatpush1.msra.mxu0 %v3676
  %4131 = vmatprep.subr.mxu0 %v3681
  %4132 = vmatpush1.msra.mxu0 %v3680
  %4133 = vmatprep.subr.mxu0 %v3685
  %4134 = vmatpush1.msra.mxu0 %v3684
  %4135 = vmatprep.subr.mxu0 %v3689
  %4136 = vmatpush1.msra.mxu0 %v3688
  %4137 = vmatprep.subr.mxu0 %v3693
  %4138 = vmatpush1.msra.mxu0 %v3692
  %4139 = vmatprep.subr.mxu0 %v3697
  %4140 = vmatpush1.msra.mxu0 %v3696
  %4141 = vmatprep.subr.mxu0 %v3701
  %4142 = vmatpush1.msra.mxu0 %v3700
  %4143 = vmatprep.subr.mxu0 %v3705
  %4144 = vmatpush1.msra.mxu0 %v3704
  %4145 = vmatprep.subr.mxu0 0.0
  %4146 = vmatpush1.msra.mxu0 0.0
  %4147 = vmatprep.subr.mxu0 0.0
  %4148 = vmatpush1.msra.mxu0 0.0
  %4149 = vmatprep.subr.mxu0 0.0
  %4150 = vmatpush1.msra.mxu0 0.0
  %4151 = vmatprep.subr.mxu0 0.0
  %4152 = vmatpush1.msra.mxu0 0.0
  %4153 = vmatprep.subr.mxu0 0.0
  %4154 = vmatpush1.msra.mxu0 0.0
  %4155 = vmatprep.subr.mxu0 0.0
  %4156 = vmatpush1.msra.mxu0 0.0
  %4157 = vmatprep.subr.mxu0 0.0
  %4158 = vmatpush1.msra.mxu0 0.0
  %4159 = vmatprep.subr.mxu0 0.0
  %4160 = vmatpush1.msra.mxu0 0.0
  %4161 = vmatprep.subr.mxu0 0.0
  %4162 = vmatpush1.msra.mxu0 0.0
  %4163 = vmatprep.subr.mxu0 0.0
  %4164 = vmatpush1.msra.mxu0 0.0
  %4165 = vmatprep.subr.mxu0 0.0
  %4166 = vmatpush1.msra.mxu0 0.0
  %4167 = vmatprep.subr.mxu0 0.0
  %4168 = vmatpush1.msra.mxu0 0.0
  %4169 = vmatprep.subr.mxu0 0.0
  %4170 = vmatpush1.msra.mxu0 0.0
  %4171 = vmatprep.subr.mxu0 0.0
  %4172 = vmatpush1.msra.mxu0 0.0
  %4173 = vmatprep.subr.mxu0 0.0
  %4174 = vmatpush1.msra.mxu0 0.0
  %4175 = vmatprep.subr.mxu0 0.0
  %4176 = vmatpush1.msra.mxu0 0.0
  %4177 = vmatprep.mubr.f32.mxu0 0.0
  %4178 = vmatmul.mubr.f32.gmra.mrb[0].mxu0 %v4036
  %v4179 = vpop.f32.mrb[0].mxu0
  %v4180 = vadd.f32 0.0, %v4179
  %v4181 = vpop.f32.mrb[0].mxu0
  %v4182 = vadd.f32 0.0, %v4181
  %4183 = vdwg.mxu0
  %v4184 = vadd.f32 %v4038, %v4109
  %v4185 = vadd.f32 %v4039, %v4111
  %v4186 = vadd.f32 %v4040, %v4180
  %v4187 = vadd.f32 %v4041, %v4182
  %v4188 = vtanh.pop %v4184
  %v4189 = vmul.f32 %v4188, 0.5
  %v4190 = vadd.f32 %v4189, 0.5
  %v4191 = vtanh.pop %v4185
  %v4192 = vmul.f32 %v4191, 0.5
  %v4193 = vadd.f32 %v4192, 0.5
  %v4194 = vtanh.pop %v4186
  %v4195 = vtanh.pop %v4187
  %v4196 = vmul.f32 %v4195, 0.5
  %v4197 = vadd.f32 %v4196, 0.5
  %v4198 = vmul.f32 %v4193, %v4034
  %v4199 = vmul.f32 %v4190, %v4194
  %v4200 = vadd.f32 %v4198, %v4199
  %v4201 = vtanh.pop %v4200
  %v4202 = vmul.f32 %v4197, %v4201
  %s4203 = scalar_lea.vmem [#allocation3], 96
  %v4204 = vld [vmem:[%s4203] sm:$0xff]
  %v4205 = vld [vmem:[%s4203 + $0x8] sm:$0xff]
  %v4206 = vld [vmem:[%s4203 + $0x10] sm:$0xff]
  %v4207 = vld [vmem:[%s4203 + $0x18] sm:$0xff]
  %4208 = vmatprep.subr.mxu0 %v3643
  %4209 = vmatpush1.msra.mxu0 %v3642
  %4210 = vmatprep.subr.mxu0 %v3647
  %4211 = vmatpush1.msra.mxu0 %v3646
  %4212 = vmatprep.subr.mxu0 %v3651
  %4213 = vmatpush1.msra.mxu0 %v3650
  %4214 = vmatprep.subr.mxu0 %v3655
  %4215 = vmatpush1.msra.mxu0 %v3654
  %4216 = vmatprep.subr.mxu0 %v3659
  %4217 = vmatpush1.msra.mxu0 %v3658
  %4218 = vmatprep.subr.mxu0 %v3663
  %4219 = vmatpush1.msra.mxu0 %v3662
  %4220 = vmatprep.subr.mxu0 %v3667
  %4221 = vmatpush1.msra.mxu0 %v3666
  %4222 = vmatprep.subr.mxu0 %v3671
  %4223 = vmatpush1.msra.mxu0 %v3670
  %4224 = vmatprep.subr.mxu0 %v3675
  %4225 = vmatpush1.msra.mxu0 %v3674
  %4226 = vmatprep.subr.mxu0 %v3679
  %4227 = vmatpush1.msra.mxu0 %v3678
  %4228 = vmatprep.subr.mxu0 %v3683
  %4229 = vmatpush1.msra.mxu0 %v3682
  %4230 = vmatprep.subr.mxu0 %v3687
  %4231 = vmatpush1.msra.mxu0 %v3686
  %4232 = vmatprep.subr.mxu0 %v3691
  %4233 = vmatpush1.msra.mxu0 %v3690
  %4234 = vmatprep.subr.mxu0 %v3695
  %4235 = vmatpush1.msra.mxu0 %v3694
  %4236 = vmatprep.subr.mxu0 %v3699
  %4237 = vmatpush1.msra.mxu0 %v3698
  %4238 = vmatprep.subr.mxu0 %v3703
  %4239 = vmatpush1.msra.mxu0 %v3702
  %4240 = vmatprep.subr.mxu0 0.0
  %4241 = vmatpush1.msra.mxu0 0.0
  %4242 = vmatprep.subr.mxu0 0.0
  %4243 = vmatpush1.msra.mxu0 0.0
  %4244 = vmatprep.subr.mxu0 0.0
  %4245 = vmatpush1.msra.mxu0 0.0
  %4246 = vmatprep.subr.mxu0 0.0
  %4247 = vmatpush1.msra.mxu0 0.0
  %4248 = vmatprep.subr.mxu0 0.0
  %4249 = vmatpush1.msra.mxu0 0.0
  %4250 = vmatprep.subr.mxu0 0.0
  %4251 = vmatpush1.msra.mxu0 0.0
  %4252 = vmatprep.subr.mxu0 0.0
  %4253 = vmatpush1.msra.mxu0 0.0
  %4254 = vmatprep.subr.mxu0 0.0
  %4255 = vmatpush1.msra.mxu0 0.0
  %4256 = vmatprep.subr.mxu0 0.0
  %4257 = vmatpush1.msra.mxu0 0.0
  %4258 = vmatprep.subr.mxu0 0.0
  %4259 = vmatpush1.msra.mxu0 0.0
  %4260 = vmatprep.subr.mxu0 0.0
  %4261 = vmatpush1.msra.mxu0 0.0
  %4262 = vmatprep.subr.mxu0 0.0
  %4263 = vmatpush1.msra.mxu0 0.0
  %4264 = vmatprep.subr.mxu0 0.0
  %4265 = vmatpush1.msra.mxu0 0.0
  %4266 = vmatprep.subr.mxu0 0.0
  %4267 = vmatpush1.msra.mxu0 0.0
  %4268 = vmatprep.subr.mxu0 0.0
  %4269 = vmatpush1.msra.mxu0 0.0
  %4270 = vmatprep.subr.mxu0 0.0
  %4271 = vmatpush1.msra.mxu0 0.0
  %4272 = vmatprep.mubr.f32.mxu0 0.0
  %4273 = vmatmul.mubr.f32.gmra.mrb[0].mxu0 %v4202
  %v4274 = vpop.f32.mrb[0].mxu0
  %v4275 = vadd.f32 0.0, %v4274
  %v4276 = vpop.f32.mrb[0].mxu0
  %v4277 = vadd.f32 0.0, %v4276
  %4278 = vdwg.mxu0
  %4279 = vmatprep.subr.mxu0 %v3645
  %4280 = vmatpush1.msra.mxu0 %v3644
  %4281 = vmatprep.subr.mxu0 %v3649
  %4282 = vmatpush1.msra.mxu0 %v3648
  %4283 = vmatprep.subr.mxu0 %v3653
  %4284 = vmatpush1.msra.mxu0 %v3652
  %4285 = vmatprep.subr.mxu0 %v3657
  %4286 = vmatpush1.msra.mxu0 %v3656
  %4287 = vmatprep.subr.mxu0 %v3661
  %4288 = vmatpush1.msra.mxu0 %v3660
  %4289 = vmatprep.subr.mxu0 %v3665
  %4290 = vmatpush1.msra.mxu0 %v3664
  %4291 = vmatprep.subr.mxu0 %v3669
  %4292 = vmatpush1.msra.mxu0 %v3668
  %4293 = vmatprep.subr.mxu0 %v3673
  %4294 = vmatpush1.msra.mxu0 %v3672
  %4295 = vmatprep.subr.mxu0 %v3677
  %4296 = vmatpush1.msra.mxu0 %v3676
  %4297 = vmatprep.subr.mxu0 %v3681
  %4298 = vmatpush1.msra.mxu0 %v3680
  %4299 = vmatprep.subr.mxu0 %v3685
  %4300 = vmatpush1.msra.mxu0 %v3684
  %4301 = vmatprep.subr.mxu0 %v3689
  %4302 = vmatpush1.msra.mxu0 %v3688
  %4303 = vmatprep.subr.mxu0 %v3693
  %4304 = vmatpush1.msra.mxu0 %v3692
  %4305 = vmatprep.subr.mxu0 %v3697
  %4306 = vmatpush1.msra.mxu0 %v3696
  %4307 = vmatprep.subr.mxu0 %v3701
  %4308 = vmatpush1.msra.mxu0 %v3700
  %4309 = vmatprep.subr.mxu0 %v3705
  %4310 = vmatpush1.msra.mxu0 %v3704
  %4311 = vmatprep.subr.mxu0 0.0
  %4312 = vmatpush1.msra.mxu0 0.0
  %4313 = vmatprep.subr.mxu0 0.0
  %4314 = vmatpush1.msra.mxu0 0.0
  %4315 = vmatprep.subr.mxu0 0.0
  %4316 = vmatpush1.msra.mxu0 0.0
  %4317 = vmatprep.subr.mxu0 0.0
  %4318 = vmatpush1.msra.mxu0 0.0
  %4319 = vmatprep.subr.mxu0 0.0
  %4320 = vmatpush1.msra.mxu0 0.0
  %4321 = vmatprep.subr.mxu0 0.0
  %4322 = vmatpush1.msra.mxu0 0.0
  %4323 = vmatprep.subr.mxu0 0.0
  %4324 = vmatpush1.msra.mxu0 0.0
  %4325 = vmatprep.subr.mxu0 0.0
  %4326 = vmatpush1.msra.mxu0 0.0
  %4327 = vmatprep.subr.mxu0 0.0
  %4328 = vmatpush1.msra.mxu0 0.0
  %4329 = vmatprep.subr.mxu0 0.0
  %4330 = vmatpush1.msra.mxu0 0.0
  %4331 = vmatprep.subr.mxu0 0.0
  %4332 = vmatpush1.msra.mxu0 0.0
  %4333 = vmatprep.subr.mxu0 0.0
  %4334 = vmatpush1.msra.mxu0 0.0
  %4335 = vmatprep.subr.mxu0 0.0
  %4336 = vmatpush1.msra.mxu0 0.0
  %4337 = vmatprep.subr.mxu0 0.0
  %4338 = vmatpush1.msra.mxu0 0.0
  %4339 = vmatprep.subr.mxu0 0.0
  %4340 = vmatpush1.msra.mxu0 0.0
  %4341 = vmatprep.subr.mxu0 0.0
  %4342 = vmatpush1.msra.mxu0 0.0
  %4343 = vmatprep.mubr.f32.mxu0 0.0
  %4344 = vmatmul.mubr.f32.gmra.mrb[0].mxu0 %v4202
  %v4345 = vpop.f32.mrb[0].mxu0
  %v4346 = vadd.f32 0.0, %v4345
  %v4347 = vpop.f32.mrb[0].mxu0
  %v4348 = vadd.f32 0.0, %v4347
  %4349 = vdwg.mxu0
  %v4350 = vadd.f32 %v4204, %v4275
  %v4351 = vadd.f32 %v4205, %v4277
  %v4352 = vadd.f32 %v4206, %v4346
  %v4353 = vadd.f32 %v4207, %v4348
  %v4354 = vtanh.pop %v4350
  %v4355 = vmul.f32 %v4354, 0.5
  %v4356 = vadd.f32 %v4355, 0.5
  %v4357 = vtanh.pop %v4351
  %v4358 = vmul.f32 %v4357, 0.5
  %v4359 = vadd.f32 %v4358, 0.5
  %v4360 = vtanh.pop %v4352
  %v4361 = vtanh.pop %v4353
  %v4362 = vmul.f32 %v4361, 0.5
  %v4363 = vadd.f32 %v4362, 0.5
  %v4364 = vmul.f32 %v4359, %v4200
  %v4365 = vmul.f32 %v4356, %v4360
  %v4366 = vadd.f32 %v4364, %v4365
  %v4367 = vtanh.pop %v4366
  %v4368 = vmul.f32 %v4363, %v4367
  %s4369 = scalar_lea.vmem [#allocation3], 128
  %v4370 = vld [vmem:[%s4369] sm:$0xff]
  %v4371 = vld [vmem:[%s4369 + $0x8] sm:$0xff]
  %v4372 = vld [vmem:[%s4369 + $0x10] sm:$0xff]
  %v4373 = vld [vmem:[%s4369 + $0x18] sm:$0xff]
  %4374 = vmatprep.subr.mxu0 %v3643
  %4375 = vmatpush1.msra.mxu0 %v3642
  %4376 = vmatprep.subr.mxu0 %v3647
  %4377 = vmatpush1.msra.mxu0 %v3646
  %4378 = vmatprep.subr.mxu0 %v3651
  %4379 = vmatpush1.msra.mxu0 %v3650
  %4380 = vmatprep.subr.mxu0 %v3655
  %4381 = vmatpush1.msra.mxu0 %v3654
  %4382 = vmatprep.subr.mxu0 %v3659
  %4383 = vmatpush1.msra.mxu0 %v3658
  %4384 = vmatprep.subr.mxu0 %v3663
  %4385 = vmatpush1.msra.mxu0 %v3662
  %4386 = vmatprep.subr.mxu0 %v3667
  %4387 = vmatpush1.msra.mxu0 %v3666
  %4388 = vmatprep.subr.mxu0 %v3671
  %4389 = vmatpush1.msra.mxu0 %v3670
  %4390 = vmatprep.subr.mxu0 %v3675
  %4391 = vmatpush1.msra.mxu0 %v3674
  %4392 = vmatprep.subr.mxu0 %v3679
  %4393 = vmatpush1.msra.mxu0 %v3678
  %4394 = vmatprep.subr.mxu0 %v3683
  %4395 = vmatpush1.msra.mxu0 %v3682
  %4396 = vmatprep.subr.mxu0 %v3687
  %4397 = vmatpush1.msra.mxu0 %v3686
  %4398 = vmatprep.subr.mxu0 %v3691
  %4399 = vmatpush1.msra.mxu0 %v3690
  %4400 = vmatprep.subr.mxu0 %v3695
  %4401 = vmatpush1.msra.mxu0 %v3694
  %4402 = vmatprep.subr.mxu0 %v3699
  %4403 = vmatpush1.msra.mxu0 %v3698
  %4404 = vmatprep.subr.mxu0 %v3703
  %4405 = vmatpush1.msra.mxu0 %v3702
  %4406 = vmatprep.subr.mxu0 0.0
  %4407 = vmatpush1.msra.mxu0 0.0
  %4408 = vmatprep.subr.mxu0 0.0
  %4409 = vmatpush1.msra.mxu0 0.0
  %4410 = vmatprep.subr.mxu0 0.0
  %4411 = vmatpush1.msra.mxu0 0.0
  %4412 = vmatprep.subr.mxu0 0.0
  %4413 = vmatpush1.msra.mxu0 0.0
  %4414 = vmatprep.subr.mxu0 0.0
  %4415 = vmatpush1.msra.mxu0 0.0
  %4416 = vmatprep.subr.mxu0 0.0
  %4417 = vmatpush1.msra.mxu0 0.0
  %4418 = vmatprep.subr.mxu0 0.0
  %4419 = vmatpush1.msra.mxu0 0.0
  %4420 = vmatprep.subr.mxu0 0.0
  %4421 = vmatpush1.msra.mxu0 0.0
  %4422 = vmatprep.subr.mxu0 0.0
  %4423 = vmatpush1.msra.mxu0 0.0
  %4424 = vmatprep.subr.mxu0 0.0
  %4425 = vmatpush1.msra.mxu0 0.0
  %4426 = vmatprep.subr.mxu0 0.0
  %4427 = vmatpush1.msra.mxu0 0.0
  %4428 = vmatprep.subr.mxu0 0.0
  %4429 = vmatpush1.msra.mxu0 0.0
  %4430 = vmatprep.subr.mxu0 0.0
  %4431 = vmatpush1.msra.mxu0 0.0
  %4432 = vmatprep.subr.mxu0 0.0
  %4433 = vmatpush1.msra.mxu0 0.0
  %4434 = vmatprep.subr.mxu0 0.0
  %4435 = vmatpush1.msra.mxu0 0.0
  %4436 = vmatprep.subr.mxu0 0.0
  %4437 = vmatpush1.msra.mxu0 0.0
  %4438 = vmatprep.mubr.f32.mxu0 0.0
  %4439 = vmatmul.mubr.f32.gmra.mrb[0].mxu0 %v4368
  %v4440 = vpop.f32.mrb[0].mxu0
  %v4441 = vadd.f32 0.0, %v4440
  %v4442 = vpop.f32.mrb[0].mxu0
  %v4443 = vadd.f32 0.0, %v4442
  %4444 = vdwg.mxu0
  %4445 = vmatprep.subr.mxu0 %v3645
  %4446 = vmatpush1.msra.mxu0 %v3644
  %4447 = vmatprep.subr.mxu0 %v3649
  %4448 = vmatpush1.msra.mxu0 %v3648
  %4449 = vmatprep.subr.mxu0 %v3653
  %4450 = vmatpush1.msra.mxu0 %v3652
  %4451 = vmatprep.subr.mxu0 %v3657
  %4452 = vmatpush1.msra.mxu0 %v3656
  %4453 = vmatprep.subr.mxu0 %v3661
  %4454 = vmatpush1.msra.mxu0 %v3660
  %4455 = vmatprep.subr.mxu0 %v3665
  %4456 = vmatpush1.msra.mxu0 %v3664
  %4457 = vmatprep.subr.mxu0 %v3669
  %4458 = vmatpush1.msra.mxu0 %v3668
  %4459 = vmatprep.subr.mxu0 %v3673
  %4460 = vmatpush1.msra.mxu0 %v3672
  %4461 = vmatprep.subr.mxu0 %v3677
  %4462 = vmatpush1.msra.mxu0 %v3676
  %4463 = vmatprep.subr.mxu0 %v3681
  %4464 = vmatpush1.msra.mxu0 %v3680
  %4465 = vmatprep.subr.mxu0 %v3685
  %4466 = vmatpush1.msra.mxu0 %v3684
  %4467 = vmatprep.subr.mxu0 %v3689
  %4468 = vmatpush1.msra.mxu0 %v3688
  %4469 = vmatprep.subr.mxu0 %v3693
  %4470 = vmatpush1.msra.mxu0 %v3692
  %4471 = vmatprep.subr.mxu0 %v3697
  %4472 = vmatpush1.msra.mxu0 %v3696
  %4473 = vmatprep.subr.mxu0 %v3701
  %4474 = vmatpush1.msra.mxu0 %v3700
  %4475 = vmatprep.subr.mxu0 %v3705
  %4476 = vmatpush1.msra.mxu0 %v3704
  %4477 = vmatprep.subr.mxu0 0.0
  %4478 = vmatpush1.msra.mxu0 0.0
  %4479 = vmatprep.subr.mxu0 0.0
  %4480 = vmatpush1.msra.mxu0 0.0
  %4481 = vmatprep.subr.mxu0 0.0
  %4482 = vmatpush1.msra.mxu0 0.0
  %4483 = vmatprep.subr.mxu0 0.0
  %4484 = vmatpush1.msra.mxu0 0.0
  %4485 = vmatprep.subr.mxu0 0.0
  %4486 = vmatpush1.msra.mxu0 0.0
  %4487 = vmatprep.subr.mxu0 0.0
  %4488 = vmatpush1.msra.mxu0 0.0
  %4489 = vmatprep.subr.mxu0 0.0
  %4490 = vmatpush1.msra.mxu0 0.0
  %4491 = vmatprep.subr.mxu0 0.0
  %4492 = vmatpush1.msra.mxu0 0.0
  %4493 = vmatprep.subr.mxu0 0.0
  %4494 = vmatpush1.msra.mxu0 0.0
  %4495 = vmatprep.subr.mxu0 0.0
  %4496 = vmatpush1.msra.mxu0 0.0
  %4497 = vmatprep.subr.mxu0 0.0
  %4498 = vmatpush1.msra.mxu0 0.0
  %4499 = vmatprep.subr.mxu0 0.0
  %4500 = vmatpush1.msra.mxu0 0.0
  %4501 = vmatprep.subr.mxu0 0.0
  %4502 = vmatpush1.msra.mxu0 0.0
  %4503 = vmatprep.subr.mxu0 0.0
  %4504 = vmatpush1.msra.mxu0 0.0
  %4505 = vmatprep.subr.mxu0 0.0
  %4506 = vmatpush1.msra.mxu0 0.0
  %4507 = vmatprep.subr.mxu0 0.0
  %4508 = vmatpush1.msra.mxu0 0.0
  %4509 = vmatprep.mubr.f32.mxu0 0.0
  %4510 = vmatmul.mubr.f32.gmra.mrb[0].mxu0 %v4368
  %v4511 = vpop.f32.mrb[0].mxu0
  %v4512 = vadd.f32 0.0, %v4511
  %v4513 = vpop.f32.mrb[0].mxu0
  %v4514 = vadd.f32 0.0, %v4513
  %4515 = vdwg.mxu0
  %v4516 = vadd.f32 %v4370, %v4441
  %v4517 = vadd.f32 %v4371, %v4443
  %v4518 = vadd.f32 %v4372, %v4512
  %v4519 = vadd.f32 %v4373, %v4514
  %v4520 = vtanh.pop %v4516
  %v4521 = vmul.f32 %v4520, 0.5
  %v4522 = vadd.f32 %v4521, 0.5
  %v4523 = vtanh.pop %v4517
  %v4524 = vmul.f32 %v4523, 0.5
  %v4525 = vadd.f32 %v4524, 0.5
  %v4526 = vtanh.pop %v4518
  %v4527 = vtanh.pop %v4519
  %v4528 = vmul.f32 %v4527, 0.5
  %v4529 = vadd.f32 %v4528, 0.5
  %v4530 = vmul.f32 %v4525, %v4366
  %v4531 = vmul.f32 %v4522, %v4526
  %v4532 = vadd.f32 %v4530, %v4531
  %v4533 = vtanh.pop %v4532
  %v4534 = vmul.f32 %v4529, %v4533
  %s4535 = scalar_lea.vmem [#allocation3], 160
  %v4536 = vld [vmem:[%s4535] sm:$0xff]
  %v4537 = vld [vmem:[%s4535 + $0x8] sm:$0xff]
  %v4538 = vld [vmem:[%s4535 + $0x10] sm:$0xff]
  %v4539 = vld [vmem:[%s4535 + $0x18] sm:$0xff]
  %4540 = vmatprep.subr.mxu0 %v3643
  %4541 = vmatpush1.msra.mxu0 %v3642
  %4542 = vmatprep.subr.mxu0 %v3647
  %4543 = vmatpush1.msra.mxu0 %v3646
  %4544 = vmatprep.subr.mxu0 %v3651
  %4545 = vmatpush1.msra.mxu0 %v3650
  %4546 = vmatprep.subr.mxu0 %v3655
  %4547 = vmatpush1.msra.mxu0 %v3654
  %4548 = vmatprep.subr.mxu0 %v3659
  %4549 = vmatpush1.msra.mxu0 %v3658
  %4550 = vmatprep.subr.mxu0 %v3663
  %4551 = vmatpush1.msra.mxu0 %v3662
  %4552 = vmatprep.subr.mxu0 %v3667
  %4553 = vmatpush1.msra.mxu0 %v3666
  %4554 = vmatprep.subr.mxu0 %v3671
  %4555 = vmatpush1.msra.mxu0 %v3670
  %4556 = vmatprep.subr.mxu0 %v3675
  %4557 = vmatpush1.msra.mxu0 %v3674
  %4558 = vmatprep.subr.mxu0 %v3679
  %4559 = vmatpush1.msra.mxu0 %v3678
  %4560 = vmatprep.subr.mxu0 %v3683
  %4561 = vmatpush1.msra.mxu0 %v3682
  %4562 = vmatprep.subr.mxu0 %v3687
  %4563 = vmatpush1.msra.mxu0 %v3686
  %4564 = vmatprep.subr.mxu0 %v3691
  %4565 = vmatpush1.msra.mxu0 %v3690
  %4566 = vmatprep.subr.mxu0 %v3695
  %4567 = vmatpush1.msra.mxu0 %v3694
  %4568 = vmatprep.subr.mxu0 %v3699
  %4569 = vmatpush1.msra.mxu0 %v3698
  %4570 = vmatprep.subr.mxu0 %v3703
  %4571 = vmatpush1.msra.mxu0 %v3702
  %4572 = vmatprep.subr.mxu0 0.0
  %4573 = vmatpush1.msra.mxu0 0.0
  %4574 = vmatprep.subr.mxu0 0.0
  %4575 = vmatpush1.msra.mxu0 0.0
  %4576 = vmatprep.subr.mxu0 0.0
  %4577 = vmatpush1.msra.mxu0 0.0
  %4578 = vmatprep.subr.mxu0 0.0
  %4579 = vmatpush1.msra.mxu0 0.0
  %4580 = vmatprep.subr.mxu0 0.0
  %4581 = vmatpush1.msra.mxu0 0.0
  %4582 = vmatprep.subr.mxu0 0.0
  %4583 = vmatpush1.msra.mxu0 0.0
  %4584 = vmatprep.subr.mxu0 0.0
  %4585 = vmatpush1.msra.mxu0 0.0
  %4586 = vmatprep.subr.mxu0 0.0
  %4587 = vmatpush1.msra.mxu0 0.0
  %4588 = vmatprep.subr.mxu0 0.0
  %4589 = vmatpush1.msra.mxu0 0.0
  %4590 = vmatprep.subr.mxu0 0.0
  %4591 = vmatpush1.msra.mxu0 0.0
  %4592 = vmatprep.subr.mxu0 0.0
  %4593 = vmatpush1.msra.mxu0 0.0
  %4594 = vmatprep.subr.mxu0 0.0
  %4595 = vmatpush1.msra.mxu0 0.0
  %4596 = vmatprep.subr.mxu0 0.0
  %4597 = vmatpush1.msra.mxu0 0.0
  %4598 = vmatprep.subr.mxu0 0.0
  %4599 = vmatpush1.msra.mxu0 0.0
  %4600 = vmatprep.subr.mxu0 0.0
  %4601 = vmatpush1.msra.mxu0 0.0
  %4602 = vmatprep.subr.mxu0 0.0
  %4603 = vmatpush1.msra.mxu0 0.0
  %4604 = vmatprep.mubr.f32.mxu0 0.0
  %4605 = vmatmul.mubr.f32.gmra.mrb[0].mxu0 %v4534
  %v4606 = vpop.f32.mrb[0].mxu0
  %v4607 = vadd.f32 0.0, %v4606
  %v4608 = vpop.f32.mrb[0].mxu0
  %v4609 = vadd.f32 0.0, %v4608
  %4610 = vdwg.mxu0
  %4611 = vmatprep.subr.mxu0 %v3645
  %4612 = vmatpush1.msra.mxu0 %v3644
  %4613 = vmatprep.subr.mxu0 %v3649
  %4614 = vmatpush1.msra.mxu0 %v3648
  %4615 = vmatprep.subr.mxu0 %v3653
  %4616 = vmatpush1.msra.mxu0 %v3652
  %4617 = vmatprep.subr.mxu0 %v3657
  %4618 = vmatpush1.msra.mxu0 %v3656
  %4619 = vmatprep.subr.mxu0 %v3661
  %4620 = vmatpush1.msra.mxu0 %v3660
  %4621 = vmatprep.subr.mxu0 %v3665
  %4622 = vmatpush1.msra.mxu0 %v3664
  %4623 = vmatprep.subr.mxu0 %v3669
  %4624 = vmatpush1.msra.mxu0 %v3668
  %4625 = vmatprep.subr.mxu0 %v3673
  %4626 = vmatpush1.msra.mxu0 %v3672
  %4627 = vmatprep.subr.mxu0 %v3677
  %4628 = vmatpush1.msra.mxu0 %v3676
  %4629 = vmatprep.subr.mxu0 %v3681
  %4630 = vmatpush1.msra.mxu0 %v3680
  %4631 = vmatprep.subr.mxu0 %v3685
  %4632 = vmatpush1.msra.mxu0 %v3684
  %4633 = vmatprep.subr.mxu0 %v3689
  %4634 = vmatpush1.msra.mxu0 %v3688
  %4635 = vmatprep.subr.mxu0 %v3693
  %4636 = vmatpush1.msra.mxu0 %v3692
  %4637 = vmatprep.subr.mxu0 %v3697
  %4638 = vmatpush1.msra.mxu0 %v3696
  %4639 = vmatprep.subr.mxu0 %v3701
  %4640 = vmatpush1.msra.mxu0 %v3700
  %4641 = vmatprep.subr.mxu0 %v3705
  %4642 = vmatpush1.msra.mxu0 %v3704
  %4643 = vmatprep.subr.mxu0 0.0
  %4644 = vmatpush1.msra.mxu0 0.0
  %4645 = vmatprep.subr.mxu0 0.0
  %4646 = vmatpush1.msra.mxu0 0.0
  %4647 = vmatprep.subr.mxu0 0.0
  %4648 = vmatpush1.msra.mxu0 0.0
  %4649 = vmatprep.subr.mxu0 0.0
  %4650 = vmatpush1.msra.mxu0 0.0
  %4651 = vmatprep.subr.mxu0 0.0
  %4652 = vmatpush1.msra.mxu0 0.0
  %4653 = vmatprep.subr.mxu0 0.0
  %4654 = vmatpush1.msra.mxu0 0.0
  %4655 = vmatprep.subr.mxu0 0.0
  %4656 = vmatpush1.msra.mxu0 0.0
  %4657 = vmatprep.subr.mxu0 0.0
  %4658 = vmatpush1.msra.mxu0 0.0
  %4659 = vmatprep.subr.mxu0 0.0
  %4660 = vmatpush1.msra.mxu0 0.0
  %4661 = vmatprep.subr.mxu0 0.0
  %4662 = vmatpush1.msra.mxu0 0.0
  %4663 = vmatprep.subr.mxu0 0.0
  %4664 = vmatpush1.msra.mxu0 0.0
  %4665 = vmatprep.subr.mxu0 0.0
  %4666 = vmatpush1.msra.mxu0 0.0
  %4667 = vmatprep.subr.mxu0 0.0
  %4668 = vmatpush1.msra.mxu0 0.0
  %4669 = vmatprep.subr.mxu0 0.0
  %4670 = vmatpush1.msra.mxu0 0.0
  %4671 = vmatprep.subr.mxu0 0.0
  %4672 = vmatpush1.msra.mxu0 0.0
  %4673 = vmatprep.subr.mxu0 0.0
  %4674 = vmatpush1.msra.mxu0 0.0
  %4675 = vmatprep.mubr.f32.mxu0 0.0
  %4676 = vmatmul.mubr.f32.gmra.mrb[0].mxu0 %v4534
  %v4677 = vpop.f32.mrb[0].mxu0
  %v4678 = vadd.f32 0.0, %v4677
  %v4679 = vpop.f32.mrb[0].mxu0
  %v4680 = vadd.f32 0.0, %v4679
  %4681 = vdwg.mxu0
  %v4682 = vadd.f32 %v4536, %v4607
  %v4683 = vadd.f32 %v4537, %v4609
  %v4684 = vadd.f32 %v4538, %v4678
  %v4685 = vadd.f32 %v4539, %v4680
  %v4686 = vtanh.pop %v4682
  %v4687 = vmul.f32 %v4686, 0.5
  %v4688 = vadd.f32 %v4687, 0.5
  %v4689 = vtanh.pop %v4683
  %v4690 = vmul.f32 %v4689, 0.5
  %v4691 = vadd.f32 %v4690, 0.5
  %v4692 = vtanh.pop %v4684
  %v4693 = vtanh.pop %v4685
  %v4694 = vmul.f32 %v4693, 0.5
  %v4695 = vadd.f32 %v4694, 0.5
  %v4696 = vmul.f32 %v4691, %v4532
  %v4697 = vmul.f32 %v4688, %v4692
  %v4698 = vadd.f32 %v4696, %v4697
  %v4699 = vtanh.pop %v4698
  %v4700 = vmul.f32 %v4695, %v4699
  %s4701 = scalar_lea.vmem [#allocation3], 192
  %v4702 = vld [vmem:[%s4701] sm:$0xff]
  %v4703 = vld [vmem:[%s4701 + $0x8] sm:$0xff]
  %v4704 = vld [vmem:[%s4701 + $0x10] sm:$0xff]
  %v4705 = vld [vmem:[%s4701 + $0x18] sm:$0xff]
  %4706 = vmatprep.subr.mxu0 %v3643
  %4707 = vmatpush1.msra.mxu0 %v3642
  %4708 = vmatprep.subr.mxu0 %v3647
  %4709 = vmatpush1.msra.mxu0 %v3646
  %4710 = vmatprep.subr.mxu0 %v3651
  %4711 = vmatpush1.msra.mxu0 %v3650
  %4712 = vmatprep.subr.mxu0 %v3655
  %4713 = vmatpush1.msra.mxu0 %v3654
  %4714 = vmatprep.subr.mxu0 %v3659
  %4715 = vmatpush1.msra.mxu0 %v3658
  %4716 = vmatprep.subr.mxu0 %v3663
  %4717 = vmatpush1.msra.mxu0 %v3662
  %4718 = vmatprep.subr.mxu0 %v3667
  %4719 = vmatpush1.msra.mxu0 %v3666
  %4720 = vmatprep.subr.mxu0 %v3671
  %4721 = vmatpush1.msra.mxu0 %v3670
  %4722 = vmatprep.subr.mxu0 %v3675
  %4723 = vmatpush1.msra.mxu0 %v3674
  %4724 = vmatprep.subr.mxu0 %v3679
  %4725 = vmatpush1.msra.mxu0 %v3678
  %4726 = vmatprep.subr.mxu0 %v3683
  %4727 = vmatpush1.msra.mxu0 %v3682
  %4728 = vmatprep.subr.mxu0 %v3687
  %4729 = vmatpush1.msra.mxu0 %v3686
  %4730 = vmatprep.subr.mxu0 %v3691
  %4731 = vmatpush1.msra.mxu0 %v3690
  %4732 = vmatprep.subr.mxu0 %v3695
  %4733 = vmatpush1.msra.mxu0 %v3694
  %4734 = vmatprep.subr.mxu0 %v3699
  %4735 = vmatpush1.msra.mxu0 %v3698
  %4736 = vmatprep.subr.mxu0 %v3703
  %4737 = vmatpush1.msra.mxu0 %v3702
  %4738 = vmatprep.subr.mxu0 0.0
  %4739 = vmatpush1.msra.mxu0 0.0
  %4740 = vmatprep.subr.mxu0 0.0
  %4741 = vmatpush1.msra.mxu0 0.0
  %4742 = vmatprep.subr.mxu0 0.0
  %4743 = vmatpush1.msra.mxu0 0.0
  %4744 = vmatprep.subr.mxu0 0.0
  %4745 = vmatpush1.msra.mxu0 0.0
  %4746 = vmatprep.subr.mxu0 0.0
  %4747 = vmatpush1.msra.mxu0 0.0
  %4748 = vmatprep.subr.mxu0 0.0
  %4749 = vmatpush1.msra.mxu0 0.0
  %4750 = vmatprep.subr.mxu0 0.0
  %4751 = vmatpush1.msra.mxu0 0.0
  %4752 = vmatprep.subr.mxu0 0.0
  %4753 = vmatpush1.msra.mxu0 0.0
  %4754 = vmatprep.subr.mxu0 0.0
  %4755 = vmatpush1.msra.mxu0 0.0
  %4756 = vmatprep.subr.mxu0 0.0
  %4757 = vmatpush1.msra.mxu0 0.0
  %4758 = vmatprep.subr.mxu0 0.0
  %4759 = vmatpush1.msra.mxu0 0.0
  %4760 = vmatprep.subr.mxu0 0.0
  %4761 = vmatpush1.msra.mxu0 0.0
  %4762 = vmatprep.subr.mxu0 0.0
  %4763 = vmatpush1.msra.mxu0 0.0
  %4764 = vmatprep.subr.mxu0 0.0
  %4765 = vmatpush1.msra.mxu0 0.0
  %4766 = vmatprep.subr.mxu0 0.0
  %4767 = vmatpush1.msra.mxu0 0.0
  %4768 = vmatprep.subr.mxu0 0.0
  %4769 = vmatpush1.msra.mxu0 0.0
  %4770 = vmatprep.mubr.f32.mxu0 0.0
  %4771 = vmatmul.mubr.f32.gmra.mrb[0].mxu0 %v4700
  %v4772 = vpop.f32.mrb[0].mxu0
  %v4773 = vadd.f32 0.0, %v4772
  %v4774 = vpop.f32.mrb[0].mxu0
  %v4775 = vadd.f32 0.0, %v4774
  %4776 = vdwg.mxu0
  %4777 = vmatprep.subr.mxu0 %v3645
  %4778 = vmatpush1.msra.mxu0 %v3644
  %4779 = vmatprep.subr.mxu0 %v3649
  %4780 = vmatpush1.msra.mxu0 %v3648
  %4781 = vmatprep.subr.mxu0 %v3653
  %4782 = vmatpush1.msra.mxu0 %v3652
  %4783 = vmatprep.subr.mxu0 %v3657
  %4784 = vmatpush1.msra.mxu0 %v3656
  %4785 = vmatprep.subr.mxu0 %v3661
  %4786 = vmatpush1.msra.mxu0 %v3660
  %4787 = vmatprep.subr.mxu0 %v3665
  %4788 = vmatpush1.msra.mxu0 %v3664
  %4789 = vmatprep.subr.mxu0 %v3669
  %4790 = vmatpush1.msra.mxu0 %v3668
  %4791 = vmatprep.subr.mxu0 %v3673
  %4792 = vmatpush1.msra.mxu0 %v3672
  %4793 = vmatprep.subr.mxu0 %v3677
  %4794 = vmatpush1.msra.mxu0 %v3676
  %4795 = vmatprep.subr.mxu0 %v3681
  %4796 = vmatpush1.msra.mxu0 %v3680
  %4797 = vmatprep.subr.mxu0 %v3685
  %4798 = vmatpush1.msra.mxu0 %v3684
  %4799 = vmatprep.subr.mxu0 %v3689
  %4800 = vmatpush1.msra.mxu0 %v3688
  %4801 = vmatprep.subr.mxu0 %v3693
  %4802 = vmatpush1.msra.mxu0 %v3692
  %4803 = vmatprep.subr.mxu0 %v3697
  %4804 = vmatpush1.msra.mxu0 %v3696
  %4805 = vmatprep.subr.mxu0 %v3701
  %4806 = vmatpush1.msra.mxu0 %v3700
  %4807 = vmatprep.subr.mxu0 %v3705
  %4808 = vmatpush1.msra.mxu0 %v3704
  %4809 = vmatprep.subr.mxu0 0.0
  %4810 = vmatpush1.msra.mxu0 0.0
  %4811 = vmatprep.subr.mxu0 0.0
  %4812 = vmatpush1.msra.mxu0 0.0
  %4813 = vmatprep.subr.mxu0 0.0
  %4814 = vmatpush1.msra.mxu0 0.0
  %4815 = vmatprep.subr.mxu0 0.0
  %4816 = vmatpush1.msra.mxu0 0.0
  %4817 = vmatprep.subr.mxu0 0.0
  %4818 = vmatpush1.msra.mxu0 0.0
  %4819 = vmatprep.subr.mxu0 0.0
  %4820 = vmatpush1.msra.mxu0 0.0
  %4821 = vmatprep.subr.mxu0 0.0
  %4822 = vmatpush1.msra.mxu0 0.0
  %4823 = vmatprep.subr.mxu0 0.0
  %4824 = vmatpush1.msra.mxu0 0.0
  %4825 = vmatprep.subr.mxu0 0.0
  %4826 = vmatpush1.msra.mxu0 0.0
  %4827 = vmatprep.subr.mxu0 0.0
  %4828 = vmatpush1.msra.mxu0 0.0
  %4829 = vmatprep.subr.mxu0 0.0
  %4830 = vmatpush1.msra.mxu0 0.0
  %4831 = vmatprep.subr.mxu0 0.0
  %4832 = vmatpush1.msra.mxu0 0.0
  %4833 = vmatprep.subr.mxu0 0.0
  %4834 = vmatpush1.msra.mxu0 0.0
  %4835 = vmatprep.subr.mxu0 0.0
  %4836 = vmatpush1.msra.mxu0 0.0
  %4837 = vmatprep.subr.mxu0 0.0
  %4838 = vmatpush1.msra.mxu0 0.0
  %4839 = vmatprep.subr.mxu0 0.0
  %4840 = vmatpush1.msra.mxu0 0.0
  %4841 = vmatprep.mubr.f32.mxu0 0.0
  %4842 = vmatmul.mubr.f32.gmra.mrb[0].mxu0 %v4700
  %v4843 = vpop.f32.mrb[0].mxu0
  %v4844 = vadd.f32 0.0, %v4843
  %v4845 = vpop.f32.mrb[0].mxu0
  %v4846 = vadd.f32 0.0, %v4845
  %4847 = vdwg.mxu0
  %v4848 = vadd.f32 %v4702, %v4773
  %v4849 = vadd.f32 %v4703, %v4775
  %v4850 = vadd.f32 %v4704, %v4844
  %v4851 = vadd.f32 %v4705, %v4846
  %v4852 = vtanh.pop %v4848
  %v4853 = vmul.f32 %v4852, 0.5
  %v4854 = vadd.f32 %v4853, 0.5
  %v4855 = vtanh.pop %v4849
  %v4856 = vmul.f32 %v4855, 0.5
  %v4857 = vadd.f32 %v4856, 0.5
  %v4858 = vtanh.pop %v4850
  %v4859 = vtanh.pop %v4851
  %v4860 = vmul.f32 %v4859, 0.5
  %v4861 = vadd.f32 %v4860, 0.5
  %v4862 = vmul.f32 %v4857, %v4698
  %v4863 = vmul.f32 %v4854, %v4858
  %v4864 = vadd.f32 %v4862, %v4863
  %v4865 = vtanh.pop %v4864
  %v4866 = vmul.f32 %v4861, %v4865
  %s4867 = scalar_lea.vmem [#allocation3], 224
  %v4868 = vld [vmem:[%s4867] sm:$0xff]
  %v4869 = vld [vmem:[%s4867 + $0x8] sm:$0xff]
  %v4870 = vld [vmem:[%s4867 + $0x10] sm:$0xff]
  %v4871 = vld [vmem:[%s4867 + $0x18] sm:$0xff]
  %4872 = vmatprep.subr.mxu0 %v3643
  %4873 = vmatpush1.msra.mxu0 %v3642
  %4874 = vmatprep.subr.mxu0 %v3647
  %4875 = vmatpush1.msra.mxu0 %v3646
  %4876 = vmatprep.subr.mxu0 %v3651
  %4877 = vmatpush1.msra.mxu0 %v3650
  %4878 = vmatprep.subr.mxu0 %v3655
  %4879 = vmatpush1.msra.mxu0 %v3654
  %4880 = vmatprep.subr.mxu0 %v3659
  %4881 = vmatpush1.msra.mxu0 %v3658
  %4882 = vmatprep.subr.mxu0 %v3663
  %4883 = vmatpush1.msra.mxu0 %v3662
  %4884 = vmatprep.subr.mxu0 %v3667
  %4885 = vmatpush1.msra.mxu0 %v3666
  %4886 = vmatprep.subr.mxu0 %v3671
  %4887 = vmatpush1.msra.mxu0 %v3670
  %4888 = vmatprep.subr.mxu0 %v3675
  %4889 = vmatpush1.msra.mxu0 %v3674
  %4890 = vmatprep.subr.mxu0 %v3679
  %4891 = vmatpush1.msra.mxu0 %v3678
  %4892 = vmatprep.subr.mxu0 %v3683
  %4893 = vmatpush1.msra.mxu0 %v3682
  %4894 = vmatprep.subr.mxu0 %v3687
  %4895 = vmatpush1.msra.mxu0 %v3686
  %4896 = vmatprep.subr.mxu0 %v3691
  %4897 = vmatpush1.msra.mxu0 %v3690
  %4898 = vmatprep.subr.mxu0 %v3695
  %4899 = vmatpush1.msra.mxu0 %v3694
  %4900 = vmatprep.subr.mxu0 %v3699
  %4901 = vmatpush1.msra.mxu0 %v3698
  %4902 = vmatprep.subr.mxu0 %v3703
  %4903 = vmatpush1.msra.mxu0 %v3702
  %4904 = vmatprep.subr.mxu0 0.0
  %4905 = vmatpush1.msra.mxu0 0.0
  %4906 = vmatprep.subr.mxu0 0.0
  %4907 = vmatpush1.msra.mxu0 0.0
  %4908 = vmatprep.subr.mxu0 0.0
  %4909 = vmatpush1.msra.mxu0 0.0
  %4910 = vmatprep.subr.mxu0 0.0
  %4911 = vmatpush1.msra.mxu0 0.0
  %4912 = vmatprep.subr.mxu0 0.0
  %4913 = vmatpush1.msra.mxu0 0.0
  %4914 = vmatprep.subr.mxu0 0.0
  %4915 = vmatpush1.msra.mxu0 0.0
  %4916 = vmatprep.subr.mxu0 0.0
  %4917 = vmatpush1.msra.mxu0 0.0
  %4918 = vmatprep.subr.mxu0 0.0
  %4919 = vmatpush1.msra.mxu0 0.0
  %4920 = vmatprep.subr.mxu0 0.0
  %4921 = vmatpush1.msra.mxu0 0.0
  %4922 = vmatprep.subr.mxu0 0.0
  %4923 = vmatpush1.msra.mxu0 0.0
  %4924 = vmatprep.subr.mxu0 0.0
  %4925 = vmatpush1.msra.mxu0 0.0
  %4926 = vmatprep.subr.mxu0 0.0
  %4927 = vmatpush1.msra.mxu0 0.0
  %4928 = vmatprep.subr.mxu0 0.0
  %4929 = vmatpush1.msra.mxu0 0.0
  %4930 = vmatprep.subr.mxu0 0.0
  %4931 = vmatpush1.msra.mxu0 0.0
  %4932 = vmatprep.subr.mxu0 0.0
  %4933 = vmatpush1.msra.mxu0 0.0
  %4934 = vmatprep.subr.mxu0 0.0
  %4935 = vmatpush1.msra.mxu0 0.0
  %4936 = vmatprep.mubr.f32.mxu0 0.0
  %4937 = vmatmul.mubr.f32.gmra.mrb[0].mxu0 %v4866
  %v4938 = vpop.f32.mrb[0].mxu0
  %v4939 = vadd.f32 0.0, %v4938
  %v4940 = vpop.f32.mrb[0].mxu0
  %v4941 = vadd.f32 0.0, %v4940
  %4942 = vdwg.mxu0
  %4943 = vmatprep.subr.mxu0 %v3645
  %4944 = vmatpush1.msra.mxu0 %v3644
  %4945 = vmatprep.subr.mxu0 %v3649
  %4946 = vmatpush1.msra.mxu0 %v3648
  %4947 = vmatprep.subr.mxu0 %v3653
  %4948 = vmatpush1.msra.mxu0 %v3652
  %4949 = vmatprep.subr.mxu0 %v3657
  %4950 = vmatpush1.msra.mxu0 %v3656
  %4951 = vmatprep.subr.mxu0 %v3661
  %4952 = vmatpush1.msra.mxu0 %v3660
  %4953 = vmatprep.subr.mxu0 %v3665
  %4954 = vmatpush1.msra.mxu0 %v3664
  %4955 = vmatprep.subr.mxu0 %v3669
  %4956 = vmatpush1.msra.mxu0 %v3668
  %4957 = vmatprep.subr.mxu0 %v3673
  %4958 = vmatpush1.msra.mxu0 %v3672
  %4959 = vmatprep.subr.mxu0 %v3677
  %4960 = vmatpush1.msra.mxu0 %v3676
  %4961 = vmatprep.subr.mxu0 %v3681
  %4962 = vmatpush1.msra.mxu0 %v3680
  %4963 = vmatprep.subr.mxu0 %v3685
  %4964 = vmatpush1.msra.mxu0 %v3684
  %4965 = vmatprep.subr.mxu0 %v3689
  %4966 = vmatpush1.msra.mxu0 %v3688
  %4967 = vmatprep.subr.mxu0 %v3693
  %4968 = vmatpush1.msra.mxu0 %v3692
  %4969 = vmatprep.subr.mxu0 %v3697
  %4970 = vmatpush1.msra.mxu0 %v3696
  %4971 = vmatprep.subr.mxu0 %v3701
  %4972 = vmatpush1.msra.mxu0 %v3700
  %4973 = vmatprep.subr.mxu0 %v3705
  %4974 = vmatpush1.msra.mxu0 %v3704
  %4975 = vmatprep.subr.mxu0 0.0
  %4976 = vmatpush1.msra.mxu0 0.0
  %4977 = vmatprep.subr.mxu0 0.0
  %4978 = vmatpush1.msra.mxu0 0.0
  %4979 = vmatprep.subr.mxu0 0.0
  %4980 = vmatpush1.msra.mxu0 0.0
  %4981 = vmatprep.subr.mxu0 0.0
  %4982 = vmatpush1.msra.mxu0 0.0
  %4983 = vmatprep.subr.mxu0 0.0
  %4984 = vmatpush1.msra.mxu0 0.0
  %4985 = vmatprep.subr.mxu0 0.0
  %4986 = vmatpush1.msra.mxu0 0.0
  %4987 = vmatprep.subr.mxu0 0.0
  %4988 = vmatpush1.msra.mxu0 0.0
  %4989 = vmatprep.subr.mxu0 0.0
  %4990 = vmatpush1.msra.mxu0 0.0
  %4991 = vmatprep.subr.mxu0 0.0
  %4992 = vmatpush1.msra.mxu0 0.0
  %4993 = vmatprep.subr.mxu0 0.0
  %4994 = vmatpush1.msra.mxu0 0.0
  %4995 = vmatprep.subr.mxu0 0.0
  %4996 = vmatpush1.msra.mxu0 0.0
  %4997 = vmatprep.subr.mxu0 0.0
  %4998 = vmatpush1.msra.mxu0 0.0
  %4999 = vmatprep.subr.mxu0 0.0
  %5000 = vmatpush1.msra.mxu0 0.0
  %5001 = vmatprep.subr.mxu0 0.0
  %5002 = vmatpush1.msra.mxu0 0.0
  %5003 = vmatprep.subr.mxu0 0.0
  %5004 = vmatpush1.msra.mxu0 0.0
  %5005 = vmatprep.subr.mxu0 0.0
  %5006 = vmatpush1.msra.mxu0 0.0
  %5007 = vmatprep.mubr.f32.mxu0 0.0
  %5008 = vmatmul.mubr.f32.gmra.mrb[0].mxu0 %v4866
  %v5009 = vpop.f32.mrb[0].mxu0
  %v5010 = vadd.f32 0.0, %v5009
  %v5011 = vpop.f32.mrb[0].mxu0
  %v5012 = vadd.f32 0.0, %v5011
  %5013 = vdwg.mxu0
  %v5014 = vadd.f32 %v4868, %v4939
  %v5015 = vadd.f32 %v4869, %v4941
  %v5016 = vadd.f32 %v4870, %v5010
  %v5017 = vadd.f32 %v4871, %v5012
  %v5018 = vtanh.pop %v5014
  %v5019 = vmul.f32 %v5018, 0.5
  %v5020 = vadd.f32 %v5019, 0.5
  %v5021 = vtanh.pop %v5015
  %v5022 = vmul.f32 %v5021, 0.5
  %v5023 = vadd.f32 %v5022, 0.5
  %v5024 = vtanh.pop %v5016
  %v5025 = vtanh.pop %v5017
  %v5026 = vmul.f32 %v5025, 0.5
  %v5027 = vadd.f32 %v5026, 0.5
  %v5028 = vmul.f32 %v5023, %v4864
  %v5029 = vmul.f32 %v5020, %v5024
  %v5030 = vadd.f32 %v5028, %v5029
  %v5031 = vtanh.pop %v5030
  %v5032 = vmul.f32 %v5027, %v5031
  %v5033 = vld [vmem:[%s740] sm:$0xff]
  %v5034 = vld [vmem:[%s740 + $0x8] sm:$0xff]
  %v5035 = vld [vmem:[%s9] sm:$0xff]
  %v5036 = vld [vmem:[%s9 + $0x8] sm:$0xff]
  %v5037 = vld [vmem:[%s9 + $0x10] sm:$0xff]
  %v5038 = vld [vmem:[%s9 + $0x18] sm:$0xff]
  %v5039 = vld [vmem:[%s9 + $0x20] sm:$0xff]
  %v5040 = vld [vmem:[%s9 + $0x28] sm:$0xff]
  %v5041 = vld [vmem:[%s9 + $0x30] sm:$0xff]
  %v5042 = vld [vmem:[%s9 + $0x38] sm:$0xff]
  %v5043 = vld [vmem:[%s9 + $0x40] sm:$0xff]
  %v5044 = vld [vmem:[%s9 + $0x48] sm:$0xff]
  %v5045 = vld [vmem:[%s9 + $0x50] sm:$0xff]
  %v5046 = vld [vmem:[%s9 + $0x58] sm:$0xff]
  %v5047 = vld [vmem:[%s9 + $0x60] sm:$0xff]
  %v5048 = vld [vmem:[%s9 + $0x68] sm:$0xff]
  %v5049 = vld [vmem:[%s9 + $0x70] sm:$0xff]
  %v5050 = vld [vmem:[%s9 + $0x78] sm:$0xff]
  %v5051 = vld [vmem:[%s9 + $0x80] sm:$0xff]
  %v5052 = vld [vmem:[%s9 + $0x88] sm:$0xff]
  %v5053 = vld [vmem:[%s9 + $0x90] sm:$0xff]
  %v5054 = vld [vmem:[%s9 + $0x98] sm:$0xff]
  %v5055 = vld [vmem:[%s9 + $0xa0] sm:$0xff]
  %v5056 = vld [vmem:[%s9 + $0xa8] sm:$0xff]
  %v5057 = vld [vmem:[%s9 + $0xb0] sm:$0xff]
  %v5058 = vld [vmem:[%s9 + $0xb8] sm:$0xff]
  %v5059 = vld [vmem:[%s9 + $0xc0] sm:$0xff]
  %v5060 = vld [vmem:[%s9 + $0xc8] sm:$0xff]
  %v5061 = vld [vmem:[%s9 + $0xd0] sm:$0xff]
  %v5062 = vld [vmem:[%s9 + $0xd8] sm:$0xff]
  %v5063 = vld [vmem:[%s9 + $0xe0] sm:$0xff]
  %v5064 = vld [vmem:[%s9 + $0xe8] sm:$0xff]
  %v5065 = vld [vmem:[%s9 + $0xf0] sm:$0xff]
  %v5066 = vld [vmem:[%s9 + $0xf8] sm:$0xff]
  %v5067 = vld [vmem:[%s9 + $0x100] sm:$0xff]
  %v5068 = vld [vmem:[%s9 + $0x108] sm:$0xff]
  %v5069 = vld [vmem:[%s9 + $0x110] sm:$0xff]
  %v5070 = vld [vmem:[%s9 + $0x118] sm:$0xff]
  %v5071 = vld [vmem:[%s9 + $0x120] sm:$0xff]
  %v5072 = vld [vmem:[%s9 + $0x128] sm:$0xff]
  %v5073 = vld [vmem:[%s9 + $0x130] sm:$0xff]
  %v5074 = vld [vmem:[%s9 + $0x138] sm:$0xff]
  %v5075 = vld [vmem:[%s9 + $0x140] sm:$0xff]
  %v5076 = vld [vmem:[%s9 + $0x148] sm:$0xff]
  %v5077 = vld [vmem:[%s9 + $0x150] sm:$0xff]
  %v5078 = vld [vmem:[%s9 + $0x158] sm:$0xff]
  %v5079 = vld [vmem:[%s9 + $0x160] sm:$0xff]
  %v5080 = vld [vmem:[%s9 + $0x168] sm:$0xff]
  %v5081 = vld [vmem:[%s9 + $0x170] sm:$0xff]
  %v5082 = vld [vmem:[%s9 + $0x178] sm:$0xff]
  %v5083 = vld [vmem:[%s9 + $0x180] sm:$0xff]
  %v5084 = vld [vmem:[%s9 + $0x188] sm:$0xff]
  %v5085 = vld [vmem:[%s9 + $0x190] sm:$0xff]
  %v5086 = vld [vmem:[%s9 + $0x198] sm:$0xff]
  %v5087 = vld [vmem:[%s9 + $0x1a0] sm:$0xff]
  %v5088 = vld [vmem:[%s9 + $0x1a8] sm:$0xff]
  %v5089 = vld [vmem:[%s9 + $0x1b0] sm:$0xff]
  %v5090 = vld [vmem:[%s9 + $0x1b8] sm:$0xff]
  %v5091 = vld [vmem:[%s9 + $0x1c0] sm:$0xff]
  %v5092 = vld [vmem:[%s9 + $0x1c8] sm:$0xff]
  %v5093 = vld [vmem:[%s9 + $0x1d0] sm:$0xff]
  %v5094 = vld [vmem:[%s9 + $0x1d8] sm:$0xff]
  %v5095 = vld [vmem:[%s9 + $0x1e0] sm:$0xff]
  %v5096 = vld [vmem:[%s9 + $0x1e8] sm:$0xff]
  %v5097 = vld [vmem:[%s9 + $0x1f0] sm:$0xff]
  %v5098 = vld [vmem:[%s9 + $0x1f8] sm:$0xff]
  %v5099 = vld [vmem:[%s9 + $0x200] sm:$0xff]
  %v5100 = vld [vmem:[%s9 + $0x208] sm:$0xff]
  %v5101 = vld [vmem:[%s9 + $0x210] sm:$0xff]
  %v5102 = vld [vmem:[%s9 + $0x218] sm:$0xff]
  %v5103 = vld [vmem:[%s9 + $0x220] sm:$0xff]
  %v5104 = vld [vmem:[%s9 + $0x228] sm:$0xff]
  %v5105 = vld [vmem:[%s9 + $0x230] sm:$0xff]
  %v5106 = vld [vmem:[%s9 + $0x238] sm:$0xff]
  %v5107 = vld [vmem:[%s9 + $0x240] sm:$0xff]
  %v5108 = vld [vmem:[%s9 + $0x248] sm:$0xff]
  %v5109 = vld [vmem:[%s9 + $0x250] sm:$0xff]
  %v5110 = vld [vmem:[%s9 + $0x258] sm:$0xff]
  %v5111 = vld [vmem:[%s9 + $0x260] sm:$0xff]
  %v5112 = vld [vmem:[%s9 + $0x268] sm:$0xff]
  %v5113 = vld [vmem:[%s9 + $0x270] sm:$0xff]
  %v5114 = vld [vmem:[%s9 + $0x278] sm:$0xff]
  %v5115 = vld [vmem:[%s9 + $0x280] sm:$0xff]
  %v5116 = vld [vmem:[%s9 + $0x288] sm:$0xff]
  %v5117 = vld [vmem:[%s9 + $0x290] sm:$0xff]
  %v5118 = vld [vmem:[%s9 + $0x298] sm:$0xff]
  %v5119 = vld [vmem:[%s9 + $0x2a0] sm:$0xff]
  %v5120 = vld [vmem:[%s9 + $0x2a8] sm:$0xff]
  %v5121 = vld [vmem:[%s9 + $0x2b0] sm:$0xff]
  %v5122 = vld [vmem:[%s9 + $0x2b8] sm:$0xff]
  %v5123 = vld [vmem:[%s9 + $0x2c0] sm:$0xff]
  %v5124 = vld [vmem:[%s9 + $0x2c8] sm:$0xff]
  %v5125 = vld [vmem:[%s9 + $0x2d0] sm:$0xff]
  %v5126 = vld [vmem:[%s9 + $0x2d8] sm:$0xff]
  %v5127 = vld [vmem:[%s9 + $0x2e0] sm:$0xff]
  %v5128 = vld [vmem:[%s9 + $0x2e8] sm:$0xff]
  %v5129 = vld [vmem:[%s9 + $0x2f0] sm:$0xff]
  %v5130 = vld [vmem:[%s9 + $0x2f8] sm:$0xff]
  %v5131 = vld [vmem:[%s9 + $0x300] sm:$0xff]
  %v5132 = vld [vmem:[%s9 + $0x308] sm:$0xff]
  %v5133 = vld [vmem:[%s9 + $0x310] sm:$0xff]
  %v5134 = vld [vmem:[%s9 + $0x318] sm:$0xff]
  %v5135 = vld [vmem:[%s9 + $0x320] sm:$0xff]
  %v5136 = vld [vmem:[%s9 + $0x328] sm:$0xff]
  %v5137 = vld [vmem:[%s9 + $0x330] sm:$0xff]
  %v5138 = vld [vmem:[%s9 + $0x338] sm:$0xff]
  %v5139 = vld [vmem:[%s9 + $0x340] sm:$0xff]
  %v5140 = vld [vmem:[%s9 + $0x348] sm:$0xff]
  %v5141 = vld [vmem:[%s9 + $0x350] sm:$0xff]
  %v5142 = vld [vmem:[%s9 + $0x358] sm:$0xff]
  %v5143 = vld [vmem:[%s9 + $0x360] sm:$0xff]
  %v5144 = vld [vmem:[%s9 + $0x368] sm:$0xff]
  %v5145 = vld [vmem:[%s9 + $0x370] sm:$0xff]
  %v5146 = vld [vmem:[%s9 + $0x378] sm:$0xff]
  %v5147 = vld [vmem:[%s9 + $0x380] sm:$0xff]
  %v5148 = vld [vmem:[%s9 + $0x388] sm:$0xff]
  %v5149 = vld [vmem:[%s9 + $0x390] sm:$0xff]
  %v5150 = vld [vmem:[%s9 + $0x398] sm:$0xff]
  %v5151 = vld [vmem:[%s9 + $0x3a0] sm:$0xff]
  %v5152 = vld [vmem:[%s9 + $0x3a8] sm:$0xff]
  %v5153 = vld [vmem:[%s9 + $0x3b0] sm:$0xff]
  %v5154 = vld [vmem:[%s9 + $0x3b8] sm:$0xff]
  %v5155 = vld [vmem:[%s9 + $0x3c0] sm:$0xff]
  %v5156 = vld [vmem:[%s9 + $0x3c8] sm:$0xff]
  %v5157 = vld [vmem:[%s9 + $0x3d0] sm:$0xff]
  %v5158 = vld [vmem:[%s9 + $0x3d8] sm:$0xff]
  %v5159 = vld [vmem:[%s9 + $0x3e0] sm:$0xff]
  %v5160 = vld [vmem:[%s9 + $0x3e8] sm:$0xff]
  %v5161 = vld [vmem:[%s9 + $0x3f0] sm:$0xff]
  %v5162 = vld [vmem:[%s9 + $0x3f8] sm:$0xff]
  %v5163 = vld [vmem:[%s10] sm:$0xf]
  %v5165 = vlaneseq
  %v5166 = vshrl.u32 %v5165, 7
  %v5167 = vsub.s32 0, %v5166
  %v5168 = vrot.slane %v5163, %v5167
  %v5169 = vlaneseq
  %v5170 = vshrl.u32 %v5169, 7
  %v5171 = vsub.s32 1, %v5170
  %v5172 = vrot.slane %v5163, %v5171
  %v5173 = vlaneseq
  %v5174 = vshrl.u32 %v5173, 7
  %v5175 = vsub.s32 2, %v5174
  %v5176 = vrot.slane %v5163, %v5175
  %v5177 = vlaneseq
  %v5178 = vshrl.u32 %v5177, 7
  %v5179 = vsub.s32 3, %v5178
  %v5180 = vrot.slane %v5163, %v5179
  %5185 = vmatprep.subr.mxu0 %v5036
  %5186 = vmatpush1.msra.mxu0 %v5035
  %5187 = vmatprep.subr.mxu0 %v5040
  %5188 = vmatpush1.msra.mxu0 %v5039
  %5189 = vmatprep.subr.mxu0 %v5044
  %5190 = vmatpush1.msra.mxu0 %v5043
  %5191 = vmatprep.subr.mxu0 %v5048
  %5192 = vmatpush1.msra.mxu0 %v5047
  %5193 = vmatprep.subr.mxu0 %v5052
  %5194 = vmatpush1.msra.mxu0 %v5051
  %5195 = vmatprep.subr.mxu0 %v5056
  %5196 = vmatpush1.msra.mxu0 %v5055
  %5197 = vmatprep.subr.mxu0 %v5060
  %5198 = vmatpush1.msra.mxu0 %v5059
  %5199 = vmatprep.subr.mxu0 %v5064
  %5200 = vmatpush1.msra.mxu0 %v5063
  %5201 = vmatprep.subr.mxu0 %v5068
  %5202 = vmatpush1.msra.mxu0 %v5067
  %5203 = vmatprep.subr.mxu0 %v5072
  %5204 = vmatpush1.msra.mxu0 %v5071
  %5205 = vmatprep.subr.mxu0 %v5076
  %5206 = vmatpush1.msra.mxu0 %v5075
  %5207 = vmatprep.subr.mxu0 %v5080
  %5208 = vmatpush1.msra.mxu0 %v5079
  %5209 = vmatprep.subr.mxu0 %v5084
  %5210 = vmatpush1.msra.mxu0 %v5083
  %5211 = vmatprep.subr.mxu0 %v5088
  %5212 = vmatpush1.msra.mxu0 %v5087
  %5213 = vmatprep.subr.mxu0 %v5092
  %5214 = vmatpush1.msra.mxu0 %v5091
  %5215 = vmatprep.subr.mxu0 %v5096
  %5216 = vmatpush1.msra.mxu0 %v5095
  %5217 = vmatprep.subr.mxu0 %v5100
  %5218 = vmatpush1.msra.mxu0 %v5099
  %5219 = vmatprep.subr.mxu0 %v5104
  %5220 = vmatpush1.msra.mxu0 %v5103
  %5221 = vmatprep.subr.mxu0 %v5108
  %5222 = vmatpush1.msra.mxu0 %v5107
  %5223 = vmatprep.subr.mxu0 %v5112
  %5224 = vmatpush1.msra.mxu0 %v5111
  %5225 = vmatprep.subr.mxu0 %v5116
  %5226 = vmatpush1.msra.mxu0 %v5115
  %5227 = vmatprep.subr.mxu0 %v5120
  %5228 = vmatpush1.msra.mxu0 %v5119
  %5229 = vmatprep.subr.mxu0 %v5124
  %5230 = vmatpush1.msra.mxu0 %v5123
  %5231 = vmatprep.subr.mxu0 %v5128
  %5232 = vmatpush1.msra.mxu0 %v5127
  %5233 = vmatprep.subr.mxu0 %v5132
  %5234 = vmatpush1.msra.mxu0 %v5131
  %5235 = vmatprep.subr.mxu0 %v5136
  %5236 = vmatpush1.msra.mxu0 %v5135
  %5237 = vmatprep.subr.mxu0 %v5140
  %5238 = vmatpush1.msra.mxu0 %v5139
  %5239 = vmatprep.subr.mxu0 %v5144
  %5240 = vmatpush1.msra.mxu0 %v5143
  %5241 = vmatprep.subr.mxu0 %v5148
  %5242 = vmatpush1.msra.mxu0 %v5147
  %5243 = vmatprep.subr.mxu0 %v5152
  %5244 = vmatpush1.msra.mxu0 %v5151
  %5245 = vmatprep.subr.mxu0 %v5156
  %5246 = vmatpush1.msra.mxu0 %v5155
  %5247 = vmatprep.subr.mxu0 %v5160
  %5248 = vmatpush1.msra.mxu0 %v5159
  %5249 = vmatprep.mubr.f32.mxu0 %v5034
  %5250 = vmatmul.mubr.f32.gmra.mrb[0].mxu0 %v5033
  %v5251 = vpop.f32.mrb[0].mxu0
  %v5252 = vadd.f32 %v5168, %v5251
  %v5253 = vpop.f32.mrb[0].mxu0
  %v5254 = vadd.f32 %v5172, %v5253
  %5255 = vdwg.mxu0
  %5256 = vmatprep.subr.mxu0 %v5038
  %5257 = vmatpush1.msra.mxu0 %v5037
  %5258 = vmatprep.subr.mxu0 %v5042
  %5259 = vmatpush1.msra.mxu0 %v5041
  %5260 = vmatprep.subr.mxu0 %v5046
  %5261 = vmatpush1.msra.mxu0 %v5045
  %5262 = vmatprep.subr.mxu0 %v5050
  %5263 = vmatpush1.msra.mxu0 %v5049
  %5264 = vmatprep.subr.mxu0 %v5054
  %5265 = vmatpush1.msra.mxu0 %v5053
  %5266 = vmatprep.subr.mxu0 %v5058
  %5267 = vmatpush1.msra.mxu0 %v5057
  %5268 = vmatprep.subr.mxu0 %v5062
  %5269 = vmatpush1.msra.mxu0 %v5061
  %5270 = vmatprep.subr.mxu0 %v5066
  %5271 = vmatpush1.msra.mxu0 %v5065
  %5272 = vmatprep.subr.mxu0 %v5070
  %5273 = vmatpush1.msra.mxu0 %v5069
  %5274 = vmatprep.subr.mxu0 %v5074
  %5275 = vmatpush1.msra.mxu0 %v5073
  %5276 = vmatprep.subr.mxu0 %v5078
  %5277 = vmatpush1.msra.mxu0 %v5077
  %5278 = vmatprep.subr.mxu0 %v5082
  %5279 = vmatpush1.msra.mxu0 %v5081
  %5280 = vmatprep.subr.mxu0 %v5086
  %5281 = vmatpush1.msra.mxu0 %v5085
  %5282 = vmatprep.subr.mxu0 %v5090
  %5283 = vmatpush1.msra.mxu0 %v5089
  %5284 = vmatprep.subr.mxu0 %v5094
  %5285 = vmatpush1.msra.mxu0 %v5093
  %5286 = vmatprep.subr.mxu0 %v5098
  %5287 = vmatpush1.msra.mxu0 %v5097
  %5288 = vmatprep.subr.mxu0 %v5102
  %5289 = vmatpush1.msra.mxu0 %v5101
  %5290 = vmatprep.subr.mxu0 %v5106
  %5291 = vmatpush1.msra.mxu0 %v5105
  %5292 = vmatprep.subr.mxu0 %v5110
  %5293 = vmatpush1.msra.mxu0 %v5109
  %5294 = vmatprep.subr.mxu0 %v5114
  %5295 = vmatpush1.msra.mxu0 %v5113
  %5296 = vmatprep.subr.mxu0 %v5118
  %5297 = vmatpush1.msra.mxu0 %v5117
  %5298 = vmatprep.subr.mxu0 %v5122
  %5299 = vmatpush1.msra.mxu0 %v5121
  %5300 = vmatprep.subr.mxu0 %v5126
  %5301 = vmatpush1.msra.mxu0 %v5125
  %5302 = vmatprep.subr.mxu0 %v5130
  %5303 = vmatpush1.msra.mxu0 %v5129
  %5304 = vmatprep.subr.mxu0 %v5134
  %5305 = vmatpush1.msra.mxu0 %v5133
  %5306 = vmatprep.subr.mxu0 %v5138
  %5307 = vmatpush1.msra.mxu0 %v5137
  %5308 = vmatprep.subr.mxu0 %v5142
  %5309 = vmatpush1.msra.mxu0 %v5141
  %5310 = vmatprep.subr.mxu0 %v5146
  %5311 = vmatpush1.msra.mxu0 %v5145
  %5312 = vmatprep.subr.mxu0 %v5150
  %5313 = vmatpush1.msra.mxu0 %v5149
  %5314 = vmatprep.subr.mxu0 %v5154
  %5315 = vmatpush1.msra.mxu0 %v5153
  %5316 = vmatprep.subr.mxu0 %v5158
  %5317 = vmatpush1.msra.mxu0 %v5157
  %5318 = vmatprep.subr.mxu0 %v5162
  %5319 = vmatpush1.msra.mxu0 %v5161
  %5320 = vmatprep.mubr.f32.mxu0 %v5034
  %5321 = vmatmul.mubr.f32.gmra.mrb[0].mxu0 %v5033
  %v5322 = vpop.f32.mrb[0].mxu0
  %v5323 = vadd.f32 %v5176, %v5322
  %v5324 = vpop.f32.mrb[0].mxu0
  %v5325 = vadd.f32 %v5180, %v5324
  %5326 = vdwg.mxu0
  %v5327 = vtanh.pop %v5252
  %v5328 = vmul.f32 %v5327, 0.5
  %v5329 = vadd.f32 %v5328, 0.5
  %v5330 = vtanh.pop %v5254
  %v5331 = vmul.f32 %v5330, 0.5
  %v5332 = vadd.f32 %v5331, 0.5
  %v5333 = vtanh.pop %v5323
  %v5334 = vtanh.pop %v5325
  %v5335 = vmul.f32 %v5334, 0.5
  %v5336 = vadd.f32 %v5335, 0.5
  %v5337 = vmul.f32 %v5332, 0.0
  %v5338 = vmul.f32 %v5329, %v5333
  %v5339 = vadd.f32 %v5337, %v5338
  %v5340 = vtanh.pop %v5339
  %v5341 = vmul.f32 %v5336, %v5340
  %v5342 = vld [vmem:[%s11] sm:$0xff]
  %v5343 = vld [vmem:[%s11 + $0x8] sm:$0xff]
  %v5344 = vld [vmem:[%s11 + $0x10] sm:$0xff]
  %v5345 = vld [vmem:[%s11 + $0x18] sm:$0xff]
  %v5346 = vld [vmem:[%s11 + $0x20] sm:$0xff]
  %v5347 = vld [vmem:[%s11 + $0x28] sm:$0xff]
  %v5348 = vld [vmem:[%s11 + $0x30] sm:$0xff]
  %v5349 = vld [vmem:[%s11 + $0x38] sm:$0xff]
  %v5350 = vld [vmem:[%s11 + $0x40] sm:$0xff]
  %v5351 = vld [vmem:[%s11 + $0x48] sm:$0xff]
  %v5352 = vld [vmem:[%s11 + $0x50] sm:$0xff]
  %v5353 = vld [vmem:[%s11 + $0x58] sm:$0xff]
  %v5354 = vld [vmem:[%s11 + $0x60] sm:$0xff]
  %v5355 = vld [vmem:[%s11 + $0x68] sm:$0xff]
  %v5356 = vld [vmem:[%s11 + $0x70] sm:$0xff]
  %v5357 = vld [vmem:[%s11 + $0x78] sm:$0xff]
  %v5358 = vld [vmem:[%s11 + $0x80] sm:$0xff]
  %v5359 = vld [vmem:[%s11 + $0x88] sm:$0xff]
  %v5360 = vld [vmem:[%s11 + $0x90] sm:$0xff]
  %v5361 = vld [vmem:[%s11 + $0x98] sm:$0xff]
  %v5362 = vld [vmem:[%s11 + $0xa0] sm:$0xff]
  %v5363 = vld [vmem:[%s11 + $0xa8] sm:$0xff]
  %v5364 = vld [vmem:[%s11 + $0xb0] sm:$0xff]
  %v5365 = vld [vmem:[%s11 + $0xb8] sm:$0xff]
  %v5366 = vld [vmem:[%s11 + $0xc0] sm:$0xff]
  %v5367 = vld [vmem:[%s11 + $0xc8] sm:$0xff]
  %v5368 = vld [vmem:[%s11 + $0xd0] sm:$0xff]
  %v5369 = vld [vmem:[%s11 + $0xd8] sm:$0xff]
  %v5370 = vld [vmem:[%s11 + $0xe0] sm:$0xff]
  %v5371 = vld [vmem:[%s11 + $0xe8] sm:$0xff]
  %v5372 = vld [vmem:[%s11 + $0xf0] sm:$0xff]
  %v5373 = vld [vmem:[%s11 + $0xf8] sm:$0xff]
  %v5374 = vld [vmem:[%s12] sm:$0x1]
  %v5376 = vlaneseq
  %v5377 = vshrl.u32 %v5376, 7
  %v5378 = vsub.s32 0, %v5377
  %v5379 = vrot.slane %v5374, %v5378
  %5381 = vmatprep.subr.mxu0 0.0
  %5382 = vmatpush1.msra.mxu0 %v5342
  %5383 = vmatprep.subr.mxu0 0.0
  %5384 = vmatpush1.msra.mxu0 %v5343
  %5385 = vmatprep.subr.mxu0 0.0
  %5386 = vmatpush1.msra.mxu0 %v5344
  %5387 = vmatprep.subr.mxu0 0.0
  %5388 = vmatpush1.msra.mxu0 %v5345
  %5389 = vmatprep.subr.mxu0 0.0
  %5390 = vmatpush1.msra.mxu0 %v5346
  %5391 = vmatprep.subr.mxu0 0.0
  %5392 = vmatpush1.msra.mxu0 %v5347
  %5393 = vmatprep.subr.mxu0 0.0
  %5394 = vmatpush1.msra.mxu0 %v5348
  %5395 = vmatprep.subr.mxu0 0.0
  %5396 = vmatpush1.msra.mxu0 %v5349
  %5397 = vmatprep.subr.mxu0 0.0
  %5398 = vmatpush1.msra.mxu0 %v5350
  %5399 = vmatprep.subr.mxu0 0.0
  %5400 = vmatpush1.msra.mxu0 %v5351
  %5401 = vmatprep.subr.mxu0 0.0
  %5402 = vmatpush1.msra.mxu0 %v5352
  %5403 = vmatprep.subr.mxu0 0.0
  %5404 = vmatpush1.msra.mxu0 %v5353
  %5405 = vmatprep.subr.mxu0 0.0
  %5406 = vmatpush1.msra.mxu0 %v5354
  %5407 = vmatprep.subr.mxu0 0.0
  %5408 = vmatpush1.msra.mxu0 %v5355
  %5409 = vmatprep.subr.mxu0 0.0
  %5410 = vmatpush1.msra.mxu0 %v5356
  %5411 = vmatprep.subr.mxu0 0.0
  %5412 = vmatpush1.msra.mxu0 %v5357
  %5413 = vmatprep.subr.mxu0 0.0
  %5414 = vmatpush1.msra.mxu0 %v5358
  %5415 = vmatprep.subr.mxu0 0.0
  %5416 = vmatpush1.msra.mxu0 %v5359
  %5417 = vmatprep.subr.mxu0 0.0
  %5418 = vmatpush1.msra.mxu0 %v5360
  %5419 = vmatprep.subr.mxu0 0.0
  %5420 = vmatpush1.msra.mxu0 %v5361
  %5421 = vmatprep.subr.mxu0 0.0
  %5422 = vmatpush1.msra.mxu0 %v5362
  %5423 = vmatprep.subr.mxu0 0.0
  %5424 = vmatpush1.msra.mxu0 %v5363
  %5425 = vmatprep.subr.mxu0 0.0
  %5426 = vmatpush1.msra.mxu0 %v5364
  %5427 = vmatprep.subr.mxu0 0.0
  %5428 = vmatpush1.msra.mxu0 %v5365
  %5429 = vmatprep.subr.mxu0 0.0
  %5430 = vmatpush1.msra.mxu0 %v5366
  %5431 = vmatprep.subr.mxu0 0.0
  %5432 = vmatpush1.msra.mxu0 %v5367
  %5433 = vmatprep.subr.mxu0 0.0
  %5434 = vmatpush1.msra.mxu0 %v5368
  %5435 = vmatprep.subr.mxu0 0.0
  %5436 = vmatpush1.msra.mxu0 %v5369
  %5437 = vmatprep.subr.mxu0 0.0
  %5438 = vmatpush1.msra.mxu0 %v5370
  %5439 = vmatprep.subr.mxu0 0.0
  %5440 = vmatpush1.msra.mxu0 %v5371
  %5441 = vmatprep.subr.mxu0 0.0
  %5442 = vmatpush1.msra.mxu0 %v5372
  %5443 = vmatprep.subr.mxu0 0.0
  %5444 = vmatpush1.msra.mxu0 %v5373
  %5445 = vmatprep.mubr.f32.mxu0 %v5341
  %5446 = vmatmul.mubr.f32.gmra.mrb[0].mxu0 %v5032
  %v5447 = vpop.f32.mrb[0].mxu0
  %v5448 = vadd.f32 %v5379, %v5447
  %v5449 = vpop.f32.mrb[0].mxu0
  %5450 = vdwg.mxu0
  %v5451 = vxor.u32 %v5448, 2147483648
  %v5452 = vmul.f32 %v5451, 1.442695
  %v5453 = vpow.pop %v5452
  %v5454 = vadd.f32 %v5453, 1.0
  %v5455 = vrcp.pop %v5454
  %v5456 = vmul.f32 1.0, %v5455
  %vm5457 = vcmask 31744
  %5458 = vst.msk [vmem:[%s13] sm:$0xff] %vm5457, %v5456
  // Predicated region
  $region54: #{quadcdd_forward.1} parent=0 // pred_check
    _
  $region55: #{quadcdd_forward.1} parent=0 // pred_check_branch
    %5460 = sbr.rel (0) target = $region57
  $region56: #{quadcdd_forward.1} parent=0 // pred_region
    _
  $region57: #{quadcdd_forward.1} parent=0 // pred_fallthru
    _
  // Predicated region
  $region58: #{quadcdd_forward.1} parent=0 // pred_check
    _
  $region59: #{quadcdd_forward.1} parent=0 // pred_check_branch
    %5462 = sbr.rel (0) target = $region61
  $region60: #{quadcdd_forward.1} parent=0 // pred_region
    _
  $region61: #{quadcdd_forward.1} parent=0 // pred_fallthru
    _

</llo_original>
